<compile_context>
chip_gen: v5e
topology: v5e:2x2
jax: 0.10.0
libtpu: 0.0.40
codegen_flags: <defaults>
</compile_context>

<pallas_src>
import functools

import numpy as np
import jax
import jax.numpy as jnp
from jax.experimental import pallas as pl
from jax.experimental.pallas import tpu as pltpu


# (stride, padding, output_padding, relu-after) for the four ConvTranspose2d.
_DECONV_SPECS = [(2, 1, 1, True), (3, 1, 1, True), (3, 1, 1, True), (1, 1, 0, False)]
_RELU_TAIL = tuple(spec[3] for spec in _DECONV_SPECS[1:])
_LANE = 128


def _round_up(n, m):
    return ((n + m - 1) // m) * m


# ----------------------------------------------------------------------------
# Fused kernel: one grid step processes TB batch elements.
# ----------------------------------------------------------------------------
def _decoder_kernel(z_ref, w0_ref, c0_ref, *rest):
    o_ref = rest[-1]
    layer_refs = rest[:-1]                      # (Bcat, Abig, bias) per tail layer

    def dot(a, b):
        return jnp.dot(a, b, preferred_element_type=jnp.float32)

    # ---- FC head + .view(B,3,4,4) + ConvTranspose2d #1 (pre-folded) --------
    zb = z_ref[0].astype(jnp.bfloat16)                        # (TB, latent)
    f = dot(zb, w0_ref[...]) + c0_ref[...]                    # (TB, 8*128) f32
    n_rows1 = w0_ref.shape[1] // _LANE                        # layer-1 H_out (= 8)
    # 128-aligned lane-block split, stacked rows (h-major, element-minor).
    x = jnp.concatenate(
        [f[:, r * _LANE:(r + 1) * _LANE] for r in range(n_rows1)], axis=0)
    x = jnp.maximum(x, 0.0)                                   # ReLU in f32

    # ---- ConvTranspose2d #2..#4:  Y = Abig @ restack(X @ Bcat) + bias ------
    for l, relu in enumerate(_RELU_TAIL):
        b_ref = layer_refs[3 * l]              # (P_in, 3*P_out)        bf16
        a_ref = layer_refs[3 * l + 1]          # (H_out*TB, 3*H_in*TB)  bf16 (0/1)
        s_ref = layer_refs[3 * l + 2]          # (1, P_out)             f32
        p_out = s_ref.shape[1]
        t = dot(x.astype(jnp.bfloat16), b_ref[...])           # (H_in*TB, 3*P_out)
        zcat = jnp.concatenate(                               # (3*H_in*TB, P_out)
            [t[:, k * p_out:(k + 1) * p_out] for k in range(3)], axis=0)
        y = dot(a_ref[...], zcat.astype(jnp.bfloat16)) + s_ref[...]
        x = jnp.maximum(y, 0.0) if relu else y                # (H_out*TB, P_out) f32

    o_ref[0, :, :] = x


# ----------------------------------------------------------------------------
# One-time host-side parameter preparation (hoisted out of the forward path).
# ----------------------------------------------------------------------------
def _deconv_as_matmuls(w_t, bias, stride, padding, output_padding, h_in, w_in):
    """ConvTranspose2d -> (A[kh], B[kh], bias_row) in (H, C*W) slab layout so
    Y = sum_kh A[kh] @ X @ B[kh] + bias_row reproduces the layer exactly
    (scatter form: out[co, s*ih-p+kh, s*iw-p+kw] += x[ci,ih,iw]*w[ci,co,kh,kw])."""
    w_t = np.asarray(w_t, np.float64)
    c_in, c_out, kh_sz, kw_sz = w_t.shape
    h_out = (h_in - 1) * stride - 2 * padding + kh_sz + output_padding
    w_out = (w_in - 1) * stride - 2 * padding + kw_sz + output_padding

    oh, ih, kh = np.arange(h_out), np.arange(h_in), np.arange(kh_sz)
    A = (oh[None, :, None] == stride * ih[None, None, :] - padding + kh[:, None, None])
    A = A.astype(np.float64)                                  # (KH, H_out, H_in)

    ow, iw, kw = np.arange(w_out), np.arange(w_in), np.arange(kw_sz)
    S = (ow[None, None, :] == stride * iw[:, None, None] - padding + kw[None, :, None])
    S = S.astype(np.float64)                                  # (W_in, KW, W_out)

    B = np.einsum("iko,cdhk->hcido", S, w_t)                  # (KH, Cin, Win, Cout, Wout)
    B = B.reshape(kh_sz, c_in * w_in, c_out * w_out)
    bias_row = np.repeat(np.asarray(bias, np.float64), w_out)[None, :]
    return A, B, bias_row, (h_out, w_out, c_out)


def _slab_from_vec48(v):
    # `.view(3, 4, 4)` (CHW) -> (H=4, C*W=12) slab layout.
    return v.reshape(3, 4, 4).transpose(1, 0, 2).reshape(4, 12)


def prepare_decoder_params(fc_params, conv_params, *, tb):
    """Fold FC + view + deconv #1 into one affine map; build per-tail-layer
    (Bcat, Abig = kron(Acat, I_TB), padded bias).  All in float64 on the host,
    stored bf16 (weights / 0-1 scatter matrices) or f32 (biases)."""
    (fw1, fb1), (fw2, fb2), (fw3, fb3) = [
        (np.asarray(w, np.float64), np.asarray(b, np.float64)) for (w, b) in fc_params]
    conv_np = [(np.asarray(w, np.float64), np.asarray(b, np.float64))
               for (w, b) in conv_params]

    # FC head has no nonlinearity -> collapse to a single (latent, 48) affine map.
    w_fc = fw1 @ fw2 @ fw3
    b_fc = ((fb1 @ fw2 + fb2) @ fw3 + fb3).reshape(-1)
    latent = w_fc.shape[0]

    # Fold through ConvTranspose2d #1 (stride 2): z -> layer-1 pre-ReLU slab (8, 40).
    s0, p0, op0, _ = _DECONV_SPECS[0]
    A1, B1, bias1, (h1, w1, c1) = _deconv_as_matmuls(
        conv_np[0][0], conv_np[0][1], s0, p0, op0, 4, 4)
    n1 = c1 * w1                                              # 40 real lanes

    def l1_linear(slab):                                      # (4,12) -> (h1, n1)
        return sum(A1[k] @ slab @ B1[k] for k in range(A1.shape[0]))

    w0 = np.zeros((latent, h1 * _LANE))
    for j in range(latent):
        y = l1_linear(_slab_from_vec48(w_fc[j]))
        for r in range(h1):
            w0[j, r * _LANE:r * _LANE + n1] = y[r]
    c0 = np.zeros((1, h1 * _LANE))
    y0 = l1_linear(_slab_from_vec48(b_fc)) + bias1
    for r in range(h1):
        c0[0, r * _LANE:r * _LANE + n1] = y0[r]

    consts = [jnp.asarray(w0, jnp.bfloat16), jnp.asarray(c0, jnp.float32)]

    # ConvTranspose2d #2..#4.
    h, w, c_in, p_in = h1, w1, c1, _LANE
    for (wt, bias), (s, p, op, _) in zip(conv_np[1:], _DECONV_SPECS[1:]):
        A, B, bias_row, (h_out, w_out, c_out) = _deconv_as_matmuls(wt, bias, s, p, op, h, w)
        n_in, n_out = c_in * w, c_out * w_out
        p_out = _round_up(n_out, _LANE)
        kh_sz = A.shape[0]

        b_cat = np.zeros((p_in, kh_sz * p_out))
        a_cat = np.zeros((h_out, kh_sz * h))
        for k in range(kh_sz):
            b_cat[:n_in, k * p_out:k * p_out + n_out] = B[k]
            a_cat[:, k * h:(k + 1) * h] = A[k]
        a_big = np.kron(a_cat, np.eye(tb))                    # batch block-diagonal, 0/1
        bias_pad = np.zeros((1, p_out))
        bias_pad[0, :n_out] = bias_row[0]

        consts += [jnp.asarray(b_cat, jnp.bfloat16),
                   jnp.asarray(a_big, jnp.bfloat16),
                   jnp.asarray(bias_pad, jnp.float32)]
        h, w, c_in, p_in = h_out, w_out, c_out, p_out

    meta = {"tb": int(tb), "h_out": int(h), "w_out": int(w), "n_pad": int(p_in)}
    return tuple(consts), meta


# ----------------------------------------------------------------------------
# Forward: ONE pallas_call for the entire decoder.
# ----------------------------------------------------------------------------
def _full_spec(arr):
    return pl.BlockSpec(arr.shape, lambda i, _n=arr.ndim: (0,) * _n)


@functools.partial(jax.jit,
                   static_argnames=("out_channels", "tb", "h_out", "w_out", "n_pad"))
def _decoder_forward_impl(z, consts, *, out_channels, tb, h_out, w_out, n_pad):
    b, latent = z.shape
    g = -(-b // tb)                      # grid steps (keep >= 2 for v7x when possible)
    b_pad = g * tb
    if b_pad != b:
        z = jnp.pad(z, ((0, b_pad - b), (0, 0)))
    z3 = z.reshape(g, tb, latent)

    in_specs = [pl.BlockSpec((1, tb, latent), lambda i: (i, 0, 0))]
    in_specs += [_full_spec(c) for c in consts]

    out = pl.pallas_call(
        _decoder_kernel,
        out_shape=jax.ShapeDtypeStruct((g, h_out * tb, n_pad), jnp.float32),
        grid=(g,),
        in_specs=in_specs,
        out_specs=pl.BlockSpec((1, h_out * tb, n_pad), lambda i: (i, 0, 0)),
        compiler_params=pltpu.CompilerParams(dimension_semantics=("parallel",)),
    )(z3, *consts)

    # (G, H*TB, Npad) slab, rows (h-major, element-minor) -> NCHW, pad stripped.
    out = out.reshape(g, h_out, tb, n_pad).transpose(0, 2, 1, 3).reshape(b_pad, h_out, n_pad)
    out = out[:b, :, :out_channels * w_out]
    return out.reshape(b, h_out, out_channels, w_out).transpose(0, 2, 1, 3)


def decoder_forward(z, prepped, *, out_channels):
    # TODO(synk): the module's `print(f'Z shape:...')` is host-side debug logging
    # with no device equivalent; intentionally omitted.
    consts, meta = prepped
    return _decoder_forward_impl(z, consts, out_channels=out_channels, **meta)


# ----------------------------------------------------------------------------
# Pure-JAX reference (independent: lax.conv_general_dilated, HIGHEST precision).
# ----------------------------------------------------------------------------
def reference_forward(z, fc_params, conv_params):
    h = z
    for w, b in fc_params:
        h = jnp.dot(h, w, precision=jax.lax.Precision.HIGHEST) + b
    x = h.reshape(z.shape[0], 3, 4, 4)
    for (wt, bias), (s, p, op, relu) in zip(conv_params, _DECONV_SPECS):
        k = wt.shape[2]
        w_oihw = jnp.transpose(wt, (1, 0, 2, 3))[:, :, ::-1, ::-1]
        x = jax.lax.conv_general_dilated(
            x, w_oihw, window_strides=(1, 1),
            padding=[(k - 1 - p, k - 1 - p + op)] * 2, lhs_dilation=(s, s),
            dimension_numbers=("NCHW", "OIHW", "NCHW"),
            precision=jax.lax.Precision.HIGHEST,
        ) + bias[None, :, None, None]
        if relu:
            x = jnp.maximum(x, 0.0)
    return x


# ----------------------------------------------------------------------------
# Deterministic parameter construction (PyTorch-like uniform fan-in init).
# ----------------------------------------------------------------------------
def make_params(key, latent_dim, out_channels):
    keys = iter(jax.random.split(key, 32))

    def lin(cin, cout):
        bound = 1.0 / jnp.sqrt(cin)
        w = jax.random.uniform(next(keys), (cin, cout), jnp.float32, -bound, bound)
        b = jax.random.uniform(next(keys), (1, cout), jnp.float32, -bound, bound)
        return w, b

    def deconv(cin, cout, k=3):
        bound = 1.0 / jnp.sqrt(cin * k * k)
        w = jax.random.uniform(next(keys), (cin, cout, k, k), jnp.float32, -bound, bound)
        b = jax.random.uniform(next(keys), (cout,), jnp.float32, -bound, bound)
        return w, b

    fc_params = [lin(latent_dim, 28), lin(28, 38), lin(38, 48)]
    conv_params = [deconv(3, 5), deconv(5, 7), deconv(7, 5), deconv(5, out_channels)]
    return fc_params, conv_params


if __name__ == "__main__":
    latent_dim = 8
    out_channels = 3
    batch = 8        # small, but exercises TB-batching with 2 grid steps (v7x: both TCs busy)
    tb = 4

    key = jax.random.PRNGKey(0)
    k_param, k_z = jax.random.split(key)
    fc_params, conv_params = make_params(k_param, latent_dim, out_channels)
    z = jax.random.normal(k_z, (batch, latent_dim), jnp.float32)

    prepped = prepare_decoder_params(fc_params, conv_params, tb=tb)   # one-time prep

    out = decoder_forward(z, prepped, out_channels=out_channels)
    out = jax.block_until_ready(out)
    assert out.shape == (batch, out_channels, 68, 68), out.shape

    ref = jax.block_until_ready(reference_forward(z, fc_params, conv_params))
    # bf16 MXU operands with f32 accumulation vs a HIGHEST-precision f32 reference;
    # tolerance leaves headroom for that reduced-precision path.
    err = float(jnp.max(jnp.abs(out - ref)))
    assert jnp.allclose(out, ref, rtol=3e-2, atol=3e-2), err

    print("KERNEL_OK")
</pallas_src>

<mosaic_0001>
module attributes {stable_mosaic.version = 11 : i64} {
  func.func @_decoder_kernel(%arg0: i32, %arg1: memref<1x4x8xf32, #tpu.memory_space<vmem>>, %arg2: memref<8x1024xbf16, #tpu.memory_space<vmem>>, %arg3: memref<1x1024xf32, #tpu.memory_space<vmem>>, %arg4: memref<128x768xbf16, #tpu.memory_space<vmem>>, %arg5: memref<92x96xbf16, #tpu.memory_space<vmem>>, %arg6: memref<1x256xf32, #tpu.memory_space<vmem>>, %arg7: memref<256x1152xbf16, #tpu.memory_space<vmem>>, %arg8: memref<272x276xbf16, #tpu.memory_space<vmem>>, %arg9: memref<1x384xf32, #tpu.memory_space<vmem>>, %arg10: memref<384x768xbf16, #tpu.memory_space<vmem>>, %arg11: memref<272x816xbf16, #tpu.memory_space<vmem>>, %arg12: memref<1x256xf32, #tpu.memory_space<vmem>>, %arg13: memref<1x272x256xf32, #tpu.memory_space<vmem>>) attributes {dimension_semantics = [#tpu.dimension_semantics<parallel>], iteration_bounds = array<i64: 2>, scalar_prefetch = 0 : i64, scratch_operands = 0 : i64, tpu.core_type = #tpu.core_type<tc>, window_params = [{transform_indices = @transform_0, window_bounds = array<i64: 1, 4, 8>}, {pipeline_mode = #tpu.pipeline_mode<synchronous>, transform_indices = @transform_1, window_bounds = array<i64: 8, 1024>}, {pipeline_mode = #tpu.pipeline_mode<synchronous>, transform_indices = @transform_2, window_bounds = array<i64: 1, 1024>}, {pipeline_mode = #tpu.pipeline_mode<synchronous>, transform_indices = @transform_3, window_bounds = array<i64: 128, 768>}, {pipeline_mode = #tpu.pipeline_mode<synchronous>, transform_indices = @transform_4, window_bounds = array<i64: 92, 96>}, {pipeline_mode = #tpu.pipeline_mode<synchronous>, transform_indices = @transform_5, window_bounds = array<i64: 1, 256>}, {pipeline_mode = #tpu.pipeline_mode<synchronous>, transform_indices = @transform_6, window_bounds = array<i64: 256, 1152>}, {pipeline_mode = #tpu.pipeline_mode<synchronous>, transform_indices = @transform_7, window_bounds = array<i64: 272, 276>}, {pipeline_mode = #tpu.pipeline_mode<synchronous>, transform_indices = @transform_8, window_bounds = array<i64: 1, 384>}, {pipeline_mode = #tpu.pipeline_mode<synchronous>, transform_indices = @transform_9, window_bounds = array<i64: 384, 768>}, {pipeline_mode = #tpu.pipeline_mode<synchronous>, transform_indices = @transform_10, window_bounds = array<i64: 272, 816>}, {pipeline_mode = #tpu.pipeline_mode<synchronous>, transform_indices = @transform_11, window_bounds = array<i64: 1, 256>}, {transform_indices = @transform_12, window_bounds = array<i64: 1, 272, 256>}]} {
    %c0 = arith.constant 0 : index
    %c0_0 = arith.constant 0 : index
    %c0_1 = arith.constant 0 : index
    %0 = vector.load %arg1[%c0, %c0_0, %c0_1] : memref<1x4x8xf32, #tpu.memory_space<vmem>>, vector<1x4x8xf32>
    %1 = vector.shape_cast %0 : vector<1x4x8xf32> to vector<4x8xf32>
    %2 = arith.truncf %1 : vector<4x8xf32> to vector<4x8xbf16>
    %c0_2 = arith.constant 0 : index
    %c0_3 = arith.constant 0 : index
    %3 = vector.load %arg2[%c0_2, %c0_3] : memref<8x1024xbf16, #tpu.memory_space<vmem>>, vector<8x1024xbf16>
    %cst = arith.constant dense<0.000000e+00> : vector<4x1024xf32>
    %4 = tpu.matmul %2, %3, %cst {dimension_numbers = #tpu.dot_dimension_numbers<[1], [0], [0], [1], [0, 0, 1, 1], [], []>} : vector<4x8xbf16>, vector<8x1024xbf16>, vector<4x1024xf32> -> vector<4x1024xf32>
    %c0_4 = arith.constant 0 : index
    %c0_5 = arith.constant 0 : index
    %5 = vector.load %arg3[%c0_4, %c0_5] : memref<1x1024xf32, #tpu.memory_space<vmem>>, vector<1x1024xf32>
    %6 = vector.broadcast %5 : vector<1x1024xf32> to vector<4x1024xf32>
    %7 = arith.addf %4, %6 : vector<4x1024xf32>
    %8 = vector.extract_strided_slice %7 {offsets = [0, 0], sizes = [4, 128], strides = [1, 1]} : vector<4x1024xf32> to vector<4x128xf32>
    %9 = vector.extract_strided_slice %7 {offsets = [0, 128], sizes = [4, 128], strides = [1, 1]} : vector<4x1024xf32> to vector<4x128xf32>
    %10 = vector.extract_strided_slice %7 {offsets = [0, 256], sizes = [4, 128], strides = [1, 1]} : vector<4x1024xf32> to vector<4x128xf32>
    %11 = vector.extract_strided_slice %7 {offsets = [0, 384], sizes = [4, 128], strides = [1, 1]} : vector<4x1024xf32> to vector<4x128xf32>
    %12 = vector.extract_strided_slice %7 {offsets = [0, 512], sizes = [4, 128], strides = [1, 1]} : vector<4x1024xf32> to vector<4x128xf32>
    %13 = vector.extract_strided_slice %7 {offsets = [0, 640], sizes = [4, 128], strides = [1, 1]} : vector<4x1024xf32> to vector<4x128xf32>
    %14 = vector.extract_strided_slice %7 {offsets = [0, 768], sizes = [4, 128], strides = [1, 1]} : vector<4x1024xf32> to vector<4x128xf32>
    %15 = vector.extract_strided_slice %7 {offsets = [0, 896], sizes = [4, 128], strides = [1, 1]} : vector<4x1024xf32> to vector<4x128xf32>
    %16 = tpu.concatenate %8, %9, %10, %11, %12, %13, %14, %15 in 0 : vector<4x128xf32>, vector<4x128xf32>, vector<4x128xf32>, vector<4x128xf32>, vector<4x128xf32>, vector<4x128xf32>, vector<4x128xf32>, vector<4x128xf32> -> vector<32x128xf32>
    %cst_6 = arith.constant 0.000000e+00 : f32
    %17 = vector.broadcast %cst_6 : f32 to vector<32x128xf32>
    %18 = arith.maximumf %16, %17 : vector<32x128xf32>
    %19 = arith.truncf %18 : vector<32x128xf32> to vector<32x128xbf16>
    %c0_7 = arith.constant 0 : index
    %c0_8 = arith.constant 0 : index
    %20 = vector.load %arg4[%c0_7, %c0_8] : memref<128x768xbf16, #tpu.memory_space<vmem>>, vector<128x768xbf16>
    %cst_9 = arith.constant dense<0.000000e+00> : vector<32x768xf32>
    %21 = tpu.matmul %19, %20, %cst_9 {dimension_numbers = #tpu.dot_dimension_numbers<[1], [0], [0], [1], [0, 0, 1, 1], [], []>} : vector<32x128xbf16>, vector<128x768xbf16>, vector<32x768xf32> -> vector<32x768xf32>
    %22 = vector.extract_strided_slice %21 {offsets = [0, 0], sizes = [32, 256], strides = [1, 1]} : vector<32x768xf32> to vector<32x256xf32>
    %23 = vector.extract_strided_slice %21 {offsets = [0, 256], sizes = [32, 256], strides = [1, 1]} : vector<32x768xf32> to vector<32x256xf32>
    %24 = vector.extract_strided_slice %21 {offsets = [0, 512], sizes = [32, 256], strides = [1, 1]} : vector<32x768xf32> to vector<32x256xf32>
    %25 = tpu.concatenate %22, %23, %24 in 0 : vector<32x256xf32>, vector<32x256xf32>, vector<32x256xf32> -> vector<96x256xf32>
    %c0_10 = arith.constant 0 : index
    %c0_11 = arith.constant 0 : index
    %26 = vector.load %arg5[%c0_10, %c0_11] : memref<92x96xbf16, #tpu.memory_space<vmem>>, vector<92x96xbf16>
    %27 = arith.truncf %25 : vector<96x256xf32> to vector<96x256xbf16>
    %cst_12 = arith.constant dense<0.000000e+00> : vector<92x256xf32>
    %28 = tpu.matmul %26, %27, %cst_12 {dimension_numbers = #tpu.dot_dimension_numbers<[1], [0], [0], [1], [0, 0, 1, 1], [], []>} : vector<92x96xbf16>, vector<96x256xbf16>, vector<92x256xf32> -> vector<92x256xf32>
    %c0_13 = arith.constant 0 : index
    %c0_14 = arith.constant 0 : index
    %29 = vector.load %arg6[%c0_13, %c0_14] : memref<1x256xf32, #tpu.memory_space<vmem>>, vector<1x256xf32>
    %30 = vector.broadcast %29 : vector<1x256xf32> to vector<92x256xf32>
    %31 = arith.addf %28, %30 : vector<92x256xf32>
    %cst_15 = arith.constant 0.000000e+00 : f32
    %32 = vector.broadcast %cst_15 : f32 to vector<92x256xf32>
    %33 = arith.maximumf %31, %32 : vector<92x256xf32>
    %34 = arith.truncf %33 : vector<92x256xf32> to vector<92x256xbf16>
    %c0_16 = arith.constant 0 : index
    %c0_17 = arith.constant 0 : index
    %35 = vector.load %arg7[%c0_16, %c0_17] : memref<256x1152xbf16, #tpu.memory_space<vmem>>, vector<256x1152xbf16>
    %cst_18 = arith.constant dense<0.000000e+00> : vector<92x1152xf32>
    %36 = tpu.matmul %34, %35, %cst_18 {dimension_numbers = #tpu.dot_dimension_numbers<[1], [0], [0], [1], [0, 0, 1, 1], [], []>} : vector<92x256xbf16>, vector<256x1152xbf16>, vector<92x1152xf32> -> vector<92x1152xf32>
    %37 = vector.extract_strided_slice %36 {offsets = [0, 0], sizes = [92, 384], strides = [1, 1]} : vector<92x1152xf32> to vector<92x384xf32>
    %38 = vector.extract_strided_slice %36 {offsets = [0, 384], sizes = [92, 384], strides = [1, 1]} : vector<92x1152xf32> to vector<92x384xf32>
    %39 = vector.extract_strided_slice %36 {offsets = [0, 768], sizes = [92, 384], strides = [1, 1]} : vector<92x1152xf32> to vector<92x384xf32>
    %40 = tpu.concatenate %37, %38, %39 in 0 : vector<92x384xf32>, vector<92x384xf32>, vector<92x384xf32> -> vector<276x384xf32>
    %c0_19 = arith.constant 0 : index
    %c0_20 = arith.constant 0 : index
    %41 = vector.load %arg8[%c0_19, %c0_20] : memref<272x276xbf16, #tpu.memory_space<vmem>>, vector<272x276xbf16>
    %42 = arith.truncf %40 : vector<276x384xf32> to vector<276x384xbf16>
    %cst_21 = arith.constant dense<0.000000e+00> : vector<272x384xf32>
    %43 = tpu.matmul %41, %42, %cst_21 {dimension_numbers = #tpu.dot_dimension_numbers<[1], [0], [0], [1], [0, 0, 1, 1], [], []>} : vector<272x276xbf16>, vector<276x384xbf16>, vector<272x384xf32> -> vector<272x384xf32>
    %c0_22 = arith.constant 0 : index
    %c0_23 = arith.constant 0 : index
    %44 = vector.load %arg9[%c0_22, %c0_23] : memref<1x384xf32, #tpu.memory_space<vmem>>, vector<1x384xf32>
    %45 = vector.broadcast %44 : vector<1x384xf32> to vector<272x384xf32>
    %46 = arith.addf %43, %45 : vector<272x384xf32>
    %cst_24 = arith.constant 0.000000e+00 : f32
    %47 = vector.broadcast %cst_24 : f32 to vector<272x384xf32>
    %48 = arith.maximumf %46, %47 : vector<272x384xf32>
    %49 = arith.truncf %48 : vector<272x384xf32> to vector<272x384xbf16>
    %c0_25 = arith.constant 0 : index
    %c0_26 = arith.constant 0 : index
    %50 = vector.load %arg10[%c0_25, %c0_26] : memref<384x768xbf16, #tpu.memory_space<vmem>>, vector<384x768xbf16>
    %cst_27 = arith.constant dense<0.000000e+00> : vector<272x768xf32>
    %51 = tpu.matmul %49, %50, %cst_27 {dimension_numbers = #tpu.dot_dimension_numbers<[1], [0], [0], [1], [0, 0, 1, 1], [], []>} : vector<272x384xbf16>, vector<384x768xbf16>, vector<272x768xf32> -> vector<272x768xf32>
    %52 = vector.extract_strided_slice %51 {offsets = [0, 0], sizes = [272, 256], strides = [1, 1]} : vector<272x768xf32> to vector<272x256xf32>
    %53 = vector.extract_strided_slice %51 {offsets = [0, 256], sizes = [272, 256], strides = [1, 1]} : vector<272x768xf32> to vector<272x256xf32>
    %54 = vector.extract_strided_slice %51 {offsets = [0, 512], sizes = [272, 256], strides = [1, 1]} : vector<272x768xf32> to vector<272x256xf32>
    %55 = tpu.concatenate %52, %53, %54 in 0 : vector<272x256xf32>, vector<272x256xf32>, vector<272x256xf32> -> vector<816x256xf32>
    %c0_28 = arith.constant 0 : index
    %c0_29 = arith.constant 0 : index
    %56 = vector.load %arg11[%c0_28, %c0_29] : memref<272x816xbf16, #tpu.memory_space<vmem>>, vector<272x816xbf16>
    %57 = arith.truncf %55 : vector<816x256xf32> to vector<816x256xbf16>
    %cst_30 = arith.constant dense<0.000000e+00> : vector<272x256xf32>
    %58 = tpu.matmul %56, %57, %cst_30 {dimension_numbers = #tpu.dot_dimension_numbers<[1], [0], [0], [1], [0, 0, 1, 1], [], []>} : vector<272x816xbf16>, vector<816x256xbf16>, vector<272x256xf32> -> vector<272x256xf32>
    %c0_31 = arith.constant 0 : index
    %c0_32 = arith.constant 0 : index
    %59 = vector.load %arg12[%c0_31, %c0_32] : memref<1x256xf32, #tpu.memory_space<vmem>>, vector<1x256xf32>
    %60 = vector.broadcast %59 : vector<1x256xf32> to vector<272x256xf32>
    %61 = arith.addf %58, %60 : vector<272x256xf32>
    %c0_33 = arith.constant 0 : index
    %c0_34 = arith.constant 0 : index
    %c0_35 = arith.constant 0 : index
    %62 = vector.load %arg13[%c0_33, %c0_34, %c0_35] : memref<1x272x256xf32, #tpu.memory_space<vmem>>, vector<1x272x256xf32>
    %63 = vector.shape_cast %62 : vector<1x272x256xf32> to vector<272x256xf32>
    %64 = vector.shape_cast %61 : vector<272x256xf32> to vector<1x272x256xf32>
    tpu.vector_store %arg13[%c0_33, %c0_34, %c0_35], %64 {strides = array<i32>} : memref<1x272x256xf32, #tpu.memory_space<vmem>>, vector<1x272x256xf32>,
    return
  }
  func.func @transform_0(%arg0: i32) -> (i32, i32, i32) {
    %c0_i32 = arith.constant 0 : i32
    %c0_i32_0 = arith.constant 0 : i32
    %c0_i32_1 = arith.constant 0 : i32
    return %arg0, %c0_i32, %c0_i32_0 : i32, i32, i32
  }
  func.func @transform_1(%arg0: i32) -> (i32, i32) {
    %c0_i32 = arith.constant 0 : i32
    %c0_i32_0 = arith.constant 0 : i32
    %c0_i32_1 = arith.constant 0 : i32
    return %c0_i32, %c0_i32_0 : i32, i32
  }
  func.func @transform_2(%arg0: i32) -> (i32, i32) {
    %c0_i32 = arith.constant 0 : i32
    %c0_i32_0 = arith.constant 0 : i32
    %c0_i32_1 = arith.constant 0 : i32
    return %c0_i32, %c0_i32_0 : i32, i32
  }
  func.func @transform_3(%arg0: i32) -> (i32, i32) {
    %c0_i32 = arith.constant 0 : i32
    %c0_i32_0 = arith.constant 0 : i32
    %c0_i32_1 = arith.constant 0 : i32
    return %c0_i32, %c0_i32_0 : i32, i32
  }
  func.func @transform_4(%arg0: i32) -> (i32, i32) {
    %c0_i32 = arith.constant 0 : i32
    %c0_i32_0 = arith.constant 0 : i32
    %c0_i32_1 = arith.constant 0 : i32
    return %c0_i32, %c0_i32_0 : i32, i32
  }
  func.func @transform_5(%arg0: i32) -> (i32, i32) {
    %c0_i32 = arith.constant 0 : i32
    %c0_i32_0 = arith.constant 0 : i32
    %c0_i32_1 = arith.constant 0 : i32
    return %c0_i32, %c0_i32_0 : i32, i32
  }
  func.func @transform_6(%arg0: i32) -> (i32, i32) {
    %c0_i32 = arith.constant 0 : i32
    %c0_i32_0 = arith.constant 0 : i32
    %c0_i32_1 = arith.constant 0 : i32
    return %c0_i32, %c0_i32_0 : i32, i32
  }
  func.func @transform_7(%arg0: i32) -> (i32, i32) {
    %c0_i32 = arith.constant 0 : i32
    %c0_i32_0 = arith.constant 0 : i32
    %c0_i32_1 = arith.constant 0 : i32
    return %c0_i32, %c0_i32_0 : i32, i32
  }
  func.func @transform_8(%arg0: i32) -> (i32, i32) {
    %c0_i32 = arith.constant 0 : i32
    %c0_i32_0 = arith.constant 0 : i32
    %c0_i32_1 = arith.constant 0 : i32
    return %c0_i32, %c0_i32_0 : i32, i32
  }
  func.func @transform_9(%arg0: i32) -> (i32, i32) {
    %c0_i32 = arith.constant 0 : i32
    %c0_i32_0 = arith.constant 0 : i32
    %c0_i32_1 = arith.constant 0 : i32
    return %c0_i32, %c0_i32_0 : i32, i32
  }
  func.func @transform_10(%arg0: i32) -> (i32, i32) {
    %c0_i32 = arith.constant 0 : i32
    %c0_i32_0 = arith.constant 0 : i32
    %c0_i32_1 = arith.constant 0 : i32
    return %c0_i32, %c0_i32_0 : i32, i32
  }
  func.func @transform_11(%arg0: i32) -> (i32, i32) {
    %c0_i32 = arith.constant 0 : i32
    %c0_i32_0 = arith.constant 0 : i32
    %c0_i32_1 = arith.constant 0 : i32
    return %c0_i32, %c0_i32_0 : i32, i32
  }
  func.func @transform_12(%arg0: i32) -> (i32, i32, i32) {
    %c0_i32 = arith.constant 0 : i32
    %c0_i32_0 = arith.constant 0 : i32
    %c0_i32_1 = arith.constant 0 : i32
    return %arg0, %c0_i32, %c0_i32_0 : i32, i32, i32
  }
}

</mosaic_0001>

<llo_original>
// kernel: _decoder_forward_impl.1
$region0: #{_decoder_forward_impl.1}
  #allocation0 [shape = 'u32[]', space=smem, size = 0x4, offset = 0x4, fixed_abs, tag = 'smem constant byte address 0x4 - core index']
  #allocation1 [shape = 'u32[72,128]{1,0:T(1,128)}', space=vmem, size = 0x9000, scoped, tag = 'internal scratch']
  %s0 = inlined_call_operand.hbm [shape: f32[2,4,8], index: 0, kind: input, shape index: {}]
  %s1 = inlined_call_operand.hbm [shape: bf16[8,1024], index: 1, kind: input, shape index: {}]
  %s2 = inlined_call_operand.hbm [shape: f32[1,1024], index: 2, kind: input, shape index: {}]
  %s3 = inlined_call_operand.hbm [shape: bf16[128,768], index: 3, kind: input, shape index: {}]
  %s4 = inlined_call_operand.hbm [shape: bf16[92,96], index: 4, kind: input, shape index: {}]
  %s5 = inlined_call_operand.vmem [shape: f32[1,256], index: 5, kind: input, shape index: {}]
  %s6 = inlined_call_operand.hbm [shape: bf16[256,1152], index: 6, kind: input, shape index: {}]
  %s7 = inlined_call_operand.hbm [shape: bf16[272,276], index: 7, kind: input, shape index: {}]
  %s8 = inlined_call_operand.vmem [shape: f32[1,384], index: 8, kind: input, shape index: {}]
  %s9 = inlined_call_operand.hbm [shape: bf16[384,768], index: 9, kind: input, shape index: {}]
  %s10 = inlined_call_operand.hbm [shape: bf16[272,816], index: 10, kind: input, shape index: {}]
  %s11 = inlined_call_operand.vmem [shape: f32[1,256], index: 11, kind: input, shape index: {}]
  %s12 = inlined_call_operand.vmem [shape: f32[2,272,256], index: 12, kind: output, shape index: {}]
  %s13 = sld [smem:[#allocation0]]
  $region117: #{_decoder_forward_impl.1} parent=0
    _
  %s15 = ssub.s32 1, %s13
  %s16 = scalar_select 0, %s15, %s13
  $region1: #{_decoder_forward_impl.1} parent=0
    #allocation2 [shape = 'u8[4096]{0}', space=vmem, size = 0x1000, scoped, tag = 'input window, operand 0']
    #allocation3 [shape = 's32[2]{0}', space=sflag, size = 0x8, scoped, tag = 'scoped memory for _decoder_forward_impl.1']
    #allocation4 [shape = 'u8[16384]{0}', space=vmem, size = 0x4000, scoped, tag = 'input window, operand 1, single buffered']
    #allocation5 [shape = 's32[1]{0}', space=sflag, size = 0x4, scoped, tag = 'scoped memory for _decoder_forward_impl.1']
    #allocation6 [shape = 'u8[4096]{0}', space=vmem, size = 0x1000, scoped, tag = 'input window, operand 2, single buffered']
    #allocation7 [shape = 'u8[196608]{0}', space=vmem, size = 0x30000, scoped, tag = 'input window, operand 3, single buffered']
    #allocation8 [shape = 's32[1]{0}', space=sflag, size = 0x4, scoped, tag = 'scoped memory for _decoder_forward_impl.1']
    #allocation9 [shape = 'u8[24576]{0}', space=vmem, size = 0x6000, scoped, tag = 'input window, operand 4, single buffered']
    #allocation10 [shape = 'u8[589824]{0}', space=vmem, size = 0x90000, scoped, tag = 'input window, operand 6, single buffered']
    #allocation11 [shape = 's32[1]{0}', space=sflag, size = 0x4, scoped, tag = 'scoped memory for _decoder_forward_impl.1']
    #allocation12 [shape = 'u8[208896]{0}', space=vmem, size = 0x33000, scoped, tag = 'input window, operand 7, single buffered']
    #allocation13 [shape = 'u8[589824]{0}', space=vmem, size = 0x90000, scoped, tag = 'input window, operand 9, single buffered']
    #allocation14 [shape = 's32[1]{0}', space=sflag, size = 0x4, scoped, tag = 'scoped memory for _decoder_forward_impl.1']
    #allocation15 [shape = 'u8[487424]{0}', space=vmem, size = 0x77000, scoped, tag = 'input window, operand 10, single buffered']
    %17 = vsyncpa [#allocation3], 0
    %s18 = scalar_lea.sflag [#allocation3], 1
    %19 = vsyncpa %s18, 0
    %20 = vsyncpa [#allocation5], 0
    %21 = vsyncpa [#allocation8], 0
    %22 = vsyncpa [#allocation11], 0
    %23 = vsyncpa [#allocation14], 0
    loop: start=0, step=1, limit=4
    $region2: #{_decoder_forward_impl.1} parent=1 // loop_pre_header
      _
    $region3: #{_decoder_forward_impl.1} parent=1 // loop_header
      %s25 = sphi 0, %s29
      %p26 = scmp.ge.s32.totalorder %s25, 4
      %s35 = sphi 0, %s37
      %s38 = sphi 0, %s35
      %s39 = sphi 0, %s38
      %s55 = sphi 0, %s39
      %s59 = sphi 0, %s59
      %s61 = sphi 0, %s59
      %s62 = sphi 0, %s61
      %s76 = sphi 0, %s62
      %s80 = sphi 0, %s80
      %s82 = sphi 0, %s80
      %s83 = sphi 0, %s82
      %s97 = sphi 0, %s83
      %s101 = sphi 0, %s101
      %s103 = sphi 0, %s101
      %s104 = sphi 0, %s103
      %s118 = sphi 0, %s104
      %s122 = sphi 0, %s122
      %s124 = sphi 0, %s122
      %s125 = sphi 0, %s124
      %s139 = sphi 0, %s125
      %s143 = sphi 0, %s143
      %s145 = sphi 0, %s143
      %s146 = sphi 0, %s145
      %s160 = sphi 0, %s146
      %s164 = sphi 0, %s164
      %s166 = sphi 0, %s164
      %s167 = sphi 0, %s166
      %s181 = sphi 0, %s167
      %s185 = sphi 0, %s185
      %s187 = sphi 0, %s185
      %s188 = sphi 0, %s187
      %s202 = sphi 0, %s188
      %s206 = sphi 0, %s206
      %s208 = sphi 0, %s206
      %s209 = sphi 0, %s208
      %s223 = sphi 0, %s209
      %s227 = sphi 0, %s227
      %s229 = sphi 0, %s227
      %s230 = sphi 0, %s229
      %s244 = sphi 0, %s230
      %s248 = sphi 0, %s248
      %s250 = sphi 0, %s248
      %s251 = sphi 0, %s250
      %s265 = sphi 0, %s251
      %s269 = sphi 0, %s269
      %s271 = sphi 0, %s269
      %s272 = sphi 0, %s271
      %s286 = sphi 0, %s272
      %s292 = sphi 0, %s294
      %s295 = sphi 0, %s292
      %s296 = sphi 0, %s295
      %s312 = sphi 0, %s296
    $region4: #{_decoder_forward_impl.1} parent=1 // loop_header_branch
      %28 = sbr.rel (%p26) target = $region8
    $region5: #{_decoder_forward_impl.1} parent=1 // loop_body
      %s30 = ssub.s32 %s25, 1
      %s31 = ssub.s32 %s25, 2
      %s32 = sadd.s32 %s25, 1
      %s33 = ssub.s32 %s25, %s32
      %p34 = scmp.eq.s32.totalorder %s33, 0
      %s36 = sadd.s32 %s35, 1
      %s37 = scalar_select %p34, %s35, %s36
      %p40 = pneg %p34
      %p41 = scmp.eq.s32.totalorder %s25, 1
      %p42 = por %p40, %p41
      %p43 = scmp.ne.s32.totalorder %s35, %s38
      %p44 = scmp.eq.s32.totalorder %s25, 0
      %p45 = por %p43, %p44
      %p46 = scmp.ne.s32.totalorder %s35, %s38
      %p47 = scmp.eq.s32.totalorder %s30, 1
      %p48 = por %p46, %p47
      %p49 = scmp.ne.s32.totalorder %s38, %s39
      %p50 = scmp.eq.s32.totalorder %s30, 0
      %p51 = por %p49, %p50
      %p52 = scmp.ne.s32.totalorder %s38, %s39
      %p53 = scmp.eq.s32.totalorder %s31, 1
      %p54 = por %p52, %p53
      %p56 = scmp.ne.s32.totalorder %s39, %s55
      %p57 = scmp.eq.s32.totalorder %s31, 0
      %p58 = por %p56, %p57
      %s60 = sadd.s32 %s59, 1
      %p63 = scmp.eq.s32.totalorder %s25, 1
      %p64 = scmp.ne.s32.totalorder %s59, %s61
      %p65 = scmp.eq.s32.totalorder %s25, 0
      %p66 = por %p64, %p65
      %p67 = scmp.ne.s32.totalorder %s59, %s61
      %p68 = scmp.eq.s32.totalorder %s30, 1
      %p69 = por %p67, %p68
      %p70 = scmp.ne.s32.totalorder %s61, %s62
      %p71 = scmp.eq.s32.totalorder %s30, 0
      %p72 = por %p70, %p71
      %p73 = scmp.ne.s32.totalorder %s61, %s62
      %p74 = scmp.eq.s32.totalorder %s31, 1
      %p75 = por %p73, %p74
      %p77 = scmp.ne.s32.totalorder %s62, %s76
      %p78 = scmp.eq.s32.totalorder %s31, 0
      %p79 = por %p77, %p78
      %s81 = sadd.s32 %s80, 1
      %p84 = scmp.eq.s32.totalorder %s25, 1
      %p85 = scmp.ne.s32.totalorder %s80, %s82
      %p86 = scmp.eq.s32.totalorder %s25, 0
      %p87 = por %p85, %p86
      %p88 = scmp.ne.s32.totalorder %s80, %s82
      %p89 = scmp.eq.s32.totalorder %s30, 1
      %p90 = por %p88, %p89
      %p91 = scmp.ne.s32.totalorder %s82, %s83
      %p92 = scmp.eq.s32.totalorder %s30, 0
      %p93 = por %p91, %p92
      %p94 = scmp.ne.s32.totalorder %s82, %s83
      %p95 = scmp.eq.s32.totalorder %s31, 1
      %p96 = por %p94, %p95
      %p98 = scmp.ne.s32.totalorder %s83, %s97
      %p99 = scmp.eq.s32.totalorder %s31, 0
      %p100 = por %p98, %p99
      %s102 = sadd.s32 %s101, 1
      %p105 = scmp.eq.s32.totalorder %s25, 1
      %p106 = scmp.ne.s32.totalorder %s101, %s103
      %p107 = scmp.eq.s32.totalorder %s25, 0
      %p108 = por %p106, %p107
      %p109 = scmp.ne.s32.totalorder %s101, %s103
      %p110 = scmp.eq.s32.totalorder %s30, 1
      %p111 = por %p109, %p110
      %p112 = scmp.ne.s32.totalorder %s103, %s104
      %p113 = scmp.eq.s32.totalorder %s30, 0
      %p114 = por %p112, %p113
      %p115 = scmp.ne.s32.totalorder %s103, %s104
      %p116 = scmp.eq.s32.totalorder %s31, 1
      %p117 = por %p115, %p116
      %p119 = scmp.ne.s32.totalorder %s104, %s118
      %p120 = scmp.eq.s32.totalorder %s31, 0
      %p121 = por %p119, %p120
      %s123 = sadd.s32 %s122, 1
      %p126 = scmp.eq.s32.totalorder %s25, 1
      %p127 = scmp.ne.s32.totalorder %s122, %s124
      %p128 = scmp.eq.s32.totalorder %s25, 0
      %p129 = por %p127, %p128
      %p130 = scmp.ne.s32.totalorder %s122, %s124
      %p131 = scmp.eq.s32.totalorder %s30, 1
      %p132 = por %p130, %p131
      %p133 = scmp.ne.s32.totalorder %s124, %s125
      %p134 = scmp.eq.s32.totalorder %s30, 0
      %p135 = por %p133, %p134
      %p136 = scmp.ne.s32.totalorder %s124, %s125
      %p137 = scmp.eq.s32.totalorder %s31, 1
      %p138 = por %p136, %p137
      %p140 = scmp.ne.s32.totalorder %s125, %s139
      %p141 = scmp.eq.s32.totalorder %s31, 0
      %p142 = por %p140, %p141
      %s144 = sadd.s32 %s143, 1
      %p147 = scmp.eq.s32.totalorder %s25, 1
      %p148 = scmp.ne.s32.totalorder %s143, %s145
      %p149 = scmp.eq.s32.totalorder %s25, 0
      %p150 = por %p148, %p149
      %p151 = scmp.ne.s32.totalorder %s143, %s145
      %p152 = scmp.eq.s32.totalorder %s30, 1
      %p153 = por %p151, %p152
      %p154 = scmp.ne.s32.totalorder %s145, %s146
      %p155 = scmp.eq.s32.totalorder %s30, 0
      %p156 = por %p154, %p155
      %p157 = scmp.ne.s32.totalorder %s145, %s146
      %p158 = scmp.eq.s32.totalorder %s31, 1
      %p159 = por %p157, %p158
      %p161 = scmp.ne.s32.totalorder %s146, %s160
      %p162 = scmp.eq.s32.totalorder %s31, 0
      %p163 = por %p161, %p162
      %s165 = sadd.s32 %s164, 1
      %p168 = scmp.eq.s32.totalorder %s25, 1
      %p169 = scmp.ne.s32.totalorder %s164, %s166
      %p170 = scmp.eq.s32.totalorder %s25, 0
      %p171 = por %p169, %p170
      %p172 = scmp.ne.s32.totalorder %s164, %s166
      %p173 = scmp.eq.s32.totalorder %s30, 1
      %p174 = por %p172, %p173
      %p175 = scmp.ne.s32.totalorder %s166, %s167
      %p176 = scmp.eq.s32.totalorder %s30, 0
      %p177 = por %p175, %p176
      %p178 = scmp.ne.s32.totalorder %s166, %s167
      %p179 = scmp.eq.s32.totalorder %s31, 1
      %p180 = por %p178, %p179
      %p182 = scmp.ne.s32.totalorder %s167, %s181
      %p183 = scmp.eq.s32.totalorder %s31, 0
      %p184 = por %p182, %p183
      %s186 = sadd.s32 %s185, 1
      %p189 = scmp.eq.s32.totalorder %s25, 1
      %p190 = scmp.ne.s32.totalorder %s185, %s187
      %p191 = scmp.eq.s32.totalorder %s25, 0
      %p192 = por %p190, %p191
      %p193 = scmp.ne.s32.totalorder %s185, %s187
      %p194 = scmp.eq.s32.totalorder %s30, 1
      %p195 = por %p193, %p194
      %p196 = scmp.ne.s32.totalorder %s187, %s188
      %p197 = scmp.eq.s32.totalorder %s30, 0
      %p198 = por %p196, %p197
      %p199 = scmp.ne.s32.totalorder %s187, %s188
      %p200 = scmp.eq.s32.totalorder %s31, 1
      %p201 = por %p199, %p200
      %p203 = scmp.ne.s32.totalorder %s188, %s202
      %p204 = scmp.eq.s32.totalorder %s31, 0
      %p205 = por %p203, %p204
      %s207 = sadd.s32 %s206, 1
      %p210 = scmp.eq.s32.totalorder %s25, 1
      %p211 = scmp.ne.s32.totalorder %s206, %s208
      %p212 = scmp.eq.s32.totalorder %s25, 0
      %p213 = por %p211, %p212
      %p214 = scmp.ne.s32.totalorder %s206, %s208
      %p215 = scmp.eq.s32.totalorder %s30, 1
      %p216 = por %p214, %p215
      %p217 = scmp.ne.s32.totalorder %s208, %s209
      %p218 = scmp.eq.s32.totalorder %s30, 0
      %p219 = por %p217, %p218
      %p220 = scmp.ne.s32.totalorder %s208, %s209
      %p221 = scmp.eq.s32.totalorder %s31, 1
      %p222 = por %p220, %p221
      %p224 = scmp.ne.s32.totalorder %s209, %s223
      %p225 = scmp.eq.s32.totalorder %s31, 0
      %p226 = por %p224, %p225
      %s228 = sadd.s32 %s227, 1
      %p231 = scmp.eq.s32.totalorder %s25, 1
      %p232 = scmp.ne.s32.totalorder %s227, %s229
      %p233 = scmp.eq.s32.totalorder %s25, 0
      %p234 = por %p232, %p233
      %p235 = scmp.ne.s32.totalorder %s227, %s229
      %p236 = scmp.eq.s32.totalorder %s30, 1
      %p237 = por %p235, %p236
      %p238 = scmp.ne.s32.totalorder %s229, %s230
      %p239 = scmp.eq.s32.totalorder %s30, 0
      %p240 = por %p238, %p239
      %p241 = scmp.ne.s32.totalorder %s229, %s230
      %p242 = scmp.eq.s32.totalorder %s31, 1
      %p243 = por %p241, %p242
      %p245 = scmp.ne.s32.totalorder %s230, %s244
      %p246 = scmp.eq.s32.totalorder %s31, 0
      %p247 = por %p245, %p246
      %s249 = sadd.s32 %s248, 1
      %p252 = scmp.eq.s32.totalorder %s25, 1
      %p253 = scmp.ne.s32.totalorder %s248, %s250
      %p254 = scmp.eq.s32.totalorder %s25, 0
      %p255 = por %p253, %p254
      %p256 = scmp.ne.s32.totalorder %s248, %s250
      %p257 = scmp.eq.s32.totalorder %s30, 1
      %p258 = por %p256, %p257
      %p259 = scmp.ne.s32.totalorder %s250, %s251
      %p260 = scmp.eq.s32.totalorder %s30, 0
      %p261 = por %p259, %p260
      %p262 = scmp.ne.s32.totalorder %s250, %s251
      %p263 = scmp.eq.s32.totalorder %s31, 1
      %p264 = por %p262, %p263
      %p266 = scmp.ne.s32.totalorder %s251, %s265
      %p267 = scmp.eq.s32.totalorder %s31, 0
      %p268 = por %p266, %p267
      %s270 = sadd.s32 %s269, 1
      %p273 = scmp.eq.s32.totalorder %s25, 1
      %p274 = scmp.ne.s32.totalorder %s269, %s271
      %p275 = scmp.eq.s32.totalorder %s25, 0
      %p276 = por %p274, %p275
      %p277 = scmp.ne.s32.totalorder %s269, %s271
      %p278 = scmp.eq.s32.totalorder %s30, 1
      %p279 = por %p277, %p278
      %p280 = scmp.ne.s32.totalorder %s271, %s272
      %p281 = scmp.eq.s32.totalorder %s30, 0
      %p282 = por %p280, %p281
      %p283 = scmp.ne.s32.totalorder %s271, %s272
      %p284 = scmp.eq.s32.totalorder %s31, 1
      %p285 = por %p283, %p284
      %p287 = scmp.ne.s32.totalorder %s272, %s286
      %p288 = scmp.eq.s32.totalorder %s31, 0
      %p289 = por %p287, %p288
      %s290 = ssub.s32 %s25, %s32
      %p291 = scmp.eq.s32.totalorder %s290, 0
      %s293 = sadd.s32 %s292, 1
      %s294 = scalar_select %p291, %s292, %s293
      %p297 = pneg %p291
      %p298 = scmp.eq.s32.totalorder %s25, 1
      %p299 = por %p297, %p298
      %p300 = scmp.ne.s32.totalorder %s292, %s295
      %p301 = scmp.eq.s32.totalorder %s25, 0
      %p302 = por %p300, %p301
      %p303 = scmp.ne.s32.totalorder %s292, %s295
      %p304 = scmp.eq.s32.totalorder %s30, 1
      %p305 = por %p303, %p304
      %p306 = scmp.ne.s32.totalorder %s295, %s296
      %p307 = scmp.eq.s32.totalorder %s30, 0
      %p308 = por %p306, %p307
      %p309 = scmp.ne.s32.totalorder %s295, %s296
      %p310 = scmp.eq.s32.totalorder %s31, 1
      %p311 = por %p309, %p310
      %p313 = scmp.ne.s32.totalorder %s296, %s312
      %p314 = scmp.eq.s32.totalorder %s31, 0
      %p315 = por %p313, %p314
      %p316 = scmp.le.s32.totalorder 1, %s25
      %p317 = scmp.lt.s32.totalorder %s25, 3
      %p318 = pnand %p316, %p317
      %p319 = pneg %p318
      // Predicated region
      $region9: #{_decoder_forward_impl.1} parent=5 // pred_check
        _
      $region10: #{_decoder_forward_impl.1} parent=5 // pred_check_branch
        %321 = sbr.rel (%p318) target = $region12
      $region11: #{_decoder_forward_impl.1} parent=5 // pred_region
        %s322 = ssub.s32 %s25, 1
        // Predicated region
        $region13: #{_decoder_forward_impl.1} parent=11 // pred_check
          %p323 = pneg %p72
        $region14: #{_decoder_forward_impl.1} parent=11 // pred_check_branch
          %325 = sbr.rel (%p323) target = $region16
        $region15: #{_decoder_forward_impl.1} parent=11 // pred_region
          %327 = vsyncadd [#allocation5], 0
          %s329 = sshll.u32 %s1, 4
          %s330 = int_to_ptr.hbm [resolvable:$true] %s329
          %s331 = sshll.u32 [#allocation4], 4
          %s332 = int_to_ptr.vmem [resolvable:$true] %s331
          %334 = dma.hbm_to_vmem [thread:$0]  %s330, 512, %s332, [#allocation5]
        $region16: #{_decoder_forward_impl.1} parent=11 // pred_fallthru
          _
        // Predicated region
        $region17: #{_decoder_forward_impl.1} parent=11 // pred_check
          %p335 = pneg %p93
        $region18: #{_decoder_forward_impl.1} parent=11 // pred_check_branch
          %337 = sbr.rel (%p335) target = $region20
        $region19: #{_decoder_forward_impl.1} parent=11 // pred_region
          %339 = vsyncadd [#allocation5], 0
          %s341 = sshll.u32 %s2, 4
          %s342 = int_to_ptr.hbm [resolvable:$true] %s341
          %s343 = sshll.u32 [#allocation6], 4
          %s344 = int_to_ptr.vmem [resolvable:$true] %s343
          %346 = dma.hbm_to_vmem [thread:$0]  %s342, 128, %s344, [#allocation5]
        $region20: #{_decoder_forward_impl.1} parent=11 // pred_fallthru
          _
        // Predicated region
        $region21: #{_decoder_forward_impl.1} parent=11 // pred_check
          %p347 = pneg %p114
        $region22: #{_decoder_forward_impl.1} parent=11 // pred_check_branch
          %349 = sbr.rel (%p347) target = $region24
        $region23: #{_decoder_forward_impl.1} parent=11 // pred_region
          %351 = vsyncadd [#allocation8], 0
          %s352 = sshll.u32 %s3, 4
          %s353 = int_to_ptr.hbm [resolvable:$true] %s352
          %s354 = sshll.u32 [#allocation7], 4
          %s355 = int_to_ptr.vmem [resolvable:$true] %s354
          %360 = dma.hbm_to_vmem [thread:$0]  %s353, 6144, %s355, [#allocation8], 384, 384, 24
        $region24: #{_decoder_forward_impl.1} parent=11 // pred_fallthru
          _
        // Predicated region
        $region25: #{_decoder_forward_impl.1} parent=11 // pred_check
          %p361 = pneg %p135
        $region26: #{_decoder_forward_impl.1} parent=11 // pred_check_branch
          %363 = sbr.rel (%p361) target = $region28
        $region27: #{_decoder_forward_impl.1} parent=11 // pred_region
          %365 = vsyncadd [#allocation8], 0
          %s366 = sshll.u32 %s4, 4
          %s367 = int_to_ptr.hbm [resolvable:$true] %s366
          %s368 = sshll.u32 [#allocation9], 4
          %s369 = int_to_ptr.vmem [resolvable:$true] %s368
          %374 = dma.hbm_to_vmem [thread:$0]  %s367, 768, %s369, [#allocation8], 64, 64, 4
        $region28: #{_decoder_forward_impl.1} parent=11 // pred_fallthru
          _
        // Predicated region
        $region29: #{_decoder_forward_impl.1} parent=11 // pred_check
          %p375 = pneg %p156
        $region30: #{_decoder_forward_impl.1} parent=11 // pred_check_branch
          %377 = sbr.rel (%p375) target = $region32
        $region31: #{_decoder_forward_impl.1} parent=11 // pred_region
          _
        $region32: #{_decoder_forward_impl.1} parent=11 // pred_fallthru
          _
        // Predicated region
        $region33: #{_decoder_forward_impl.1} parent=11 // pred_check
          %p378 = pneg %p177
        $region34: #{_decoder_forward_impl.1} parent=11 // pred_check_branch
          %380 = sbr.rel (%p378) target = $region36
        $region35: #{_decoder_forward_impl.1} parent=11 // pred_region
          %382 = vsyncadd [#allocation11], 0
          %s383 = sshll.u32 %s6, 4
          %s384 = int_to_ptr.hbm [resolvable:$true] %s383
          %s385 = sshll.u32 [#allocation10], 4
          %s386 = int_to_ptr.vmem [resolvable:$true] %s385
          %391 = dma.hbm_to_vmem [thread:$0]  %s384, 18432, %s386, [#allocation11], 576, 576, 36
        $region36: #{_decoder_forward_impl.1} parent=11 // pred_fallthru
          _
        // Predicated region
        $region37: #{_decoder_forward_impl.1} parent=11 // pred_check
          %p392 = pneg %p198
        $region38: #{_decoder_forward_impl.1} parent=11 // pred_check_branch
          %394 = sbr.rel (%p392) target = $region40
        $region39: #{_decoder_forward_impl.1} parent=11 // pred_region
          %396 = vsyncadd [#allocation11], 0
          %s397 = sshll.u32 %s7, 4
          %s398 = int_to_ptr.hbm [resolvable:$true] %s397
          %s399 = sshll.u32 [#allocation12], 4
          %s400 = int_to_ptr.vmem [resolvable:$true] %s399
          %405 = dma.hbm_to_vmem [thread:$0]  %s398, 6528, %s400, [#allocation11], 192, 192, 12
        $region40: #{_decoder_forward_impl.1} parent=11 // pred_fallthru
          _
        // Predicated region
        $region41: #{_decoder_forward_impl.1} parent=11 // pred_check
          %p406 = pneg %p219
        $region42: #{_decoder_forward_impl.1} parent=11 // pred_check_branch
          %408 = sbr.rel (%p406) target = $region44
        $region43: #{_decoder_forward_impl.1} parent=11 // pred_region
          _
        $region44: #{_decoder_forward_impl.1} parent=11 // pred_fallthru
          _
        // Predicated region
        $region45: #{_decoder_forward_impl.1} parent=11 // pred_check
          %p409 = pneg %p240
        $region46: #{_decoder_forward_impl.1} parent=11 // pred_check_branch
          %411 = sbr.rel (%p409) target = $region48
        $region47: #{_decoder_forward_impl.1} parent=11 // pred_region
          %413 = vsyncadd [#allocation14], 0
          %s414 = sshll.u32 %s9, 4
          %s415 = int_to_ptr.hbm [resolvable:$true] %s414
          %s416 = sshll.u32 [#allocation13], 4
          %s417 = int_to_ptr.vmem [resolvable:$true] %s416
          %422 = dma.hbm_to_vmem [thread:$0]  %s415, 18432, %s417, [#allocation14], 384, 384, 24
        $region48: #{_decoder_forward_impl.1} parent=11 // pred_fallthru
          _
        // Predicated region
        $region49: #{_decoder_forward_impl.1} parent=11 // pred_check
          %p423 = pneg %p261
        $region50: #{_decoder_forward_impl.1} parent=11 // pred_check_branch
          %425 = sbr.rel (%p423) target = $region52
        $region51: #{_decoder_forward_impl.1} parent=11 // pred_region
          %427 = vsyncadd [#allocation14], 0
          %s428 = sshll.u32 %s10, 4
          %s429 = int_to_ptr.hbm [resolvable:$true] %s428
          %s430 = sshll.u32 [#allocation15], 4
          %s431 = int_to_ptr.vmem [resolvable:$true] %s430
          %436 = dma.hbm_to_vmem [thread:$0]  %s429, 15232, %s431, [#allocation14], 448, 448, 28
        $region52: #{_decoder_forward_impl.1} parent=11 // pred_fallthru
          _
        // Predicated region
        $region53: #{_decoder_forward_impl.1} parent=11 // pred_check
          %p437 = pneg %p282
        $region54: #{_decoder_forward_impl.1} parent=11 // pred_check_branch
          %439 = sbr.rel (%p437) target = $region56
        $region55: #{_decoder_forward_impl.1} parent=11 // pred_region
          _
        $region56: #{_decoder_forward_impl.1} parent=11 // pred_fallthru
          _
      $region12: #{_decoder_forward_impl.1} parent=5 // pred_fallthru
        _
      %p440 = scmp.lt.s32.totalorder %s25, 2
      // Predicated region
      $region57: #{_decoder_forward_impl.1} parent=5 // pred_check
        %p441 = pneg %p440
      $region58: #{_decoder_forward_impl.1} parent=5 // pred_check_branch
        %443 = sbr.rel (%p441) target = $region60
      $region59: #{_decoder_forward_impl.1} parent=5 // pred_region
        // Predicated region
        $region61: #{_decoder_forward_impl.1} parent=59 // pred_check
          %p444 = pneg %p45
        $region62: #{_decoder_forward_impl.1} parent=59 // pred_check_branch
          %446 = sbr.rel (%p444) target = $region64
        $region63: #{_decoder_forward_impl.1} parent=59 // pred_region
          %s447 = sand.u32 %s35, 1
          %s448 = scalar_lea.sflag [#allocation3], %s447
          %s449 = sand.u32 %s35, 1
          %s450 = smul.addr %s449, 4
          %s451 = scalar_lea.vmem [#allocation2], %s450
          %453 = vsyncadd %s448, 0
          %s454 = smul.addr %s25, 4
          %s455 = scalar_lea.hbm %s0, %s454
          %s457 = sshll.u32 %s455, 4
          %s458 = int_to_ptr.hbm [resolvable:$true] %s457
          %s459 = sshll.u32 %s451, 4
          %s460 = int_to_ptr.vmem [resolvable:$true] %s459
          %462 = dma.hbm_to_vmem [thread:$0]  %s458, 64, %s460, %s448
        $region64: #{_decoder_forward_impl.1} parent=59 // pred_fallthru
          _
      $region60: #{_decoder_forward_impl.1} parent=5 // pred_fallthru
        _
      %p463 = scmp.le.s32.totalorder 1, %s25
      %p464 = scmp.lt.s32.totalorder %s25, 3
      %p465 = pnand %p463, %p464
      %p466 = pneg %p465
      // Predicated region
      $region65: #{_decoder_forward_impl.1} parent=5 // pred_check
        _
      $region66: #{_decoder_forward_impl.1} parent=5 // pred_check_branch
        %468 = sbr.rel (%p465) target = $region68
      $region67: #{_decoder_forward_impl.1} parent=5 // pred_region
        %s469 = ssub.s32 %s25, 1
        %s470 = sand.u32 %s38, 1
        %s471 = scalar_lea.sflag [#allocation3], %s470
        %s472 = sand.u32 %s38, 1
        %s473 = smul.addr %s472, 4
        %s474 = scalar_lea.vmem [#allocation2], %s473
        // Predicated region
        $region69: #{_decoder_forward_impl.1} parent=67 // pred_check
          %p475 = pneg %p51
        $region70: #{_decoder_forward_impl.1} parent=67 // pred_check_branch
          %477 = sbr.rel (%p475) target = $region72
        $region71: #{_decoder_forward_impl.1} parent=67 // pred_region
          %479 = dma.done %s471, 64
        $region72: #{_decoder_forward_impl.1} parent=67 // pred_fallthru
          _
        // Predicated region
        $region73: #{_decoder_forward_impl.1} parent=67 // pred_check
          %p480 = pneg %p72
        $region74: #{_decoder_forward_impl.1} parent=67 // pred_check_branch
          %482 = sbr.rel (%p480) target = $region76
        $region75: #{_decoder_forward_impl.1} parent=67 // pred_region
          %484 = dma.done [#allocation5], 512
        $region76: #{_decoder_forward_impl.1} parent=67 // pred_fallthru
          _
        // Predicated region
        $region77: #{_decoder_forward_impl.1} parent=67 // pred_check
          %p485 = pneg %p93
        $region78: #{_decoder_forward_impl.1} parent=67 // pred_check_branch
          %487 = sbr.rel (%p485) target = $region80
        $region79: #{_decoder_forward_impl.1} parent=67 // pred_region
          %489 = dma.done [#allocation5], 128
        $region80: #{_decoder_forward_impl.1} parent=67 // pred_fallthru
          _
        // Predicated region
        $region81: #{_decoder_forward_impl.1} parent=67 // pred_check
          %p490 = pneg %p114
        $region82: #{_decoder_forward_impl.1} parent=67 // pred_check_branch
          %492 = sbr.rel (%p490) target = $region84
        $region83: #{_decoder_forward_impl.1} parent=67 // pred_region
          %494 = dma.done [#allocation8], 6144
        $region84: #{_decoder_forward_impl.1} parent=67 // pred_fallthru
          _
        // Predicated region
        $region85: #{_decoder_forward_impl.1} parent=67 // pred_check
          %p495 = pneg %p135
        $region86: #{_decoder_forward_impl.1} parent=67 // pred_check_branch
          %497 = sbr.rel (%p495) target = $region88
        $region87: #{_decoder_forward_impl.1} parent=67 // pred_region
          %499 = dma.done [#allocation8], 768
        $region88: #{_decoder_forward_impl.1} parent=67 // pred_fallthru
          _
        // Predicated region
        $region89: #{_decoder_forward_impl.1} parent=67 // pred_check
          %p500 = pneg %p177
        $region90: #{_decoder_forward_impl.1} parent=67 // pred_check_branch
          %502 = sbr.rel (%p500) target = $region92
        $region91: #{_decoder_forward_impl.1} parent=67 // pred_region
          %504 = dma.done [#allocation11], 18432
        $region92: #{_decoder_forward_impl.1} parent=67 // pred_fallthru
          _
        // Predicated region
        $region93: #{_decoder_forward_impl.1} parent=67 // pred_check
          %p505 = pneg %p198
        $region94: #{_decoder_forward_impl.1} parent=67 // pred_check_branch
          %507 = sbr.rel (%p505) target = $region96
        $region95: #{_decoder_forward_impl.1} parent=67 // pred_region
          %509 = dma.done [#allocation11], 6528
        $region96: #{_decoder_forward_impl.1} parent=67 // pred_fallthru
          _
        // Predicated region
        $region97: #{_decoder_forward_impl.1} parent=67 // pred_check
          %p510 = pneg %p240
        $region98: #{_decoder_forward_impl.1} parent=67 // pred_check_branch
          %512 = sbr.rel (%p510) target = $region100
        $region99: #{_decoder_forward_impl.1} parent=67 // pred_region
          %514 = dma.done [#allocation14], 18432
        $region100: #{_decoder_forward_impl.1} parent=67 // pred_fallthru
          _
        // Predicated region
        $region101: #{_decoder_forward_impl.1} parent=67 // pred_check
          %p515 = pneg %p261
        $region102: #{_decoder_forward_impl.1} parent=67 // pred_check_branch
          %517 = sbr.rel (%p515) target = $region104
        $region103: #{_decoder_forward_impl.1} parent=67 // pred_region
          %519 = dma.done [#allocation14], 15232
        $region104: #{_decoder_forward_impl.1} parent=67 // pred_fallthru
          _
        %s520 = sand.u32 %s38, 1
        %s521 = scalar_lea.sflag [#allocation3], %s520
        %s522 = sand.u32 %s38, 1
        %s523 = smul.addr %s522, 4
        %s524 = scalar_lea.vmem [#allocation2], %s523
        %p525 = pneg %p51
        %p526 = pneg %p48
        %p527 = pneg %p72
        %p528 = pneg %p69
        %p529 = pneg %p93
        %p530 = pneg %p90
        %p531 = pneg %p114
        %p532 = pneg %p111
        %p533 = pneg %p135
        %p534 = pneg %p132
        %p535 = pneg %p156
        %p536 = pneg %p153
        %p537 = pneg %p177
        %p538 = pneg %p174
        %p539 = pneg %p198
        %p540 = pneg %p195
        %p541 = pneg %p219
        %p542 = pneg %p216
        %p543 = pneg %p240
        %p544 = pneg %p237
        %p545 = pneg %p261
        %p546 = pneg %p258
        %p547 = pneg %p282
        %p548 = pneg %p279
        %p549 = pneg %p308
        %p550 = pneg %p305
        %p551 = scmp.lt.s32.totalorder %s30, 1
        %s552 = scalar_select %p551, %s30, 1
        %s553 = smul.addr %s552, 68
        %s554 = smul.addr %s553, 8
        %s555 = scalar_lea.vmem %s12, %s554
        %p556 = scmp.lt.s32.totalorder %s30, 1
        %s557 = scalar_select %p556, %s30, 1
        %s558 = smul.addr %s557, 68
        %s559 = smul.addr %s558, 8
        %s560 = scalar_lea.vmem %s12, %s559
        %v562 = vld [vmem:[%s474] sm:$0xf]
        %v563 = vpack.c.bf16 %v562, %v562
        %v564 = vld [vmem:[#allocation4] sm:$0xff]
        %v565 = vld [vmem:[#allocation4 + $0x8] sm:$0xff]
        %v566 = vld [vmem:[#allocation4 + $0x10] sm:$0xff]
        %v567 = vld [vmem:[#allocation4 + $0x18] sm:$0xff]
        %v568 = vld [vmem:[#allocation6] sm:$0xff]
        %v570 = vperm.slane %v568, 0
        %v571 = vperm.slane %v568, 1
        %v572 = vperm.slane %v568, 2
        %v573 = vperm.slane %v568, 3
        %v574 = vperm.slane %v568, 4
        %v575 = vperm.slane %v568, 5
        %v576 = vperm.slane %v568, 6
        %v577 = vperm.slane %v568, 7
        %v590 = vunpack.c.l.b16 %v564
        %v591 = vunpack.c.h.b16 %v564
        %v592 = vunpack.c.l.b16 %v565
        %v593 = vunpack.c.h.b16 %v565
        %v594 = vunpack.c.l.b16 %v566
        %v595 = vunpack.c.h.b16 %v566
        %v596 = vunpack.c.l.b16 %v567
        %v597 = vunpack.c.h.b16 %v567
        %v598 = vpack.c.b16 %v590, %v590
        %v599 = vpack.c.b16 %v591, %v591
        %v600 = vpack.c.b16 %v592, %v592
        %v601 = vpack.c.b16 %v593, %v593
        %v602 = vpack.c.b16 %v594, %v594
        %v603 = vpack.c.b16 %v595, %v595
        %v604 = vpack.c.b16 %v596, %v596
        %v605 = vpack.c.b16 %v597, %v597
        %vm606 = vcmask 64512
        %v608 = vsel %vm606, %v563, 0
        %vm610 = vcmask 1043456
        %v612 = vsel %vm610, %v598, 0
        %v615 = vsel %vm610, %v599, 0
        %v618 = vsel %vm610, %v600, 0
        %v621 = vsel %vm610, %v601, 0
        %v624 = vsel %vm610, %v602, 0
        %v627 = vsel %vm610, %v603, 0
        %v630 = vsel %vm610, %v604, 0
        %v633 = vsel %vm610, %v605, 0
        %635 = vmatpush.bf16.msra.mxu0 0
        %636 = vmatpush.bf16.msra.mxu0 0
        %637 = vmatpush.bf16.msra.mxu0 0
        %638 = vmatpush.bf16.msra.mxu0 0
        %639 = vmatpush.bf16.msra.mxu0 0
        %640 = vmatpush.bf16.msra.mxu0 0
        %641 = vmatpush.bf16.msra.mxu0 0
        %642 = vmatpush.bf16.msra.mxu0 %v612
        %643 = vmatmul.bf16.gmra.mxu0 %v608
        %v644 = vpop.f32.mrf.mxu0
        %v645 = vadd.f32 %v570, %v644
        %v646 = vpop.f32.mrf.mxu0
        %647 = vdwg.mxu0
        %648 = vmatpush.bf16.msra.mxu0 0
        %649 = vmatpush.bf16.msra.mxu0 0
        %650 = vmatpush.bf16.msra.mxu0 0
        %651 = vmatpush.bf16.msra.mxu0 0
        %652 = vmatpush.bf16.msra.mxu0 0
        %653 = vmatpush.bf16.msra.mxu0 0
        %654 = vmatpush.bf16.msra.mxu0 0
        %655 = vmatpush.bf16.msra.mxu0 %v615
        %656 = vmatmul.bf16.gmra.mxu0 %v608
        %v657 = vpop.f32.mrf.mxu0
        %v658 = vadd.f32 %v571, %v657
        %v659 = vpop.f32.mrf.mxu0
        %660 = vdwg.mxu0
        %661 = vmatpush.bf16.msra.mxu0 0
        %662 = vmatpush.bf16.msra.mxu0 0
        %663 = vmatpush.bf16.msra.mxu0 0
        %664 = vmatpush.bf16.msra.mxu0 0
        %665 = vmatpush.bf16.msra.mxu0 0
        %666 = vmatpush.bf16.msra.mxu0 0
        %667 = vmatpush.bf16.msra.mxu0 0
        %668 = vmatpush.bf16.msra.mxu0 %v618
        %669 = vmatmul.bf16.gmra.mxu0 %v608
        %v670 = vpop.f32.mrf.mxu0
        %v671 = vadd.f32 %v572, %v670
        %v672 = vpop.f32.mrf.mxu0
        %673 = vdwg.mxu0
        %674 = vmatpush.bf16.msra.mxu0 0
        %675 = vmatpush.bf16.msra.mxu0 0
        %676 = vmatpush.bf16.msra.mxu0 0
        %677 = vmatpush.bf16.msra.mxu0 0
        %678 = vmatpush.bf16.msra.mxu0 0
        %679 = vmatpush.bf16.msra.mxu0 0
        %680 = vmatpush.bf16.msra.mxu0 0
        %681 = vmatpush.bf16.msra.mxu0 %v621
        %682 = vmatmul.bf16.gmra.mxu0 %v608
        %v683 = vpop.f32.mrf.mxu0
        %v684 = vadd.f32 %v573, %v683
        %v685 = vpop.f32.mrf.mxu0
        %686 = vdwg.mxu0
        %687 = vmatpush.bf16.msra.mxu0 0
        %688 = vmatpush.bf16.msra.mxu0 0
        %689 = vmatpush.bf16.msra.mxu0 0
        %690 = vmatpush.bf16.msra.mxu0 0
        %691 = vmatpush.bf16.msra.mxu0 0
        %692 = vmatpush.bf16.msra.mxu0 0
        %693 = vmatpush.bf16.msra.mxu0 0
        %694 = vmatpush.bf16.msra.mxu0 %v624
        %695 = vmatmul.bf16.gmra.mxu0 %v608
        %v696 = vpop.f32.mrf.mxu0
        %v697 = vadd.f32 %v574, %v696
        %v698 = vpop.f32.mrf.mxu0
        %699 = vdwg.mxu0
        %700 = vmatpush.bf16.msra.mxu0 0
        %701 = vmatpush.bf16.msra.mxu0 0
        %702 = vmatpush.bf16.msra.mxu0 0
        %703 = vmatpush.bf16.msra.mxu0 0
        %704 = vmatpush.bf16.msra.mxu0 0
        %705 = vmatpush.bf16.msra.mxu0 0
        %706 = vmatpush.bf16.msra.mxu0 0
        %707 = vmatpush.bf16.msra.mxu0 %v627
        %708 = vmatmul.bf16.gmra.mxu0 %v608
        %v709 = vpop.f32.mrf.mxu0
        %v710 = vadd.f32 %v575, %v709
        %v711 = vpop.f32.mrf.mxu0
        %712 = vdwg.mxu0
        %713 = vmatpush.bf16.msra.mxu0 0
        %714 = vmatpush.bf16.msra.mxu0 0
        %715 = vmatpush.bf16.msra.mxu0 0
        %716 = vmatpush.bf16.msra.mxu0 0
        %717 = vmatpush.bf16.msra.mxu0 0
        %718 = vmatpush.bf16.msra.mxu0 0
        %719 = vmatpush.bf16.msra.mxu0 0
        %720 = vmatpush.bf16.msra.mxu0 %v630
        %721 = vmatmul.bf16.gmra.mxu0 %v608
        %v722 = vpop.f32.mrf.mxu0
        %v723 = vadd.f32 %v576, %v722
        %v724 = vpop.f32.mrf.mxu0
        %725 = vdwg.mxu0
        %726 = vmatpush.bf16.msra.mxu0 0
        %727 = vmatpush.bf16.msra.mxu0 0
        %728 = vmatpush.bf16.msra.mxu0 0
        %729 = vmatpush.bf16.msra.mxu0 0
        %730 = vmatpush.bf16.msra.mxu0 0
        %731 = vmatpush.bf16.msra.mxu0 0
        %732 = vmatpush.bf16.msra.mxu0 0
        %733 = vmatpush.bf16.msra.mxu0 %v633
        %734 = vmatmul.bf16.gmra.mxu0 %v608
        %v735 = vpop.f32.mrf.mxu0
        %v736 = vadd.f32 %v577, %v735
        %v737 = vpop.f32.mrf.mxu0
        %738 = vdwg.mxu0
        %v740 = vrot.slane %v658, 4
        %v743 = vrot.slane %v684, 4
        %v746 = vrot.slane %v710, 4
        %v749 = vrot.slane %v736, 4
        %v751 = vsel %vm610, %v645, %v740
        %v752 = vsel %vm610, %v671, %v743
        %v753 = vsel %vm610, %v697, %v746
        %v754 = vsel %vm610, %v723, %v749
        %v755 = vmax.f32 %v751, 0.0
        %v756 = vmax.f32 %v752, 0.0
        %v757 = vmax.f32 %v753, 0.0
        %v758 = vmax.f32 %v754, 0.0
        %v759 = vpack.c.bf16 %v756, %v755
        %v760 = vpack.c.bf16 %v758, %v757
        %v761 = vld [vmem:[#allocation7] sm:$0xff]
        %v762 = vld [vmem:[#allocation7 + $0x8] sm:$0xff]
        %v763 = vld [vmem:[#allocation7 + $0x10] sm:$0xff]
        %v764 = vld [vmem:[#allocation7 + $0x18] sm:$0xff]
        %v765 = vld [vmem:[#allocation7 + $0x20] sm:$0xff]
        %v766 = vld [vmem:[#allocation7 + $0x28] sm:$0xff]
        %v767 = vld [vmem:[#allocation7 + $0x30] sm:$0xff]
        %v768 = vld [vmem:[#allocation7 + $0x38] sm:$0xff]
        %v769 = vld [vmem:[#allocation7 + $0x40] sm:$0xff]
        %v770 = vld [vmem:[#allocation7 + $0x48] sm:$0xff]
        %v771 = vld [vmem:[#allocation7 + $0x50] sm:$0xff]
        %v772 = vld [vmem:[#allocation7 + $0x58] sm:$0xff]
        %v773 = vld [vmem:[#allocation7 + $0x60] sm:$0xff]
        %v774 = vld [vmem:[#allocation7 + $0x68] sm:$0xff]
        %v775 = vld [vmem:[#allocation7 + $0x70] sm:$0xff]
        %v776 = vld [vmem:[#allocation7 + $0x78] sm:$0xff]
        %v777 = vld [vmem:[#allocation7 + $0x80] sm:$0xff]
        %v778 = vld [vmem:[#allocation7 + $0x88] sm:$0xff]
        %v779 = vld [vmem:[#allocation7 + $0x90] sm:$0xff]
        %v780 = vld [vmem:[#allocation7 + $0x98] sm:$0xff]
        %v781 = vld [vmem:[#allocation7 + $0xa0] sm:$0xff]
        %v782 = vld [vmem:[#allocation7 + $0xa8] sm:$0xff]
        %v783 = vld [vmem:[#allocation7 + $0xb0] sm:$0xff]
        %v784 = vld [vmem:[#allocation7 + $0xb8] sm:$0xff]
        %v785 = vld [vmem:[#allocation7 + $0xc0] sm:$0xff]
        %v786 = vld [vmem:[#allocation7 + $0xc8] sm:$0xff]
        %v787 = vld [vmem:[#allocation7 + $0xd0] sm:$0xff]
        %v788 = vld [vmem:[#allocation7 + $0xd8] sm:$0xff]
        %v789 = vld [vmem:[#allocation7 + $0xe0] sm:$0xff]
        %v790 = vld [vmem:[#allocation7 + $0xe8] sm:$0xff]
        %v791 = vld [vmem:[#allocation7 + $0xf0] sm:$0xff]
        %v792 = vld [vmem:[#allocation7 + $0xf8] sm:$0xff]
        %v793 = vld [vmem:[#allocation7 + $0x100] sm:$0xff]
        %v794 = vld [vmem:[#allocation7 + $0x108] sm:$0xff]
        %v795 = vld [vmem:[#allocation7 + $0x110] sm:$0xff]
        %v796 = vld [vmem:[#allocation7 + $0x118] sm:$0xff]
        %v797 = vld [vmem:[#allocation7 + $0x120] sm:$0xff]
        %v798 = vld [vmem:[#allocation7 + $0x128] sm:$0xff]
        %v799 = vld [vmem:[#allocation7 + $0x130] sm:$0xff]
        %v800 = vld [vmem:[#allocation7 + $0x138] sm:$0xff]
        %v801 = vld [vmem:[#allocation7 + $0x140] sm:$0xff]
        %v802 = vld [vmem:[#allocation7 + $0x148] sm:$0xff]
        %v803 = vld [vmem:[#allocation7 + $0x150] sm:$0xff]
        %v804 = vld [vmem:[#allocation7 + $0x158] sm:$0xff]
        %v805 = vld [vmem:[#allocation7 + $0x160] sm:$0xff]
        %v806 = vld [vmem:[#allocation7 + $0x168] sm:$0xff]
        %v807 = vld [vmem:[#allocation7 + $0x170] sm:$0xff]
        %v808 = vld [vmem:[#allocation7 + $0x178] sm:$0xff]
        %v857 = vunpack.c.l.b16 %v761
        %v858 = vunpack.c.h.b16 %v761
        %v859 = vunpack.c.l.b16 %v762
        %v860 = vunpack.c.h.b16 %v762
        %v861 = vunpack.c.l.b16 %v763
        %v862 = vunpack.c.h.b16 %v763
        %v863 = vunpack.c.l.b16 %v764
        %v864 = vunpack.c.h.b16 %v764
        %v865 = vunpack.c.l.b16 %v765
        %v866 = vunpack.c.h.b16 %v765
        %v867 = vunpack.c.l.b16 %v766
        %v868 = vunpack.c.h.b16 %v766
        %v869 = vunpack.c.l.b16 %v767
        %v870 = vunpack.c.h.b16 %v767
        %v871 = vunpack.c.l.b16 %v768
        %v872 = vunpack.c.h.b16 %v768
        %v873 = vunpack.c.l.b16 %v769
        %v874 = vunpack.c.h.b16 %v769
        %v875 = vunpack.c.l.b16 %v770
        %v876 = vunpack.c.h.b16 %v770
        %v877 = vunpack.c.l.b16 %v771
        %v878 = vunpack.c.h.b16 %v771
        %v879 = vunpack.c.l.b16 %v772
        %v880 = vunpack.c.h.b16 %v772
        %v881 = vunpack.c.l.b16 %v773
        %v882 = vunpack.c.h.b16 %v773
        %v883 = vunpack.c.l.b16 %v774
        %v884 = vunpack.c.h.b16 %v774
        %v885 = vunpack.c.l.b16 %v775
        %v886 = vunpack.c.h.b16 %v775
        %v887 = vunpack.c.l.b16 %v776
        %v888 = vunpack.c.h.b16 %v776
        %v889 = vunpack.c.l.b16 %v777
        %v890 = vunpack.c.h.b16 %v777
        %v891 = vunpack.c.l.b16 %v778
        %v892 = vunpack.c.h.b16 %v778
        %v893 = vunpack.c.l.b16 %v779
        %v894 = vunpack.c.h.b16 %v779
        %v895 = vunpack.c.l.b16 %v780
        %v896 = vunpack.c.h.b16 %v780
        %v897 = vunpack.c.l.b16 %v781
        %v898 = vunpack.c.h.b16 %v781
        %v899 = vunpack.c.l.b16 %v782
        %v900 = vunpack.c.h.b16 %v782
        %v901 = vunpack.c.l.b16 %v783
        %v902 = vunpack.c.h.b16 %v783
        %v903 = vunpack.c.l.b16 %v784
        %v904 = vunpack.c.h.b16 %v784
        %v905 = vunpack.c.l.b16 %v785
        %v906 = vunpack.c.h.b16 %v785
        %v907 = vunpack.c.l.b16 %v786
        %v908 = vunpack.c.h.b16 %v786
        %v909 = vunpack.c.l.b16 %v787
        %v910 = vunpack.c.h.b16 %v787
        %v911 = vunpack.c.l.b16 %v788
        %v912 = vunpack.c.h.b16 %v788
        %v913 = vunpack.c.l.b16 %v789
        %v914 = vunpack.c.h.b16 %v789
        %v915 = vunpack.c.l.b16 %v790
        %v916 = vunpack.c.h.b16 %v790
        %v917 = vunpack.c.l.b16 %v791
        %v918 = vunpack.c.h.b16 %v791
        %v919 = vunpack.c.l.b16 %v792
        %v920 = vunpack.c.h.b16 %v792
        %v921 = vunpack.c.l.b16 %v793
        %v922 = vunpack.c.h.b16 %v793
        %v923 = vunpack.c.l.b16 %v794
        %v924 = vunpack.c.h.b16 %v794
        %v925 = vunpack.c.l.b16 %v795
        %v926 = vunpack.c.h.b16 %v795
        %v927 = vunpack.c.l.b16 %v796
        %v928 = vunpack.c.h.b16 %v796
        %v929 = vunpack.c.l.b16 %v797
        %v930 = vunpack.c.h.b16 %v797
        %v931 = vunpack.c.l.b16 %v798
        %v932 = vunpack.c.h.b16 %v798
        %v933 = vunpack.c.l.b16 %v799
        %v934 = vunpack.c.h.b16 %v799
        %v935 = vunpack.c.l.b16 %v800
        %v936 = vunpack.c.h.b16 %v800
        %v937 = vunpack.c.l.b16 %v801
        %v938 = vunpack.c.h.b16 %v801
        %v939 = vunpack.c.l.b16 %v802
        %v940 = vunpack.c.h.b16 %v802
        %v941 = vunpack.c.l.b16 %v803
        %v942 = vunpack.c.h.b16 %v803
        %v943 = vunpack.c.l.b16 %v804
        %v944 = vunpack.c.h.b16 %v804
        %v945 = vunpack.c.l.b16 %v805
        %v946 = vunpack.c.h.b16 %v805
        %v947 = vunpack.c.l.b16 %v806
        %v948 = vunpack.c.h.b16 %v806
        %v949 = vunpack.c.l.b16 %v807
        %v950 = vunpack.c.h.b16 %v807
        %v951 = vunpack.c.l.b16 %v808
        %v952 = vunpack.c.h.b16 %v808
        %v953 = vpack.c.b16 %v863, %v857
        %v954 = vpack.c.b16 %v864, %v858
        %v955 = vpack.c.b16 %v865, %v859
        %v956 = vpack.c.b16 %v866, %v860
        %v957 = vpack.c.b16 %v867, %v861
        %v958 = vpack.c.b16 %v868, %v862
        %v959 = vpack.c.b16 %v875, %v869
        %v960 = vpack.c.b16 %v876, %v870
        %v961 = vpack.c.b16 %v877, %v871
        %v962 = vpack.c.b16 %v878, %v872
        %v963 = vpack.c.b16 %v879, %v873
        %v964 = vpack.c.b16 %v880, %v874
        %v965 = vpack.c.b16 %v887, %v881
        %v966 = vpack.c.b16 %v888, %v882
        %v967 = vpack.c.b16 %v889, %v883
        %v968 = vpack.c.b16 %v890, %v884
        %v969 = vpack.c.b16 %v891, %v885
        %v970 = vpack.c.b16 %v892, %v886
        %v971 = vpack.c.b16 %v899, %v893
        %v972 = vpack.c.b16 %v900, %v894
        %v973 = vpack.c.b16 %v901, %v895
        %v974 = vpack.c.b16 %v902, %v896
        %v975 = vpack.c.b16 %v903, %v897
        %v976 = vpack.c.b16 %v904, %v898
        %v977 = vpack.c.b16 %v911, %v905
        %v978 = vpack.c.b16 %v912, %v906
        %v979 = vpack.c.b16 %v913, %v907
        %v980 = vpack.c.b16 %v914, %v908
        %v981 = vpack.c.b16 %v915, %v909
        %v982 = vpack.c.b16 %v916, %v910
        %v983 = vpack.c.b16 %v923, %v917
        %v984 = vpack.c.b16 %v924, %v918
        %v985 = vpack.c.b16 %v925, %v919
        %v986 = vpack.c.b16 %v926, %v920
        %v987 = vpack.c.b16 %v927, %v921
        %v988 = vpack.c.b16 %v928, %v922
        %v989 = vpack.c.b16 %v935, %v929
        %v990 = vpack.c.b16 %v936, %v930
        %v991 = vpack.c.b16 %v937, %v931
        %v992 = vpack.c.b16 %v938, %v932
        %v993 = vpack.c.b16 %v939, %v933
        %v994 = vpack.c.b16 %v940, %v934
        %v995 = vpack.c.b16 %v947, %v941
        %v996 = vpack.c.b16 %v948, %v942
        %v997 = vpack.c.b16 %v949, %v943
        %v998 = vpack.c.b16 %v950, %v944
        %v999 = vpack.c.b16 %v951, %v945
        %v1000 = vpack.c.b16 %v952, %v946
        %1049 = vmatpush.bf16.msra.mxu0 %v995
        %1050 = vmatpush.bf16.msra.mxu0 %v989
        %1051 = vmatpush.bf16.msra.mxu0 %v983
        %1052 = vmatpush.bf16.msra.mxu0 %v977
        %1053 = vmatpush.bf16.msra.mxu0 %v971
        %1054 = vmatpush.bf16.msra.mxu0 %v965
        %1055 = vmatpush.bf16.msra.mxu0 %v959
        %1056 = vmatpush.bf16.msra.mxu0 %v953
        %1057 = vmatmul.bf16.gmra.mxu0 %v759
        %v1058 = vpop.f32.mrf.mxu0
        %v1059 = vadd.f32 0.0, %v1058
        %v1060 = vpop.f32.mrf.mxu0
        %v1061 = vadd.f32 0.0, %v1060
        %1062 = vmatmul.bf16.gmra.mxu0 %v760
        %v1063 = vpop.f32.mrf.mxu0
        %v1064 = vadd.f32 0.0, %v1063
        %v1065 = vpop.f32.mrf.mxu0
        %v1066 = vadd.f32 0.0, %v1065
        %1067 = vdwg.mxu0
        %1068 = vmatpush.bf16.msra.mxu0 %v996
        %1069 = vmatpush.bf16.msra.mxu0 %v990
        %1070 = vmatpush.bf16.msra.mxu0 %v984
        %1071 = vmatpush.bf16.msra.mxu0 %v978
        %1072 = vmatpush.bf16.msra.mxu0 %v972
        %1073 = vmatpush.bf16.msra.mxu0 %v966
        %1074 = vmatpush.bf16.msra.mxu0 %v960
        %1075 = vmatpush.bf16.msra.mxu0 %v954
        %1076 = vmatmul.bf16.gmra.mxu0 %v759
        %v1077 = vpop.f32.mrf.mxu0
        %v1078 = vadd.f32 0.0, %v1077
        %v1079 = vpop.f32.mrf.mxu0
        %v1080 = vadd.f32 0.0, %v1079
        %1081 = vmatmul.bf16.gmra.mxu0 %v760
        %v1082 = vpop.f32.mrf.mxu0
        %v1083 = vadd.f32 0.0, %v1082
        %v1084 = vpop.f32.mrf.mxu0
        %v1085 = vadd.f32 0.0, %v1084
        %1086 = vdwg.mxu0
        %1087 = vmatpush.bf16.msra.mxu0 %v997
        %1088 = vmatpush.bf16.msra.mxu0 %v991
        %1089 = vmatpush.bf16.msra.mxu0 %v985
        %1090 = vmatpush.bf16.msra.mxu0 %v979
        %1091 = vmatpush.bf16.msra.mxu0 %v973
        %1092 = vmatpush.bf16.msra.mxu0 %v967
        %1093 = vmatpush.bf16.msra.mxu0 %v961
        %1094 = vmatpush.bf16.msra.mxu0 %v955
        %1095 = vmatmul.bf16.gmra.mxu0 %v759
        %v1096 = vpop.f32.mrf.mxu0
        %v1097 = vadd.f32 0.0, %v1096
        %v1098 = vpop.f32.mrf.mxu0
        %v1099 = vadd.f32 0.0, %v1098
        %1100 = vmatmul.bf16.gmra.mxu0 %v760
        %v1101 = vpop.f32.mrf.mxu0
        %v1102 = vadd.f32 0.0, %v1101
        %v1103 = vpop.f32.mrf.mxu0
        %v1104 = vadd.f32 0.0, %v1103
        %1105 = vdwg.mxu0
        %1106 = vmatpush.bf16.msra.mxu0 %v998
        %1107 = vmatpush.bf16.msra.mxu0 %v992
        %1108 = vmatpush.bf16.msra.mxu0 %v986
        %1109 = vmatpush.bf16.msra.mxu0 %v980
        %1110 = vmatpush.bf16.msra.mxu0 %v974
        %1111 = vmatpush.bf16.msra.mxu0 %v968
        %1112 = vmatpush.bf16.msra.mxu0 %v962
        %1113 = vmatpush.bf16.msra.mxu0 %v956
        %1114 = vmatmul.bf16.gmra.mxu0 %v759
        %v1115 = vpop.f32.mrf.mxu0
        %v1116 = vadd.f32 0.0, %v1115
        %v1117 = vpop.f32.mrf.mxu0
        %v1118 = vadd.f32 0.0, %v1117
        %1119 = vmatmul.bf16.gmra.mxu0 %v760
        %v1120 = vpop.f32.mrf.mxu0
        %v1121 = vadd.f32 0.0, %v1120
        %v1122 = vpop.f32.mrf.mxu0
        %v1123 = vadd.f32 0.0, %v1122
        %1124 = vdwg.mxu0
        %1125 = vmatpush.bf16.msra.mxu0 %v999
        %1126 = vmatpush.bf16.msra.mxu0 %v993
        %1127 = vmatpush.bf16.msra.mxu0 %v987
        %1128 = vmatpush.bf16.msra.mxu0 %v981
        %1129 = vmatpush.bf16.msra.mxu0 %v975
        %1130 = vmatpush.bf16.msra.mxu0 %v969
        %1131 = vmatpush.bf16.msra.mxu0 %v963
        %1132 = vmatpush.bf16.msra.mxu0 %v957
        %1133 = vmatmul.bf16.gmra.mxu0 %v759
        %v1134 = vpop.f32.mrf.mxu0
        %v1135 = vadd.f32 0.0, %v1134
        %v1136 = vpop.f32.mrf.mxu0
        %v1137 = vadd.f32 0.0, %v1136
        %1138 = vmatmul.bf16.gmra.mxu0 %v760
        %v1139 = vpop.f32.mrf.mxu0
        %v1140 = vadd.f32 0.0, %v1139
        %v1141 = vpop.f32.mrf.mxu0
        %v1142 = vadd.f32 0.0, %v1141
        %1143 = vdwg.mxu0
        %1144 = vmatpush.bf16.msra.mxu0 %v1000
        %1145 = vmatpush.bf16.msra.mxu0 %v994
        %1146 = vmatpush.bf16.msra.mxu0 %v988
        %1147 = vmatpush.bf16.msra.mxu0 %v982
        %1148 = vmatpush.bf16.msra.mxu0 %v976
        %1149 = vmatpush.bf16.msra.mxu0 %v970
        %1150 = vmatpush.bf16.msra.mxu0 %v964
        %1151 = vmatpush.bf16.msra.mxu0 %v958
        %1152 = vmatmul.bf16.gmra.mxu0 %v759
        %v1153 = vpop.f32.mrf.mxu0
        %v1154 = vadd.f32 0.0, %v1153
        %v1155 = vpop.f32.mrf.mxu0
        %v1156 = vadd.f32 0.0, %v1155
        %1157 = vmatmul.bf16.gmra.mxu0 %v760
        %v1158 = vpop.f32.mrf.mxu0
        %v1159 = vadd.f32 0.0, %v1158
        %v1160 = vpop.f32.mrf.mxu0
        %v1161 = vadd.f32 0.0, %v1160
        %1162 = vdwg.mxu0
        %v1163 = vld [vmem:[#allocation9] sm:$0xf]
        %v1164 = vld [vmem:[#allocation9 + $0x4] sm:$0xf]
        %v1165 = vld [vmem:[#allocation9 + $0x8] sm:$0xf]
        %v1166 = vld [vmem:[#allocation9 + $0xc] sm:$0xf]
        %v1167 = vld [vmem:[#allocation9 + $0x10] sm:$0xf]
        %v1168 = vld [vmem:[#allocation9 + $0x14] sm:$0xf]
        %v1169 = vld [vmem:[#allocation9 + $0x18] sm:$0xf]
        %v1170 = vld [vmem:[#allocation9 + $0x1c] sm:$0xf]
        %v1171 = vld [vmem:[#allocation9 + $0x20] sm:$0xf]
        %v1172 = vld [vmem:[#allocation9 + $0x24] sm:$0xf]
        %v1173 = vld [vmem:[#allocation9 + $0x28] sm:$0xf]
        %v1174 = vld [vmem:[#allocation9 + $0x2c] sm:$0x3]
        %v1175 = vpack.c.bf16 %v1061, %v1059
        %v1176 = vpack.c.bf16 %v1080, %v1078
        %v1177 = vpack.c.bf16 %v1066, %v1064
        %v1178 = vpack.c.bf16 %v1085, %v1083
        %v1179 = vpack.c.bf16 %v1099, %v1097
        %v1180 = vpack.c.bf16 %v1118, %v1116
        %v1181 = vpack.c.bf16 %v1104, %v1102
        %v1182 = vpack.c.bf16 %v1123, %v1121
        %v1183 = vpack.c.bf16 %v1137, %v1135
        %v1184 = vpack.c.bf16 %v1156, %v1154
        %v1185 = vpack.c.bf16 %v1142, %v1140
        %v1186 = vpack.c.bf16 %v1161, %v1159
        %v1187 = vld [vmem:[%s5] sm:$0x3]
        %v1189 = vperm.slane %v1187, 0
        %v1190 = vperm.slane %v1187, 1
        %v1205 = vunpack.c.l.b16 %v1163
        %v1206 = vunpack.c.l.b16 %v1164
        %v1207 = vunpack.c.l.b16 %v1165
        %v1208 = vunpack.c.l.b16 %v1166
        %v1209 = vunpack.c.l.b16 %v1167
        %v1210 = vunpack.c.l.b16 %v1168
        %v1211 = vunpack.c.l.b16 %v1169
        %v1212 = vunpack.c.l.b16 %v1170
        %v1213 = vunpack.c.l.b16 %v1171
        %v1214 = vunpack.c.l.b16 %v1172
        %v1215 = vunpack.c.l.b16 %v1173
        %v1216 = vunpack.c.l.b16 %v1174
        %v1217 = vpack.c.b16 %v1206, %v1205
        %v1218 = vpack.c.b16 %v1208, %v1207
        %v1219 = vpack.c.b16 %v1210, %v1209
        %v1220 = vpack.c.b16 %v1212, %v1211
        %v1221 = vpack.c.b16 %v1214, %v1213
        %v1222 = vpack.c.b16 %v1216, %v1215
        %vm1223 = vcmask 785408
        %v1225 = vsel %vm1223, %v1217, 0
        %v1228 = vsel %vm1223, %v1218, 0
        %v1231 = vsel %vm1223, %v1219, 0
        %v1234 = vsel %vm1223, %v1220, 0
        %v1237 = vsel %vm1223, %v1221, 0
        %v1240 = vsel %vm1223, %v1222, 0
        %1242 = vmatpush.bf16.msra.mxu0 0
        %1243 = vmatpush.bf16.msra.mxu0 0
        %1244 = vmatpush.bf16.msra.mxu0 %v1185
        %1245 = vmatpush.bf16.msra.mxu0 %v1183
        %1246 = vmatpush.bf16.msra.mxu0 %v1181
        %1247 = vmatpush.bf16.msra.mxu0 %v1179
        %1248 = vmatpush.bf16.msra.mxu0 %v1177
        %1249 = vmatpush.bf16.msra.mxu0 %v1175
        %1250 = vmatmul.bf16.gmra.mxu0 %v1225
        %v1251 = vpop.f32.mrf.mxu0
        %v1252 = vadd.f32 %v1189, %v1251
        %v1253 = vpop.f32.mrf.mxu0
        %v1254 = vadd.f32 %v1189, %v1253
        %1255 = vmatmul.bf16.gmra.mxu0 %v1228
        %v1256 = vpop.f32.mrf.mxu0
        %v1257 = vadd.f32 %v1189, %v1256
        %v1258 = vpop.f32.mrf.mxu0
        %v1259 = vadd.f32 %v1189, %v1258
        %1260 = vmatmul.bf16.gmra.mxu0 %v1231
        %v1261 = vpop.f32.mrf.mxu0
        %v1262 = vadd.f32 %v1189, %v1261
        %v1263 = vpop.f32.mrf.mxu0
        %v1264 = vadd.f32 %v1189, %v1263
        %1265 = vmatmul.bf16.gmra.mxu0 %v1234
        %v1266 = vpop.f32.mrf.mxu0
        %v1267 = vadd.f32 %v1189, %v1266
        %v1268 = vpop.f32.mrf.mxu0
        %v1269 = vadd.f32 %v1189, %v1268
        %1270 = vmatmul.bf16.gmra.mxu0 %v1237
        %v1271 = vpop.f32.mrf.mxu0
        %v1272 = vadd.f32 %v1189, %v1271
        %v1273 = vpop.f32.mrf.mxu0
        %v1274 = vadd.f32 %v1189, %v1273
        %1275 = vmatmul.bf16.gmra.mxu0 %v1240
        %v1276 = vpop.f32.mrf.mxu0
        %v1277 = vadd.f32 %v1189, %v1276
        %v1278 = vpop.f32.mrf.mxu0
        %v1279 = vadd.f32 %v1189, %v1278
        %1280 = vdwg.mxu0
        %1281 = vmatpush.bf16.msra.mxu0 0
        %1282 = vmatpush.bf16.msra.mxu0 0
        %1283 = vmatpush.bf16.msra.mxu0 %v1186
        %1284 = vmatpush.bf16.msra.mxu0 %v1184
        %1285 = vmatpush.bf16.msra.mxu0 %v1182
        %1286 = vmatpush.bf16.msra.mxu0 %v1180
        %1287 = vmatpush.bf16.msra.mxu0 %v1178
        %1288 = vmatpush.bf16.msra.mxu0 %v1176
        %1289 = vmatmul.bf16.gmra.mxu0 %v1225
        %v1290 = vpop.f32.mrf.mxu0
        %v1291 = vadd.f32 %v1190, %v1290
        %v1292 = vpop.f32.mrf.mxu0
        %v1293 = vadd.f32 %v1190, %v1292
        %1294 = vmatmul.bf16.gmra.mxu0 %v1228
        %v1295 = vpop.f32.mrf.mxu0
        %v1296 = vadd.f32 %v1190, %v1295
        %v1297 = vpop.f32.mrf.mxu0
        %v1298 = vadd.f32 %v1190, %v1297
        %1299 = vmatmul.bf16.gmra.mxu0 %v1231
        %v1300 = vpop.f32.mrf.mxu0
        %v1301 = vadd.f32 %v1190, %v1300
        %v1302 = vpop.f32.mrf.mxu0
        %v1303 = vadd.f32 %v1190, %v1302
        %1304 = vmatmul.bf16.gmra.mxu0 %v1234
        %v1305 = vpop.f32.mrf.mxu0
        %v1306 = vadd.f32 %v1190, %v1305
        %v1307 = vpop.f32.mrf.mxu0
        %v1308 = vadd.f32 %v1190, %v1307
        %1309 = vmatmul.bf16.gmra.mxu0 %v1237
        %v1310 = vpop.f32.mrf.mxu0
        %v1311 = vadd.f32 %v1190, %v1310
        %v1312 = vpop.f32.mrf.mxu0
        %v1313 = vadd.f32 %v1190, %v1312
        %1314 = vmatmul.bf16.gmra.mxu0 %v1240
        %v1315 = vpop.f32.mrf.mxu0
        %v1316 = vadd.f32 %v1190, %v1315
        %v1317 = vpop.f32.mrf.mxu0
        %v1318 = vadd.f32 %v1190, %v1317
        %1319 = vdwg.mxu0
        %v1320 = vmax.f32 %v1252, 0.0
        %v1321 = vmax.f32 %v1291, 0.0
        %v1322 = vmax.f32 %v1254, 0.0
        %v1323 = vmax.f32 %v1293, 0.0
        %v1324 = vmax.f32 %v1257, 0.0
        %v1325 = vmax.f32 %v1296, 0.0
        %v1326 = vmax.f32 %v1259, 0.0
        %v1327 = vmax.f32 %v1298, 0.0
        %v1328 = vmax.f32 %v1262, 0.0
        %v1329 = vmax.f32 %v1301, 0.0
        %v1330 = vmax.f32 %v1264, 0.0
        %v1331 = vmax.f32 %v1303, 0.0
        %v1332 = vmax.f32 %v1267, 0.0
        %v1333 = vmax.f32 %v1306, 0.0
        %v1334 = vmax.f32 %v1269, 0.0
        %v1335 = vmax.f32 %v1308, 0.0
        %v1336 = vmax.f32 %v1272, 0.0
        %v1337 = vmax.f32 %v1311, 0.0
        %v1338 = vmax.f32 %v1274, 0.0
        %v1339 = vmax.f32 %v1313, 0.0
        %v1340 = vmax.f32 %v1277, 0.0
        %v1341 = vmax.f32 %v1316, 0.0
        %v1342 = vmax.f32 %v1279, 0.0
        %v1343 = vmax.f32 %v1318, 0.0
        %v1344 = vpack.c.bf16 %v1322, %v1320
        %v1345 = vpack.c.bf16 %v1323, %v1321
        %v1346 = vpack.c.bf16 %v1326, %v1324
        %v1347 = vpack.c.bf16 %v1327, %v1325
        %v1348 = vpack.c.bf16 %v1330, %v1328
        %v1349 = vpack.c.bf16 %v1331, %v1329
        %v1350 = vpack.c.bf16 %v1334, %v1332
        %v1351 = vpack.c.bf16 %v1335, %v1333
        %v1352 = vpack.c.bf16 %v1338, %v1336
        %v1353 = vpack.c.bf16 %v1339, %v1337
        %v1354 = vpack.c.bf16 %v1342, %v1340
        %v1355 = vpack.c.bf16 %v1343, %v1341
        %v1356 = vld [vmem:[#allocation10] sm:$0xff]
        %v1357 = vld [vmem:[#allocation10 + $0x8] sm:$0xff]
        %v1358 = vld [vmem:[#allocation10 + $0x10] sm:$0xff]
        %v1359 = vld [vmem:[#allocation10 + $0x18] sm:$0xff]
        %v1360 = vld [vmem:[#allocation10 + $0x20] sm:$0xf]
        %v1361 = vld [vmem:[#allocation10 + $0x24] sm:$0xff]
        %v1362 = vld [vmem:[#allocation10 + $0x2c] sm:$0xff]
        %v1363 = vld [vmem:[#allocation10 + $0x34] sm:$0xff]
        %v1364 = vld [vmem:[#allocation10 + $0x3c] sm:$0xff]
        %v1365 = vld [vmem:[#allocation10 + $0x44] sm:$0xf]
        %v1366 = vld [vmem:[#allocation10 + $0x48] sm:$0xff]
        %v1367 = vld [vmem:[#allocation10 + $0x50] sm:$0xff]
        %v1368 = vld [vmem:[#allocation10 + $0x58] sm:$0xff]
        %v1369 = vld [vmem:[#allocation10 + $0x60] sm:$0xff]
        %v1370 = vld [vmem:[#allocation10 + $0x68] sm:$0xf]
        %v1371 = vld [vmem:[#allocation10 + $0x6c] sm:$0xff]
        %v1372 = vld [vmem:[#allocation10 + $0x74] sm:$0xff]
        %v1373 = vld [vmem:[#allocation10 + $0x7c] sm:$0xff]
        %v1374 = vld [vmem:[#allocation10 + $0x84] sm:$0xff]
        %v1375 = vld [vmem:[#allocation10 + $0x8c] sm:$0xf]
        %v1376 = vld [vmem:[#allocation10 + $0x90] sm:$0xff]
        %v1377 = vld [vmem:[#allocation10 + $0x98] sm:$0xff]
        %v1378 = vld [vmem:[#allocation10 + $0xa0] sm:$0xff]
        %v1379 = vld [vmem:[#allocation10 + $0xa8] sm:$0xff]
        %v1380 = vld [vmem:[#allocation10 + $0xb0] sm:$0xf]
        %v1381 = vld [vmem:[#allocation10 + $0xb4] sm:$0xff]
        %v1382 = vld [vmem:[#allocation10 + $0xbc] sm:$0xff]
        %v1383 = vld [vmem:[#allocation10 + $0xc4] sm:$0xff]
        %v1384 = vld [vmem:[#allocation10 + $0xcc] sm:$0xff]
        %v1385 = vld [vmem:[#allocation10 + $0xd4] sm:$0xf]
        %v1386 = vld [vmem:[#allocation10 + $0xd8] sm:$0xff]
        %v1387 = vld [vmem:[#allocation10 + $0xe0] sm:$0xff]
        %v1388 = vld [vmem:[#allocation10 + $0xe8] sm:$0xff]
        %v1389 = vld [vmem:[#allocation10 + $0xf0] sm:$0xff]
        %v1390 = vld [vmem:[#allocation10 + $0xf8] sm:$0xf]
        %v1391 = vld [vmem:[#allocation10 + $0xfc] sm:$0xff]
        %v1392 = vld [vmem:[#allocation10 + $0x104] sm:$0xff]
        %v1393 = vld [vmem:[#allocation10 + $0x10c] sm:$0xff]
        %v1394 = vld [vmem:[#allocation10 + $0x114] sm:$0xff]
        %v1395 = vld [vmem:[#allocation10 + $0x11c] sm:$0xf]
        %v1396 = vld [vmem:[#allocation10 + $0x120] sm:$0xff]
        %v1397 = vld [vmem:[#allocation10 + $0x128] sm:$0xff]
        %v1398 = vld [vmem:[#allocation10 + $0x130] sm:$0xff]
        %v1399 = vld [vmem:[#allocation10 + $0x138] sm:$0xff]
        %v1400 = vld [vmem:[#allocation10 + $0x140] sm:$0xf]
        %v1401 = vld [vmem:[#allocation10 + $0x144] sm:$0xff]
        %v1402 = vld [vmem:[#allocation10 + $0x14c] sm:$0xff]
        %v1403 = vld [vmem:[#allocation10 + $0x154] sm:$0xff]
        %v1404 = vld [vmem:[#allocation10 + $0x15c] sm:$0xff]
        %v1405 = vld [vmem:[#allocation10 + $0x164] sm:$0xf]
        %v1406 = vld [vmem:[#allocation10 + $0x168] sm:$0xff]
        %v1407 = vld [vmem:[#allocation10 + $0x170] sm:$0xff]
        %v1408 = vld [vmem:[#allocation10 + $0x178] sm:$0xff]
        %v1409 = vld [vmem:[#allocation10 + $0x180] sm:$0xff]
        %v1410 = vld [vmem:[#allocation10 + $0x188] sm:$0xf]
        %v1411 = vld [vmem:[#allocation10 + $0x18c] sm:$0xff]
        %v1412 = vld [vmem:[#allocation10 + $0x194] sm:$0xff]
        %v1413 = vld [vmem:[#allocation10 + $0x19c] sm:$0xff]
        %v1414 = vld [vmem:[#allocation10 + $0x1a4] sm:$0xff]
        %v1415 = vld [vmem:[#allocation10 + $0x1ac] sm:$0xf]
        %v1416 = vld [vmem:[#allocation10 + $0x1b0] sm:$0xff]
        %v1417 = vld [vmem:[#allocation10 + $0x1b8] sm:$0xff]
        %v1418 = vld [vmem:[#allocation10 + $0x1c0] sm:$0xff]
        %v1419 = vld [vmem:[#allocation10 + $0x1c8] sm:$0xff]
        %v1420 = vld [vmem:[#allocation10 + $0x1d0] sm:$0xf]
        %v1421 = vld [vmem:[#allocation10 + $0x1d4] sm:$0xff]
        %v1422 = vld [vmem:[#allocation10 + $0x1dc] sm:$0xff]
        %v1423 = vld [vmem:[#allocation10 + $0x1e4] sm:$0xff]
        %v1424 = vld [vmem:[#allocation10 + $0x1ec] sm:$0xff]
        %v1425 = vld [vmem:[#allocation10 + $0x1f4] sm:$0xf]
        %v1426 = vld [vmem:[#allocation10 + $0x1f8] sm:$0xff]
        %v1427 = vld [vmem:[#allocation10 + $0x200] sm:$0xff]
        %v1428 = vld [vmem:[#allocation10 + $0x208] sm:$0xff]
        %v1429 = vld [vmem:[#allocation10 + $0x210] sm:$0xff]
        %v1430 = vld [vmem:[#allocation10 + $0x218] sm:$0xf]
        %v1431 = vld [vmem:[#allocation10 + $0x21c] sm:$0xff]
        %v1432 = vld [vmem:[#allocation10 + $0x224] sm:$0xff]
        %v1433 = vld [vmem:[#allocation10 + $0x22c] sm:$0xff]
        %v1434 = vld [vmem:[#allocation10 + $0x234] sm:$0xff]
        %v1435 = vld [vmem:[#allocation10 + $0x23c] sm:$0xf]
        %v1436 = vld [vmem:[#allocation10 + $0x240] sm:$0xff]
        %v1437 = vld [vmem:[#allocation10 + $0x248] sm:$0xff]
        %v1438 = vld [vmem:[#allocation10 + $0x250] sm:$0xff]
        %v1439 = vld [vmem:[#allocation10 + $0x258] sm:$0xff]
        %v1440 = vld [vmem:[#allocation10 + $0x260] sm:$0xf]
        %v1441 = vld [vmem:[#allocation10 + $0x264] sm:$0xff]
        %v1442 = vld [vmem:[#allocation10 + $0x26c] sm:$0xff]
        %v1443 = vld [vmem:[#allocation10 + $0x274] sm:$0xff]
        %v1444 = vld [vmem:[#allocation10 + $0x27c] sm:$0xff]
        %v1445 = vld [vmem:[#allocation10 + $0x284] sm:$0xf]
        %v1446 = vld [vmem:[#allocation10 + $0x288] sm:$0xff]
        %v1447 = vld [vmem:[#allocation10 + $0x290] sm:$0xff]
        %v1448 = vld [vmem:[#allocation10 + $0x298] sm:$0xff]
        %v1449 = vld [vmem:[#allocation10 + $0x2a0] sm:$0xff]
        %v1450 = vld [vmem:[#allocation10 + $0x2a8] sm:$0xf]
        %v1451 = vld [vmem:[#allocation10 + $0x2ac] sm:$0xff]
        %v1452 = vld [vmem:[#allocation10 + $0x2b4] sm:$0xff]
        %v1453 = vld [vmem:[#allocation10 + $0x2bc] sm:$0xff]
        %v1454 = vld [vmem:[#allocation10 + $0x2c4] sm:$0xff]
        %v1455 = vld [vmem:[#allocation10 + $0x2cc] sm:$0xf]
        %v1456 = vld [vmem:[#allocation10 + $0x2d0] sm:$0xff]
        %v1457 = vld [vmem:[#allocation10 + $0x2d8] sm:$0xff]
        %v1458 = vld [vmem:[#allocation10 + $0x2e0] sm:$0xff]
        %v1459 = vld [vmem:[#allocation10 + $0x2e8] sm:$0xff]
        %v1460 = vld [vmem:[#allocation10 + $0x2f0] sm:$0xf]
        %v1461 = vld [vmem:[#allocation10 + $0x2f4] sm:$0xff]
        %v1462 = vld [vmem:[#allocation10 + $0x2fc] sm:$0xff]
        %v1463 = vld [vmem:[#allocation10 + $0x304] sm:$0xff]
        %v1464 = vld [vmem:[#allocation10 + $0x30c] sm:$0xff]
        %v1465 = vld [vmem:[#allocation10 + $0x314] sm:$0xf]
        %v1466 = vld [vmem:[#allocation10 + $0x318] sm:$0xff]
        %v1467 = vld [vmem:[#allocation10 + $0x320] sm:$0xff]
        %v1468 = vld [vmem:[#allocation10 + $0x328] sm:$0xff]
        %v1469 = vld [vmem:[#allocation10 + $0x330] sm:$0xff]
        %v1470 = vld [vmem:[#allocation10 + $0x338] sm:$0xf]
        %v1471 = vld [vmem:[#allocation10 + $0x33c] sm:$0xff]
        %v1472 = vld [vmem:[#allocation10 + $0x344] sm:$0xff]
        %v1473 = vld [vmem:[#allocation10 + $0x34c] sm:$0xff]
        %v1474 = vld [vmem:[#allocation10 + $0x354] sm:$0xff]
        %v1475 = vld [vmem:[#allocation10 + $0x35c] sm:$0xf]
        %v1476 = vld [vmem:[#allocation10 + $0x360] sm:$0xff]
        %v1477 = vld [vmem:[#allocation10 + $0x368] sm:$0xff]
        %v1478 = vld [vmem:[#allocation10 + $0x370] sm:$0xff]
        %v1479 = vld [vmem:[#allocation10 + $0x378] sm:$0xff]
        %v1480 = vld [vmem:[#allocation10 + $0x380] sm:$0xf]
        %v1481 = vld [vmem:[#allocation10 + $0x384] sm:$0xff]
        %v1482 = vld [vmem:[#allocation10 + $0x38c] sm:$0xff]
        %v1483 = vld [vmem:[#allocation10 + $0x394] sm:$0xff]
        %v1484 = vld [vmem:[#allocation10 + $0x39c] sm:$0xff]
        %v1485 = vld [vmem:[#allocation10 + $0x3a4] sm:$0xf]
        %v1486 = vld [vmem:[#allocation10 + $0x3a8] sm:$0xff]
        %v1487 = vld [vmem:[#allocation10 + $0x3b0] sm:$0xff]
        %v1488 = vld [vmem:[#allocation10 + $0x3b8] sm:$0xff]
        %v1489 = vld [vmem:[#allocation10 + $0x3c0] sm:$0xff]
        %v1490 = vld [vmem:[#allocation10 + $0x3c8] sm:$0xf]
        %v1491 = vld [vmem:[#allocation10 + $0x3cc] sm:$0xff]
        %v1492 = vld [vmem:[#allocation10 + $0x3d4] sm:$0xff]
        %v1493 = vld [vmem:[#allocation10 + $0x3dc] sm:$0xff]
        %v1494 = vld [vmem:[#allocation10 + $0x3e4] sm:$0xff]
        %v1495 = vld [vmem:[#allocation10 + $0x3ec] sm:$0xf]
        %v1496 = vld [vmem:[#allocation10 + $0x3f0] sm:$0xff]
        %v1497 = vld [vmem:[#allocation10 + $0x3f8] sm:$0xff]
        %v1498 = vld [vmem:[#allocation10 + $0x400] sm:$0xff]
        %v1499 = vld [vmem:[#allocation10 + $0x408] sm:$0xff]
        %v1500 = vld [vmem:[#allocation10 + $0x410] sm:$0xf]
        %v1501 = vld [vmem:[#allocation10 + $0x414] sm:$0xff]
        %v1502 = vld [vmem:[#allocation10 + $0x41c] sm:$0xff]
        %v1503 = vld [vmem:[#allocation10 + $0x424] sm:$0xff]
        %v1504 = vld [vmem:[#allocation10 + $0x42c] sm:$0xff]
        %v1505 = vld [vmem:[#allocation10 + $0x434] sm:$0xf]
        %v1506 = vld [vmem:[#allocation10 + $0x438] sm:$0xff]
        %v1507 = vld [vmem:[#allocation10 + $0x440] sm:$0xff]
        %v1508 = vld [vmem:[#allocation10 + $0x448] sm:$0xff]
        %v1509 = vld [vmem:[#allocation10 + $0x450] sm:$0xff]
        %v1510 = vld [vmem:[#allocation10 + $0x458] sm:$0xf]
        %v1511 = vld [vmem:[#allocation10 + $0x45c] sm:$0xff]
        %v1512 = vld [vmem:[#allocation10 + $0x464] sm:$0xff]
        %v1513 = vld [vmem:[#allocation10 + $0x46c] sm:$0xff]
        %v1514 = vld [vmem:[#allocation10 + $0x474] sm:$0xff]
        %v1515 = vld [vmem:[#allocation10 + $0x47c] sm:$0xf]
        %v1676 = vunpack.c.l.b16 %v1356
        %v1677 = vunpack.c.h.b16 %v1356
        %v1678 = vunpack.c.l.b16 %v1357
        %v1679 = vunpack.c.h.b16 %v1357
        %v1680 = vunpack.c.l.b16 %v1358
        %v1681 = vunpack.c.h.b16 %v1358
        %v1682 = vunpack.c.l.b16 %v1359
        %v1683 = vunpack.c.h.b16 %v1359
        %v1684 = vunpack.c.l.b16 %v1360
        %v1685 = vunpack.c.l.b16 %v1361
        %v1686 = vunpack.c.h.b16 %v1361
        %v1687 = vunpack.c.l.b16 %v1362
        %v1688 = vunpack.c.h.b16 %v1362
        %v1689 = vunpack.c.l.b16 %v1363
        %v1690 = vunpack.c.h.b16 %v1363
        %v1691 = vunpack.c.l.b16 %v1364
        %v1692 = vunpack.c.h.b16 %v1364
        %v1693 = vunpack.c.l.b16 %v1365
        %v1694 = vunpack.c.l.b16 %v1366
        %v1695 = vunpack.c.h.b16 %v1366
        %v1696 = vunpack.c.l.b16 %v1367
        %v1697 = vunpack.c.h.b16 %v1367
        %v1698 = vunpack.c.l.b16 %v1368
        %v1699 = vunpack.c.h.b16 %v1368
        %v1700 = vunpack.c.l.b16 %v1369
        %v1701 = vunpack.c.h.b16 %v1369
        %v1702 = vunpack.c.l.b16 %v1370
        %v1703 = vunpack.c.l.b16 %v1371
        %v1704 = vunpack.c.h.b16 %v1371
        %v1705 = vunpack.c.l.b16 %v1372
        %v1706 = vunpack.c.h.b16 %v1372
        %v1707 = vunpack.c.l.b16 %v1373
        %v1708 = vunpack.c.h.b16 %v1373
        %v1709 = vunpack.c.l.b16 %v1374
        %v1710 = vunpack.c.h.b16 %v1374
        %v1711 = vunpack.c.l.b16 %v1375
        %v1712 = vunpack.c.l.b16 %v1376
        %v1713 = vunpack.c.h.b16 %v1376
        %v1714 = vunpack.c.l.b16 %v1377
        %v1715 = vunpack.c.h.b16 %v1377
        %v1716 = vunpack.c.l.b16 %v1378
        %v1717 = vunpack.c.h.b16 %v1378
        %v1718 = vunpack.c.l.b16 %v1379
        %v1719 = vunpack.c.h.b16 %v1379
        %v1720 = vunpack.c.l.b16 %v1380
        %v1721 = vunpack.c.l.b16 %v1381
        %v1722 = vunpack.c.h.b16 %v1381
        %v1723 = vunpack.c.l.b16 %v1382
        %v1724 = vunpack.c.h.b16 %v1382
        %v1725 = vunpack.c.l.b16 %v1383
        %v1726 = vunpack.c.h.b16 %v1383
        %v1727 = vunpack.c.l.b16 %v1384
        %v1728 = vunpack.c.h.b16 %v1384
        %v1729 = vunpack.c.l.b16 %v1385
        %v1730 = vunpack.c.l.b16 %v1386
        %v1731 = vunpack.c.h.b16 %v1386
        %v1732 = vunpack.c.l.b16 %v1387
        %v1733 = vunpack.c.h.b16 %v1387
        %v1734 = vunpack.c.l.b16 %v1388
        %v1735 = vunpack.c.h.b16 %v1388
        %v1736 = vunpack.c.l.b16 %v1389
        %v1737 = vunpack.c.h.b16 %v1389
        %v1738 = vunpack.c.l.b16 %v1390
        %v1739 = vunpack.c.l.b16 %v1391
        %v1740 = vunpack.c.h.b16 %v1391
        %v1741 = vunpack.c.l.b16 %v1392
        %v1742 = vunpack.c.h.b16 %v1392
        %v1743 = vunpack.c.l.b16 %v1393
        %v1744 = vunpack.c.h.b16 %v1393
        %v1745 = vunpack.c.l.b16 %v1394
        %v1746 = vunpack.c.h.b16 %v1394
        %v1747 = vunpack.c.l.b16 %v1395
        %v1748 = vunpack.c.l.b16 %v1396
        %v1749 = vunpack.c.h.b16 %v1396
        %v1750 = vunpack.c.l.b16 %v1397
        %v1751 = vunpack.c.h.b16 %v1397
        %v1752 = vunpack.c.l.b16 %v1398
        %v1753 = vunpack.c.h.b16 %v1398
        %v1754 = vunpack.c.l.b16 %v1399
        %v1755 = vunpack.c.h.b16 %v1399
        %v1756 = vunpack.c.l.b16 %v1400
        %v1757 = vunpack.c.l.b16 %v1401
        %v1758 = vunpack.c.h.b16 %v1401
        %v1759 = vunpack.c.l.b16 %v1402
        %v1760 = vunpack.c.h.b16 %v1402
        %v1761 = vunpack.c.l.b16 %v1403
        %v1762 = vunpack.c.h.b16 %v1403
        %v1763 = vunpack.c.l.b16 %v1404
        %v1764 = vunpack.c.h.b16 %v1404
        %v1765 = vunpack.c.l.b16 %v1405
        %v1766 = vunpack.c.l.b16 %v1406
        %v1767 = vunpack.c.h.b16 %v1406
        %v1768 = vunpack.c.l.b16 %v1407
        %v1769 = vunpack.c.h.b16 %v1407
        %v1770 = vunpack.c.l.b16 %v1408
        %v1771 = vunpack.c.h.b16 %v1408
        %v1772 = vunpack.c.l.b16 %v1409
        %v1773 = vunpack.c.h.b16 %v1409
        %v1774 = vunpack.c.l.b16 %v1410
        %v1775 = vunpack.c.l.b16 %v1411
        %v1776 = vunpack.c.h.b16 %v1411
        %v1777 = vunpack.c.l.b16 %v1412
        %v1778 = vunpack.c.h.b16 %v1412
        %v1779 = vunpack.c.l.b16 %v1413
        %v1780 = vunpack.c.h.b16 %v1413
        %v1781 = vunpack.c.l.b16 %v1414
        %v1782 = vunpack.c.h.b16 %v1414
        %v1783 = vunpack.c.l.b16 %v1415
        %v1784 = vunpack.c.l.b16 %v1416
        %v1785 = vunpack.c.h.b16 %v1416
        %v1786 = vunpack.c.l.b16 %v1417
        %v1787 = vunpack.c.h.b16 %v1417
        %v1788 = vunpack.c.l.b16 %v1418
        %v1789 = vunpack.c.h.b16 %v1418
        %v1790 = vunpack.c.l.b16 %v1419
        %v1791 = vunpack.c.h.b16 %v1419
        %v1792 = vunpack.c.l.b16 %v1420
        %v1793 = vunpack.c.l.b16 %v1421
        %v1794 = vunpack.c.h.b16 %v1421
        %v1795 = vunpack.c.l.b16 %v1422
        %v1796 = vunpack.c.h.b16 %v1422
        %v1797 = vunpack.c.l.b16 %v1423
        %v1798 = vunpack.c.h.b16 %v1423
        %v1799 = vunpack.c.l.b16 %v1424
        %v1800 = vunpack.c.h.b16 %v1424
        %v1801 = vunpack.c.l.b16 %v1425
        %v1802 = vunpack.c.l.b16 %v1426
        %v1803 = vunpack.c.h.b16 %v1426
        %v1804 = vunpack.c.l.b16 %v1427
        %v1805 = vunpack.c.h.b16 %v1427
        %v1806 = vunpack.c.l.b16 %v1428
        %v1807 = vunpack.c.h.b16 %v1428
        %v1808 = vunpack.c.l.b16 %v1429
        %v1809 = vunpack.c.h.b16 %v1429
        %v1810 = vunpack.c.l.b16 %v1430
        %v1811 = vunpack.c.l.b16 %v1431
        %v1812 = vunpack.c.h.b16 %v1431
        %v1813 = vunpack.c.l.b16 %v1432
        %v1814 = vunpack.c.h.b16 %v1432
        %v1815 = vunpack.c.l.b16 %v1433
        %v1816 = vunpack.c.h.b16 %v1433
        %v1817 = vunpack.c.l.b16 %v1434
        %v1818 = vunpack.c.h.b16 %v1434
        %v1819 = vunpack.c.l.b16 %v1435
        %v1820 = vunpack.c.l.b16 %v1436
        %v1821 = vunpack.c.h.b16 %v1436
        %v1822 = vunpack.c.l.b16 %v1437
        %v1823 = vunpack.c.h.b16 %v1437
        %v1824 = vunpack.c.l.b16 %v1438
        %v1825 = vunpack.c.h.b16 %v1438
        %v1826 = vunpack.c.l.b16 %v1439
        %v1827 = vunpack.c.h.b16 %v1439
        %v1828 = vunpack.c.l.b16 %v1440
        %v1829 = vunpack.c.l.b16 %v1441
        %v1830 = vunpack.c.h.b16 %v1441
        %v1831 = vunpack.c.l.b16 %v1442
        %v1832 = vunpack.c.h.b16 %v1442
        %v1833 = vunpack.c.l.b16 %v1443
        %v1834 = vunpack.c.h.b16 %v1443
        %v1835 = vunpack.c.l.b16 %v1444
        %v1836 = vunpack.c.h.b16 %v1444
        %v1837 = vunpack.c.l.b16 %v1445
        %v1838 = vunpack.c.l.b16 %v1446
        %v1839 = vunpack.c.h.b16 %v1446
        %v1840 = vunpack.c.l.b16 %v1447
        %v1841 = vunpack.c.h.b16 %v1447
        %v1842 = vunpack.c.l.b16 %v1448
        %v1843 = vunpack.c.h.b16 %v1448
        %v1844 = vunpack.c.l.b16 %v1449
        %v1845 = vunpack.c.h.b16 %v1449
        %v1846 = vunpack.c.l.b16 %v1450
        %v1847 = vunpack.c.l.b16 %v1451
        %v1848 = vunpack.c.h.b16 %v1451
        %v1849 = vunpack.c.l.b16 %v1452
        %v1850 = vunpack.c.h.b16 %v1452
        %v1851 = vunpack.c.l.b16 %v1453
        %v1852 = vunpack.c.h.b16 %v1453
        %v1853 = vunpack.c.l.b16 %v1454
        %v1854 = vunpack.c.h.b16 %v1454
        %v1855 = vunpack.c.l.b16 %v1455
        %v1856 = vunpack.c.l.b16 %v1456
        %v1857 = vunpack.c.h.b16 %v1456
        %v1858 = vunpack.c.l.b16 %v1457
        %v1859 = vunpack.c.h.b16 %v1457
        %v1860 = vunpack.c.l.b16 %v1458
        %v1861 = vunpack.c.h.b16 %v1458
        %v1862 = vunpack.c.l.b16 %v1459
        %v1863 = vunpack.c.h.b16 %v1459
        %v1864 = vunpack.c.l.b16 %v1460
        %v1865 = vunpack.c.l.b16 %v1461
        %v1866 = vunpack.c.h.b16 %v1461
        %v1867 = vunpack.c.l.b16 %v1462
        %v1868 = vunpack.c.h.b16 %v1462
        %v1869 = vunpack.c.l.b16 %v1463
        %v1870 = vunpack.c.h.b16 %v1463
        %v1871 = vunpack.c.l.b16 %v1464
        %v1872 = vunpack.c.h.b16 %v1464
        %v1873 = vunpack.c.l.b16 %v1465
        %v1874 = vunpack.c.l.b16 %v1466
        %v1875 = vunpack.c.h.b16 %v1466
        %v1876 = vunpack.c.l.b16 %v1467
        %v1877 = vunpack.c.h.b16 %v1467
        %v1878 = vunpack.c.l.b16 %v1468
        %v1879 = vunpack.c.h.b16 %v1468
        %v1880 = vunpack.c.l.b16 %v1469
        %v1881 = vunpack.c.h.b16 %v1469
        %v1882 = vunpack.c.l.b16 %v1470
        %v1883 = vunpack.c.l.b16 %v1471
        %v1884 = vunpack.c.h.b16 %v1471
        %v1885 = vunpack.c.l.b16 %v1472
        %v1886 = vunpack.c.h.b16 %v1472
        %v1887 = vunpack.c.l.b16 %v1473
        %v1888 = vunpack.c.h.b16 %v1473
        %v1889 = vunpack.c.l.b16 %v1474
        %v1890 = vunpack.c.h.b16 %v1474
        %v1891 = vunpack.c.l.b16 %v1475
        %v1892 = vunpack.c.l.b16 %v1476
        %v1893 = vunpack.c.h.b16 %v1476
        %v1894 = vunpack.c.l.b16 %v1477
        %v1895 = vunpack.c.h.b16 %v1477
        %v1896 = vunpack.c.l.b16 %v1478
        %v1897 = vunpack.c.h.b16 %v1478
        %v1898 = vunpack.c.l.b16 %v1479
        %v1899 = vunpack.c.h.b16 %v1479
        %v1900 = vunpack.c.l.b16 %v1480
        %v1901 = vunpack.c.l.b16 %v1481
        %v1902 = vunpack.c.h.b16 %v1481
        %v1903 = vunpack.c.l.b16 %v1482
        %v1904 = vunpack.c.h.b16 %v1482
        %v1905 = vunpack.c.l.b16 %v1483
        %v1906 = vunpack.c.h.b16 %v1483
        %v1907 = vunpack.c.l.b16 %v1484
        %v1908 = vunpack.c.h.b16 %v1484
        %v1909 = vunpack.c.l.b16 %v1485
        %v1910 = vunpack.c.l.b16 %v1486
        %v1911 = vunpack.c.h.b16 %v1486
        %v1912 = vunpack.c.l.b16 %v1487
        %v1913 = vunpack.c.h.b16 %v1487
        %v1914 = vunpack.c.l.b16 %v1488
        %v1915 = vunpack.c.h.b16 %v1488
        %v1916 = vunpack.c.l.b16 %v1489
        %v1917 = vunpack.c.h.b16 %v1489
        %v1918 = vunpack.c.l.b16 %v1490
        %v1919 = vunpack.c.l.b16 %v1491
        %v1920 = vunpack.c.h.b16 %v1491
        %v1921 = vunpack.c.l.b16 %v1492
        %v1922 = vunpack.c.h.b16 %v1492
        %v1923 = vunpack.c.l.b16 %v1493
        %v1924 = vunpack.c.h.b16 %v1493
        %v1925 = vunpack.c.l.b16 %v1494
        %v1926 = vunpack.c.h.b16 %v1494
        %v1927 = vunpack.c.l.b16 %v1495
        %v1928 = vunpack.c.l.b16 %v1496
        %v1929 = vunpack.c.h.b16 %v1496
        %v1930 = vunpack.c.l.b16 %v1497
        %v1931 = vunpack.c.h.b16 %v1497
        %v1932 = vunpack.c.l.b16 %v1498
        %v1933 = vunpack.c.h.b16 %v1498
        %v1934 = vunpack.c.l.b16 %v1499
        %v1935 = vunpack.c.h.b16 %v1499
        %v1936 = vunpack.c.l.b16 %v1500
        %v1937 = vunpack.c.l.b16 %v1501
        %v1938 = vunpack.c.h.b16 %v1501
        %v1939 = vunpack.c.l.b16 %v1502
        %v1940 = vunpack.c.h.b16 %v1502
        %v1941 = vunpack.c.l.b16 %v1503
        %v1942 = vunpack.c.h.b16 %v1503
        %v1943 = vunpack.c.l.b16 %v1504
        %v1944 = vunpack.c.h.b16 %v1504
        %v1945 = vunpack.c.l.b16 %v1505
        %v1946 = vunpack.c.l.b16 %v1506
        %v1947 = vunpack.c.h.b16 %v1506
        %v1948 = vunpack.c.l.b16 %v1507
        %v1949 = vunpack.c.h.b16 %v1507
        %v1950 = vunpack.c.l.b16 %v1508
        %v1951 = vunpack.c.h.b16 %v1508
        %v1952 = vunpack.c.l.b16 %v1509
        %v1953 = vunpack.c.h.b16 %v1509
        %v1954 = vunpack.c.l.b16 %v1510
        %v1955 = vunpack.c.l.b16 %v1511
        %v1956 = vunpack.c.h.b16 %v1511
        %v1957 = vunpack.c.l.b16 %v1512
        %v1958 = vunpack.c.h.b16 %v1512
        %v1959 = vunpack.c.l.b16 %v1513
        %v1960 = vunpack.c.h.b16 %v1513
        %v1961 = vunpack.c.l.b16 %v1514
        %v1962 = vunpack.c.h.b16 %v1514
        %v1963 = vunpack.c.l.b16 %v1515
        %v1964 = vpack.c.b16 %v1685, %v1676
        %v1965 = vpack.c.b16 %v1686, %v1677
        %v1966 = vpack.c.b16 %v1687, %v1678
        %v1967 = vpack.c.b16 %v1688, %v1679
        %v1968 = vpack.c.b16 %v1689, %v1680
        %v1969 = vpack.c.b16 %v1690, %v1681
        %v1970 = vpack.c.b16 %v1691, %v1682
        %v1971 = vpack.c.b16 %v1692, %v1683
        %v1972 = vpack.c.b16 %v1693, %v1684
        %v1973 = vpack.c.b16 %v1703, %v1694
        %v1974 = vpack.c.b16 %v1704, %v1695
        %v1975 = vpack.c.b16 %v1705, %v1696
        %v1976 = vpack.c.b16 %v1706, %v1697
        %v1977 = vpack.c.b16 %v1707, %v1698
        %v1978 = vpack.c.b16 %v1708, %v1699
        %v1979 = vpack.c.b16 %v1709, %v1700
        %v1980 = vpack.c.b16 %v1710, %v1701
        %v1981 = vpack.c.b16 %v1711, %v1702
        %v1982 = vpack.c.b16 %v1721, %v1712
        %v1983 = vpack.c.b16 %v1722, %v1713
        %v1984 = vpack.c.b16 %v1723, %v1714
        %v1985 = vpack.c.b16 %v1724, %v1715
        %v1986 = vpack.c.b16 %v1725, %v1716
        %v1987 = vpack.c.b16 %v1726, %v1717
        %v1988 = vpack.c.b16 %v1727, %v1718
        %v1989 = vpack.c.b16 %v1728, %v1719
        %v1990 = vpack.c.b16 %v1729, %v1720
        %v1991 = vpack.c.b16 %v1739, %v1730
        %v1992 = vpack.c.b16 %v1740, %v1731
        %v1993 = vpack.c.b16 %v1741, %v1732
        %v1994 = vpack.c.b16 %v1742, %v1733
        %v1995 = vpack.c.b16 %v1743, %v1734
        %v1996 = vpack.c.b16 %v1744, %v1735
        %v1997 = vpack.c.b16 %v1745, %v1736
        %v1998 = vpack.c.b16 %v1746, %v1737
        %v1999 = vpack.c.b16 %v1747, %v1738
        %v2000 = vpack.c.b16 %v1757, %v1748
        %v2001 = vpack.c.b16 %v1758, %v1749
        %v2002 = vpack.c.b16 %v1759, %v1750
        %v2003 = vpack.c.b16 %v1760, %v1751
        %v2004 = vpack.c.b16 %v1761, %v1752
        %v2005 = vpack.c.b16 %v1762, %v1753
        %v2006 = vpack.c.b16 %v1763, %v1754
        %v2007 = vpack.c.b16 %v1764, %v1755
        %v2008 = vpack.c.b16 %v1765, %v1756
        %v2009 = vpack.c.b16 %v1775, %v1766
        %v2010 = vpack.c.b16 %v1776, %v1767
        %v2011 = vpack.c.b16 %v1777, %v1768
        %v2012 = vpack.c.b16 %v1778, %v1769
        %v2013 = vpack.c.b16 %v1779, %v1770
        %v2014 = vpack.c.b16 %v1780, %v1771
        %v2015 = vpack.c.b16 %v1781, %v1772
        %v2016 = vpack.c.b16 %v1782, %v1773
        %v2017 = vpack.c.b16 %v1783, %v1774
        %v2018 = vpack.c.b16 %v1793, %v1784
        %v2019 = vpack.c.b16 %v1794, %v1785
        %v2020 = vpack.c.b16 %v1795, %v1786
        %v2021 = vpack.c.b16 %v1796, %v1787
        %v2022 = vpack.c.b16 %v1797, %v1788
        %v2023 = vpack.c.b16 %v1798, %v1789
        %v2024 = vpack.c.b16 %v1799, %v1790
        %v2025 = vpack.c.b16 %v1800, %v1791
        %v2026 = vpack.c.b16 %v1801, %v1792
        %v2027 = vpack.c.b16 %v1811, %v1802
        %v2028 = vpack.c.b16 %v1812, %v1803
        %v2029 = vpack.c.b16 %v1813, %v1804
        %v2030 = vpack.c.b16 %v1814, %v1805
        %v2031 = vpack.c.b16 %v1815, %v1806
        %v2032 = vpack.c.b16 %v1816, %v1807
        %v2033 = vpack.c.b16 %v1817, %v1808
        %v2034 = vpack.c.b16 %v1818, %v1809
        %v2035 = vpack.c.b16 %v1819, %v1810
        %v2036 = vpack.c.b16 %v1829, %v1820
        %v2037 = vpack.c.b16 %v1830, %v1821
        %v2038 = vpack.c.b16 %v1831, %v1822
        %v2039 = vpack.c.b16 %v1832, %v1823
        %v2040 = vpack.c.b16 %v1833, %v1824
        %v2041 = vpack.c.b16 %v1834, %v1825
        %v2042 = vpack.c.b16 %v1835, %v1826
        %v2043 = vpack.c.b16 %v1836, %v1827
        %v2044 = vpack.c.b16 %v1837, %v1828
        %v2045 = vpack.c.b16 %v1847, %v1838
        %v2046 = vpack.c.b16 %v1848, %v1839
        %v2047 = vpack.c.b16 %v1849, %v1840
        %v2048 = vpack.c.b16 %v1850, %v1841
        %v2049 = vpack.c.b16 %v1851, %v1842
        %v2050 = vpack.c.b16 %v1852, %v1843
        %v2051 = vpack.c.b16 %v1853, %v1844
        %v2052 = vpack.c.b16 %v1854, %v1845
        %v2053 = vpack.c.b16 %v1855, %v1846
        %v2054 = vpack.c.b16 %v1865, %v1856
        %v2055 = vpack.c.b16 %v1866, %v1857
        %v2056 = vpack.c.b16 %v1867, %v1858
        %v2057 = vpack.c.b16 %v1868, %v1859
        %v2058 = vpack.c.b16 %v1869, %v1860
        %v2059 = vpack.c.b16 %v1870, %v1861
        %v2060 = vpack.c.b16 %v1871, %v1862
        %v2061 = vpack.c.b16 %v1872, %v1863
        %v2062 = vpack.c.b16 %v1873, %v1864
        %v2063 = vpack.c.b16 %v1883, %v1874
        %v2064 = vpack.c.b16 %v1884, %v1875
        %v2065 = vpack.c.b16 %v1885, %v1876
        %v2066 = vpack.c.b16 %v1886, %v1877
        %v2067 = vpack.c.b16 %v1887, %v1878
        %v2068 = vpack.c.b16 %v1888, %v1879
        %v2069 = vpack.c.b16 %v1889, %v1880
        %v2070 = vpack.c.b16 %v1890, %v1881
        %v2071 = vpack.c.b16 %v1891, %v1882
        %v2072 = vpack.c.b16 %v1901, %v1892
        %v2073 = vpack.c.b16 %v1902, %v1893
        %v2074 = vpack.c.b16 %v1903, %v1894
        %v2075 = vpack.c.b16 %v1904, %v1895
        %v2076 = vpack.c.b16 %v1905, %v1896
        %v2077 = vpack.c.b16 %v1906, %v1897
        %v2078 = vpack.c.b16 %v1907, %v1898
        %v2079 = vpack.c.b16 %v1908, %v1899
        %v2080 = vpack.c.b16 %v1909, %v1900
        %v2081 = vpack.c.b16 %v1919, %v1910
        %v2082 = vpack.c.b16 %v1920, %v1911
        %v2083 = vpack.c.b16 %v1921, %v1912
        %v2084 = vpack.c.b16 %v1922, %v1913
        %v2085 = vpack.c.b16 %v1923, %v1914
        %v2086 = vpack.c.b16 %v1924, %v1915
        %v2087 = vpack.c.b16 %v1925, %v1916
        %v2088 = vpack.c.b16 %v1926, %v1917
        %v2089 = vpack.c.b16 %v1927, %v1918
        %v2090 = vpack.c.b16 %v1937, %v1928
        %v2091 = vpack.c.b16 %v1938, %v1929
        %v2092 = vpack.c.b16 %v1939, %v1930
        %v2093 = vpack.c.b16 %v1940, %v1931
        %v2094 = vpack.c.b16 %v1941, %v1932
        %v2095 = vpack.c.b16 %v1942, %v1933
        %v2096 = vpack.c.b16 %v1943, %v1934
        %v2097 = vpack.c.b16 %v1944, %v1935
        %v2098 = vpack.c.b16 %v1945, %v1936
        %v2099 = vpack.c.b16 %v1955, %v1946
        %v2100 = vpack.c.b16 %v1956, %v1947
        %v2101 = vpack.c.b16 %v1957, %v1948
        %v2102 = vpack.c.b16 %v1958, %v1949
        %v2103 = vpack.c.b16 %v1959, %v1950
        %v2104 = vpack.c.b16 %v1960, %v1951
        %v2105 = vpack.c.b16 %v1961, %v1952
        %v2106 = vpack.c.b16 %v1962, %v1953
        %v2107 = vpack.c.b16 %v1963, %v1954
        %2252 = vmatpush.bf16.msra.mxu0 %v2027
        %2253 = vmatpush.bf16.msra.mxu0 %v2018
        %2254 = vmatpush.bf16.msra.mxu0 %v2009
        %2255 = vmatpush.bf16.msra.mxu0 %v2000
        %2256 = vmatpush.bf16.msra.mxu0 %v1991
        %2257 = vmatpush.bf16.msra.mxu0 %v1982
        %2258 = vmatpush.bf16.msra.mxu0 %v1973
        %2259 = vmatpush.bf16.msra.mxu0 %v1964
        %2260 = vmatmul.bf16.gmra.mxu0 %v1344
        %v2261 = vpop.f32.mrf.mxu0
        %v2262 = vadd.f32 0.0, %v2261
        %v2263 = vpop.f32.mrf.mxu0
        %v2264 = vadd.f32 0.0, %v2263
        %2265 = vmatmul.bf16.gmra.mxu0 %v1346
        %v2266 = vpop.f32.mrf.mxu0
        %v2267 = vadd.f32 0.0, %v2266
        %v2268 = vpop.f32.mrf.mxu0
        %v2269 = vadd.f32 0.0, %v2268
        %2270 = vmatmul.bf16.gmra.mxu0 %v1348
        %v2271 = vpop.f32.mrf.mxu0
        %v2272 = vadd.f32 0.0, %v2271
        %v2273 = vpop.f32.mrf.mxu0
        %v2274 = vadd.f32 0.0, %v2273
        %2275 = vmatmul.bf16.gmra.mxu0 %v1350
        %v2276 = vpop.f32.mrf.mxu0
        %v2277 = vadd.f32 0.0, %v2276
        %v2278 = vpop.f32.mrf.mxu0
        %v2279 = vadd.f32 0.0, %v2278
        %2280 = vmatmul.bf16.gmra.mxu0 %v1352
        %v2281 = vpop.f32.mrf.mxu0
        %v2282 = vadd.f32 0.0, %v2281
        %v2283 = vpop.f32.mrf.mxu0
        %v2284 = vadd.f32 0.0, %v2283
        %2285 = vmatmul.bf16.gmra.mxu0 %v1354
        %v2286 = vpop.f32.mrf.mxu0
        %v2287 = vadd.f32 0.0, %v2286
        %v2288 = vpop.f32.mrf.mxu0
        %v2289 = vadd.f32 0.0, %v2288
        %2290 = vdwg.mxu0
        %2291 = vmatpush.bf16.msra.mxu0 %v2099
        %2292 = vmatpush.bf16.msra.mxu0 %v2090
        %2293 = vmatpush.bf16.msra.mxu0 %v2081
        %2294 = vmatpush.bf16.msra.mxu0 %v2072
        %2295 = vmatpush.bf16.msra.mxu0 %v2063
        %2296 = vmatpush.bf16.msra.mxu0 %v2054
        %2297 = vmatpush.bf16.msra.mxu0 %v2045
        %2298 = vmatpush.bf16.msra.mxu0 %v2036
        %2299 = vmatmul.bf16.gmra.mxu0 %v1345
        %v2300 = vpop.f32.mrf.mxu0
        %v2301 = vadd.f32 %v2262, %v2300
        %v2302 = vpop.f32.mrf.mxu0
        %v2303 = vadd.f32 %v2264, %v2302
        %2304 = vmatmul.bf16.gmra.mxu0 %v1347
        %v2305 = vpop.f32.mrf.mxu0
        %v2306 = vadd.f32 %v2267, %v2305
        %v2307 = vpop.f32.mrf.mxu0
        %v2308 = vadd.f32 %v2269, %v2307
        %2309 = vmatmul.bf16.gmra.mxu0 %v1349
        %v2310 = vpop.f32.mrf.mxu0
        %v2311 = vadd.f32 %v2272, %v2310
        %v2312 = vpop.f32.mrf.mxu0
        %v2313 = vadd.f32 %v2274, %v2312
        %2314 = vmatmul.bf16.gmra.mxu0 %v1351
        %v2315 = vpop.f32.mrf.mxu0
        %v2316 = vadd.f32 %v2277, %v2315
        %v2317 = vpop.f32.mrf.mxu0
        %v2318 = vadd.f32 %v2279, %v2317
        %2319 = vmatmul.bf16.gmra.mxu0 %v1353
        %v2320 = vpop.f32.mrf.mxu0
        %v2321 = vadd.f32 %v2282, %v2320
        %v2322 = vpop.f32.mrf.mxu0
        %v2323 = vadd.f32 %v2284, %v2322
        %2324 = vmatmul.bf16.gmra.mxu0 %v1355
        %v2325 = vpop.f32.mrf.mxu0
        %v2326 = vadd.f32 %v2287, %v2325
        %v2327 = vpop.f32.mrf.mxu0
        %v2328 = vadd.f32 %v2289, %v2327
        %2329 = vdwg.mxu0
        %2330 = vmatpush.bf16.msra.mxu0 %v2028
        %2331 = vmatpush.bf16.msra.mxu0 %v2019
        %2332 = vmatpush.bf16.msra.mxu0 %v2010
        %2333 = vmatpush.bf16.msra.mxu0 %v2001
        %2334 = vmatpush.bf16.msra.mxu0 %v1992
        %2335 = vmatpush.bf16.msra.mxu0 %v1983
        %2336 = vmatpush.bf16.msra.mxu0 %v1974
        %2337 = vmatpush.bf16.msra.mxu0 %v1965
        %2338 = vmatmul.bf16.gmra.mxu0 %v1344
        %v2339 = vpop.f32.mrf.mxu0
        %v2340 = vadd.f32 0.0, %v2339
        %v2341 = vpop.f32.mrf.mxu0
        %v2342 = vadd.f32 0.0, %v2341
        %2343 = vmatmul.bf16.gmra.mxu0 %v1346
        %v2344 = vpop.f32.mrf.mxu0
        %v2345 = vadd.f32 0.0, %v2344
        %v2346 = vpop.f32.mrf.mxu0
        %v2347 = vadd.f32 0.0, %v2346
        %2348 = vmatmul.bf16.gmra.mxu0 %v1348
        %v2349 = vpop.f32.mrf.mxu0
        %v2350 = vadd.f32 0.0, %v2349
        %v2351 = vpop.f32.mrf.mxu0
        %v2352 = vadd.f32 0.0, %v2351
        %2353 = vmatmul.bf16.gmra.mxu0 %v1350
        %v2354 = vpop.f32.mrf.mxu0
        %v2355 = vadd.f32 0.0, %v2354
        %v2356 = vpop.f32.mrf.mxu0
        %v2357 = vadd.f32 0.0, %v2356
        %2358 = vmatmul.bf16.gmra.mxu0 %v1352
        %v2359 = vpop.f32.mrf.mxu0
        %v2360 = vadd.f32 0.0, %v2359
        %v2361 = vpop.f32.mrf.mxu0
        %v2362 = vadd.f32 0.0, %v2361
        %2363 = vmatmul.bf16.gmra.mxu0 %v1354
        %v2364 = vpop.f32.mrf.mxu0
        %v2365 = vadd.f32 0.0, %v2364
        %v2366 = vpop.f32.mrf.mxu0
        %v2367 = vadd.f32 0.0, %v2366
        %2368 = vdwg.mxu0
        %2369 = vmatpush.bf16.msra.mxu0 %v2100
        %2370 = vmatpush.bf16.msra.mxu0 %v2091
        %2371 = vmatpush.bf16.msra.mxu0 %v2082
        %2372 = vmatpush.bf16.msra.mxu0 %v2073
        %2373 = vmatpush.bf16.msra.mxu0 %v2064
        %2374 = vmatpush.bf16.msra.mxu0 %v2055
        %2375 = vmatpush.bf16.msra.mxu0 %v2046
        %2376 = vmatpush.bf16.msra.mxu0 %v2037
        %2377 = vmatmul.bf16.gmra.mxu0 %v1345
        %v2378 = vpop.f32.mrf.mxu0
        %v2379 = vadd.f32 %v2340, %v2378
        %v2380 = vpop.f32.mrf.mxu0
        %v2381 = vadd.f32 %v2342, %v2380
        %2382 = vmatmul.bf16.gmra.mxu0 %v1347
        %v2383 = vpop.f32.mrf.mxu0
        %v2384 = vadd.f32 %v2345, %v2383
        %v2385 = vpop.f32.mrf.mxu0
        %v2386 = vadd.f32 %v2347, %v2385
        %2387 = vmatmul.bf16.gmra.mxu0 %v1349
        %v2388 = vpop.f32.mrf.mxu0
        %v2389 = vadd.f32 %v2350, %v2388
        %v2390 = vpop.f32.mrf.mxu0
        %v2391 = vadd.f32 %v2352, %v2390
        %2392 = vmatmul.bf16.gmra.mxu0 %v1351
        %v2393 = vpop.f32.mrf.mxu0
        %v2394 = vadd.f32 %v2355, %v2393
        %v2395 = vpop.f32.mrf.mxu0
        %v2396 = vadd.f32 %v2357, %v2395
        %2397 = vmatmul.bf16.gmra.mxu0 %v1353
        %v2398 = vpop.f32.mrf.mxu0
        %v2399 = vadd.f32 %v2360, %v2398
        %v2400 = vpop.f32.mrf.mxu0
        %v2401 = vadd.f32 %v2362, %v2400
        %2402 = vmatmul.bf16.gmra.mxu0 %v1355
        %v2403 = vpop.f32.mrf.mxu0
        %v2404 = vadd.f32 %v2365, %v2403
        %v2405 = vpop.f32.mrf.mxu0
        %v2406 = vadd.f32 %v2367, %v2405
        %2407 = vdwg.mxu0
        %2408 = vmatpush.bf16.msra.mxu0 %v2029
        %2409 = vmatpush.bf16.msra.mxu0 %v2020
        %2410 = vmatpush.bf16.msra.mxu0 %v2011
        %2411 = vmatpush.bf16.msra.mxu0 %v2002
        %2412 = vmatpush.bf16.msra.mxu0 %v1993
        %2413 = vmatpush.bf16.msra.mxu0 %v1984
        %2414 = vmatpush.bf16.msra.mxu0 %v1975
        %2415 = vmatpush.bf16.msra.mxu0 %v1966
        %2416 = vmatmul.bf16.gmra.mxu0 %v1344
        %v2417 = vpop.f32.mrf.mxu0
        %v2418 = vadd.f32 0.0, %v2417
        %v2419 = vpop.f32.mrf.mxu0
        %v2420 = vadd.f32 0.0, %v2419
        %2421 = vmatmul.bf16.gmra.mxu0 %v1346
        %v2422 = vpop.f32.mrf.mxu0
        %v2423 = vadd.f32 0.0, %v2422
        %v2424 = vpop.f32.mrf.mxu0
        %v2425 = vadd.f32 0.0, %v2424
        %2426 = vmatmul.bf16.gmra.mxu0 %v1348
        %v2427 = vpop.f32.mrf.mxu0
        %v2428 = vadd.f32 0.0, %v2427
        %v2429 = vpop.f32.mrf.mxu0
        %v2430 = vadd.f32 0.0, %v2429
        %2431 = vmatmul.bf16.gmra.mxu0 %v1350
        %v2432 = vpop.f32.mrf.mxu0
        %v2433 = vadd.f32 0.0, %v2432
        %v2434 = vpop.f32.mrf.mxu0
        %v2435 = vadd.f32 0.0, %v2434
        %2436 = vmatmul.bf16.gmra.mxu0 %v1352
        %v2437 = vpop.f32.mrf.mxu0
        %v2438 = vadd.f32 0.0, %v2437
        %v2439 = vpop.f32.mrf.mxu0
        %v2440 = vadd.f32 0.0, %v2439
        %2441 = vmatmul.bf16.gmra.mxu0 %v1354
        %v2442 = vpop.f32.mrf.mxu0
        %v2443 = vadd.f32 0.0, %v2442
        %v2444 = vpop.f32.mrf.mxu0
        %v2445 = vadd.f32 0.0, %v2444
        %2446 = vdwg.mxu0
        %2447 = vmatpush.bf16.msra.mxu0 %v2101
        %2448 = vmatpush.bf16.msra.mxu0 %v2092
        %2449 = vmatpush.bf16.msra.mxu0 %v2083
        %2450 = vmatpush.bf16.msra.mxu0 %v2074
        %2451 = vmatpush.bf16.msra.mxu0 %v2065
        %2452 = vmatpush.bf16.msra.mxu0 %v2056
        %2453 = vmatpush.bf16.msra.mxu0 %v2047
        %2454 = vmatpush.bf16.msra.mxu0 %v2038
        %2455 = vmatmul.bf16.gmra.mxu0 %v1345
        %v2456 = vpop.f32.mrf.mxu0
        %v2457 = vadd.f32 %v2418, %v2456
        %v2458 = vpop.f32.mrf.mxu0
        %v2459 = vadd.f32 %v2420, %v2458
        %2460 = vmatmul.bf16.gmra.mxu0 %v1347
        %v2461 = vpop.f32.mrf.mxu0
        %v2462 = vadd.f32 %v2423, %v2461
        %v2463 = vpop.f32.mrf.mxu0
        %v2464 = vadd.f32 %v2425, %v2463
        %2465 = vmatmul.bf16.gmra.mxu0 %v1349
        %v2466 = vpop.f32.mrf.mxu0
        %v2467 = vadd.f32 %v2428, %v2466
        %v2468 = vpop.f32.mrf.mxu0
        %v2469 = vadd.f32 %v2430, %v2468
        %2470 = vmatmul.bf16.gmra.mxu0 %v1351
        %v2471 = vpop.f32.mrf.mxu0
        %v2472 = vadd.f32 %v2433, %v2471
        %v2473 = vpop.f32.mrf.mxu0
        %v2474 = vadd.f32 %v2435, %v2473
        %2475 = vmatmul.bf16.gmra.mxu0 %v1353
        %v2476 = vpop.f32.mrf.mxu0
        %v2477 = vadd.f32 %v2438, %v2476
        %v2478 = vpop.f32.mrf.mxu0
        %v2479 = vadd.f32 %v2440, %v2478
        %2480 = vmatmul.bf16.gmra.mxu0 %v1355
        %v2481 = vpop.f32.mrf.mxu0
        %v2482 = vadd.f32 %v2443, %v2481
        %v2483 = vpop.f32.mrf.mxu0
        %v2484 = vadd.f32 %v2445, %v2483
        %2485 = vdwg.mxu0
        %2486 = vmatpush.bf16.msra.mxu0 %v2030
        %2487 = vmatpush.bf16.msra.mxu0 %v2021
        %2488 = vmatpush.bf16.msra.mxu0 %v2012
        %2489 = vmatpush.bf16.msra.mxu0 %v2003
        %2490 = vmatpush.bf16.msra.mxu0 %v1994
        %2491 = vmatpush.bf16.msra.mxu0 %v1985
        %2492 = vmatpush.bf16.msra.mxu0 %v1976
        %2493 = vmatpush.bf16.msra.mxu0 %v1967
        %2494 = vmatmul.bf16.gmra.mxu0 %v1344
        %v2495 = vpop.f32.mrf.mxu0
        %v2496 = vadd.f32 0.0, %v2495
        %v2497 = vpop.f32.mrf.mxu0
        %v2498 = vadd.f32 0.0, %v2497
        %2499 = vmatmul.bf16.gmra.mxu0 %v1346
        %v2500 = vpop.f32.mrf.mxu0
        %v2501 = vadd.f32 0.0, %v2500
        %v2502 = vpop.f32.mrf.mxu0
        %v2503 = vadd.f32 0.0, %v2502
        %2504 = vmatmul.bf16.gmra.mxu0 %v1348
        %v2505 = vpop.f32.mrf.mxu0
        %v2506 = vadd.f32 0.0, %v2505
        %v2507 = vpop.f32.mrf.mxu0
        %v2508 = vadd.f32 0.0, %v2507
        %2509 = vmatmul.bf16.gmra.mxu0 %v1350
        %v2510 = vpop.f32.mrf.mxu0
        %v2511 = vadd.f32 0.0, %v2510
        %v2512 = vpop.f32.mrf.mxu0
        %v2513 = vadd.f32 0.0, %v2512
        %2514 = vmatmul.bf16.gmra.mxu0 %v1352
        %v2515 = vpop.f32.mrf.mxu0
        %v2516 = vadd.f32 0.0, %v2515
        %v2517 = vpop.f32.mrf.mxu0
        %v2518 = vadd.f32 0.0, %v2517
        %2519 = vmatmul.bf16.gmra.mxu0 %v1354
        %v2520 = vpop.f32.mrf.mxu0
        %v2521 = vadd.f32 0.0, %v2520
        %v2522 = vpop.f32.mrf.mxu0
        %v2523 = vadd.f32 0.0, %v2522
        %2524 = vdwg.mxu0
        %2525 = vmatpush.bf16.msra.mxu0 %v2102
        %2526 = vmatpush.bf16.msra.mxu0 %v2093
        %2527 = vmatpush.bf16.msra.mxu0 %v2084
        %2528 = vmatpush.bf16.msra.mxu0 %v2075
        %2529 = vmatpush.bf16.msra.mxu0 %v2066
        %2530 = vmatpush.bf16.msra.mxu0 %v2057
        %2531 = vmatpush.bf16.msra.mxu0 %v2048
        %2532 = vmatpush.bf16.msra.mxu0 %v2039
        %2533 = vmatmul.bf16.gmra.mxu0 %v1345
        %v2534 = vpop.f32.mrf.mxu0
        %v2535 = vadd.f32 %v2496, %v2534
        %v2536 = vpop.f32.mrf.mxu0
        %v2537 = vadd.f32 %v2498, %v2536
        %2538 = vmatmul.bf16.gmra.mxu0 %v1347
        %v2539 = vpop.f32.mrf.mxu0
        %v2540 = vadd.f32 %v2501, %v2539
        %v2541 = vpop.f32.mrf.mxu0
        %v2542 = vadd.f32 %v2503, %v2541
        %2543 = vmatmul.bf16.gmra.mxu0 %v1349
        %v2544 = vpop.f32.mrf.mxu0
        %v2545 = vadd.f32 %v2506, %v2544
        %v2546 = vpop.f32.mrf.mxu0
        %v2547 = vadd.f32 %v2508, %v2546
        %2548 = vmatmul.bf16.gmra.mxu0 %v1351
        %v2549 = vpop.f32.mrf.mxu0
        %v2550 = vadd.f32 %v2511, %v2549
        %v2551 = vpop.f32.mrf.mxu0
        %v2552 = vadd.f32 %v2513, %v2551
        %2553 = vmatmul.bf16.gmra.mxu0 %v1353
        %v2554 = vpop.f32.mrf.mxu0
        %v2555 = vadd.f32 %v2516, %v2554
        %v2556 = vpop.f32.mrf.mxu0
        %v2557 = vadd.f32 %v2518, %v2556
        %2558 = vmatmul.bf16.gmra.mxu0 %v1355
        %v2559 = vpop.f32.mrf.mxu0
        %v2560 = vadd.f32 %v2521, %v2559
        %v2561 = vpop.f32.mrf.mxu0
        %v2562 = vadd.f32 %v2523, %v2561
        %2563 = vdwg.mxu0
        %2564 = vmatpush.bf16.msra.mxu0 %v2031
        %2565 = vmatpush.bf16.msra.mxu0 %v2022
        %2566 = vmatpush.bf16.msra.mxu0 %v2013
        %2567 = vmatpush.bf16.msra.mxu0 %v2004
        %2568 = vmatpush.bf16.msra.mxu0 %v1995
        %2569 = vmatpush.bf16.msra.mxu0 %v1986
        %2570 = vmatpush.bf16.msra.mxu0 %v1977
        %2571 = vmatpush.bf16.msra.mxu0 %v1968
        %2572 = vmatmul.bf16.gmra.mxu0 %v1344
        %v2573 = vpop.f32.mrf.mxu0
        %v2574 = vadd.f32 0.0, %v2573
        %v2575 = vpop.f32.mrf.mxu0
        %v2576 = vadd.f32 0.0, %v2575
        %2577 = vmatmul.bf16.gmra.mxu0 %v1346
        %v2578 = vpop.f32.mrf.mxu0
        %v2579 = vadd.f32 0.0, %v2578
        %v2580 = vpop.f32.mrf.mxu0
        %v2581 = vadd.f32 0.0, %v2580
        %2582 = vmatmul.bf16.gmra.mxu0 %v1348
        %v2583 = vpop.f32.mrf.mxu0
        %v2584 = vadd.f32 0.0, %v2583
        %v2585 = vpop.f32.mrf.mxu0
        %v2586 = vadd.f32 0.0, %v2585
        %2587 = vmatmul.bf16.gmra.mxu0 %v1350
        %v2588 = vpop.f32.mrf.mxu0
        %v2589 = vadd.f32 0.0, %v2588
        %v2590 = vpop.f32.mrf.mxu0
        %v2591 = vadd.f32 0.0, %v2590
        %2592 = vmatmul.bf16.gmra.mxu0 %v1352
        %v2593 = vpop.f32.mrf.mxu0
        %v2594 = vadd.f32 0.0, %v2593
        %v2595 = vpop.f32.mrf.mxu0
        %v2596 = vadd.f32 0.0, %v2595
        %2597 = vmatmul.bf16.gmra.mxu0 %v1354
        %v2598 = vpop.f32.mrf.mxu0
        %v2599 = vadd.f32 0.0, %v2598
        %v2600 = vpop.f32.mrf.mxu0
        %v2601 = vadd.f32 0.0, %v2600
        %2602 = vdwg.mxu0
        %2603 = vmatpush.bf16.msra.mxu0 %v2103
        %2604 = vmatpush.bf16.msra.mxu0 %v2094
        %2605 = vmatpush.bf16.msra.mxu0 %v2085
        %2606 = vmatpush.bf16.msra.mxu0 %v2076
        %2607 = vmatpush.bf16.msra.mxu0 %v2067
        %2608 = vmatpush.bf16.msra.mxu0 %v2058
        %2609 = vmatpush.bf16.msra.mxu0 %v2049
        %2610 = vmatpush.bf16.msra.mxu0 %v2040
        %2611 = vmatmul.bf16.gmra.mxu0 %v1345
        %v2612 = vpop.f32.mrf.mxu0
        %v2613 = vadd.f32 %v2574, %v2612
        %v2614 = vpop.f32.mrf.mxu0
        %v2615 = vadd.f32 %v2576, %v2614
        %2616 = vmatmul.bf16.gmra.mxu0 %v1347
        %v2617 = vpop.f32.mrf.mxu0
        %v2618 = vadd.f32 %v2579, %v2617
        %v2619 = vpop.f32.mrf.mxu0
        %v2620 = vadd.f32 %v2581, %v2619
        %2621 = vmatmul.bf16.gmra.mxu0 %v1349
        %v2622 = vpop.f32.mrf.mxu0
        %v2623 = vadd.f32 %v2584, %v2622
        %v2624 = vpop.f32.mrf.mxu0
        %v2625 = vadd.f32 %v2586, %v2624
        %2626 = vmatmul.bf16.gmra.mxu0 %v1351
        %v2627 = vpop.f32.mrf.mxu0
        %v2628 = vadd.f32 %v2589, %v2627
        %v2629 = vpop.f32.mrf.mxu0
        %v2630 = vadd.f32 %v2591, %v2629
        %2631 = vmatmul.bf16.gmra.mxu0 %v1353
        %v2632 = vpop.f32.mrf.mxu0
        %v2633 = vadd.f32 %v2594, %v2632
        %v2634 = vpop.f32.mrf.mxu0
        %v2635 = vadd.f32 %v2596, %v2634
        %2636 = vmatmul.bf16.gmra.mxu0 %v1355
        %v2637 = vpop.f32.mrf.mxu0
        %v2638 = vadd.f32 %v2599, %v2637
        %v2639 = vpop.f32.mrf.mxu0
        %v2640 = vadd.f32 %v2601, %v2639
        %2641 = vdwg.mxu0
        %2642 = vmatpush.bf16.msra.mxu0 %v2032
        %2643 = vmatpush.bf16.msra.mxu0 %v2023
        %2644 = vmatpush.bf16.msra.mxu0 %v2014
        %2645 = vmatpush.bf16.msra.mxu0 %v2005
        %2646 = vmatpush.bf16.msra.mxu0 %v1996
        %2647 = vmatpush.bf16.msra.mxu0 %v1987
        %2648 = vmatpush.bf16.msra.mxu0 %v1978
        %2649 = vmatpush.bf16.msra.mxu0 %v1969
        %2650 = vmatmul.bf16.gmra.mxu0 %v1344
        %v2651 = vpop.f32.mrf.mxu0
        %v2652 = vadd.f32 0.0, %v2651
        %v2653 = vpop.f32.mrf.mxu0
        %v2654 = vadd.f32 0.0, %v2653
        %2655 = vmatmul.bf16.gmra.mxu0 %v1346
        %v2656 = vpop.f32.mrf.mxu0
        %v2657 = vadd.f32 0.0, %v2656
        %v2658 = vpop.f32.mrf.mxu0
        %v2659 = vadd.f32 0.0, %v2658
        %2660 = vmatmul.bf16.gmra.mxu0 %v1348
        %v2661 = vpop.f32.mrf.mxu0
        %v2662 = vadd.f32 0.0, %v2661
        %v2663 = vpop.f32.mrf.mxu0
        %v2664 = vadd.f32 0.0, %v2663
        %2665 = vmatmul.bf16.gmra.mxu0 %v1350
        %v2666 = vpop.f32.mrf.mxu0
        %v2667 = vadd.f32 0.0, %v2666
        %v2668 = vpop.f32.mrf.mxu0
        %v2669 = vadd.f32 0.0, %v2668
        %2670 = vmatmul.bf16.gmra.mxu0 %v1352
        %v2671 = vpop.f32.mrf.mxu0
        %v2672 = vadd.f32 0.0, %v2671
        %v2673 = vpop.f32.mrf.mxu0
        %v2674 = vadd.f32 0.0, %v2673
        %2675 = vmatmul.bf16.gmra.mxu0 %v1354
        %v2676 = vpop.f32.mrf.mxu0
        %v2677 = vadd.f32 0.0, %v2676
        %v2678 = vpop.f32.mrf.mxu0
        %v2679 = vadd.f32 0.0, %v2678
        %2680 = vdwg.mxu0
        %2681 = vmatpush.bf16.msra.mxu0 %v2104
        %2682 = vmatpush.bf16.msra.mxu0 %v2095
        %2683 = vmatpush.bf16.msra.mxu0 %v2086
        %2684 = vmatpush.bf16.msra.mxu0 %v2077
        %2685 = vmatpush.bf16.msra.mxu0 %v2068
        %2686 = vmatpush.bf16.msra.mxu0 %v2059
        %2687 = vmatpush.bf16.msra.mxu0 %v2050
        %2688 = vmatpush.bf16.msra.mxu0 %v2041
        %2689 = vmatmul.bf16.gmra.mxu0 %v1345
        %v2690 = vpop.f32.mrf.mxu0
        %v2691 = vadd.f32 %v2652, %v2690
        %v2692 = vpop.f32.mrf.mxu0
        %v2693 = vadd.f32 %v2654, %v2692
        %2694 = vmatmul.bf16.gmra.mxu0 %v1347
        %v2695 = vpop.f32.mrf.mxu0
        %v2696 = vadd.f32 %v2657, %v2695
        %v2697 = vpop.f32.mrf.mxu0
        %v2698 = vadd.f32 %v2659, %v2697
        %2699 = vmatmul.bf16.gmra.mxu0 %v1349
        %v2700 = vpop.f32.mrf.mxu0
        %v2701 = vadd.f32 %v2662, %v2700
        %v2702 = vpop.f32.mrf.mxu0
        %v2703 = vadd.f32 %v2664, %v2702
        %2704 = vmatmul.bf16.gmra.mxu0 %v1351
        %v2705 = vpop.f32.mrf.mxu0
        %v2706 = vadd.f32 %v2667, %v2705
        %v2707 = vpop.f32.mrf.mxu0
        %v2708 = vadd.f32 %v2669, %v2707
        %2709 = vmatmul.bf16.gmra.mxu0 %v1353
        %v2710 = vpop.f32.mrf.mxu0
        %v2711 = vadd.f32 %v2672, %v2710
        %v2712 = vpop.f32.mrf.mxu0
        %v2713 = vadd.f32 %v2674, %v2712
        %2714 = vmatmul.bf16.gmra.mxu0 %v1355
        %v2715 = vpop.f32.mrf.mxu0
        %v2716 = vadd.f32 %v2677, %v2715
        %v2717 = vpop.f32.mrf.mxu0
        %v2718 = vadd.f32 %v2679, %v2717
        %2719 = vdwg.mxu0
        %2720 = vmatpush.bf16.msra.mxu0 %v2033
        %2721 = vmatpush.bf16.msra.mxu0 %v2024
        %2722 = vmatpush.bf16.msra.mxu0 %v2015
        %2723 = vmatpush.bf16.msra.mxu0 %v2006
        %2724 = vmatpush.bf16.msra.mxu0 %v1997
        %2725 = vmatpush.bf16.msra.mxu0 %v1988
        %2726 = vmatpush.bf16.msra.mxu0 %v1979
        %2727 = vmatpush.bf16.msra.mxu0 %v1970
        %2728 = vmatmul.bf16.gmra.mxu0 %v1344
        %v2729 = vpop.f32.mrf.mxu0
        %v2730 = vadd.f32 0.0, %v2729
        %v2731 = vpop.f32.mrf.mxu0
        %v2732 = vadd.f32 0.0, %v2731
        %2733 = vmatmul.bf16.gmra.mxu0 %v1346
        %v2734 = vpop.f32.mrf.mxu0
        %v2735 = vadd.f32 0.0, %v2734
        %v2736 = vpop.f32.mrf.mxu0
        %v2737 = vadd.f32 0.0, %v2736
        %2738 = vmatmul.bf16.gmra.mxu0 %v1348
        %v2739 = vpop.f32.mrf.mxu0
        %v2740 = vadd.f32 0.0, %v2739
        %v2741 = vpop.f32.mrf.mxu0
        %v2742 = vadd.f32 0.0, %v2741
        %2743 = vmatmul.bf16.gmra.mxu0 %v1350
        %v2744 = vpop.f32.mrf.mxu0
        %v2745 = vadd.f32 0.0, %v2744
        %v2746 = vpop.f32.mrf.mxu0
        %v2747 = vadd.f32 0.0, %v2746
        %2748 = vmatmul.bf16.gmra.mxu0 %v1352
        %v2749 = vpop.f32.mrf.mxu0
        %v2750 = vadd.f32 0.0, %v2749
        %v2751 = vpop.f32.mrf.mxu0
        %v2752 = vadd.f32 0.0, %v2751
        %2753 = vmatmul.bf16.gmra.mxu0 %v1354
        %v2754 = vpop.f32.mrf.mxu0
        %v2755 = vadd.f32 0.0, %v2754
        %v2756 = vpop.f32.mrf.mxu0
        %v2757 = vadd.f32 0.0, %v2756
        %2758 = vdwg.mxu0
        %2759 = vmatpush.bf16.msra.mxu0 %v2105
        %2760 = vmatpush.bf16.msra.mxu0 %v2096
        %2761 = vmatpush.bf16.msra.mxu0 %v2087
        %2762 = vmatpush.bf16.msra.mxu0 %v2078
        %2763 = vmatpush.bf16.msra.mxu0 %v2069
        %2764 = vmatpush.bf16.msra.mxu0 %v2060
        %2765 = vmatpush.bf16.msra.mxu0 %v2051
        %2766 = vmatpush.bf16.msra.mxu0 %v2042
        %2767 = vmatmul.bf16.gmra.mxu0 %v1345
        %v2768 = vpop.f32.mrf.mxu0
        %v2769 = vadd.f32 %v2730, %v2768
        %v2770 = vpop.f32.mrf.mxu0
        %v2771 = vadd.f32 %v2732, %v2770
        %2772 = vmatmul.bf16.gmra.mxu0 %v1347
        %v2773 = vpop.f32.mrf.mxu0
        %v2774 = vadd.f32 %v2735, %v2773
        %v2775 = vpop.f32.mrf.mxu0
        %v2776 = vadd.f32 %v2737, %v2775
        %2777 = vmatmul.bf16.gmra.mxu0 %v1349
        %v2778 = vpop.f32.mrf.mxu0
        %v2779 = vadd.f32 %v2740, %v2778
        %v2780 = vpop.f32.mrf.mxu0
        %v2781 = vadd.f32 %v2742, %v2780
        %2782 = vmatmul.bf16.gmra.mxu0 %v1351
        %v2783 = vpop.f32.mrf.mxu0
        %v2784 = vadd.f32 %v2745, %v2783
        %v2785 = vpop.f32.mrf.mxu0
        %v2786 = vadd.f32 %v2747, %v2785
        %2787 = vmatmul.bf16.gmra.mxu0 %v1353
        %v2788 = vpop.f32.mrf.mxu0
        %v2789 = vadd.f32 %v2750, %v2788
        %v2790 = vpop.f32.mrf.mxu0
        %v2791 = vadd.f32 %v2752, %v2790
        %2792 = vmatmul.bf16.gmra.mxu0 %v1355
        %v2793 = vpop.f32.mrf.mxu0
        %v2794 = vadd.f32 %v2755, %v2793
        %v2795 = vpop.f32.mrf.mxu0
        %v2796 = vadd.f32 %v2757, %v2795
        %2797 = vdwg.mxu0
        %2798 = vmatpush.bf16.msra.mxu0 %v2034
        %2799 = vmatpush.bf16.msra.mxu0 %v2025
        %2800 = vmatpush.bf16.msra.mxu0 %v2016
        %2801 = vmatpush.bf16.msra.mxu0 %v2007
        %2802 = vmatpush.bf16.msra.mxu0 %v1998
        %2803 = vmatpush.bf16.msra.mxu0 %v1989
        %2804 = vmatpush.bf16.msra.mxu0 %v1980
        %2805 = vmatpush.bf16.msra.mxu0 %v1971
        %2806 = vmatmul.bf16.gmra.mxu0 %v1344
        %v2807 = vpop.f32.mrf.mxu0
        %v2808 = vadd.f32 0.0, %v2807
        %v2809 = vpop.f32.mrf.mxu0
        %v2810 = vadd.f32 0.0, %v2809
        %2811 = vmatmul.bf16.gmra.mxu0 %v1346
        %v2812 = vpop.f32.mrf.mxu0
        %v2813 = vadd.f32 0.0, %v2812
        %v2814 = vpop.f32.mrf.mxu0
        %v2815 = vadd.f32 0.0, %v2814
        %2816 = vmatmul.bf16.gmra.mxu0 %v1348
        %v2817 = vpop.f32.mrf.mxu0
        %v2818 = vadd.f32 0.0, %v2817
        %v2819 = vpop.f32.mrf.mxu0
        %v2820 = vadd.f32 0.0, %v2819
        %2821 = vmatmul.bf16.gmra.mxu0 %v1350
        %v2822 = vpop.f32.mrf.mxu0
        %v2823 = vadd.f32 0.0, %v2822
        %v2824 = vpop.f32.mrf.mxu0
        %v2825 = vadd.f32 0.0, %v2824
        %2826 = vmatmul.bf16.gmra.mxu0 %v1352
        %v2827 = vpop.f32.mrf.mxu0
        %v2828 = vadd.f32 0.0, %v2827
        %v2829 = vpop.f32.mrf.mxu0
        %v2830 = vadd.f32 0.0, %v2829
        %2831 = vmatmul.bf16.gmra.mxu0 %v1354
        %v2832 = vpop.f32.mrf.mxu0
        %v2833 = vadd.f32 0.0, %v2832
        %v2834 = vpop.f32.mrf.mxu0
        %v2835 = vadd.f32 0.0, %v2834
        %2836 = vdwg.mxu0
        %2837 = vmatpush.bf16.msra.mxu0 %v2106
        %2838 = vmatpush.bf16.msra.mxu0 %v2097
        %2839 = vmatpush.bf16.msra.mxu0 %v2088
        %2840 = vmatpush.bf16.msra.mxu0 %v2079
        %2841 = vmatpush.bf16.msra.mxu0 %v2070
        %2842 = vmatpush.bf16.msra.mxu0 %v2061
        %2843 = vmatpush.bf16.msra.mxu0 %v2052
        %2844 = vmatpush.bf16.msra.mxu0 %v2043
        %2845 = vmatmul.bf16.gmra.mxu0 %v1345
        %v2846 = vpop.f32.mrf.mxu0
        %v2847 = vadd.f32 %v2808, %v2846
        %v2848 = vpop.f32.mrf.mxu0
        %v2849 = vadd.f32 %v2810, %v2848
        %2850 = vmatmul.bf16.gmra.mxu0 %v1347
        %v2851 = vpop.f32.mrf.mxu0
        %v2852 = vadd.f32 %v2813, %v2851
        %v2853 = vpop.f32.mrf.mxu0
        %v2854 = vadd.f32 %v2815, %v2853
        %2855 = vmatmul.bf16.gmra.mxu0 %v1349
        %v2856 = vpop.f32.mrf.mxu0
        %v2857 = vadd.f32 %v2818, %v2856
        %v2858 = vpop.f32.mrf.mxu0
        %v2859 = vadd.f32 %v2820, %v2858
        %2860 = vmatmul.bf16.gmra.mxu0 %v1351
        %v2861 = vpop.f32.mrf.mxu0
        %v2862 = vadd.f32 %v2823, %v2861
        %v2863 = vpop.f32.mrf.mxu0
        %v2864 = vadd.f32 %v2825, %v2863
        %2865 = vmatmul.bf16.gmra.mxu0 %v1353
        %v2866 = vpop.f32.mrf.mxu0
        %v2867 = vadd.f32 %v2828, %v2866
        %v2868 = vpop.f32.mrf.mxu0
        %v2869 = vadd.f32 %v2830, %v2868
        %2870 = vmatmul.bf16.gmra.mxu0 %v1355
        %v2871 = vpop.f32.mrf.mxu0
        %v2872 = vadd.f32 %v2833, %v2871
        %v2873 = vpop.f32.mrf.mxu0
        %v2874 = vadd.f32 %v2835, %v2873
        %2875 = vdwg.mxu0
        %2876 = vmatpush.bf16.msra.mxu0 %v2035
        %2877 = vmatpush.bf16.msra.mxu0 %v2026
        %2878 = vmatpush.bf16.msra.mxu0 %v2017
        %2879 = vmatpush.bf16.msra.mxu0 %v2008
        %2880 = vmatpush.bf16.msra.mxu0 %v1999
        %2881 = vmatpush.bf16.msra.mxu0 %v1990
        %2882 = vmatpush.bf16.msra.mxu0 %v1981
        %2883 = vmatpush.bf16.msra.mxu0 %v1972
        %2884 = vmatmul.bf16.gmra.mxu0 %v1344
        %v2885 = vpop.f32.mrf.mxu0
        %v2886 = vadd.f32 0.0, %v2885
        %v2887 = vpop.f32.mrf.mxu0
        %v2888 = vadd.f32 0.0, %v2887
        %2889 = vmatmul.bf16.gmra.mxu0 %v1346
        %v2890 = vpop.f32.mrf.mxu0
        %v2891 = vadd.f32 0.0, %v2890
        %v2892 = vpop.f32.mrf.mxu0
        %v2893 = vadd.f32 0.0, %v2892
        %2894 = vmatmul.bf16.gmra.mxu0 %v1348
        %v2895 = vpop.f32.mrf.mxu0
        %v2896 = vadd.f32 0.0, %v2895
        %v2897 = vpop.f32.mrf.mxu0
        %v2898 = vadd.f32 0.0, %v2897
        %2899 = vmatmul.bf16.gmra.mxu0 %v1350
        %v2900 = vpop.f32.mrf.mxu0
        %v2901 = vadd.f32 0.0, %v2900
        %v2902 = vpop.f32.mrf.mxu0
        %v2903 = vadd.f32 0.0, %v2902
        %2904 = vmatmul.bf16.gmra.mxu0 %v1352
        %v2905 = vpop.f32.mrf.mxu0
        %v2906 = vadd.f32 0.0, %v2905
        %v2907 = vpop.f32.mrf.mxu0
        %v2908 = vadd.f32 0.0, %v2907
        %2909 = vmatmul.bf16.gmra.mxu0 %v1354
        %v2910 = vpop.f32.mrf.mxu0
        %v2911 = vadd.f32 0.0, %v2910
        %v2912 = vpop.f32.mrf.mxu0
        %v2913 = vadd.f32 0.0, %v2912
        %2914 = vdwg.mxu0
        %2915 = vmatpush.bf16.msra.mxu0 %v2107
        %2916 = vmatpush.bf16.msra.mxu0 %v2098
        %2917 = vmatpush.bf16.msra.mxu0 %v2089
        %2918 = vmatpush.bf16.msra.mxu0 %v2080
        %2919 = vmatpush.bf16.msra.mxu0 %v2071
        %2920 = vmatpush.bf16.msra.mxu0 %v2062
        %2921 = vmatpush.bf16.msra.mxu0 %v2053
        %2922 = vmatpush.bf16.msra.mxu0 %v2044
        %2923 = vmatmul.bf16.gmra.mxu0 %v1345
        %v2924 = vpop.f32.mrf.mxu0
        %v2925 = vadd.f32 %v2886, %v2924
        %v2926 = vpop.f32.mrf.mxu0
        %v2927 = vadd.f32 %v2888, %v2926
        %2928 = vmatmul.bf16.gmra.mxu0 %v1347
        %v2929 = vpop.f32.mrf.mxu0
        %v2930 = vadd.f32 %v2891, %v2929
        %v2931 = vpop.f32.mrf.mxu0
        %v2932 = vadd.f32 %v2893, %v2931
        %2933 = vmatmul.bf16.gmra.mxu0 %v1349
        %v2934 = vpop.f32.mrf.mxu0
        %v2935 = vadd.f32 %v2896, %v2934
        %v2936 = vpop.f32.mrf.mxu0
        %v2937 = vadd.f32 %v2898, %v2936
        %2938 = vmatmul.bf16.gmra.mxu0 %v1351
        %v2939 = vpop.f32.mrf.mxu0
        %v2940 = vadd.f32 %v2901, %v2939
        %v2941 = vpop.f32.mrf.mxu0
        %v2942 = vadd.f32 %v2903, %v2941
        %2943 = vmatmul.bf16.gmra.mxu0 %v1353
        %v2944 = vpop.f32.mrf.mxu0
        %v2945 = vadd.f32 %v2906, %v2944
        %v2946 = vpop.f32.mrf.mxu0
        %v2947 = vadd.f32 %v2908, %v2946
        %2948 = vmatmul.bf16.gmra.mxu0 %v1355
        %v2949 = vpop.f32.mrf.mxu0
        %v2950 = vadd.f32 %v2911, %v2949
        %v2951 = vpop.f32.mrf.mxu0
        %v2952 = vadd.f32 %v2913, %v2951
        %2953 = vdwg.mxu0
        %v2990 = vrot.slane %v2535, 4
        %v2991 = vrot.slane %v2613, 4
        %v2992 = vrot.slane %v2691, 4
        %v2993 = vrot.slane %v2537, 4
        %v2994 = vsel %vm610, %v2990, %v2993
        %v2995 = vrot.slane %v2615, 4
        %v2996 = vsel %vm610, %v2991, %v2995
        %v2997 = vrot.slane %v2693, 4
        %v2998 = vsel %vm610, %v2992, %v2997
        %v2999 = vrot.slane %v2540, 4
        %v3000 = vsel %vm610, %v2993, %v2999
        %v3001 = vrot.slane %v2618, 4
        %v3002 = vsel %vm610, %v2995, %v3001
        %v3003 = vrot.slane %v2696, 4
        %v3004 = vsel %vm610, %v2997, %v3003
        %v3005 = vrot.slane %v2542, 4
        %v3006 = vsel %vm610, %v2999, %v3005
        %v3007 = vrot.slane %v2620, 4
        %v3008 = vsel %vm610, %v3001, %v3007
        %v3009 = vrot.slane %v2698, 4
        %v3010 = vsel %vm610, %v3003, %v3009
        %v3011 = vrot.slane %v2545, 4
        %v3012 = vsel %vm610, %v3005, %v3011
        %v3013 = vrot.slane %v2623, 4
        %v3014 = vsel %vm610, %v3007, %v3013
        %v3015 = vrot.slane %v2701, 4
        %v3016 = vsel %vm610, %v3009, %v3015
        %v3017 = vrot.slane %v2547, 4
        %v3018 = vsel %vm610, %v3011, %v3017
        %v3019 = vrot.slane %v2625, 4
        %v3020 = vsel %vm610, %v3013, %v3019
        %v3021 = vrot.slane %v2703, 4
        %v3022 = vsel %vm610, %v3015, %v3021
        %v3023 = vrot.slane %v2550, 4
        %v3024 = vsel %vm610, %v3017, %v3023
        %v3025 = vrot.slane %v2628, 4
        %v3026 = vsel %vm610, %v3019, %v3025
        %v3027 = vrot.slane %v2706, 4
        %v3028 = vsel %vm610, %v3021, %v3027
        %v3029 = vrot.slane %v2552, 4
        %v3030 = vsel %vm610, %v3023, %v3029
        %v3031 = vrot.slane %v2630, 4
        %v3032 = vsel %vm610, %v3025, %v3031
        %v3033 = vrot.slane %v2708, 4
        %v3034 = vsel %vm610, %v3027, %v3033
        %v3035 = vrot.slane %v2555, 4
        %v3036 = vsel %vm610, %v3029, %v3035
        %v3037 = vrot.slane %v2633, 4
        %v3038 = vsel %vm610, %v3031, %v3037
        %v3039 = vrot.slane %v2711, 4
        %v3040 = vsel %vm610, %v3033, %v3039
        %v3041 = vrot.slane %v2557, 4
        %v3042 = vsel %vm610, %v3035, %v3041
        %v3043 = vrot.slane %v2635, 4
        %v3044 = vsel %vm610, %v3037, %v3043
        %v3045 = vrot.slane %v2713, 4
        %v3046 = vsel %vm610, %v3039, %v3045
        %v3047 = vrot.slane %v2560, 4
        %v3048 = vsel %vm610, %v3041, %v3047
        %v3049 = vrot.slane %v2638, 4
        %v3050 = vsel %vm610, %v3043, %v3049
        %v3051 = vrot.slane %v2716, 4
        %v3052 = vsel %vm610, %v3045, %v3051
        %v3053 = vrot.slane %v2562, 4
        %v3054 = vsel %vm610, %v3047, %v3053
        %v3055 = vrot.slane %v2640, 4
        %v3056 = vsel %vm610, %v3049, %v3055
        %v3057 = vrot.slane %v2718, 4
        %v3058 = vsel %vm610, %v3051, %v3057
        %v3095 = vsel %vm610, %v2328, %v2990
        %v3096 = vsel %vm610, %v2406, %v2991
        %v3097 = vsel %vm610, %v2484, %v2992
        %v3098 = vld [vmem:[#allocation12] sm:$0xff]
        %v3099 = vld [vmem:[#allocation12 + $0x8] sm:$0xf]
        %v3100 = vld [vmem:[#allocation12 + $0xc] sm:$0xff]
        %v3101 = vld [vmem:[#allocation12 + $0x14] sm:$0xf]
        %v3102 = vld [vmem:[#allocation12 + $0x18] sm:$0xff]
        %v3103 = vld [vmem:[#allocation12 + $0x20] sm:$0xf]
        %v3104 = vld [vmem:[#allocation12 + $0x24] sm:$0xff]
        %v3105 = vld [vmem:[#allocation12 + $0x2c] sm:$0xf]
        %v3106 = vld [vmem:[#allocation12 + $0x30] sm:$0xff]
        %v3107 = vld [vmem:[#allocation12 + $0x38] sm:$0xf]
        %v3108 = vld [vmem:[#allocation12 + $0x3c] sm:$0xff]
        %v3109 = vld [vmem:[#allocation12 + $0x44] sm:$0xf]
        %v3110 = vld [vmem:[#allocation12 + $0x48] sm:$0xff]
        %v3111 = vld [vmem:[#allocation12 + $0x50] sm:$0xf]
        %v3112 = vld [vmem:[#allocation12 + $0x54] sm:$0xff]
        %v3113 = vld [vmem:[#allocation12 + $0x5c] sm:$0xf]
        %v3114 = vld [vmem:[#allocation12 + $0x60] sm:$0xff]
        %v3115 = vld [vmem:[#allocation12 + $0x68] sm:$0xf]
        %v3116 = vld [vmem:[#allocation12 + $0x6c] sm:$0xff]
        %v3117 = vld [vmem:[#allocation12 + $0x74] sm:$0xf]
        %v3118 = vld [vmem:[#allocation12 + $0x78] sm:$0xff]
        %v3119 = vld [vmem:[#allocation12 + $0x80] sm:$0xf]
        %v3120 = vld [vmem:[#allocation12 + $0x84] sm:$0xff]
        %v3121 = vld [vmem:[#allocation12 + $0x8c] sm:$0xf]
        %v3122 = vld [vmem:[#allocation12 + $0x90] sm:$0xff]
        %v3123 = vld [vmem:[#allocation12 + $0x98] sm:$0xf]
        %v3124 = vld [vmem:[#allocation12 + $0x9c] sm:$0xff]
        %v3125 = vld [vmem:[#allocation12 + $0xa4] sm:$0xf]
        %v3126 = vld [vmem:[#allocation12 + $0xa8] sm:$0xff]
        %v3127 = vld [vmem:[#allocation12 + $0xb0] sm:$0xf]
        %v3128 = vld [vmem:[#allocation12 + $0xb4] sm:$0xff]
        %v3129 = vld [vmem:[#allocation12 + $0xbc] sm:$0xf]
        %v3130 = vld [vmem:[#allocation12 + $0xc0] sm:$0xff]
        %v3131 = vld [vmem:[#allocation12 + $0xc8] sm:$0xf]
        %v3132 = vld [vmem:[#allocation12 + $0xcc] sm:$0xff]
        %v3133 = vld [vmem:[#allocation12 + $0xd4] sm:$0xf]
        %v3134 = vld [vmem:[#allocation12 + $0xd8] sm:$0xff]
        %v3135 = vld [vmem:[#allocation12 + $0xe0] sm:$0xf]
        %v3136 = vld [vmem:[#allocation12 + $0xe4] sm:$0xff]
        %v3137 = vld [vmem:[#allocation12 + $0xec] sm:$0xf]
        %v3138 = vld [vmem:[#allocation12 + $0xf0] sm:$0xff]
        %v3139 = vld [vmem:[#allocation12 + $0xf8] sm:$0xf]
        %v3140 = vld [vmem:[#allocation12 + $0xfc] sm:$0xff]
        %v3141 = vld [vmem:[#allocation12 + $0x104] sm:$0xf]
        %v3142 = vld [vmem:[#allocation12 + $0x108] sm:$0xff]
        %v3143 = vld [vmem:[#allocation12 + $0x110] sm:$0xf]
        %v3144 = vld [vmem:[#allocation12 + $0x114] sm:$0xff]
        %v3145 = vld [vmem:[#allocation12 + $0x11c] sm:$0xf]
        %v3146 = vld [vmem:[#allocation12 + $0x120] sm:$0xff]
        %v3147 = vld [vmem:[#allocation12 + $0x128] sm:$0xf]
        %v3148 = vld [vmem:[#allocation12 + $0x12c] sm:$0xff]
        %v3149 = vld [vmem:[#allocation12 + $0x134] sm:$0xf]
        %v3150 = vld [vmem:[#allocation12 + $0x138] sm:$0xff]
        %v3151 = vld [vmem:[#allocation12 + $0x140] sm:$0xf]
        %v3152 = vld [vmem:[#allocation12 + $0x144] sm:$0xff]
        %v3153 = vld [vmem:[#allocation12 + $0x14c] sm:$0xf]
        %v3154 = vld [vmem:[#allocation12 + $0x150] sm:$0xff]
        %v3155 = vld [vmem:[#allocation12 + $0x158] sm:$0xf]
        %v3156 = vld [vmem:[#allocation12 + $0x15c] sm:$0xff]
        %v3157 = vld [vmem:[#allocation12 + $0x164] sm:$0xf]
        %v3158 = vld [vmem:[#allocation12 + $0x168] sm:$0xff]
        %v3159 = vld [vmem:[#allocation12 + $0x170] sm:$0xf]
        %v3160 = vld [vmem:[#allocation12 + $0x174] sm:$0xff]
        %v3161 = vld [vmem:[#allocation12 + $0x17c] sm:$0xf]
        %v3162 = vld [vmem:[#allocation12 + $0x180] sm:$0xff]
        %v3163 = vld [vmem:[#allocation12 + $0x188] sm:$0xf]
        %v3164 = vld [vmem:[#allocation12 + $0x18c] sm:$0xff]
        %v3165 = vld [vmem:[#allocation12 + $0x194] sm:$0xf]
        %v3166 = vpack.c.bf16 %v2303, %v2301
        %v3167 = vpack.c.bf16 %v2381, %v2379
        %v3168 = vpack.c.bf16 %v2459, %v2457
        %v3169 = vpack.c.bf16 %v2308, %v2306
        %v3170 = vpack.c.bf16 %v2386, %v2384
        %v3171 = vpack.c.bf16 %v2464, %v2462
        %v3172 = vpack.c.bf16 %v2313, %v2311
        %v3173 = vpack.c.bf16 %v2391, %v2389
        %v3174 = vpack.c.bf16 %v2469, %v2467
        %v3175 = vpack.c.bf16 %v2318, %v2316
        %v3176 = vpack.c.bf16 %v2396, %v2394
        %v3177 = vpack.c.bf16 %v2474, %v2472
        %v3178 = vpack.c.bf16 %v2323, %v2321
        %v3179 = vpack.c.bf16 %v2401, %v2399
        %v3180 = vpack.c.bf16 %v2479, %v2477
        %v3181 = vpack.c.bf16 %v3095, %v2326
        %v3182 = vpack.c.bf16 %v3096, %v2404
        %v3183 = vpack.c.bf16 %v3097, %v2482
        %v3184 = vpack.c.bf16 %v3000, %v2994
        %v3185 = vpack.c.bf16 %v3002, %v2996
        %v3186 = vpack.c.bf16 %v3004, %v2998
        %v3187 = vpack.c.bf16 %v3012, %v3006
        %v3188 = vpack.c.bf16 %v3014, %v3008
        %v3189 = vpack.c.bf16 %v3016, %v3010
        %v3190 = vpack.c.bf16 %v3024, %v3018
        %v3191 = vpack.c.bf16 %v3026, %v3020
        %v3192 = vpack.c.bf16 %v3028, %v3022
        %v3193 = vpack.c.bf16 %v3036, %v3030
        %v3194 = vpack.c.bf16 %v3038, %v3032
        %v3195 = vpack.c.bf16 %v3040, %v3034
        %v3196 = vpack.c.bf16 %v3048, %v3042
        %v3197 = vpack.c.bf16 %v3050, %v3044
        %v3198 = vpack.c.bf16 %v3052, %v3046
        %v3199 = vpack.c.bf16 %v2769, %v3054
        %v3200 = vpack.c.bf16 %v2847, %v3056
        %v3201 = vpack.c.bf16 %v2925, %v3058
        %v3202 = vpack.c.bf16 %v2774, %v2771
        %v3203 = vpack.c.bf16 %v2852, %v2849
        %v3204 = vpack.c.bf16 %v2930, %v2927
        %v3205 = vpack.c.bf16 %v2779, %v2776
        %v3206 = vpack.c.bf16 %v2857, %v2854
        %v3207 = vpack.c.bf16 %v2935, %v2932
        %v3208 = vpack.c.bf16 %v2784, %v2781
        %v3209 = vpack.c.bf16 %v2862, %v2859
        %v3210 = vpack.c.bf16 %v2940, %v2937
        %v3211 = vpack.c.bf16 %v2789, %v2786
        %v3212 = vpack.c.bf16 %v2867, %v2864
        %v3213 = vpack.c.bf16 %v2945, %v2942
        %v3214 = vpack.c.bf16 %v2794, %v2791
        %v3215 = vpack.c.bf16 %v2872, %v2869
        %v3216 = vpack.c.bf16 %v2950, %v2947
        %v3217 = vpack.c.bf16 %v2796, %v2796
        %v3218 = vpack.c.bf16 %v2874, %v2874
        %v3219 = vpack.c.bf16 %v2952, %v2952
        %v3220 = vld [vmem:[%s8] sm:$0x7]
        %v3222 = vperm.slane %v3220, 0
        %v3223 = vperm.slane %v3220, 1
        %v3224 = vperm.slane %v3220, 2
        %v3296 = vunpack.c.l.b16 %v3098
        %v3297 = vunpack.c.h.b16 %v3098
        %v3298 = vunpack.c.l.b16 %v3099
        %v3299 = vunpack.c.l.b16 %v3100
        %v3300 = vunpack.c.h.b16 %v3100
        %v3301 = vunpack.c.l.b16 %v3101
        %v3302 = vunpack.c.l.b16 %v3102
        %v3303 = vunpack.c.h.b16 %v3102
        %v3304 = vunpack.c.l.b16 %v3103
        %v3305 = vunpack.c.l.b16 %v3104
        %v3306 = vunpack.c.h.b16 %v3104
        %v3307 = vunpack.c.l.b16 %v3105
        %v3308 = vunpack.c.l.b16 %v3106
        %v3309 = vunpack.c.h.b16 %v3106
        %v3310 = vunpack.c.l.b16 %v3107
        %v3311 = vunpack.c.l.b16 %v3108
        %v3312 = vunpack.c.h.b16 %v3108
        %v3313 = vunpack.c.l.b16 %v3109
        %v3314 = vunpack.c.l.b16 %v3110
        %v3315 = vunpack.c.h.b16 %v3110
        %v3316 = vunpack.c.l.b16 %v3111
        %v3317 = vunpack.c.l.b16 %v3112
        %v3318 = vunpack.c.h.b16 %v3112
        %v3319 = vunpack.c.l.b16 %v3113
        %v3320 = vunpack.c.l.b16 %v3114
        %v3321 = vunpack.c.h.b16 %v3114
        %v3322 = vunpack.c.l.b16 %v3115
        %v3323 = vunpack.c.l.b16 %v3116
        %v3324 = vunpack.c.h.b16 %v3116
        %v3325 = vunpack.c.l.b16 %v3117
        %v3326 = vunpack.c.l.b16 %v3118
        %v3327 = vunpack.c.h.b16 %v3118
        %v3328 = vunpack.c.l.b16 %v3119
        %v3329 = vunpack.c.l.b16 %v3120
        %v3330 = vunpack.c.h.b16 %v3120
        %v3331 = vunpack.c.l.b16 %v3121
        %v3332 = vunpack.c.l.b16 %v3122
        %v3333 = vunpack.c.h.b16 %v3122
        %v3334 = vunpack.c.l.b16 %v3123
        %v3335 = vunpack.c.l.b16 %v3124
        %v3336 = vunpack.c.h.b16 %v3124
        %v3337 = vunpack.c.l.b16 %v3125
        %v3338 = vunpack.c.l.b16 %v3126
        %v3339 = vunpack.c.h.b16 %v3126
        %v3340 = vunpack.c.l.b16 %v3127
        %v3341 = vunpack.c.l.b16 %v3128
        %v3342 = vunpack.c.h.b16 %v3128
        %v3343 = vunpack.c.l.b16 %v3129
        %v3344 = vunpack.c.l.b16 %v3130
        %v3345 = vunpack.c.h.b16 %v3130
        %v3346 = vunpack.c.l.b16 %v3131
        %v3347 = vunpack.c.l.b16 %v3132
        %v3348 = vunpack.c.h.b16 %v3132
        %v3349 = vunpack.c.l.b16 %v3133
        %v3350 = vunpack.c.l.b16 %v3134
        %v3351 = vunpack.c.h.b16 %v3134
        %v3352 = vunpack.c.l.b16 %v3135
        %v3353 = vunpack.c.l.b16 %v3136
        %v3354 = vunpack.c.h.b16 %v3136
        %v3355 = vunpack.c.l.b16 %v3137
        %v3356 = vunpack.c.l.b16 %v3138
        %v3357 = vunpack.c.h.b16 %v3138
        %v3358 = vunpack.c.l.b16 %v3139
        %v3359 = vunpack.c.l.b16 %v3140
        %v3360 = vunpack.c.h.b16 %v3140
        %v3361 = vunpack.c.l.b16 %v3141
        %v3362 = vunpack.c.l.b16 %v3142
        %v3363 = vunpack.c.h.b16 %v3142
        %v3364 = vunpack.c.l.b16 %v3143
        %v3365 = vunpack.c.l.b16 %v3144
        %v3366 = vunpack.c.h.b16 %v3144
        %v3367 = vunpack.c.l.b16 %v3145
        %v3368 = vunpack.c.l.b16 %v3146
        %v3369 = vunpack.c.h.b16 %v3146
        %v3370 = vunpack.c.l.b16 %v3147
        %v3371 = vunpack.c.l.b16 %v3148
        %v3372 = vunpack.c.h.b16 %v3148
        %v3373 = vunpack.c.l.b16 %v3149
        %v3374 = vunpack.c.l.b16 %v3150
        %v3375 = vunpack.c.h.b16 %v3150
        %v3376 = vunpack.c.l.b16 %v3151
        %v3377 = vunpack.c.l.b16 %v3152
        %v3378 = vunpack.c.h.b16 %v3152
        %v3379 = vunpack.c.l.b16 %v3153
        %v3380 = vunpack.c.l.b16 %v3154
        %v3381 = vunpack.c.h.b16 %v3154
        %v3382 = vunpack.c.l.b16 %v3155
        %v3383 = vunpack.c.l.b16 %v3156
        %v3384 = vunpack.c.h.b16 %v3156
        %v3385 = vunpack.c.l.b16 %v3157
        %v3386 = vunpack.c.l.b16 %v3158
        %v3387 = vunpack.c.h.b16 %v3158
        %v3388 = vunpack.c.l.b16 %v3159
        %v3389 = vunpack.c.l.b16 %v3160
        %v3390 = vunpack.c.h.b16 %v3160
        %v3391 = vunpack.c.l.b16 %v3161
        %v3392 = vunpack.c.l.b16 %v3162
        %v3393 = vunpack.c.h.b16 %v3162
        %v3394 = vunpack.c.l.b16 %v3163
        %v3395 = vunpack.c.l.b16 %v3164
        %v3396 = vunpack.c.h.b16 %v3164
        %v3397 = vunpack.c.l.b16 %v3165
        %v3398 = vpack.c.b16 %v3299, %v3296
        %v3399 = vpack.c.b16 %v3300, %v3297
        %v3400 = vpack.c.b16 %v3301, %v3298
        %v3401 = vpack.c.b16 %v3305, %v3302
        %v3402 = vpack.c.b16 %v3306, %v3303
        %v3403 = vpack.c.b16 %v3307, %v3304
        %v3404 = vpack.c.b16 %v3311, %v3308
        %v3405 = vpack.c.b16 %v3312, %v3309
        %v3406 = vpack.c.b16 %v3313, %v3310
        %v3407 = vpack.c.b16 %v3317, %v3314
        %v3408 = vpack.c.b16 %v3318, %v3315
        %v3409 = vpack.c.b16 %v3319, %v3316
        %v3410 = vpack.c.b16 %v3323, %v3320
        %v3411 = vpack.c.b16 %v3324, %v3321
        %v3412 = vpack.c.b16 %v3325, %v3322
        %v3413 = vpack.c.b16 %v3329, %v3326
        %v3414 = vpack.c.b16 %v3330, %v3327
        %v3415 = vpack.c.b16 %v3331, %v3328
        %v3416 = vpack.c.b16 %v3335, %v3332
        %v3417 = vpack.c.b16 %v3336, %v3333
        %v3418 = vpack.c.b16 %v3337, %v3334
        %v3419 = vpack.c.b16 %v3341, %v3338
        %v3420 = vpack.c.b16 %v3342, %v3339
        %v3421 = vpack.c.b16 %v3343, %v3340
        %v3422 = vpack.c.b16 %v3347, %v3344
        %v3423 = vpack.c.b16 %v3348, %v3345
        %v3424 = vpack.c.b16 %v3349, %v3346
        %v3425 = vpack.c.b16 %v3353, %v3350
        %v3426 = vpack.c.b16 %v3354, %v3351
        %v3427 = vpack.c.b16 %v3355, %v3352
        %v3428 = vpack.c.b16 %v3359, %v3356
        %v3429 = vpack.c.b16 %v3360, %v3357
        %v3430 = vpack.c.b16 %v3361, %v3358
        %v3431 = vpack.c.b16 %v3365, %v3362
        %v3432 = vpack.c.b16 %v3366, %v3363
        %v3433 = vpack.c.b16 %v3367, %v3364
        %v3434 = vpack.c.b16 %v3371, %v3368
        %v3435 = vpack.c.b16 %v3372, %v3369
        %v3436 = vpack.c.b16 %v3373, %v3370
        %v3437 = vpack.c.b16 %v3377, %v3374
        %v3438 = vpack.c.b16 %v3378, %v3375
        %v3439 = vpack.c.b16 %v3379, %v3376
        %v3440 = vpack.c.b16 %v3383, %v3380
        %v3441 = vpack.c.b16 %v3384, %v3381
        %v3442 = vpack.c.b16 %v3385, %v3382
        %v3443 = vpack.c.b16 %v3389, %v3386
        %v3444 = vpack.c.b16 %v3390, %v3387
        %v3445 = vpack.c.b16 %v3391, %v3388
        %v3446 = vpack.c.b16 %v3395, %v3392
        %v3447 = vpack.c.b16 %v3396, %v3393
        %v3448 = vpack.c.b16 %v3397, %v3394
        %vm3483 = vcmask 162816
        %v3485 = vsel %vm3483, %v3400, 0
        %v3488 = vsel %vm3483, %v3403, 0
        %v3491 = vsel %vm3483, %v3406, 0
        %v3494 = vsel %vm3483, %v3409, 0
        %v3497 = vsel %vm3483, %v3412, 0
        %v3500 = vsel %vm3483, %v3415, 0
        %v3503 = vsel %vm3483, %v3418, 0
        %v3506 = vsel %vm3483, %v3421, 0
        %v3509 = vsel %vm3483, %v3424, 0
        %v3512 = vsel %vm3483, %v3427, 0
        %v3515 = vsel %vm3483, %v3430, 0
        %v3518 = vsel %vm3483, %v3433, 0
        %v3521 = vsel %vm3483, %v3436, 0
        %v3524 = vsel %vm3483, %v3439, 0
        %v3527 = vsel %vm3483, %v3442, 0
        %v3530 = vsel %vm3483, %v3445, 0
        %v3533 = vsel %vm3483, %v3448, 0
        %vm3535 = vcmask 1041408
        %v3537 = vsel %vm3535, %v3217, 0
        %v3540 = vsel %vm3535, %v3218, 0
        %v3543 = vsel %vm3535, %v3219, 0
        %3545 = vmatpush.bf16.msra.mxu0 %v3187
        %3546 = vmatpush.bf16.msra.mxu0 %v3184
        %3547 = vmatpush.bf16.msra.mxu0 %v3181
        %3548 = vmatpush.bf16.msra.mxu0 %v3178
        %3549 = vmatpush.bf16.msra.mxu0 %v3175
        %3550 = vmatpush.bf16.msra.mxu0 %v3172
        %3551 = vmatpush.bf16.msra.mxu0 %v3169
        %3552 = vmatpush.bf16.msra.mxu0 %v3166
        %3553 = vmatmul.bf16.gmra.mxu0 %v3398
        %v3554 = vpop.f32.mrf.mxu0
        %v3555 = vadd.f32 %v3222, %v3554
        %v3556 = vpop.f32.mrf.mxu0
        %v3557 = vadd.f32 %v3222, %v3556
        %3558 = vmatmul.bf16.gmra.mxu0 %v3401
        %v3559 = vpop.f32.mrf.mxu0
        %v3560 = vadd.f32 %v3222, %v3559
        %v3561 = vpop.f32.mrf.mxu0
        %v3562 = vadd.f32 %v3222, %v3561
        %3563 = vmatmul.bf16.gmra.mxu0 %v3404
        %v3564 = vpop.f32.mrf.mxu0
        %v3565 = vadd.f32 %v3222, %v3564
        %v3566 = vpop.f32.mrf.mxu0
        %v3567 = vadd.f32 %v3222, %v3566
        %3568 = vmatmul.bf16.gmra.mxu0 %v3407
        %v3569 = vpop.f32.mrf.mxu0
        %v3570 = vadd.f32 %v3222, %v3569
        %v3571 = vpop.f32.mrf.mxu0
        %v3572 = vadd.f32 %v3222, %v3571
        %3573 = vmatmul.bf16.gmra.mxu0 %v3410
        %v3574 = vpop.f32.mrf.mxu0
        %v3575 = vadd.f32 %v3222, %v3574
        %v3576 = vpop.f32.mrf.mxu0
        %v3577 = vadd.f32 %v3222, %v3576
        %3578 = vmatmul.bf16.gmra.mxu0 %v3413
        %v3579 = vpop.f32.mrf.mxu0
        %v3580 = vadd.f32 %v3222, %v3579
        %v3581 = vpop.f32.mrf.mxu0
        %v3582 = vadd.f32 %v3222, %v3581
        %3583 = vmatmul.bf16.gmra.mxu0 %v3416
        %v3584 = vpop.f32.mrf.mxu0
        %v3585 = vadd.f32 %v3222, %v3584
        %v3586 = vpop.f32.mrf.mxu0
        %v3587 = vadd.f32 %v3222, %v3586
        %3588 = vmatmul.bf16.gmra.mxu0 %v3419
        %v3589 = vpop.f32.mrf.mxu0
        %v3590 = vadd.f32 %v3222, %v3589
        %v3591 = vpop.f32.mrf.mxu0
        %v3592 = vadd.f32 %v3222, %v3591
        %3593 = vmatmul.bf16.gmra.mxu0 %v3422
        %v3594 = vpop.f32.mrf.mxu0
        %v3595 = vadd.f32 %v3222, %v3594
        %v3596 = vpop.f32.mrf.mxu0
        %v3597 = vadd.f32 %v3222, %v3596
        %3598 = vmatmul.bf16.gmra.mxu0 %v3425
        %v3599 = vpop.f32.mrf.mxu0
        %v3600 = vadd.f32 %v3222, %v3599
        %v3601 = vpop.f32.mrf.mxu0
        %v3602 = vadd.f32 %v3222, %v3601
        %3603 = vmatmul.bf16.gmra.mxu0 %v3428
        %v3604 = vpop.f32.mrf.mxu0
        %v3605 = vadd.f32 %v3222, %v3604
        %v3606 = vpop.f32.mrf.mxu0
        %v3607 = vadd.f32 %v3222, %v3606
        %3608 = vmatmul.bf16.gmra.mxu0 %v3431
        %v3609 = vpop.f32.mrf.mxu0
        %v3610 = vadd.f32 %v3222, %v3609
        %v3611 = vpop.f32.mrf.mxu0
        %v3612 = vadd.f32 %v3222, %v3611
        %3613 = vmatmul.bf16.gmra.mxu0 %v3434
        %v3614 = vpop.f32.mrf.mxu0
        %v3615 = vadd.f32 %v3222, %v3614
        %v3616 = vpop.f32.mrf.mxu0
        %v3617 = vadd.f32 %v3222, %v3616
        %3618 = vmatmul.bf16.gmra.mxu0 %v3437
        %v3619 = vpop.f32.mrf.mxu0
        %v3620 = vadd.f32 %v3222, %v3619
        %v3621 = vpop.f32.mrf.mxu0
        %v3622 = vadd.f32 %v3222, %v3621
        %3623 = vmatmul.bf16.gmra.mxu0 %v3440
        %v3624 = vpop.f32.mrf.mxu0
        %v3625 = vadd.f32 %v3222, %v3624
        %v3626 = vpop.f32.mrf.mxu0
        %v3627 = vadd.f32 %v3222, %v3626
        %3628 = vmatmul.bf16.gmra.mxu0 %v3443
        %v3629 = vpop.f32.mrf.mxu0
        %v3630 = vadd.f32 %v3222, %v3629
        %v3631 = vpop.f32.mrf.mxu0
        %v3632 = vadd.f32 %v3222, %v3631
        %3633 = vmatmul.bf16.gmra.mxu0 %v3446
        %v3634 = vpop.f32.mrf.mxu0
        %v3635 = vadd.f32 %v3222, %v3634
        %v3636 = vpop.f32.mrf.mxu0
        %v3637 = vadd.f32 %v3222, %v3636
        %3638 = vdwg.mxu0
        %3639 = vmatpush.bf16.msra.mxu0 %v3211
        %3640 = vmatpush.bf16.msra.mxu0 %v3208
        %3641 = vmatpush.bf16.msra.mxu0 %v3205
        %3642 = vmatpush.bf16.msra.mxu0 %v3202
        %3643 = vmatpush.bf16.msra.mxu0 %v3199
        %3644 = vmatpush.bf16.msra.mxu0 %v3196
        %3645 = vmatpush.bf16.msra.mxu0 %v3193
        %3646 = vmatpush.bf16.msra.mxu0 %v3190
        %3647 = vmatmul.bf16.gmra.mxu0 %v3399
        %v3648 = vpop.f32.mrf.mxu0
        %v3649 = vadd.f32 %v3555, %v3648
        %v3650 = vpop.f32.mrf.mxu0
        %v3651 = vadd.f32 %v3557, %v3650
        %3652 = vmatmul.bf16.gmra.mxu0 %v3402
        %v3653 = vpop.f32.mrf.mxu0
        %v3654 = vadd.f32 %v3560, %v3653
        %v3655 = vpop.f32.mrf.mxu0
        %v3656 = vadd.f32 %v3562, %v3655
        %3657 = vmatmul.bf16.gmra.mxu0 %v3405
        %v3658 = vpop.f32.mrf.mxu0
        %v3659 = vadd.f32 %v3565, %v3658
        %v3660 = vpop.f32.mrf.mxu0
        %v3661 = vadd.f32 %v3567, %v3660
        %3662 = vmatmul.bf16.gmra.mxu0 %v3408
        %v3663 = vpop.f32.mrf.mxu0
        %v3664 = vadd.f32 %v3570, %v3663
        %v3665 = vpop.f32.mrf.mxu0
        %v3666 = vadd.f32 %v3572, %v3665
        %3667 = vmatmul.bf16.gmra.mxu0 %v3411
        %v3668 = vpop.f32.mrf.mxu0
        %v3669 = vadd.f32 %v3575, %v3668
        %v3670 = vpop.f32.mrf.mxu0
        %v3671 = vadd.f32 %v3577, %v3670
        %3672 = vmatmul.bf16.gmra.mxu0 %v3414
        %v3673 = vpop.f32.mrf.mxu0
        %v3674 = vadd.f32 %v3580, %v3673
        %v3675 = vpop.f32.mrf.mxu0
        %v3676 = vadd.f32 %v3582, %v3675
        %3677 = vmatmul.bf16.gmra.mxu0 %v3417
        %v3678 = vpop.f32.mrf.mxu0
        %v3679 = vadd.f32 %v3585, %v3678
        %v3680 = vpop.f32.mrf.mxu0
        %v3681 = vadd.f32 %v3587, %v3680
        %3682 = vmatmul.bf16.gmra.mxu0 %v3420
        %v3683 = vpop.f32.mrf.mxu0
        %v3684 = vadd.f32 %v3590, %v3683
        %v3685 = vpop.f32.mrf.mxu0
        %v3686 = vadd.f32 %v3592, %v3685
        %3687 = vmatmul.bf16.gmra.mxu0 %v3423
        %v3688 = vpop.f32.mrf.mxu0
        %v3689 = vadd.f32 %v3595, %v3688
        %v3690 = vpop.f32.mrf.mxu0
        %v3691 = vadd.f32 %v3597, %v3690
        %3692 = vmatmul.bf16.gmra.mxu0 %v3426
        %v3693 = vpop.f32.mrf.mxu0
        %v3694 = vadd.f32 %v3600, %v3693
        %v3695 = vpop.f32.mrf.mxu0
        %v3696 = vadd.f32 %v3602, %v3695
        %3697 = vmatmul.bf16.gmra.mxu0 %v3429
        %v3698 = vpop.f32.mrf.mxu0
        %v3699 = vadd.f32 %v3605, %v3698
        %v3700 = vpop.f32.mrf.mxu0
        %v3701 = vadd.f32 %v3607, %v3700
        %3702 = vmatmul.bf16.gmra.mxu0 %v3432
        %v3703 = vpop.f32.mrf.mxu0
        %v3704 = vadd.f32 %v3610, %v3703
        %v3705 = vpop.f32.mrf.mxu0
        %v3706 = vadd.f32 %v3612, %v3705
        %3707 = vmatmul.bf16.gmra.mxu0 %v3435
        %v3708 = vpop.f32.mrf.mxu0
        %v3709 = vadd.f32 %v3615, %v3708
        %v3710 = vpop.f32.mrf.mxu0
        %v3711 = vadd.f32 %v3617, %v3710
        %3712 = vmatmul.bf16.gmra.mxu0 %v3438
        %v3713 = vpop.f32.mrf.mxu0
        %v3714 = vadd.f32 %v3620, %v3713
        %v3715 = vpop.f32.mrf.mxu0
        %v3716 = vadd.f32 %v3622, %v3715
        %3717 = vmatmul.bf16.gmra.mxu0 %v3441
        %v3718 = vpop.f32.mrf.mxu0
        %v3719 = vadd.f32 %v3625, %v3718
        %v3720 = vpop.f32.mrf.mxu0
        %v3721 = vadd.f32 %v3627, %v3720
        %3722 = vmatmul.bf16.gmra.mxu0 %v3444
        %v3723 = vpop.f32.mrf.mxu0
        %v3724 = vadd.f32 %v3630, %v3723
        %v3725 = vpop.f32.mrf.mxu0
        %v3726 = vadd.f32 %v3632, %v3725
        %3727 = vmatmul.bf16.gmra.mxu0 %v3447
        %v3728 = vpop.f32.mrf.mxu0
        %v3729 = vadd.f32 %v3635, %v3728
        %v3730 = vpop.f32.mrf.mxu0
        %v3731 = vadd.f32 %v3637, %v3730
        %3732 = vdwg.mxu0
        %3733 = vmatpush.bf16.msra.mxu0 0
        %3734 = vmatpush.bf16.msra.mxu0 0
        %3735 = vmatpush.bf16.msra.mxu0 0
        %3736 = vmatpush.bf16.msra.mxu0 0
        %3737 = vmatpush.bf16.msra.mxu0 0
        %3738 = vmatpush.bf16.msra.mxu0 0
        %3739 = vmatpush.bf16.msra.mxu0 %v3537
        %3740 = vmatpush.bf16.msra.mxu0 %v3214
        %3741 = vmatmul.bf16.gmra.mxu0 %v3485
        %v3742 = vpop.f32.mrf.mxu0
        %v3743 = vadd.f32 %v3649, %v3742
        %v3744 = vpop.f32.mrf.mxu0
        %v3745 = vadd.f32 %v3651, %v3744
        %3746 = vmatmul.bf16.gmra.mxu0 %v3488
        %v3747 = vpop.f32.mrf.mxu0
        %v3748 = vadd.f32 %v3654, %v3747
        %v3749 = vpop.f32.mrf.mxu0
        %v3750 = vadd.f32 %v3656, %v3749
        %3751 = vmatmul.bf16.gmra.mxu0 %v3491
        %v3752 = vpop.f32.mrf.mxu0
        %v3753 = vadd.f32 %v3659, %v3752
        %v3754 = vpop.f32.mrf.mxu0
        %v3755 = vadd.f32 %v3661, %v3754
        %3756 = vmatmul.bf16.gmra.mxu0 %v3494
        %v3757 = vpop.f32.mrf.mxu0
        %v3758 = vadd.f32 %v3664, %v3757
        %v3759 = vpop.f32.mrf.mxu0
        %v3760 = vadd.f32 %v3666, %v3759
        %3761 = vmatmul.bf16.gmra.mxu0 %v3497
        %v3762 = vpop.f32.mrf.mxu0
        %v3763 = vadd.f32 %v3669, %v3762
        %v3764 = vpop.f32.mrf.mxu0
        %v3765 = vadd.f32 %v3671, %v3764
        %3766 = vmatmul.bf16.gmra.mxu0 %v3500
        %v3767 = vpop.f32.mrf.mxu0
        %v3768 = vadd.f32 %v3674, %v3767
        %v3769 = vpop.f32.mrf.mxu0
        %v3770 = vadd.f32 %v3676, %v3769
        %3771 = vmatmul.bf16.gmra.mxu0 %v3503
        %v3772 = vpop.f32.mrf.mxu0
        %v3773 = vadd.f32 %v3679, %v3772
        %v3774 = vpop.f32.mrf.mxu0
        %v3775 = vadd.f32 %v3681, %v3774
        %3776 = vmatmul.bf16.gmra.mxu0 %v3506
        %v3777 = vpop.f32.mrf.mxu0
        %v3778 = vadd.f32 %v3684, %v3777
        %v3779 = vpop.f32.mrf.mxu0
        %v3780 = vadd.f32 %v3686, %v3779
        %3781 = vmatmul.bf16.gmra.mxu0 %v3509
        %v3782 = vpop.f32.mrf.mxu0
        %v3783 = vadd.f32 %v3689, %v3782
        %v3784 = vpop.f32.mrf.mxu0
        %v3785 = vadd.f32 %v3691, %v3784
        %3786 = vmatmul.bf16.gmra.mxu0 %v3512
        %v3787 = vpop.f32.mrf.mxu0
        %v3788 = vadd.f32 %v3694, %v3787
        %v3789 = vpop.f32.mrf.mxu0
        %v3790 = vadd.f32 %v3696, %v3789
        %3791 = vmatmul.bf16.gmra.mxu0 %v3515
        %v3792 = vpop.f32.mrf.mxu0
        %v3793 = vadd.f32 %v3699, %v3792
        %v3794 = vpop.f32.mrf.mxu0
        %v3795 = vadd.f32 %v3701, %v3794
        %3796 = vmatmul.bf16.gmra.mxu0 %v3518
        %v3797 = vpop.f32.mrf.mxu0
        %v3798 = vadd.f32 %v3704, %v3797
        %v3799 = vpop.f32.mrf.mxu0
        %v3800 = vadd.f32 %v3706, %v3799
        %3801 = vmatmul.bf16.gmra.mxu0 %v3521
        %v3802 = vpop.f32.mrf.mxu0
        %v3803 = vadd.f32 %v3709, %v3802
        %v3804 = vpop.f32.mrf.mxu0
        %v3805 = vadd.f32 %v3711, %v3804
        %3806 = vmatmul.bf16.gmra.mxu0 %v3524
        %v3807 = vpop.f32.mrf.mxu0
        %v3808 = vadd.f32 %v3714, %v3807
        %v3809 = vpop.f32.mrf.mxu0
        %v3810 = vadd.f32 %v3716, %v3809
        %3811 = vmatmul.bf16.gmra.mxu0 %v3527
        %v3812 = vpop.f32.mrf.mxu0
        %v3813 = vadd.f32 %v3719, %v3812
        %v3814 = vpop.f32.mrf.mxu0
        %v3815 = vadd.f32 %v3721, %v3814
        %3816 = vmatmul.bf16.gmra.mxu0 %v3530
        %v3817 = vpop.f32.mrf.mxu0
        %v3818 = vadd.f32 %v3724, %v3817
        %v3819 = vpop.f32.mrf.mxu0
        %v3820 = vadd.f32 %v3726, %v3819
        %3821 = vmatmul.bf16.gmra.mxu0 %v3533
        %v3822 = vpop.f32.mrf.mxu0
        %v3823 = vadd.f32 %v3729, %v3822
        %v3824 = vpop.f32.mrf.mxu0
        %v3825 = vadd.f32 %v3731, %v3824
        %3826 = vdwg.mxu0
        %3827 = vmatpush.bf16.msra.mxu0 %v3188
        %3828 = vmatpush.bf16.msra.mxu0 %v3185
        %3829 = vmatpush.bf16.msra.mxu0 %v3182
        %3830 = vmatpush.bf16.msra.mxu0 %v3179
        %3831 = vmatpush.bf16.msra.mxu0 %v3176
        %3832 = vmatpush.bf16.msra.mxu0 %v3173
        %3833 = vmatpush.bf16.msra.mxu0 %v3170
        %3834 = vmatpush.bf16.msra.mxu0 %v3167
        %3835 = vmatmul.bf16.gmra.mxu0 %v3398
        %v3836 = vpop.f32.mrf.mxu0
        %v3837 = vadd.f32 %v3223, %v3836
        %v3838 = vpop.f32.mrf.mxu0
        %v3839 = vadd.f32 %v3223, %v3838
        %3840 = vmatmul.bf16.gmra.mxu0 %v3401
        %v3841 = vpop.f32.mrf.mxu0
        %v3842 = vadd.f32 %v3223, %v3841
        %v3843 = vpop.f32.mrf.mxu0
        %v3844 = vadd.f32 %v3223, %v3843
        %3845 = vmatmul.bf16.gmra.mxu0 %v3404
        %v3846 = vpop.f32.mrf.mxu0
        %v3847 = vadd.f32 %v3223, %v3846
        %v3848 = vpop.f32.mrf.mxu0
        %v3849 = vadd.f32 %v3223, %v3848
        %3850 = vmatmul.bf16.gmra.mxu0 %v3407
        %v3851 = vpop.f32.mrf.mxu0
        %v3852 = vadd.f32 %v3223, %v3851
        %v3853 = vpop.f32.mrf.mxu0
        %v3854 = vadd.f32 %v3223, %v3853
        %3855 = vmatmul.bf16.gmra.mxu0 %v3410
        %v3856 = vpop.f32.mrf.mxu0
        %v3857 = vadd.f32 %v3223, %v3856
        %v3858 = vpop.f32.mrf.mxu0
        %v3859 = vadd.f32 %v3223, %v3858
        %3860 = vmatmul.bf16.gmra.mxu0 %v3413
        %v3861 = vpop.f32.mrf.mxu0
        %v3862 = vadd.f32 %v3223, %v3861
        %v3863 = vpop.f32.mrf.mxu0
        %v3864 = vadd.f32 %v3223, %v3863
        %3865 = vmatmul.bf16.gmra.mxu0 %v3416
        %v3866 = vpop.f32.mrf.mxu0
        %v3867 = vadd.f32 %v3223, %v3866
        %v3868 = vpop.f32.mrf.mxu0
        %v3869 = vadd.f32 %v3223, %v3868
        %3870 = vmatmul.bf16.gmra.mxu0 %v3419
        %v3871 = vpop.f32.mrf.mxu0
        %v3872 = vadd.f32 %v3223, %v3871
        %v3873 = vpop.f32.mrf.mxu0
        %v3874 = vadd.f32 %v3223, %v3873
        %3875 = vmatmul.bf16.gmra.mxu0 %v3422
        %v3876 = vpop.f32.mrf.mxu0
        %v3877 = vadd.f32 %v3223, %v3876
        %v3878 = vpop.f32.mrf.mxu0
        %v3879 = vadd.f32 %v3223, %v3878
        %3880 = vmatmul.bf16.gmra.mxu0 %v3425
        %v3881 = vpop.f32.mrf.mxu0
        %v3882 = vadd.f32 %v3223, %v3881
        %v3883 = vpop.f32.mrf.mxu0
        %v3884 = vadd.f32 %v3223, %v3883
        %3885 = vmatmul.bf16.gmra.mxu0 %v3428
        %v3886 = vpop.f32.mrf.mxu0
        %v3887 = vadd.f32 %v3223, %v3886
        %v3888 = vpop.f32.mrf.mxu0
        %v3889 = vadd.f32 %v3223, %v3888
        %3890 = vmatmul.bf16.gmra.mxu0 %v3431
        %v3891 = vpop.f32.mrf.mxu0
        %v3892 = vadd.f32 %v3223, %v3891
        %v3893 = vpop.f32.mrf.mxu0
        %v3894 = vadd.f32 %v3223, %v3893
        %3895 = vmatmul.bf16.gmra.mxu0 %v3434
        %v3896 = vpop.f32.mrf.mxu0
        %v3897 = vadd.f32 %v3223, %v3896
        %v3898 = vpop.f32.mrf.mxu0
        %v3899 = vadd.f32 %v3223, %v3898
        %3900 = vmatmul.bf16.gmra.mxu0 %v3437
        %v3901 = vpop.f32.mrf.mxu0
        %v3902 = vadd.f32 %v3223, %v3901
        %v3903 = vpop.f32.mrf.mxu0
        %v3904 = vadd.f32 %v3223, %v3903
        %3905 = vmatmul.bf16.gmra.mxu0 %v3440
        %v3906 = vpop.f32.mrf.mxu0
        %v3907 = vadd.f32 %v3223, %v3906
        %v3908 = vpop.f32.mrf.mxu0
        %v3909 = vadd.f32 %v3223, %v3908
        %3910 = vmatmul.bf16.gmra.mxu0 %v3443
        %v3911 = vpop.f32.mrf.mxu0
        %v3912 = vadd.f32 %v3223, %v3911
        %v3913 = vpop.f32.mrf.mxu0
        %v3914 = vadd.f32 %v3223, %v3913
        %3915 = vmatmul.bf16.gmra.mxu0 %v3446
        %v3916 = vpop.f32.mrf.mxu0
        %v3917 = vadd.f32 %v3223, %v3916
        %v3918 = vpop.f32.mrf.mxu0
        %v3919 = vadd.f32 %v3223, %v3918
        %3920 = vdwg.mxu0
        %3921 = vmatpush.bf16.msra.mxu0 %v3212
        %3922 = vmatpush.bf16.msra.mxu0 %v3209
        %3923 = vmatpush.bf16.msra.mxu0 %v3206
        %3924 = vmatpush.bf16.msra.mxu0 %v3203
        %3925 = vmatpush.bf16.msra.mxu0 %v3200
        %3926 = vmatpush.bf16.msra.mxu0 %v3197
        %3927 = vmatpush.bf16.msra.mxu0 %v3194
        %3928 = vmatpush.bf16.msra.mxu0 %v3191
        %3929 = vmatmul.bf16.gmra.mxu0 %v3399
        %v3930 = vpop.f32.mrf.mxu0
        %v3931 = vadd.f32 %v3837, %v3930
        %v3932 = vpop.f32.mrf.mxu0
        %v3933 = vadd.f32 %v3839, %v3932
        %3934 = vmatmul.bf16.gmra.mxu0 %v3402
        %v3935 = vpop.f32.mrf.mxu0
        %v3936 = vadd.f32 %v3842, %v3935
        %v3937 = vpop.f32.mrf.mxu0
        %v3938 = vadd.f32 %v3844, %v3937
        %3939 = vmatmul.bf16.gmra.mxu0 %v3405
        %v3940 = vpop.f32.mrf.mxu0
        %v3941 = vadd.f32 %v3847, %v3940
        %v3942 = vpop.f32.mrf.mxu0
        %v3943 = vadd.f32 %v3849, %v3942
        %3944 = vmatmul.bf16.gmra.mxu0 %v3408
        %v3945 = vpop.f32.mrf.mxu0
        %v3946 = vadd.f32 %v3852, %v3945
        %v3947 = vpop.f32.mrf.mxu0
        %v3948 = vadd.f32 %v3854, %v3947
        %3949 = vmatmul.bf16.gmra.mxu0 %v3411
        %v3950 = vpop.f32.mrf.mxu0
        %v3951 = vadd.f32 %v3857, %v3950
        %v3952 = vpop.f32.mrf.mxu0
        %v3953 = vadd.f32 %v3859, %v3952
        %3954 = vmatmul.bf16.gmra.mxu0 %v3414
        %v3955 = vpop.f32.mrf.mxu0
        %v3956 = vadd.f32 %v3862, %v3955
        %v3957 = vpop.f32.mrf.mxu0
        %v3958 = vadd.f32 %v3864, %v3957
        %3959 = vmatmul.bf16.gmra.mxu0 %v3417
        %v3960 = vpop.f32.mrf.mxu0
        %v3961 = vadd.f32 %v3867, %v3960
        %v3962 = vpop.f32.mrf.mxu0
        %v3963 = vadd.f32 %v3869, %v3962
        %3964 = vmatmul.bf16.gmra.mxu0 %v3420
        %v3965 = vpop.f32.mrf.mxu0
        %v3966 = vadd.f32 %v3872, %v3965
        %v3967 = vpop.f32.mrf.mxu0
        %v3968 = vadd.f32 %v3874, %v3967
        %3969 = vmatmul.bf16.gmra.mxu0 %v3423
        %v3970 = vpop.f32.mrf.mxu0
        %v3971 = vadd.f32 %v3877, %v3970
        %v3972 = vpop.f32.mrf.mxu0
        %v3973 = vadd.f32 %v3879, %v3972
        %3974 = vmatmul.bf16.gmra.mxu0 %v3426
        %v3975 = vpop.f32.mrf.mxu0
        %v3976 = vadd.f32 %v3882, %v3975
        %v3977 = vpop.f32.mrf.mxu0
        %v3978 = vadd.f32 %v3884, %v3977
        %3979 = vmatmul.bf16.gmra.mxu0 %v3429
        %v3980 = vpop.f32.mrf.mxu0
        %v3981 = vadd.f32 %v3887, %v3980
        %v3982 = vpop.f32.mrf.mxu0
        %v3983 = vadd.f32 %v3889, %v3982
        %3984 = vmatmul.bf16.gmra.mxu0 %v3432
        %v3985 = vpop.f32.mrf.mxu0
        %v3986 = vadd.f32 %v3892, %v3985
        %v3987 = vpop.f32.mrf.mxu0
        %v3988 = vadd.f32 %v3894, %v3987
        %3989 = vmatmul.bf16.gmra.mxu0 %v3435
        %v3990 = vpop.f32.mrf.mxu0
        %v3991 = vadd.f32 %v3897, %v3990
        %v3992 = vpop.f32.mrf.mxu0
        %v3993 = vadd.f32 %v3899, %v3992
        %3994 = vmatmul.bf16.gmra.mxu0 %v3438
        %v3995 = vpop.f32.mrf.mxu0
        %v3996 = vadd.f32 %v3902, %v3995
        %v3997 = vpop.f32.mrf.mxu0
        %v3998 = vadd.f32 %v3904, %v3997
        %3999 = vmatmul.bf16.gmra.mxu0 %v3441
        %v4000 = vpop.f32.mrf.mxu0
        %v4001 = vadd.f32 %v3907, %v4000
        %v4002 = vpop.f32.mrf.mxu0
        %v4003 = vadd.f32 %v3909, %v4002
        %4004 = vmatmul.bf16.gmra.mxu0 %v3444
        %v4005 = vpop.f32.mrf.mxu0
        %v4006 = vadd.f32 %v3912, %v4005
        %v4007 = vpop.f32.mrf.mxu0
        %v4008 = vadd.f32 %v3914, %v4007
        %4009 = vmatmul.bf16.gmra.mxu0 %v3447
        %v4010 = vpop.f32.mrf.mxu0
        %v4011 = vadd.f32 %v3917, %v4010
        %v4012 = vpop.f32.mrf.mxu0
        %v4013 = vadd.f32 %v3919, %v4012
        %4014 = vdwg.mxu0
        %4015 = vmatpush.bf16.msra.mxu0 0
        %4016 = vmatpush.bf16.msra.mxu0 0
        %4017 = vmatpush.bf16.msra.mxu0 0
        %4018 = vmatpush.bf16.msra.mxu0 0
        %4019 = vmatpush.bf16.msra.mxu0 0
        %4020 = vmatpush.bf16.msra.mxu0 0
        %4021 = vmatpush.bf16.msra.mxu0 %v3540
        %4022 = vmatpush.bf16.msra.mxu0 %v3215
        %4023 = vmatmul.bf16.gmra.mxu0 %v3485
        %v4024 = vpop.f32.mrf.mxu0
        %v4025 = vadd.f32 %v3931, %v4024
        %v4026 = vpop.f32.mrf.mxu0
        %v4027 = vadd.f32 %v3933, %v4026
        %4028 = vmatmul.bf16.gmra.mxu0 %v3488
        %v4029 = vpop.f32.mrf.mxu0
        %v4030 = vadd.f32 %v3936, %v4029
        %v4031 = vpop.f32.mrf.mxu0
        %v4032 = vadd.f32 %v3938, %v4031
        %4033 = vmatmul.bf16.gmra.mxu0 %v3491
        %v4034 = vpop.f32.mrf.mxu0
        %v4035 = vadd.f32 %v3941, %v4034
        %v4036 = vpop.f32.mrf.mxu0
        %v4037 = vadd.f32 %v3943, %v4036
        %4038 = vmatmul.bf16.gmra.mxu0 %v3494
        %v4039 = vpop.f32.mrf.mxu0
        %v4040 = vadd.f32 %v3946, %v4039
        %v4041 = vpop.f32.mrf.mxu0
        %v4042 = vadd.f32 %v3948, %v4041
        %4043 = vmatmul.bf16.gmra.mxu0 %v3497
        %v4044 = vpop.f32.mrf.mxu0
        %v4045 = vadd.f32 %v3951, %v4044
        %v4046 = vpop.f32.mrf.mxu0
        %v4047 = vadd.f32 %v3953, %v4046
        %4048 = vmatmul.bf16.gmra.mxu0 %v3500
        %v4049 = vpop.f32.mrf.mxu0
        %v4050 = vadd.f32 %v3956, %v4049
        %v4051 = vpop.f32.mrf.mxu0
        %v4052 = vadd.f32 %v3958, %v4051
        %4053 = vmatmul.bf16.gmra.mxu0 %v3503
        %v4054 = vpop.f32.mrf.mxu0
        %v4055 = vadd.f32 %v3961, %v4054
        %v4056 = vpop.f32.mrf.mxu0
        %v4057 = vadd.f32 %v3963, %v4056
        %4058 = vmatmul.bf16.gmra.mxu0 %v3506
        %v4059 = vpop.f32.mrf.mxu0
        %v4060 = vadd.f32 %v3966, %v4059
        %v4061 = vpop.f32.mrf.mxu0
        %v4062 = vadd.f32 %v3968, %v4061
        %4063 = vmatmul.bf16.gmra.mxu0 %v3509
        %v4064 = vpop.f32.mrf.mxu0
        %v4065 = vadd.f32 %v3971, %v4064
        %v4066 = vpop.f32.mrf.mxu0
        %v4067 = vadd.f32 %v3973, %v4066
        %4068 = vmatmul.bf16.gmra.mxu0 %v3512
        %v4069 = vpop.f32.mrf.mxu0
        %v4070 = vadd.f32 %v3976, %v4069
        %v4071 = vpop.f32.mrf.mxu0
        %v4072 = vadd.f32 %v3978, %v4071
        %4073 = vmatmul.bf16.gmra.mxu0 %v3515
        %v4074 = vpop.f32.mrf.mxu0
        %v4075 = vadd.f32 %v3981, %v4074
        %v4076 = vpop.f32.mrf.mxu0
        %v4077 = vadd.f32 %v3983, %v4076
        %4078 = vmatmul.bf16.gmra.mxu0 %v3518
        %v4079 = vpop.f32.mrf.mxu0
        %v4080 = vadd.f32 %v3986, %v4079
        %v4081 = vpop.f32.mrf.mxu0
        %v4082 = vadd.f32 %v3988, %v4081
        %4083 = vmatmul.bf16.gmra.mxu0 %v3521
        %v4084 = vpop.f32.mrf.mxu0
        %v4085 = vadd.f32 %v3991, %v4084
        %v4086 = vpop.f32.mrf.mxu0
        %v4087 = vadd.f32 %v3993, %v4086
        %4088 = vmatmul.bf16.gmra.mxu0 %v3524
        %v4089 = vpop.f32.mrf.mxu0
        %v4090 = vadd.f32 %v3996, %v4089
        %v4091 = vpop.f32.mrf.mxu0
        %v4092 = vadd.f32 %v3998, %v4091
        %4093 = vmatmul.bf16.gmra.mxu0 %v3527
        %v4094 = vpop.f32.mrf.mxu0
        %v4095 = vadd.f32 %v4001, %v4094
        %v4096 = vpop.f32.mrf.mxu0
        %v4097 = vadd.f32 %v4003, %v4096
        %4098 = vmatmul.bf16.gmra.mxu0 %v3530
        %v4099 = vpop.f32.mrf.mxu0
        %v4100 = vadd.f32 %v4006, %v4099
        %v4101 = vpop.f32.mrf.mxu0
        %v4102 = vadd.f32 %v4008, %v4101
        %4103 = vmatmul.bf16.gmra.mxu0 %v3533
        %v4104 = vpop.f32.mrf.mxu0
        %v4105 = vadd.f32 %v4011, %v4104
        %v4106 = vpop.f32.mrf.mxu0
        %v4107 = vadd.f32 %v4013, %v4106
        %4108 = vdwg.mxu0
        %4109 = vmatpush.bf16.msra.mxu0 %v3189
        %4110 = vmatpush.bf16.msra.mxu0 %v3186
        %4111 = vmatpush.bf16.msra.mxu0 %v3183
        %4112 = vmatpush.bf16.msra.mxu0 %v3180
        %4113 = vmatpush.bf16.msra.mxu0 %v3177
        %4114 = vmatpush.bf16.msra.mxu0 %v3174
        %4115 = vmatpush.bf16.msra.mxu0 %v3171
        %4116 = vmatpush.bf16.msra.mxu0 %v3168
        %4117 = vmatmul.bf16.gmra.mxu0 %v3398
        %v4118 = vpop.f32.mrf.mxu0
        %v4119 = vadd.f32 %v3224, %v4118
        %v4120 = vpop.f32.mrf.mxu0
        %v4121 = vadd.f32 %v3224, %v4120
        %4122 = vmatmul.bf16.gmra.mxu0 %v3401
        %v4123 = vpop.f32.mrf.mxu0
        %v4124 = vadd.f32 %v3224, %v4123
        %v4125 = vpop.f32.mrf.mxu0
        %v4126 = vadd.f32 %v3224, %v4125
        %4127 = vmatmul.bf16.gmra.mxu0 %v3404
        %v4128 = vpop.f32.mrf.mxu0
        %v4129 = vadd.f32 %v3224, %v4128
        %v4130 = vpop.f32.mrf.mxu0
        %v4131 = vadd.f32 %v3224, %v4130
        %4132 = vmatmul.bf16.gmra.mxu0 %v3407
        %v4133 = vpop.f32.mrf.mxu0
        %v4134 = vadd.f32 %v3224, %v4133
        %v4135 = vpop.f32.mrf.mxu0
        %v4136 = vadd.f32 %v3224, %v4135
        %4137 = vmatmul.bf16.gmra.mxu0 %v3410
        %v4138 = vpop.f32.mrf.mxu0
        %v4139 = vadd.f32 %v3224, %v4138
        %v4140 = vpop.f32.mrf.mxu0
        %v4141 = vadd.f32 %v3224, %v4140
        %4142 = vmatmul.bf16.gmra.mxu0 %v3413
        %v4143 = vpop.f32.mrf.mxu0
        %v4144 = vadd.f32 %v3224, %v4143
        %v4145 = vpop.f32.mrf.mxu0
        %v4146 = vadd.f32 %v3224, %v4145
        %4147 = vmatmul.bf16.gmra.mxu0 %v3416
        %v4148 = vpop.f32.mrf.mxu0
        %v4149 = vadd.f32 %v3224, %v4148
        %v4150 = vpop.f32.mrf.mxu0
        %v4151 = vadd.f32 %v3224, %v4150
        %4152 = vmatmul.bf16.gmra.mxu0 %v3419
        %v4153 = vpop.f32.mrf.mxu0
        %v4154 = vadd.f32 %v3224, %v4153
        %v4155 = vpop.f32.mrf.mxu0
        %v4156 = vadd.f32 %v3224, %v4155
        %4157 = vmatmul.bf16.gmra.mxu0 %v3422
        %v4158 = vpop.f32.mrf.mxu0
        %v4159 = vadd.f32 %v3224, %v4158
        %v4160 = vpop.f32.mrf.mxu0
        %v4161 = vadd.f32 %v3224, %v4160
        %4162 = vmatmul.bf16.gmra.mxu0 %v3425
        %v4163 = vpop.f32.mrf.mxu0
        %v4164 = vadd.f32 %v3224, %v4163
        %v4165 = vpop.f32.mrf.mxu0
        %v4166 = vadd.f32 %v3224, %v4165
        %4167 = vmatmul.bf16.gmra.mxu0 %v3428
        %v4168 = vpop.f32.mrf.mxu0
        %v4169 = vadd.f32 %v3224, %v4168
        %v4170 = vpop.f32.mrf.mxu0
        %v4171 = vadd.f32 %v3224, %v4170
        %4172 = vmatmul.bf16.gmra.mxu0 %v3431
        %v4173 = vpop.f32.mrf.mxu0
        %v4174 = vadd.f32 %v3224, %v4173
        %v4175 = vpop.f32.mrf.mxu0
        %v4176 = vadd.f32 %v3224, %v4175
        %4177 = vmatmul.bf16.gmra.mxu0 %v3434
        %v4178 = vpop.f32.mrf.mxu0
        %v4179 = vadd.f32 %v3224, %v4178
        %v4180 = vpop.f32.mrf.mxu0
        %v4181 = vadd.f32 %v3224, %v4180
        %4182 = vmatmul.bf16.gmra.mxu0 %v3437
        %v4183 = vpop.f32.mrf.mxu0
        %v4184 = vadd.f32 %v3224, %v4183
        %v4185 = vpop.f32.mrf.mxu0
        %v4186 = vadd.f32 %v3224, %v4185
        %4187 = vmatmul.bf16.gmra.mxu0 %v3440
        %v4188 = vpop.f32.mrf.mxu0
        %v4189 = vadd.f32 %v3224, %v4188
        %v4190 = vpop.f32.mrf.mxu0
        %v4191 = vadd.f32 %v3224, %v4190
        %4192 = vmatmul.bf16.gmra.mxu0 %v3443
        %v4193 = vpop.f32.mrf.mxu0
        %v4194 = vadd.f32 %v3224, %v4193
        %v4195 = vpop.f32.mrf.mxu0
        %v4196 = vadd.f32 %v3224, %v4195
        %4197 = vmatmul.bf16.gmra.mxu0 %v3446
        %v4198 = vpop.f32.mrf.mxu0
        %v4199 = vadd.f32 %v3224, %v4198
        %v4200 = vpop.f32.mrf.mxu0
        %v4201 = vadd.f32 %v3224, %v4200
        %4202 = vdwg.mxu0
        %4203 = vmatpush.bf16.msra.mxu0 %v3213
        %4204 = vmatpush.bf16.msra.mxu0 %v3210
        %4205 = vmatpush.bf16.msra.mxu0 %v3207
        %4206 = vmatpush.bf16.msra.mxu0 %v3204
        %4207 = vmatpush.bf16.msra.mxu0 %v3201
        %4208 = vmatpush.bf16.msra.mxu0 %v3198
        %4209 = vmatpush.bf16.msra.mxu0 %v3195
        %4210 = vmatpush.bf16.msra.mxu0 %v3192
        %4211 = vmatmul.bf16.gmra.mxu0 %v3399
        %v4212 = vpop.f32.mrf.mxu0
        %v4213 = vadd.f32 %v4119, %v4212
        %v4214 = vpop.f32.mrf.mxu0
        %v4215 = vadd.f32 %v4121, %v4214
        %4216 = vmatmul.bf16.gmra.mxu0 %v3402
        %v4217 = vpop.f32.mrf.mxu0
        %v4218 = vadd.f32 %v4124, %v4217
        %v4219 = vpop.f32.mrf.mxu0
        %v4220 = vadd.f32 %v4126, %v4219
        %4221 = vmatmul.bf16.gmra.mxu0 %v3405
        %v4222 = vpop.f32.mrf.mxu0
        %v4223 = vadd.f32 %v4129, %v4222
        %v4224 = vpop.f32.mrf.mxu0
        %v4225 = vadd.f32 %v4131, %v4224
        %4226 = vmatmul.bf16.gmra.mxu0 %v3408
        %v4227 = vpop.f32.mrf.mxu0
        %v4228 = vadd.f32 %v4134, %v4227
        %v4229 = vpop.f32.mrf.mxu0
        %v4230 = vadd.f32 %v4136, %v4229
        %4231 = vmatmul.bf16.gmra.mxu0 %v3411
        %v4232 = vpop.f32.mrf.mxu0
        %v4233 = vadd.f32 %v4139, %v4232
        %v4234 = vpop.f32.mrf.mxu0
        %v4235 = vadd.f32 %v4141, %v4234
        %4236 = vmatmul.bf16.gmra.mxu0 %v3414
        %v4237 = vpop.f32.mrf.mxu0
        %v4238 = vadd.f32 %v4144, %v4237
        %v4239 = vpop.f32.mrf.mxu0
        %v4240 = vadd.f32 %v4146, %v4239
        %4241 = vmatmul.bf16.gmra.mxu0 %v3417
        %v4242 = vpop.f32.mrf.mxu0
        %v4243 = vadd.f32 %v4149, %v4242
        %v4244 = vpop.f32.mrf.mxu0
        %v4245 = vadd.f32 %v4151, %v4244
        %4246 = vmatmul.bf16.gmra.mxu0 %v3420
        %v4247 = vpop.f32.mrf.mxu0
        %v4248 = vadd.f32 %v4154, %v4247
        %v4249 = vpop.f32.mrf.mxu0
        %v4250 = vadd.f32 %v4156, %v4249
        %4251 = vmatmul.bf16.gmra.mxu0 %v3423
        %v4252 = vpop.f32.mrf.mxu0
        %v4253 = vadd.f32 %v4159, %v4252
        %v4254 = vpop.f32.mrf.mxu0
        %v4255 = vadd.f32 %v4161, %v4254
        %4256 = vmatmul.bf16.gmra.mxu0 %v3426
        %v4257 = vpop.f32.mrf.mxu0
        %v4258 = vadd.f32 %v4164, %v4257
        %v4259 = vpop.f32.mrf.mxu0
        %v4260 = vadd.f32 %v4166, %v4259
        %4261 = vmatmul.bf16.gmra.mxu0 %v3429
        %v4262 = vpop.f32.mrf.mxu0
        %v4263 = vadd.f32 %v4169, %v4262
        %v4264 = vpop.f32.mrf.mxu0
        %v4265 = vadd.f32 %v4171, %v4264
        %4266 = vmatmul.bf16.gmra.mxu0 %v3432
        %v4267 = vpop.f32.mrf.mxu0
        %v4268 = vadd.f32 %v4174, %v4267
        %v4269 = vpop.f32.mrf.mxu0
        %v4270 = vadd.f32 %v4176, %v4269
        %4271 = vmatmul.bf16.gmra.mxu0 %v3435
        %v4272 = vpop.f32.mrf.mxu0
        %v4273 = vadd.f32 %v4179, %v4272
        %v4274 = vpop.f32.mrf.mxu0
        %v4275 = vadd.f32 %v4181, %v4274
        %4276 = vmatmul.bf16.gmra.mxu0 %v3438
        %v4277 = vpop.f32.mrf.mxu0
        %v4278 = vadd.f32 %v4184, %v4277
        %v4279 = vpop.f32.mrf.mxu0
        %v4280 = vadd.f32 %v4186, %v4279
        %4281 = vmatmul.bf16.gmra.mxu0 %v3441
        %v4282 = vpop.f32.mrf.mxu0
        %v4283 = vadd.f32 %v4189, %v4282
        %v4284 = vpop.f32.mrf.mxu0
        %v4285 = vadd.f32 %v4191, %v4284
        %4286 = vmatmul.bf16.gmra.mxu0 %v3444
        %v4287 = vpop.f32.mrf.mxu0
        %v4288 = vadd.f32 %v4194, %v4287
        %v4289 = vpop.f32.mrf.mxu0
        %v4290 = vadd.f32 %v4196, %v4289
        %4291 = vmatmul.bf16.gmra.mxu0 %v3447
        %v4292 = vpop.f32.mrf.mxu0
        %v4293 = vadd.f32 %v4199, %v4292
        %v4294 = vpop.f32.mrf.mxu0
        %v4295 = vadd.f32 %v4201, %v4294
        %4296 = vdwg.mxu0
        %4297 = vmatpush.bf16.msra.mxu0 0
        %4298 = vmatpush.bf16.msra.mxu0 0
        %4299 = vmatpush.bf16.msra.mxu0 0
        %4300 = vmatpush.bf16.msra.mxu0 0
        %4301 = vmatpush.bf16.msra.mxu0 0
        %4302 = vmatpush.bf16.msra.mxu0 0
        %4303 = vmatpush.bf16.msra.mxu0 %v3543
        %4304 = vmatpush.bf16.msra.mxu0 %v3216
        %4305 = vmatmul.bf16.gmra.mxu0 %v3485
        %v4306 = vpop.f32.mrf.mxu0
        %v4307 = vadd.f32 %v4213, %v4306
        %v4308 = vpop.f32.mrf.mxu0
        %v4309 = vadd.f32 %v4215, %v4308
        %4310 = vmatmul.bf16.gmra.mxu0 %v3488
        %v4311 = vpop.f32.mrf.mxu0
        %v4312 = vadd.f32 %v4218, %v4311
        %v4313 = vpop.f32.mrf.mxu0
        %v4314 = vadd.f32 %v4220, %v4313
        %4315 = vmatmul.bf16.gmra.mxu0 %v3491
        %v4316 = vpop.f32.mrf.mxu0
        %v4317 = vadd.f32 %v4223, %v4316
        %v4318 = vpop.f32.mrf.mxu0
        %v4319 = vadd.f32 %v4225, %v4318
        %4320 = vmatmul.bf16.gmra.mxu0 %v3494
        %v4321 = vpop.f32.mrf.mxu0
        %v4322 = vadd.f32 %v4228, %v4321
        %v4323 = vpop.f32.mrf.mxu0
        %v4324 = vadd.f32 %v4230, %v4323
        %4325 = vmatmul.bf16.gmra.mxu0 %v3497
        %v4326 = vpop.f32.mrf.mxu0
        %v4327 = vadd.f32 %v4233, %v4326
        %v4328 = vpop.f32.mrf.mxu0
        %v4329 = vadd.f32 %v4235, %v4328
        %4330 = vmatmul.bf16.gmra.mxu0 %v3500
        %v4331 = vpop.f32.mrf.mxu0
        %v4332 = vadd.f32 %v4238, %v4331
        %v4333 = vpop.f32.mrf.mxu0
        %v4334 = vadd.f32 %v4240, %v4333
        %4335 = vmatmul.bf16.gmra.mxu0 %v3503
        %v4336 = vpop.f32.mrf.mxu0
        %v4337 = vadd.f32 %v4243, %v4336
        %v4338 = vpop.f32.mrf.mxu0
        %v4339 = vadd.f32 %v4245, %v4338
        %4340 = vmatmul.bf16.gmra.mxu0 %v3506
        %v4341 = vpop.f32.mrf.mxu0
        %v4342 = vadd.f32 %v4248, %v4341
        %v4343 = vpop.f32.mrf.mxu0
        %v4344 = vadd.f32 %v4250, %v4343
        %4345 = vmatmul.bf16.gmra.mxu0 %v3509
        %v4346 = vpop.f32.mrf.mxu0
        %v4347 = vadd.f32 %v4253, %v4346
        %v4348 = vpop.f32.mrf.mxu0
        %v4349 = vadd.f32 %v4255, %v4348
        %4350 = vmatmul.bf16.gmra.mxu0 %v3512
        %v4351 = vpop.f32.mrf.mxu0
        %v4352 = vadd.f32 %v4258, %v4351
        %v4353 = vpop.f32.mrf.mxu0
        %v4354 = vadd.f32 %v4260, %v4353
        %4355 = vmatmul.bf16.gmra.mxu0 %v3515
        %v4356 = vpop.f32.mrf.mxu0
        %v4357 = vadd.f32 %v4263, %v4356
        %v4358 = vpop.f32.mrf.mxu0
        %v4359 = vadd.f32 %v4265, %v4358
        %4360 = vmatmul.bf16.gmra.mxu0 %v3518
        %v4361 = vpop.f32.mrf.mxu0
        %v4362 = vadd.f32 %v4268, %v4361
        %v4363 = vpop.f32.mrf.mxu0
        %v4364 = vadd.f32 %v4270, %v4363
        %4365 = vmatmul.bf16.gmra.mxu0 %v3521
        %v4366 = vpop.f32.mrf.mxu0
        %v4367 = vadd.f32 %v4273, %v4366
        %v4368 = vpop.f32.mrf.mxu0
        %v4369 = vadd.f32 %v4275, %v4368
        %4370 = vmatmul.bf16.gmra.mxu0 %v3524
        %v4371 = vpop.f32.mrf.mxu0
        %v4372 = vadd.f32 %v4278, %v4371
        %v4373 = vpop.f32.mrf.mxu0
        %v4374 = vadd.f32 %v4280, %v4373
        %4375 = vmatmul.bf16.gmra.mxu0 %v3527
        %v4376 = vpop.f32.mrf.mxu0
        %v4377 = vadd.f32 %v4283, %v4376
        %v4378 = vpop.f32.mrf.mxu0
        %v4379 = vadd.f32 %v4285, %v4378
        %4380 = vmatmul.bf16.gmra.mxu0 %v3530
        %v4381 = vpop.f32.mrf.mxu0
        %v4382 = vadd.f32 %v4288, %v4381
        %v4383 = vpop.f32.mrf.mxu0
        %v4384 = vadd.f32 %v4290, %v4383
        %4385 = vmatmul.bf16.gmra.mxu0 %v3533
        %v4386 = vpop.f32.mrf.mxu0
        %v4387 = vadd.f32 %v4293, %v4386
        %v4388 = vpop.f32.mrf.mxu0
        %v4389 = vadd.f32 %v4295, %v4388
        %4390 = vdwg.mxu0
        %v4391 = vmax.f32 %v3743, 0.0
        %v4392 = vmax.f32 %v4025, 0.0
        %v4393 = vmax.f32 %v4307, 0.0
        %v4394 = vmax.f32 %v3745, 0.0
        %v4395 = vmax.f32 %v4027, 0.0
        %v4396 = vmax.f32 %v4309, 0.0
        %v4397 = vmax.f32 %v3748, 0.0
        %v4398 = vmax.f32 %v4030, 0.0
        %v4399 = vmax.f32 %v4312, 0.0
        %v4400 = vmax.f32 %v3750, 0.0
        %v4401 = vmax.f32 %v4032, 0.0
        %v4402 = vmax.f32 %v4314, 0.0
        %v4403 = vmax.f32 %v3753, 0.0
        %v4404 = vmax.f32 %v4035, 0.0
        %v4405 = vmax.f32 %v4317, 0.0
        %v4406 = vmax.f32 %v3755, 0.0
        %v4407 = vmax.f32 %v4037, 0.0
        %v4408 = vmax.f32 %v4319, 0.0
        %v4409 = vmax.f32 %v3758, 0.0
        %v4410 = vmax.f32 %v4040, 0.0
        %v4411 = vmax.f32 %v4322, 0.0
        %v4412 = vmax.f32 %v3760, 0.0
        %v4413 = vmax.f32 %v4042, 0.0
        %v4414 = vmax.f32 %v4324, 0.0
        %v4415 = vmax.f32 %v3763, 0.0
        %v4416 = vmax.f32 %v4045, 0.0
        %v4417 = vmax.f32 %v4327, 0.0
        %v4418 = vmax.f32 %v3765, 0.0
        %v4419 = vmax.f32 %v4047, 0.0
        %v4420 = vmax.f32 %v4329, 0.0
        %v4421 = vmax.f32 %v3768, 0.0
        %v4422 = vmax.f32 %v4050, 0.0
        %v4423 = vmax.f32 %v4332, 0.0
        %v4424 = vmax.f32 %v3770, 0.0
        %v4425 = vmax.f32 %v4052, 0.0
        %v4426 = vmax.f32 %v4334, 0.0
        %v4427 = vmax.f32 %v3773, 0.0
        %v4428 = vmax.f32 %v4055, 0.0
        %v4429 = vmax.f32 %v4337, 0.0
        %v4430 = vmax.f32 %v3775, 0.0
        %v4431 = vmax.f32 %v4057, 0.0
        %v4432 = vmax.f32 %v4339, 0.0
        %v4433 = vmax.f32 %v3778, 0.0
        %v4434 = vmax.f32 %v4060, 0.0
        %v4435 = vmax.f32 %v4342, 0.0
        %v4436 = vmax.f32 %v3780, 0.0
        %v4437 = vmax.f32 %v4062, 0.0
        %v4438 = vmax.f32 %v4344, 0.0
        %v4439 = vmax.f32 %v3783, 0.0
        %v4440 = vmax.f32 %v4065, 0.0
        %v4441 = vmax.f32 %v4347, 0.0
        %v4442 = vmax.f32 %v3785, 0.0
        %v4443 = vmax.f32 %v4067, 0.0
        %v4444 = vmax.f32 %v4349, 0.0
        %v4445 = vmax.f32 %v3788, 0.0
        %v4446 = vmax.f32 %v4070, 0.0
        %v4447 = vmax.f32 %v4352, 0.0
        %v4448 = vmax.f32 %v3790, 0.0
        %v4449 = vmax.f32 %v4072, 0.0
        %v4450 = vmax.f32 %v4354, 0.0
        %v4451 = vmax.f32 %v3793, 0.0
        %v4452 = vmax.f32 %v4075, 0.0
        %v4453 = vmax.f32 %v4357, 0.0
        %v4454 = vmax.f32 %v3795, 0.0
        %v4455 = vmax.f32 %v4077, 0.0
        %v4456 = vmax.f32 %v4359, 0.0
        %v4457 = vmax.f32 %v3798, 0.0
        %v4458 = vmax.f32 %v4080, 0.0
        %v4459 = vmax.f32 %v4362, 0.0
        %v4460 = vmax.f32 %v3800, 0.0
        %v4461 = vmax.f32 %v4082, 0.0
        %v4462 = vmax.f32 %v4364, 0.0
        %v4463 = vmax.f32 %v3803, 0.0
        %v4464 = vmax.f32 %v4085, 0.0
        %v4465 = vmax.f32 %v4367, 0.0
        %v4466 = vmax.f32 %v3805, 0.0
        %v4467 = vmax.f32 %v4087, 0.0
        %v4468 = vmax.f32 %v4369, 0.0
        %v4469 = vmax.f32 %v3808, 0.0
        %v4470 = vmax.f32 %v4090, 0.0
        %v4471 = vmax.f32 %v4372, 0.0
        %v4472 = vmax.f32 %v3810, 0.0
        %v4473 = vmax.f32 %v4092, 0.0
        %v4474 = vmax.f32 %v4374, 0.0
        %v4475 = vmax.f32 %v3813, 0.0
        %v4476 = vmax.f32 %v4095, 0.0
        %v4477 = vmax.f32 %v4377, 0.0
        %v4478 = vmax.f32 %v3815, 0.0
        %v4479 = vmax.f32 %v4097, 0.0
        %v4480 = vmax.f32 %v4379, 0.0
        %v4481 = vmax.f32 %v3818, 0.0
        %v4482 = vmax.f32 %v4100, 0.0
        %v4483 = vmax.f32 %v4382, 0.0
        %v4484 = vmax.f32 %v3820, 0.0
        %v4485 = vmax.f32 %v4102, 0.0
        %v4486 = vmax.f32 %v4384, 0.0
        %v4487 = vmax.f32 %v3823, 0.0
        %v4488 = vmax.f32 %v4105, 0.0
        %v4489 = vmax.f32 %v4387, 0.0
        %v4490 = vmax.f32 %v3825, 0.0
        %v4491 = vmax.f32 %v4107, 0.0
        %v4492 = vmax.f32 %v4389, 0.0
        %v4493 = vpack.c.bf16 %v4394, %v4391
        %v4494 = vpack.c.bf16 %v4395, %v4392
        %v4495 = vpack.c.bf16 %v4396, %v4393
        %v4496 = vpack.c.bf16 %v4400, %v4397
        %v4497 = vpack.c.bf16 %v4401, %v4398
        %v4498 = vpack.c.bf16 %v4402, %v4399
        %v4499 = vpack.c.bf16 %v4406, %v4403
        %v4500 = vpack.c.bf16 %v4407, %v4404
        %v4501 = vpack.c.bf16 %v4408, %v4405
        %v4502 = vpack.c.bf16 %v4412, %v4409
        %v4503 = vpack.c.bf16 %v4413, %v4410
        %v4504 = vpack.c.bf16 %v4414, %v4411
        %v4505 = vpack.c.bf16 %v4418, %v4415
        %v4506 = vpack.c.bf16 %v4419, %v4416
        %v4507 = vpack.c.bf16 %v4420, %v4417
        %v4508 = vpack.c.bf16 %v4424, %v4421
        %v4509 = vpack.c.bf16 %v4425, %v4422
        %v4510 = vpack.c.bf16 %v4426, %v4423
        %v4511 = vpack.c.bf16 %v4430, %v4427
        %v4512 = vpack.c.bf16 %v4431, %v4428
        %v4513 = vpack.c.bf16 %v4432, %v4429
        %v4514 = vpack.c.bf16 %v4436, %v4433
        %v4515 = vpack.c.bf16 %v4437, %v4434
        %v4516 = vpack.c.bf16 %v4438, %v4435
        %v4517 = vpack.c.bf16 %v4442, %v4439
        %v4518 = vpack.c.bf16 %v4443, %v4440
        %v4519 = vpack.c.bf16 %v4444, %v4441
        %v4520 = vpack.c.bf16 %v4448, %v4445
        %v4521 = vpack.c.bf16 %v4449, %v4446
        %v4522 = vpack.c.bf16 %v4450, %v4447
        %v4523 = vpack.c.bf16 %v4454, %v4451
        %v4524 = vpack.c.bf16 %v4455, %v4452
        %v4525 = vpack.c.bf16 %v4456, %v4453
        %v4526 = vpack.c.bf16 %v4460, %v4457
        %v4527 = vpack.c.bf16 %v4461, %v4458
        %v4528 = vpack.c.bf16 %v4462, %v4459
        %v4529 = vpack.c.bf16 %v4466, %v4463
        %v4530 = vpack.c.bf16 %v4467, %v4464
        %v4531 = vpack.c.bf16 %v4468, %v4465
        %v4532 = vpack.c.bf16 %v4472, %v4469
        %v4533 = vpack.c.bf16 %v4473, %v4470
        %v4534 = vpack.c.bf16 %v4474, %v4471
        %v4535 = vpack.c.bf16 %v4478, %v4475
        %v4536 = vpack.c.bf16 %v4479, %v4476
        %v4537 = vpack.c.bf16 %v4480, %v4477
        %v4538 = vpack.c.bf16 %v4484, %v4481
        %v4539 = vpack.c.bf16 %v4485, %v4482
        %v4540 = vpack.c.bf16 %v4486, %v4483
        %v4541 = vpack.c.bf16 %v4490, %v4487
        %v4542 = vpack.c.bf16 %v4491, %v4488
        %v4543 = vpack.c.bf16 %v4492, %v4489
        %v4544 = vld [vmem:[#allocation13] sm:$0xff]
        %v4545 = vld [vmem:[#allocation13 + $0x8] sm:$0xff]
        %v4546 = vld [vmem:[#allocation13 + $0x10] sm:$0xff]
        %v4547 = vld [vmem:[#allocation13 + $0x18] sm:$0xff]
        %v4548 = vld [vmem:[#allocation13 + $0x20] sm:$0xff]
        %v4549 = vld [vmem:[#allocation13 + $0x28] sm:$0xff]
        %v4550 = vld [vmem:[#allocation13 + $0x30] sm:$0xff]
        %v4551 = vld [vmem:[#allocation13 + $0x38] sm:$0xff]
        %v4552 = vld [vmem:[#allocation13 + $0x40] sm:$0xff]
        %v4553 = vld [vmem:[#allocation13 + $0x48] sm:$0xff]
        %v4554 = vld [vmem:[#allocation13 + $0x50] sm:$0xff]
        %v4555 = vld [vmem:[#allocation13 + $0x58] sm:$0xff]
        %v4556 = vld [vmem:[#allocation13 + $0x60] sm:$0xff]
        %v4557 = vld [vmem:[#allocation13 + $0x68] sm:$0xff]
        %v4558 = vld [vmem:[#allocation13 + $0x70] sm:$0xff]
        %v4559 = vld [vmem:[#allocation13 + $0x78] sm:$0xff]
        %v4560 = vld [vmem:[#allocation13 + $0x80] sm:$0xff]
        %v4561 = vld [vmem:[#allocation13 + $0x88] sm:$0xff]
        %v4562 = vld [vmem:[#allocation13 + $0x90] sm:$0xff]
        %v4563 = vld [vmem:[#allocation13 + $0x98] sm:$0xff]
        %v4564 = vld [vmem:[#allocation13 + $0xa0] sm:$0xff]
        %v4565 = vld [vmem:[#allocation13 + $0xa8] sm:$0xff]
        %v4566 = vld [vmem:[#allocation13 + $0xb0] sm:$0xff]
        %v4567 = vld [vmem:[#allocation13 + $0xb8] sm:$0xff]
        %v4568 = vld [vmem:[#allocation13 + $0xc0] sm:$0xff]
        %v4569 = vld [vmem:[#allocation13 + $0xc8] sm:$0xff]
        %v4570 = vld [vmem:[#allocation13 + $0xd0] sm:$0xff]
        %v4571 = vld [vmem:[#allocation13 + $0xd8] sm:$0xff]
        %v4572 = vld [vmem:[#allocation13 + $0xe0] sm:$0xff]
        %v4573 = vld [vmem:[#allocation13 + $0xe8] sm:$0xff]
        %v4574 = vld [vmem:[#allocation13 + $0xf0] sm:$0xff]
        %v4575 = vld [vmem:[#allocation13 + $0xf8] sm:$0xff]
        %v4576 = vld [vmem:[#allocation13 + $0x100] sm:$0xff]
        %v4577 = vld [vmem:[#allocation13 + $0x108] sm:$0xff]
        %v4578 = vld [vmem:[#allocation13 + $0x110] sm:$0xff]
        %v4579 = vld [vmem:[#allocation13 + $0x118] sm:$0xff]
        %v4580 = vld [vmem:[#allocation13 + $0x120] sm:$0xff]
        %v4581 = vld [vmem:[#allocation13 + $0x128] sm:$0xff]
        %v4582 = vld [vmem:[#allocation13 + $0x130] sm:$0xff]
        %v4583 = vld [vmem:[#allocation13 + $0x138] sm:$0xff]
        %v4584 = vld [vmem:[#allocation13 + $0x140] sm:$0xff]
        %v4585 = vld [vmem:[#allocation13 + $0x148] sm:$0xff]
        %v4586 = vld [vmem:[#allocation13 + $0x150] sm:$0xff]
        %v4587 = vld [vmem:[#allocation13 + $0x158] sm:$0xff]
        %v4588 = vld [vmem:[#allocation13 + $0x160] sm:$0xff]
        %v4589 = vld [vmem:[#allocation13 + $0x168] sm:$0xff]
        %v4590 = vld [vmem:[#allocation13 + $0x170] sm:$0xff]
        %v4591 = vld [vmem:[#allocation13 + $0x178] sm:$0xff]
        %v4592 = vld [vmem:[#allocation13 + $0x180] sm:$0xff]
        %v4593 = vld [vmem:[#allocation13 + $0x188] sm:$0xff]
        %v4594 = vld [vmem:[#allocation13 + $0x190] sm:$0xff]
        %v4595 = vld [vmem:[#allocation13 + $0x198] sm:$0xff]
        %v4596 = vld [vmem:[#allocation13 + $0x1a0] sm:$0xff]
        %v4597 = vld [vmem:[#allocation13 + $0x1a8] sm:$0xff]
        %v4598 = vld [vmem:[#allocation13 + $0x1b0] sm:$0xff]
        %v4599 = vld [vmem:[#allocation13 + $0x1b8] sm:$0xff]
        %v4600 = vld [vmem:[#allocation13 + $0x1c0] sm:$0xff]
        %v4601 = vld [vmem:[#allocation13 + $0x1c8] sm:$0xff]
        %v4602 = vld [vmem:[#allocation13 + $0x1d0] sm:$0xff]
        %v4603 = vld [vmem:[#allocation13 + $0x1d8] sm:$0xff]
        %v4604 = vld [vmem:[#allocation13 + $0x1e0] sm:$0xff]
        %v4605 = vld [vmem:[#allocation13 + $0x1e8] sm:$0xff]
        %v4606 = vld [vmem:[#allocation13 + $0x1f0] sm:$0xff]
        %v4607 = vld [vmem:[#allocation13 + $0x1f8] sm:$0xff]
        %v4608 = vld [vmem:[#allocation13 + $0x200] sm:$0xff]
        %v4609 = vld [vmem:[#allocation13 + $0x208] sm:$0xff]
        %v4610 = vld [vmem:[#allocation13 + $0x210] sm:$0xff]
        %v4611 = vld [vmem:[#allocation13 + $0x218] sm:$0xff]
        %v4612 = vld [vmem:[#allocation13 + $0x220] sm:$0xff]
        %v4613 = vld [vmem:[#allocation13 + $0x228] sm:$0xff]
        %v4614 = vld [vmem:[#allocation13 + $0x230] sm:$0xff]
        %v4615 = vld [vmem:[#allocation13 + $0x238] sm:$0xff]
        %v4616 = vld [vmem:[#allocation13 + $0x240] sm:$0xff]
        %v4617 = vld [vmem:[#allocation13 + $0x248] sm:$0xff]
        %v4618 = vld [vmem:[#allocation13 + $0x250] sm:$0xff]
        %v4619 = vld [vmem:[#allocation13 + $0x258] sm:$0xff]
        %v4620 = vld [vmem:[#allocation13 + $0x260] sm:$0xff]
        %v4621 = vld [vmem:[#allocation13 + $0x268] sm:$0xff]
        %v4622 = vld [vmem:[#allocation13 + $0x270] sm:$0xff]
        %v4623 = vld [vmem:[#allocation13 + $0x278] sm:$0xff]
        %v4624 = vld [vmem:[#allocation13 + $0x280] sm:$0xff]
        %v4625 = vld [vmem:[#allocation13 + $0x288] sm:$0xff]
        %v4626 = vld [vmem:[#allocation13 + $0x290] sm:$0xff]
        %v4627 = vld [vmem:[#allocation13 + $0x298] sm:$0xff]
        %v4628 = vld [vmem:[#allocation13 + $0x2a0] sm:$0xff]
        %v4629 = vld [vmem:[#allocation13 + $0x2a8] sm:$0xff]
        %v4630 = vld [vmem:[#allocation13 + $0x2b0] sm:$0xff]
        %v4631 = vld [vmem:[#allocation13 + $0x2b8] sm:$0xff]
        %v4632 = vld [vmem:[#allocation13 + $0x2c0] sm:$0xff]
        %v4633 = vld [vmem:[#allocation13 + $0x2c8] sm:$0xff]
        %v4634 = vld [vmem:[#allocation13 + $0x2d0] sm:$0xff]
        %v4635 = vld [vmem:[#allocation13 + $0x2d8] sm:$0xff]
        %v4636 = vld [vmem:[#allocation13 + $0x2e0] sm:$0xff]
        %v4637 = vld [vmem:[#allocation13 + $0x2e8] sm:$0xff]
        %v4638 = vld [vmem:[#allocation13 + $0x2f0] sm:$0xff]
        %v4639 = vld [vmem:[#allocation13 + $0x2f8] sm:$0xff]
        %v4640 = vld [vmem:[#allocation13 + $0x300] sm:$0xff]
        %v4641 = vld [vmem:[#allocation13 + $0x308] sm:$0xff]
        %v4642 = vld [vmem:[#allocation13 + $0x310] sm:$0xff]
        %v4643 = vld [vmem:[#allocation13 + $0x318] sm:$0xff]
        %v4644 = vld [vmem:[#allocation13 + $0x320] sm:$0xff]
        %v4645 = vld [vmem:[#allocation13 + $0x328] sm:$0xff]
        %v4646 = vld [vmem:[#allocation13 + $0x330] sm:$0xff]
        %v4647 = vld [vmem:[#allocation13 + $0x338] sm:$0xff]
        %v4648 = vld [vmem:[#allocation13 + $0x340] sm:$0xff]
        %v4649 = vld [vmem:[#allocation13 + $0x348] sm:$0xff]
        %v4650 = vld [vmem:[#allocation13 + $0x350] sm:$0xff]
        %v4651 = vld [vmem:[#allocation13 + $0x358] sm:$0xff]
        %v4652 = vld [vmem:[#allocation13 + $0x360] sm:$0xff]
        %v4653 = vld [vmem:[#allocation13 + $0x368] sm:$0xff]
        %v4654 = vld [vmem:[#allocation13 + $0x370] sm:$0xff]
        %v4655 = vld [vmem:[#allocation13 + $0x378] sm:$0xff]
        %v4656 = vld [vmem:[#allocation13 + $0x380] sm:$0xff]
        %v4657 = vld [vmem:[#allocation13 + $0x388] sm:$0xff]
        %v4658 = vld [vmem:[#allocation13 + $0x390] sm:$0xff]
        %v4659 = vld [vmem:[#allocation13 + $0x398] sm:$0xff]
        %v4660 = vld [vmem:[#allocation13 + $0x3a0] sm:$0xff]
        %v4661 = vld [vmem:[#allocation13 + $0x3a8] sm:$0xff]
        %v4662 = vld [vmem:[#allocation13 + $0x3b0] sm:$0xff]
        %v4663 = vld [vmem:[#allocation13 + $0x3b8] sm:$0xff]
        %v4664 = vld [vmem:[#allocation13 + $0x3c0] sm:$0xff]
        %v4665 = vld [vmem:[#allocation13 + $0x3c8] sm:$0xff]
        %v4666 = vld [vmem:[#allocation13 + $0x3d0] sm:$0xff]
        %v4667 = vld [vmem:[#allocation13 + $0x3d8] sm:$0xff]
        %v4668 = vld [vmem:[#allocation13 + $0x3e0] sm:$0xff]
        %v4669 = vld [vmem:[#allocation13 + $0x3e8] sm:$0xff]
        %v4670 = vld [vmem:[#allocation13 + $0x3f0] sm:$0xff]
        %v4671 = vld [vmem:[#allocation13 + $0x3f8] sm:$0xff]
        %v4672 = vld [vmem:[#allocation13 + $0x400] sm:$0xff]
        %v4673 = vld [vmem:[#allocation13 + $0x408] sm:$0xff]
        %v4674 = vld [vmem:[#allocation13 + $0x410] sm:$0xff]
        %v4675 = vld [vmem:[#allocation13 + $0x418] sm:$0xff]
        %v4676 = vld [vmem:[#allocation13 + $0x420] sm:$0xff]
        %v4677 = vld [vmem:[#allocation13 + $0x428] sm:$0xff]
        %v4678 = vld [vmem:[#allocation13 + $0x430] sm:$0xff]
        %v4679 = vld [vmem:[#allocation13 + $0x438] sm:$0xff]
        %v4680 = vld [vmem:[#allocation13 + $0x440] sm:$0xff]
        %v4681 = vld [vmem:[#allocation13 + $0x448] sm:$0xff]
        %v4682 = vld [vmem:[#allocation13 + $0x450] sm:$0xff]
        %v4683 = vld [vmem:[#allocation13 + $0x458] sm:$0xff]
        %v4684 = vld [vmem:[#allocation13 + $0x460] sm:$0xff]
        %v4685 = vld [vmem:[#allocation13 + $0x468] sm:$0xff]
        %v4686 = vld [vmem:[#allocation13 + $0x470] sm:$0xff]
        %v4687 = vld [vmem:[#allocation13 + $0x478] sm:$0xff]
        %v4832 = vunpack.c.l.b16 %v4544
        %v4833 = vunpack.c.h.b16 %v4544
        %v4834 = vunpack.c.l.b16 %v4545
        %v4835 = vunpack.c.h.b16 %v4545
        %v4836 = vunpack.c.l.b16 %v4546
        %v4837 = vunpack.c.h.b16 %v4546
        %v4838 = vunpack.c.l.b16 %v4547
        %v4839 = vunpack.c.h.b16 %v4547
        %v4840 = vunpack.c.l.b16 %v4548
        %v4841 = vunpack.c.h.b16 %v4548
        %v4842 = vunpack.c.l.b16 %v4549
        %v4843 = vunpack.c.h.b16 %v4549
        %v4844 = vunpack.c.l.b16 %v4550
        %v4845 = vunpack.c.h.b16 %v4550
        %v4846 = vunpack.c.l.b16 %v4551
        %v4847 = vunpack.c.h.b16 %v4551
        %v4848 = vunpack.c.l.b16 %v4552
        %v4849 = vunpack.c.h.b16 %v4552
        %v4850 = vunpack.c.l.b16 %v4553
        %v4851 = vunpack.c.h.b16 %v4553
        %v4852 = vunpack.c.l.b16 %v4554
        %v4853 = vunpack.c.h.b16 %v4554
        %v4854 = vunpack.c.l.b16 %v4555
        %v4855 = vunpack.c.h.b16 %v4555
        %v4856 = vunpack.c.l.b16 %v4556
        %v4857 = vunpack.c.h.b16 %v4556
        %v4858 = vunpack.c.l.b16 %v4557
        %v4859 = vunpack.c.h.b16 %v4557
        %v4860 = vunpack.c.l.b16 %v4558
        %v4861 = vunpack.c.h.b16 %v4558
        %v4862 = vunpack.c.l.b16 %v4559
        %v4863 = vunpack.c.h.b16 %v4559
        %v4864 = vunpack.c.l.b16 %v4560
        %v4865 = vunpack.c.h.b16 %v4560
        %v4866 = vunpack.c.l.b16 %v4561
        %v4867 = vunpack.c.h.b16 %v4561
        %v4868 = vunpack.c.l.b16 %v4562
        %v4869 = vunpack.c.h.b16 %v4562
        %v4870 = vunpack.c.l.b16 %v4563
        %v4871 = vunpack.c.h.b16 %v4563
        %v4872 = vunpack.c.l.b16 %v4564
        %v4873 = vunpack.c.h.b16 %v4564
        %v4874 = vunpack.c.l.b16 %v4565
        %v4875 = vunpack.c.h.b16 %v4565
        %v4876 = vunpack.c.l.b16 %v4566
        %v4877 = vunpack.c.h.b16 %v4566
        %v4878 = vunpack.c.l.b16 %v4567
        %v4879 = vunpack.c.h.b16 %v4567
        %v4880 = vunpack.c.l.b16 %v4568
        %v4881 = vunpack.c.h.b16 %v4568
        %v4882 = vunpack.c.l.b16 %v4569
        %v4883 = vunpack.c.h.b16 %v4569
        %v4884 = vunpack.c.l.b16 %v4570
        %v4885 = vunpack.c.h.b16 %v4570
        %v4886 = vunpack.c.l.b16 %v4571
        %v4887 = vunpack.c.h.b16 %v4571
        %v4888 = vunpack.c.l.b16 %v4572
        %v4889 = vunpack.c.h.b16 %v4572
        %v4890 = vunpack.c.l.b16 %v4573
        %v4891 = vunpack.c.h.b16 %v4573
        %v4892 = vunpack.c.l.b16 %v4574
        %v4893 = vunpack.c.h.b16 %v4574
        %v4894 = vunpack.c.l.b16 %v4575
        %v4895 = vunpack.c.h.b16 %v4575
        %v4896 = vunpack.c.l.b16 %v4576
        %v4897 = vunpack.c.h.b16 %v4576
        %v4898 = vunpack.c.l.b16 %v4577
        %v4899 = vunpack.c.h.b16 %v4577
        %v4900 = vunpack.c.l.b16 %v4578
        %v4901 = vunpack.c.h.b16 %v4578
        %v4902 = vunpack.c.l.b16 %v4579
        %v4903 = vunpack.c.h.b16 %v4579
        %v4904 = vunpack.c.l.b16 %v4580
        %v4905 = vunpack.c.h.b16 %v4580
        %v4906 = vunpack.c.l.b16 %v4581
        %v4907 = vunpack.c.h.b16 %v4581
        %v4908 = vunpack.c.l.b16 %v4582
        %v4909 = vunpack.c.h.b16 %v4582
        %v4910 = vunpack.c.l.b16 %v4583
        %v4911 = vunpack.c.h.b16 %v4583
        %v4912 = vunpack.c.l.b16 %v4584
        %v4913 = vunpack.c.h.b16 %v4584
        %v4914 = vunpack.c.l.b16 %v4585
        %v4915 = vunpack.c.h.b16 %v4585
        %v4916 = vunpack.c.l.b16 %v4586
        %v4917 = vunpack.c.h.b16 %v4586
        %v4918 = vunpack.c.l.b16 %v4587
        %v4919 = vunpack.c.h.b16 %v4587
        %v4920 = vunpack.c.l.b16 %v4588
        %v4921 = vunpack.c.h.b16 %v4588
        %v4922 = vunpack.c.l.b16 %v4589
        %v4923 = vunpack.c.h.b16 %v4589
        %v4924 = vunpack.c.l.b16 %v4590
        %v4925 = vunpack.c.h.b16 %v4590
        %v4926 = vunpack.c.l.b16 %v4591
        %v4927 = vunpack.c.h.b16 %v4591
        %v4928 = vunpack.c.l.b16 %v4592
        %v4929 = vunpack.c.h.b16 %v4592
        %v4930 = vunpack.c.l.b16 %v4593
        %v4931 = vunpack.c.h.b16 %v4593
        %v4932 = vunpack.c.l.b16 %v4594
        %v4933 = vunpack.c.h.b16 %v4594
        %v4934 = vunpack.c.l.b16 %v4595
        %v4935 = vunpack.c.h.b16 %v4595
        %v4936 = vunpack.c.l.b16 %v4596
        %v4937 = vunpack.c.h.b16 %v4596
        %v4938 = vunpack.c.l.b16 %v4597
        %v4939 = vunpack.c.h.b16 %v4597
        %v4940 = vunpack.c.l.b16 %v4598
        %v4941 = vunpack.c.h.b16 %v4598
        %v4942 = vunpack.c.l.b16 %v4599
        %v4943 = vunpack.c.h.b16 %v4599
        %v4944 = vunpack.c.l.b16 %v4600
        %v4945 = vunpack.c.h.b16 %v4600
        %v4946 = vunpack.c.l.b16 %v4601
        %v4947 = vunpack.c.h.b16 %v4601
        %v4948 = vunpack.c.l.b16 %v4602
        %v4949 = vunpack.c.h.b16 %v4602
        %v4950 = vunpack.c.l.b16 %v4603
        %v4951 = vunpack.c.h.b16 %v4603
        %v4952 = vunpack.c.l.b16 %v4604
        %v4953 = vunpack.c.h.b16 %v4604
        %v4954 = vunpack.c.l.b16 %v4605
        %v4955 = vunpack.c.h.b16 %v4605
        %v4956 = vunpack.c.l.b16 %v4606
        %v4957 = vunpack.c.h.b16 %v4606
        %v4958 = vunpack.c.l.b16 %v4607
        %v4959 = vunpack.c.h.b16 %v4607
        %v4960 = vunpack.c.l.b16 %v4608
        %v4961 = vunpack.c.h.b16 %v4608
        %v4962 = vunpack.c.l.b16 %v4609
        %v4963 = vunpack.c.h.b16 %v4609
        %v4964 = vunpack.c.l.b16 %v4610
        %v4965 = vunpack.c.h.b16 %v4610
        %v4966 = vunpack.c.l.b16 %v4611
        %v4967 = vunpack.c.h.b16 %v4611
        %v4968 = vunpack.c.l.b16 %v4612
        %v4969 = vunpack.c.h.b16 %v4612
        %v4970 = vunpack.c.l.b16 %v4613
        %v4971 = vunpack.c.h.b16 %v4613
        %v4972 = vunpack.c.l.b16 %v4614
        %v4973 = vunpack.c.h.b16 %v4614
        %v4974 = vunpack.c.l.b16 %v4615
        %v4975 = vunpack.c.h.b16 %v4615
        %v4976 = vunpack.c.l.b16 %v4616
        %v4977 = vunpack.c.h.b16 %v4616
        %v4978 = vunpack.c.l.b16 %v4617
        %v4979 = vunpack.c.h.b16 %v4617
        %v4980 = vunpack.c.l.b16 %v4618
        %v4981 = vunpack.c.h.b16 %v4618
        %v4982 = vunpack.c.l.b16 %v4619
        %v4983 = vunpack.c.h.b16 %v4619
        %v4984 = vunpack.c.l.b16 %v4620
        %v4985 = vunpack.c.h.b16 %v4620
        %v4986 = vunpack.c.l.b16 %v4621
        %v4987 = vunpack.c.h.b16 %v4621
        %v4988 = vunpack.c.l.b16 %v4622
        %v4989 = vunpack.c.h.b16 %v4622
        %v4990 = vunpack.c.l.b16 %v4623
        %v4991 = vunpack.c.h.b16 %v4623
        %v4992 = vunpack.c.l.b16 %v4624
        %v4993 = vunpack.c.h.b16 %v4624
        %v4994 = vunpack.c.l.b16 %v4625
        %v4995 = vunpack.c.h.b16 %v4625
        %v4996 = vunpack.c.l.b16 %v4626
        %v4997 = vunpack.c.h.b16 %v4626
        %v4998 = vunpack.c.l.b16 %v4627
        %v4999 = vunpack.c.h.b16 %v4627
        %v5000 = vunpack.c.l.b16 %v4628
        %v5001 = vunpack.c.h.b16 %v4628
        %v5002 = vunpack.c.l.b16 %v4629
        %v5003 = vunpack.c.h.b16 %v4629
        %v5004 = vunpack.c.l.b16 %v4630
        %v5005 = vunpack.c.h.b16 %v4630
        %v5006 = vunpack.c.l.b16 %v4631
        %v5007 = vunpack.c.h.b16 %v4631
        %v5008 = vunpack.c.l.b16 %v4632
        %v5009 = vunpack.c.h.b16 %v4632
        %v5010 = vunpack.c.l.b16 %v4633
        %v5011 = vunpack.c.h.b16 %v4633
        %v5012 = vunpack.c.l.b16 %v4634
        %v5013 = vunpack.c.h.b16 %v4634
        %v5014 = vunpack.c.l.b16 %v4635
        %v5015 = vunpack.c.h.b16 %v4635
        %v5016 = vunpack.c.l.b16 %v4636
        %v5017 = vunpack.c.h.b16 %v4636
        %v5018 = vunpack.c.l.b16 %v4637
        %v5019 = vunpack.c.h.b16 %v4637
        %v5020 = vunpack.c.l.b16 %v4638
        %v5021 = vunpack.c.h.b16 %v4638
        %v5022 = vunpack.c.l.b16 %v4639
        %v5023 = vunpack.c.h.b16 %v4639
        %v5024 = vunpack.c.l.b16 %v4640
        %v5025 = vunpack.c.h.b16 %v4640
        %v5026 = vunpack.c.l.b16 %v4641
        %v5027 = vunpack.c.h.b16 %v4641
        %v5028 = vunpack.c.l.b16 %v4642
        %v5029 = vunpack.c.h.b16 %v4642
        %v5030 = vunpack.c.l.b16 %v4643
        %v5031 = vunpack.c.h.b16 %v4643
        %v5032 = vunpack.c.l.b16 %v4644
        %v5033 = vunpack.c.h.b16 %v4644
        %v5034 = vunpack.c.l.b16 %v4645
        %v5035 = vunpack.c.h.b16 %v4645
        %v5036 = vunpack.c.l.b16 %v4646
        %v5037 = vunpack.c.h.b16 %v4646
        %v5038 = vunpack.c.l.b16 %v4647
        %v5039 = vunpack.c.h.b16 %v4647
        %v5040 = vunpack.c.l.b16 %v4648
        %v5041 = vunpack.c.h.b16 %v4648
        %v5042 = vunpack.c.l.b16 %v4649
        %v5043 = vunpack.c.h.b16 %v4649
        %v5044 = vunpack.c.l.b16 %v4650
        %v5045 = vunpack.c.h.b16 %v4650
        %v5046 = vunpack.c.l.b16 %v4651
        %v5047 = vunpack.c.h.b16 %v4651
        %v5048 = vunpack.c.l.b16 %v4652
        %v5049 = vunpack.c.h.b16 %v4652
        %v5050 = vunpack.c.l.b16 %v4653
        %v5051 = vunpack.c.h.b16 %v4653
        %v5052 = vunpack.c.l.b16 %v4654
        %v5053 = vunpack.c.h.b16 %v4654
        %v5054 = vunpack.c.l.b16 %v4655
        %v5055 = vunpack.c.h.b16 %v4655
        %v5056 = vunpack.c.l.b16 %v4656
        %v5057 = vunpack.c.h.b16 %v4656
        %v5058 = vunpack.c.l.b16 %v4657
        %v5059 = vunpack.c.h.b16 %v4657
        %v5060 = vunpack.c.l.b16 %v4658
        %v5061 = vunpack.c.h.b16 %v4658
        %v5062 = vunpack.c.l.b16 %v4659
        %v5063 = vunpack.c.h.b16 %v4659
        %v5064 = vunpack.c.l.b16 %v4660
        %v5065 = vunpack.c.h.b16 %v4660
        %v5066 = vunpack.c.l.b16 %v4661
        %v5067 = vunpack.c.h.b16 %v4661
        %v5068 = vunpack.c.l.b16 %v4662
        %v5069 = vunpack.c.h.b16 %v4662
        %v5070 = vunpack.c.l.b16 %v4663
        %v5071 = vunpack.c.h.b16 %v4663
        %v5072 = vunpack.c.l.b16 %v4664
        %v5073 = vunpack.c.h.b16 %v4664
        %v5074 = vunpack.c.l.b16 %v4665
        %v5075 = vunpack.c.h.b16 %v4665
        %v5076 = vunpack.c.l.b16 %v4666
        %v5077 = vunpack.c.h.b16 %v4666
        %v5078 = vunpack.c.l.b16 %v4667
        %v5079 = vunpack.c.h.b16 %v4667
        %v5080 = vunpack.c.l.b16 %v4668
        %v5081 = vunpack.c.h.b16 %v4668
        %v5082 = vunpack.c.l.b16 %v4669
        %v5083 = vunpack.c.h.b16 %v4669
        %v5084 = vunpack.c.l.b16 %v4670
        %v5085 = vunpack.c.h.b16 %v4670
        %v5086 = vunpack.c.l.b16 %v4671
        %v5087 = vunpack.c.h.b16 %v4671
        %v5088 = vunpack.c.l.b16 %v4672
        %v5089 = vunpack.c.h.b16 %v4672
        %v5090 = vunpack.c.l.b16 %v4673
        %v5091 = vunpack.c.h.b16 %v4673
        %v5092 = vunpack.c.l.b16 %v4674
        %v5093 = vunpack.c.h.b16 %v4674
        %v5094 = vunpack.c.l.b16 %v4675
        %v5095 = vunpack.c.h.b16 %v4675
        %v5096 = vunpack.c.l.b16 %v4676
        %v5097 = vunpack.c.h.b16 %v4676
        %v5098 = vunpack.c.l.b16 %v4677
        %v5099 = vunpack.c.h.b16 %v4677
        %v5100 = vunpack.c.l.b16 %v4678
        %v5101 = vunpack.c.h.b16 %v4678
        %v5102 = vunpack.c.l.b16 %v4679
        %v5103 = vunpack.c.h.b16 %v4679
        %v5104 = vunpack.c.l.b16 %v4680
        %v5105 = vunpack.c.h.b16 %v4680
        %v5106 = vunpack.c.l.b16 %v4681
        %v5107 = vunpack.c.h.b16 %v4681
        %v5108 = vunpack.c.l.b16 %v4682
        %v5109 = vunpack.c.h.b16 %v4682
        %v5110 = vunpack.c.l.b16 %v4683
        %v5111 = vunpack.c.h.b16 %v4683
        %v5112 = vunpack.c.l.b16 %v4684
        %v5113 = vunpack.c.h.b16 %v4684
        %v5114 = vunpack.c.l.b16 %v4685
        %v5115 = vunpack.c.h.b16 %v4685
        %v5116 = vunpack.c.l.b16 %v4686
        %v5117 = vunpack.c.h.b16 %v4686
        %v5118 = vunpack.c.l.b16 %v4687
        %v5119 = vunpack.c.h.b16 %v4687
        %v5120 = vpack.c.b16 %v4838, %v4832
        %v5121 = vpack.c.b16 %v4839, %v4833
        %v5122 = vpack.c.b16 %v4840, %v4834
        %v5123 = vpack.c.b16 %v4841, %v4835
        %v5124 = vpack.c.b16 %v4842, %v4836
        %v5125 = vpack.c.b16 %v4843, %v4837
        %v5126 = vpack.c.b16 %v4850, %v4844
        %v5127 = vpack.c.b16 %v4851, %v4845
        %v5128 = vpack.c.b16 %v4852, %v4846
        %v5129 = vpack.c.b16 %v4853, %v4847
        %v5130 = vpack.c.b16 %v4854, %v4848
        %v5131 = vpack.c.b16 %v4855, %v4849
        %v5132 = vpack.c.b16 %v4862, %v4856
        %v5133 = vpack.c.b16 %v4863, %v4857
        %v5134 = vpack.c.b16 %v4864, %v4858
        %v5135 = vpack.c.b16 %v4865, %v4859
        %v5136 = vpack.c.b16 %v4866, %v4860
        %v5137 = vpack.c.b16 %v4867, %v4861
        %v5138 = vpack.c.b16 %v4874, %v4868
        %v5139 = vpack.c.b16 %v4875, %v4869
        %v5140 = vpack.c.b16 %v4876, %v4870
        %v5141 = vpack.c.b16 %v4877, %v4871
        %v5142 = vpack.c.b16 %v4878, %v4872
        %v5143 = vpack.c.b16 %v4879, %v4873
        %v5144 = vpack.c.b16 %v4886, %v4880
        %v5145 = vpack.c.b16 %v4887, %v4881
        %v5146 = vpack.c.b16 %v4888, %v4882
        %v5147 = vpack.c.b16 %v4889, %v4883
        %v5148 = vpack.c.b16 %v4890, %v4884
        %v5149 = vpack.c.b16 %v4891, %v4885
        %v5150 = vpack.c.b16 %v4898, %v4892
        %v5151 = vpack.c.b16 %v4899, %v4893
        %v5152 = vpack.c.b16 %v4900, %v4894
        %v5153 = vpack.c.b16 %v4901, %v4895
        %v5154 = vpack.c.b16 %v4902, %v4896
        %v5155 = vpack.c.b16 %v4903, %v4897
        %v5156 = vpack.c.b16 %v4910, %v4904
        %v5157 = vpack.c.b16 %v4911, %v4905
        %v5158 = vpack.c.b16 %v4912, %v4906
        %v5159 = vpack.c.b16 %v4913, %v4907
        %v5160 = vpack.c.b16 %v4914, %v4908
        %v5161 = vpack.c.b16 %v4915, %v4909
        %v5162 = vpack.c.b16 %v4922, %v4916
        %v5163 = vpack.c.b16 %v4923, %v4917
        %v5164 = vpack.c.b16 %v4924, %v4918
        %v5165 = vpack.c.b16 %v4925, %v4919
        %v5166 = vpack.c.b16 %v4926, %v4920
        %v5167 = vpack.c.b16 %v4927, %v4921
        %v5168 = vpack.c.b16 %v4934, %v4928
        %v5169 = vpack.c.b16 %v4935, %v4929
        %v5170 = vpack.c.b16 %v4936, %v4930
        %v5171 = vpack.c.b16 %v4937, %v4931
        %v5172 = vpack.c.b16 %v4938, %v4932
        %v5173 = vpack.c.b16 %v4939, %v4933
        %v5174 = vpack.c.b16 %v4946, %v4940
        %v5175 = vpack.c.b16 %v4947, %v4941
        %v5176 = vpack.c.b16 %v4948, %v4942
        %v5177 = vpack.c.b16 %v4949, %v4943
        %v5178 = vpack.c.b16 %v4950, %v4944
        %v5179 = vpack.c.b16 %v4951, %v4945
        %v5180 = vpack.c.b16 %v4958, %v4952
        %v5181 = vpack.c.b16 %v4959, %v4953
        %v5182 = vpack.c.b16 %v4960, %v4954
        %v5183 = vpack.c.b16 %v4961, %v4955
        %v5184 = vpack.c.b16 %v4962, %v4956
        %v5185 = vpack.c.b16 %v4963, %v4957
        %v5186 = vpack.c.b16 %v4970, %v4964
        %v5187 = vpack.c.b16 %v4971, %v4965
        %v5188 = vpack.c.b16 %v4972, %v4966
        %v5189 = vpack.c.b16 %v4973, %v4967
        %v5190 = vpack.c.b16 %v4974, %v4968
        %v5191 = vpack.c.b16 %v4975, %v4969
        %v5192 = vpack.c.b16 %v4982, %v4976
        %v5193 = vpack.c.b16 %v4983, %v4977
        %v5194 = vpack.c.b16 %v4984, %v4978
        %v5195 = vpack.c.b16 %v4985, %v4979
        %v5196 = vpack.c.b16 %v4986, %v4980
        %v5197 = vpack.c.b16 %v4987, %v4981
        %v5198 = vpack.c.b16 %v4994, %v4988
        %v5199 = vpack.c.b16 %v4995, %v4989
        %v5200 = vpack.c.b16 %v4996, %v4990
        %v5201 = vpack.c.b16 %v4997, %v4991
        %v5202 = vpack.c.b16 %v4998, %v4992
        %v5203 = vpack.c.b16 %v4999, %v4993
        %v5204 = vpack.c.b16 %v5006, %v5000
        %v5205 = vpack.c.b16 %v5007, %v5001
        %v5206 = vpack.c.b16 %v5008, %v5002
        %v5207 = vpack.c.b16 %v5009, %v5003
        %v5208 = vpack.c.b16 %v5010, %v5004
        %v5209 = vpack.c.b16 %v5011, %v5005
        %v5210 = vpack.c.b16 %v5018, %v5012
        %v5211 = vpack.c.b16 %v5019, %v5013
        %v5212 = vpack.c.b16 %v5020, %v5014
        %v5213 = vpack.c.b16 %v5021, %v5015
        %v5214 = vpack.c.b16 %v5022, %v5016
        %v5215 = vpack.c.b16 %v5023, %v5017
        %v5216 = vpack.c.b16 %v5030, %v5024
        %v5217 = vpack.c.b16 %v5031, %v5025
        %v5218 = vpack.c.b16 %v5032, %v5026
        %v5219 = vpack.c.b16 %v5033, %v5027
        %v5220 = vpack.c.b16 %v5034, %v5028
        %v5221 = vpack.c.b16 %v5035, %v5029
        %v5222 = vpack.c.b16 %v5042, %v5036
        %v5223 = vpack.c.b16 %v5043, %v5037
        %v5224 = vpack.c.b16 %v5044, %v5038
        %v5225 = vpack.c.b16 %v5045, %v5039
        %v5226 = vpack.c.b16 %v5046, %v5040
        %v5227 = vpack.c.b16 %v5047, %v5041
        %v5228 = vpack.c.b16 %v5054, %v5048
        %v5229 = vpack.c.b16 %v5055, %v5049
        %v5230 = vpack.c.b16 %v5056, %v5050
        %v5231 = vpack.c.b16 %v5057, %v5051
        %v5232 = vpack.c.b16 %v5058, %v5052
        %v5233 = vpack.c.b16 %v5059, %v5053
        %v5234 = vpack.c.b16 %v5066, %v5060
        %v5235 = vpack.c.b16 %v5067, %v5061
        %v5236 = vpack.c.b16 %v5068, %v5062
        %v5237 = vpack.c.b16 %v5069, %v5063
        %v5238 = vpack.c.b16 %v5070, %v5064
        %v5239 = vpack.c.b16 %v5071, %v5065
        %v5240 = vpack.c.b16 %v5078, %v5072
        %v5241 = vpack.c.b16 %v5079, %v5073
        %v5242 = vpack.c.b16 %v5080, %v5074
        %v5243 = vpack.c.b16 %v5081, %v5075
        %v5244 = vpack.c.b16 %v5082, %v5076
        %v5245 = vpack.c.b16 %v5083, %v5077
        %v5246 = vpack.c.b16 %v5090, %v5084
        %v5247 = vpack.c.b16 %v5091, %v5085
        %v5248 = vpack.c.b16 %v5092, %v5086
        %v5249 = vpack.c.b16 %v5093, %v5087
        %v5250 = vpack.c.b16 %v5094, %v5088
        %v5251 = vpack.c.b16 %v5095, %v5089
        %v5252 = vpack.c.b16 %v5102, %v5096
        %v5253 = vpack.c.b16 %v5103, %v5097
        %v5254 = vpack.c.b16 %v5104, %v5098
        %v5255 = vpack.c.b16 %v5105, %v5099
        %v5256 = vpack.c.b16 %v5106, %v5100
        %v5257 = vpack.c.b16 %v5107, %v5101
        %v5258 = vpack.c.b16 %v5114, %v5108
        %v5259 = vpack.c.b16 %v5115, %v5109
        %v5260 = vpack.c.b16 %v5116, %v5110
        %v5261 = vpack.c.b16 %v5117, %v5111
        %v5262 = vpack.c.b16 %v5118, %v5112
        %v5263 = vpack.c.b16 %v5119, %v5113
        %5408 = vmatpush.bf16.msra.mxu0 %v5162
        %5409 = vmatpush.bf16.msra.mxu0 %v5156
        %5410 = vmatpush.bf16.msra.mxu0 %v5150
        %5411 = vmatpush.bf16.msra.mxu0 %v5144
        %5412 = vmatpush.bf16.msra.mxu0 %v5138
        %5413 = vmatpush.bf16.msra.mxu0 %v5132
        %5414 = vmatpush.bf16.msra.mxu0 %v5126
        %5415 = vmatpush.bf16.msra.mxu0 %v5120
        %5416 = vmatmul.bf16.gmra.mxu0 %v4493
        %v5417 = vpop.f32.mrf.mxu0
        %v5418 = vadd.f32 0.0, %v5417
        %v5419 = vpop.f32.mrf.mxu0
        %v5420 = vadd.f32 0.0, %v5419
        %5421 = vmatmul.bf16.gmra.mxu0 %v4496
        %v5422 = vpop.f32.mrf.mxu0
        %v5423 = vadd.f32 0.0, %v5422
        %v5424 = vpop.f32.mrf.mxu0
        %v5425 = vadd.f32 0.0, %v5424
        %5426 = vmatmul.bf16.gmra.mxu0 %v4499
        %v5427 = vpop.f32.mrf.mxu0
        %v5428 = vadd.f32 0.0, %v5427
        %v5429 = vpop.f32.mrf.mxu0
        %v5430 = vadd.f32 0.0, %v5429
        %5431 = vmatmul.bf16.gmra.mxu0 %v4502
        %v5432 = vpop.f32.mrf.mxu0
        %v5433 = vadd.f32 0.0, %v5432
        %v5434 = vpop.f32.mrf.mxu0
        %v5435 = vadd.f32 0.0, %v5434
        %5436 = vmatmul.bf16.gmra.mxu0 %v4505
        %v5437 = vpop.f32.mrf.mxu0
        %v5438 = vadd.f32 0.0, %v5437
        %v5439 = vpop.f32.mrf.mxu0
        %v5440 = vadd.f32 0.0, %v5439
        %5441 = vmatmul.bf16.gmra.mxu0 %v4508
        %v5442 = vpop.f32.mrf.mxu0
        %v5443 = vadd.f32 0.0, %v5442
        %v5444 = vpop.f32.mrf.mxu0
        %v5445 = vadd.f32 0.0, %v5444
        %5446 = vmatmul.bf16.gmra.mxu0 %v4511
        %v5447 = vpop.f32.mrf.mxu0
        %v5448 = vadd.f32 0.0, %v5447
        %v5449 = vpop.f32.mrf.mxu0
        %v5450 = vadd.f32 0.0, %v5449
        %5451 = vmatmul.bf16.gmra.mxu0 %v4514
        %v5452 = vpop.f32.mrf.mxu0
        %v5453 = vadd.f32 0.0, %v5452
        %v5454 = vpop.f32.mrf.mxu0
        %v5455 = vadd.f32 0.0, %v5454
        %5456 = vmatmul.bf16.gmra.mxu0 %v4517
        %v5457 = vpop.f32.mrf.mxu0
        %v5458 = vadd.f32 0.0, %v5457
        %v5459 = vpop.f32.mrf.mxu0
        %v5460 = vadd.f32 0.0, %v5459
        %5461 = vmatmul.bf16.gmra.mxu0 %v4520
        %v5462 = vpop.f32.mrf.mxu0
        %v5463 = vadd.f32 0.0, %v5462
        %v5464 = vpop.f32.mrf.mxu0
        %v5465 = vadd.f32 0.0, %v5464
        %5466 = vmatmul.bf16.gmra.mxu0 %v4523
        %v5467 = vpop.f32.mrf.mxu0
        %v5468 = vadd.f32 0.0, %v5467
        %v5469 = vpop.f32.mrf.mxu0
        %v5470 = vadd.f32 0.0, %v5469
        %5471 = vmatmul.bf16.gmra.mxu0 %v4526
        %v5472 = vpop.f32.mrf.mxu0
        %v5473 = vadd.f32 0.0, %v5472
        %v5474 = vpop.f32.mrf.mxu0
        %v5475 = vadd.f32 0.0, %v5474
        %5476 = vmatmul.bf16.gmra.mxu0 %v4529
        %v5477 = vpop.f32.mrf.mxu0
        %v5478 = vadd.f32 0.0, %v5477
        %v5479 = vpop.f32.mrf.mxu0
        %v5480 = vadd.f32 0.0, %v5479
        %5481 = vmatmul.bf16.gmra.mxu0 %v4532
        %v5482 = vpop.f32.mrf.mxu0
        %v5483 = vadd.f32 0.0, %v5482
        %v5484 = vpop.f32.mrf.mxu0
        %v5485 = vadd.f32 0.0, %v5484
        %5486 = vmatmul.bf16.gmra.mxu0 %v4535
        %v5487 = vpop.f32.mrf.mxu0
        %v5488 = vadd.f32 0.0, %v5487
        %v5489 = vpop.f32.mrf.mxu0
        %v5490 = vadd.f32 0.0, %v5489
        %5491 = vmatmul.bf16.gmra.mxu0 %v4538
        %v5492 = vpop.f32.mrf.mxu0
        %v5493 = vadd.f32 0.0, %v5492
        %v5494 = vpop.f32.mrf.mxu0
        %v5495 = vadd.f32 0.0, %v5494
        %5496 = vmatmul.bf16.gmra.mxu0 %v4541
        %v5497 = vpop.f32.mrf.mxu0
        %v5498 = vadd.f32 0.0, %v5497
        %v5499 = vpop.f32.mrf.mxu0
        %v5500 = vadd.f32 0.0, %v5499
        %5501 = vdwg.mxu0
        %5502 = vmatpush.bf16.msra.mxu0 %v5210
        %5503 = vmatpush.bf16.msra.mxu0 %v5204
        %5504 = vmatpush.bf16.msra.mxu0 %v5198
        %5505 = vmatpush.bf16.msra.mxu0 %v5192
        %5506 = vmatpush.bf16.msra.mxu0 %v5186
        %5507 = vmatpush.bf16.msra.mxu0 %v5180
        %5508 = vmatpush.bf16.msra.mxu0 %v5174
        %5509 = vmatpush.bf16.msra.mxu0 %v5168
        %5510 = vmatmul.bf16.gmra.mxu0 %v4494
        %v5511 = vpop.f32.mrf.mxu0
        %v5512 = vadd.f32 %v5418, %v5511
        %v5513 = vpop.f32.mrf.mxu0
        %v5514 = vadd.f32 %v5420, %v5513
        %5515 = vmatmul.bf16.gmra.mxu0 %v4497
        %v5516 = vpop.f32.mrf.mxu0
        %v5517 = vadd.f32 %v5423, %v5516
        %v5518 = vpop.f32.mrf.mxu0
        %v5519 = vadd.f32 %v5425, %v5518
        %5520 = vmatmul.bf16.gmra.mxu0 %v4500
        %v5521 = vpop.f32.mrf.mxu0
        %v5522 = vadd.f32 %v5428, %v5521
        %v5523 = vpop.f32.mrf.mxu0
        %v5524 = vadd.f32 %v5430, %v5523
        %5525 = vmatmul.bf16.gmra.mxu0 %v4503
        %v5526 = vpop.f32.mrf.mxu0
        %v5527 = vadd.f32 %v5433, %v5526
        %v5528 = vpop.f32.mrf.mxu0
        %v5529 = vadd.f32 %v5435, %v5528
        %5530 = vmatmul.bf16.gmra.mxu0 %v4506
        %v5531 = vpop.f32.mrf.mxu0
        %v5532 = vadd.f32 %v5438, %v5531
        %v5533 = vpop.f32.mrf.mxu0
        %v5534 = vadd.f32 %v5440, %v5533
        %5535 = vmatmul.bf16.gmra.mxu0 %v4509
        %v5536 = vpop.f32.mrf.mxu0
        %v5537 = vadd.f32 %v5443, %v5536
        %v5538 = vpop.f32.mrf.mxu0
        %v5539 = vadd.f32 %v5445, %v5538
        %5540 = vmatmul.bf16.gmra.mxu0 %v4512
        %v5541 = vpop.f32.mrf.mxu0
        %v5542 = vadd.f32 %v5448, %v5541
        %v5543 = vpop.f32.mrf.mxu0
        %v5544 = vadd.f32 %v5450, %v5543
        %5545 = vmatmul.bf16.gmra.mxu0 %v4515
        %v5546 = vpop.f32.mrf.mxu0
        %v5547 = vadd.f32 %v5453, %v5546
        %v5548 = vpop.f32.mrf.mxu0
        %v5549 = vadd.f32 %v5455, %v5548
        %5550 = vmatmul.bf16.gmra.mxu0 %v4518
        %v5551 = vpop.f32.mrf.mxu0
        %v5552 = vadd.f32 %v5458, %v5551
        %v5553 = vpop.f32.mrf.mxu0
        %v5554 = vadd.f32 %v5460, %v5553
        %5555 = vmatmul.bf16.gmra.mxu0 %v4521
        %v5556 = vpop.f32.mrf.mxu0
        %v5557 = vadd.f32 %v5463, %v5556
        %v5558 = vpop.f32.mrf.mxu0
        %v5559 = vadd.f32 %v5465, %v5558
        %5560 = vmatmul.bf16.gmra.mxu0 %v4524
        %v5561 = vpop.f32.mrf.mxu0
        %v5562 = vadd.f32 %v5468, %v5561
        %v5563 = vpop.f32.mrf.mxu0
        %v5564 = vadd.f32 %v5470, %v5563
        %5565 = vmatmul.bf16.gmra.mxu0 %v4527
        %v5566 = vpop.f32.mrf.mxu0
        %v5567 = vadd.f32 %v5473, %v5566
        %v5568 = vpop.f32.mrf.mxu0
        %v5569 = vadd.f32 %v5475, %v5568
        %5570 = vmatmul.bf16.gmra.mxu0 %v4530
        %v5571 = vpop.f32.mrf.mxu0
        %v5572 = vadd.f32 %v5478, %v5571
        %v5573 = vpop.f32.mrf.mxu0
        %v5574 = vadd.f32 %v5480, %v5573
        %5575 = vmatmul.bf16.gmra.mxu0 %v4533
        %v5576 = vpop.f32.mrf.mxu0
        %v5577 = vadd.f32 %v5483, %v5576
        %v5578 = vpop.f32.mrf.mxu0
        %v5579 = vadd.f32 %v5485, %v5578
        %5580 = vmatmul.bf16.gmra.mxu0 %v4536
        %v5581 = vpop.f32.mrf.mxu0
        %v5582 = vadd.f32 %v5488, %v5581
        %v5583 = vpop.f32.mrf.mxu0
        %v5584 = vadd.f32 %v5490, %v5583
        %5585 = vmatmul.bf16.gmra.mxu0 %v4539
        %v5586 = vpop.f32.mrf.mxu0
        %v5587 = vadd.f32 %v5493, %v5586
        %v5588 = vpop.f32.mrf.mxu0
        %v5589 = vadd.f32 %v5495, %v5588
        %5590 = vmatmul.bf16.gmra.mxu0 %v4542
        %v5591 = vpop.f32.mrf.mxu0
        %v5592 = vadd.f32 %v5498, %v5591
        %v5593 = vpop.f32.mrf.mxu0
        %v5594 = vadd.f32 %v5500, %v5593
        %5595 = vdwg.mxu0
        %5596 = vmatpush.bf16.msra.mxu0 %v5258
        %5597 = vmatpush.bf16.msra.mxu0 %v5252
        %5598 = vmatpush.bf16.msra.mxu0 %v5246
        %5599 = vmatpush.bf16.msra.mxu0 %v5240
        %5600 = vmatpush.bf16.msra.mxu0 %v5234
        %5601 = vmatpush.bf16.msra.mxu0 %v5228
        %5602 = vmatpush.bf16.msra.mxu0 %v5222
        %5603 = vmatpush.bf16.msra.mxu0 %v5216
        %5604 = vmatmul.bf16.gmra.mxu0 %v4495
        %v5605 = vpop.f32.mrf.mxu0
        %v5606 = vadd.f32 %v5512, %v5605
        %v5607 = vpop.f32.mrf.mxu0
        %v5608 = vadd.f32 %v5514, %v5607
        %5609 = vmatmul.bf16.gmra.mxu0 %v4498
        %v5610 = vpop.f32.mrf.mxu0
        %v5611 = vadd.f32 %v5517, %v5610
        %v5612 = vpop.f32.mrf.mxu0
        %v5613 = vadd.f32 %v5519, %v5612
        %5614 = vmatmul.bf16.gmra.mxu0 %v4501
        %v5615 = vpop.f32.mrf.mxu0
        %v5616 = vadd.f32 %v5522, %v5615
        %v5617 = vpop.f32.mrf.mxu0
        %v5618 = vadd.f32 %v5524, %v5617
        %5619 = vmatmul.bf16.gmra.mxu0 %v4504
        %v5620 = vpop.f32.mrf.mxu0
        %v5621 = vadd.f32 %v5527, %v5620
        %v5622 = vpop.f32.mrf.mxu0
        %v5623 = vadd.f32 %v5529, %v5622
        %5624 = vmatmul.bf16.gmra.mxu0 %v4507
        %v5625 = vpop.f32.mrf.mxu0
        %v5626 = vadd.f32 %v5532, %v5625
        %v5627 = vpop.f32.mrf.mxu0
        %v5628 = vadd.f32 %v5534, %v5627
        %5629 = vmatmul.bf16.gmra.mxu0 %v4510
        %v5630 = vpop.f32.mrf.mxu0
        %v5631 = vadd.f32 %v5537, %v5630
        %v5632 = vpop.f32.mrf.mxu0
        %v5633 = vadd.f32 %v5539, %v5632
        %5634 = vmatmul.bf16.gmra.mxu0 %v4513
        %v5635 = vpop.f32.mrf.mxu0
        %v5636 = vadd.f32 %v5542, %v5635
        %v5637 = vpop.f32.mrf.mxu0
        %v5638 = vadd.f32 %v5544, %v5637
        %5639 = vmatmul.bf16.gmra.mxu0 %v4516
        %v5640 = vpop.f32.mrf.mxu0
        %v5641 = vadd.f32 %v5547, %v5640
        %v5642 = vpop.f32.mrf.mxu0
        %v5643 = vadd.f32 %v5549, %v5642
        %5644 = vmatmul.bf16.gmra.mxu0 %v4519
        %v5645 = vpop.f32.mrf.mxu0
        %v5646 = vadd.f32 %v5552, %v5645
        %v5647 = vpop.f32.mrf.mxu0
        %v5648 = vadd.f32 %v5554, %v5647
        %5649 = vmatmul.bf16.gmra.mxu0 %v4522
        %v5650 = vpop.f32.mrf.mxu0
        %v5651 = vadd.f32 %v5557, %v5650
        %v5652 = vpop.f32.mrf.mxu0
        %v5653 = vadd.f32 %v5559, %v5652
        %5654 = vmatmul.bf16.gmra.mxu0 %v4525
        %v5655 = vpop.f32.mrf.mxu0
        %v5656 = vadd.f32 %v5562, %v5655
        %v5657 = vpop.f32.mrf.mxu0
        %v5658 = vadd.f32 %v5564, %v5657
        %5659 = vmatmul.bf16.gmra.mxu0 %v4528
        %v5660 = vpop.f32.mrf.mxu0
        %v5661 = vadd.f32 %v5567, %v5660
        %v5662 = vpop.f32.mrf.mxu0
        %v5663 = vadd.f32 %v5569, %v5662
        %5664 = vmatmul.bf16.gmra.mxu0 %v4531
        %v5665 = vpop.f32.mrf.mxu0
        %v5666 = vadd.f32 %v5572, %v5665
        %v5667 = vpop.f32.mrf.mxu0
        %v5668 = vadd.f32 %v5574, %v5667
        %5669 = vmatmul.bf16.gmra.mxu0 %v4534
        %v5670 = vpop.f32.mrf.mxu0
        %v5671 = vadd.f32 %v5577, %v5670
        %v5672 = vpop.f32.mrf.mxu0
        %v5673 = vadd.f32 %v5579, %v5672
        %5674 = vmatmul.bf16.gmra.mxu0 %v4537
        %v5675 = vpop.f32.mrf.mxu0
        %v5676 = vadd.f32 %v5582, %v5675
        %v5677 = vpop.f32.mrf.mxu0
        %v5678 = vadd.f32 %v5584, %v5677
        %5679 = vmatmul.bf16.gmra.mxu0 %v4540
        %v5680 = vpop.f32.mrf.mxu0
        %v5681 = vadd.f32 %v5587, %v5680
        %v5682 = vpop.f32.mrf.mxu0
        %v5683 = vadd.f32 %v5589, %v5682
        %5684 = vmatmul.bf16.gmra.mxu0 %v4543
        %v5685 = vpop.f32.mrf.mxu0
        %v5686 = vadd.f32 %v5592, %v5685
        %v5687 = vpop.f32.mrf.mxu0
        %v5688 = vadd.f32 %v5594, %v5687
        %5689 = vdwg.mxu0
        %5690 = vmatpush.bf16.msra.mxu0 %v5163
        %5691 = vmatpush.bf16.msra.mxu0 %v5157
        %5692 = vmatpush.bf16.msra.mxu0 %v5151
        %5693 = vmatpush.bf16.msra.mxu0 %v5145
        %5694 = vmatpush.bf16.msra.mxu0 %v5139
        %5695 = vmatpush.bf16.msra.mxu0 %v5133
        %5696 = vmatpush.bf16.msra.mxu0 %v5127
        %5697 = vmatpush.bf16.msra.mxu0 %v5121
        %5698 = vmatmul.bf16.gmra.mxu0 %v4493
        %v5699 = vpop.f32.mrf.mxu0
        %v5700 = vadd.f32 0.0, %v5699
        %v5701 = vpop.f32.mrf.mxu0
        %v5702 = vadd.f32 0.0, %v5701
        %5703 = vmatmul.bf16.gmra.mxu0 %v4496
        %v5704 = vpop.f32.mrf.mxu0
        %v5705 = vadd.f32 0.0, %v5704
        %v5706 = vpop.f32.mrf.mxu0
        %v5707 = vadd.f32 0.0, %v5706
        %5708 = vmatmul.bf16.gmra.mxu0 %v4499
        %v5709 = vpop.f32.mrf.mxu0
        %v5710 = vadd.f32 0.0, %v5709
        %v5711 = vpop.f32.mrf.mxu0
        %v5712 = vadd.f32 0.0, %v5711
        %5713 = vmatmul.bf16.gmra.mxu0 %v4502
        %v5714 = vpop.f32.mrf.mxu0
        %v5715 = vadd.f32 0.0, %v5714
        %v5716 = vpop.f32.mrf.mxu0
        %v5717 = vadd.f32 0.0, %v5716
        %5718 = vmatmul.bf16.gmra.mxu0 %v4505
        %v5719 = vpop.f32.mrf.mxu0
        %v5720 = vadd.f32 0.0, %v5719
        %v5721 = vpop.f32.mrf.mxu0
        %v5722 = vadd.f32 0.0, %v5721
        %5723 = vmatmul.bf16.gmra.mxu0 %v4508
        %v5724 = vpop.f32.mrf.mxu0
        %v5725 = vadd.f32 0.0, %v5724
        %v5726 = vpop.f32.mrf.mxu0
        %v5727 = vadd.f32 0.0, %v5726
        %5728 = vmatmul.bf16.gmra.mxu0 %v4511
        %v5729 = vpop.f32.mrf.mxu0
        %v5730 = vadd.f32 0.0, %v5729
        %v5731 = vpop.f32.mrf.mxu0
        %v5732 = vadd.f32 0.0, %v5731
        %5733 = vmatmul.bf16.gmra.mxu0 %v4514
        %v5734 = vpop.f32.mrf.mxu0
        %v5735 = vadd.f32 0.0, %v5734
        %v5736 = vpop.f32.mrf.mxu0
        %v5737 = vadd.f32 0.0, %v5736
        %5738 = vmatmul.bf16.gmra.mxu0 %v4517
        %v5739 = vpop.f32.mrf.mxu0
        %v5740 = vadd.f32 0.0, %v5739
        %v5741 = vpop.f32.mrf.mxu0
        %v5742 = vadd.f32 0.0, %v5741
        %5743 = vmatmul.bf16.gmra.mxu0 %v4520
        %v5744 = vpop.f32.mrf.mxu0
        %v5745 = vadd.f32 0.0, %v5744
        %v5746 = vpop.f32.mrf.mxu0
        %v5747 = vadd.f32 0.0, %v5746
        %5748 = vmatmul.bf16.gmra.mxu0 %v4523
        %v5749 = vpop.f32.mrf.mxu0
        %v5750 = vadd.f32 0.0, %v5749
        %v5751 = vpop.f32.mrf.mxu0
        %v5752 = vadd.f32 0.0, %v5751
        %5753 = vmatmul.bf16.gmra.mxu0 %v4526
        %v5754 = vpop.f32.mrf.mxu0
        %v5755 = vadd.f32 0.0, %v5754
        %v5756 = vpop.f32.mrf.mxu0
        %v5757 = vadd.f32 0.0, %v5756
        %5758 = vmatmul.bf16.gmra.mxu0 %v4529
        %v5759 = vpop.f32.mrf.mxu0
        %v5760 = vadd.f32 0.0, %v5759
        %v5761 = vpop.f32.mrf.mxu0
        %v5762 = vadd.f32 0.0, %v5761
        %5763 = vmatmul.bf16.gmra.mxu0 %v4532
        %v5764 = vpop.f32.mrf.mxu0
        %v5765 = vadd.f32 0.0, %v5764
        %v5766 = vpop.f32.mrf.mxu0
        %v5767 = vadd.f32 0.0, %v5766
        %5768 = vmatmul.bf16.gmra.mxu0 %v4535
        %v5769 = vpop.f32.mrf.mxu0
        %v5770 = vadd.f32 0.0, %v5769
        %v5771 = vpop.f32.mrf.mxu0
        %v5772 = vadd.f32 0.0, %v5771
        %5773 = vmatmul.bf16.gmra.mxu0 %v4538
        %v5774 = vpop.f32.mrf.mxu0
        %v5775 = vadd.f32 0.0, %v5774
        %v5776 = vpop.f32.mrf.mxu0
        %v5777 = vadd.f32 0.0, %v5776
        %5778 = vmatmul.bf16.gmra.mxu0 %v4541
        %v5779 = vpop.f32.mrf.mxu0
        %v5780 = vadd.f32 0.0, %v5779
        %v5781 = vpop.f32.mrf.mxu0
        %v5782 = vadd.f32 0.0, %v5781
        %5783 = vdwg.mxu0
        %5784 = vmatpush.bf16.msra.mxu0 %v5211
        %5785 = vmatpush.bf16.msra.mxu0 %v5205
        %5786 = vmatpush.bf16.msra.mxu0 %v5199
        %5787 = vmatpush.bf16.msra.mxu0 %v5193
        %5788 = vmatpush.bf16.msra.mxu0 %v5187
        %5789 = vmatpush.bf16.msra.mxu0 %v5181
        %5790 = vmatpush.bf16.msra.mxu0 %v5175
        %5791 = vmatpush.bf16.msra.mxu0 %v5169
        %5792 = vmatmul.bf16.gmra.mxu0 %v4494
        %v5793 = vpop.f32.mrf.mxu0
        %v5794 = vadd.f32 %v5700, %v5793
        %v5795 = vpop.f32.mrf.mxu0
        %v5796 = vadd.f32 %v5702, %v5795
        %5797 = vmatmul.bf16.gmra.mxu0 %v4497
        %v5798 = vpop.f32.mrf.mxu0
        %v5799 = vadd.f32 %v5705, %v5798
        %v5800 = vpop.f32.mrf.mxu0
        %v5801 = vadd.f32 %v5707, %v5800
        %5802 = vmatmul.bf16.gmra.mxu0 %v4500
        %v5803 = vpop.f32.mrf.mxu0
        %v5804 = vadd.f32 %v5710, %v5803
        %v5805 = vpop.f32.mrf.mxu0
        %v5806 = vadd.f32 %v5712, %v5805
        %5807 = vmatmul.bf16.gmra.mxu0 %v4503
        %v5808 = vpop.f32.mrf.mxu0
        %v5809 = vadd.f32 %v5715, %v5808
        %v5810 = vpop.f32.mrf.mxu0
        %v5811 = vadd.f32 %v5717, %v5810
        %5812 = vmatmul.bf16.gmra.mxu0 %v4506
        %v5813 = vpop.f32.mrf.mxu0
        %v5814 = vadd.f32 %v5720, %v5813
        %v5815 = vpop.f32.mrf.mxu0
        %v5816 = vadd.f32 %v5722, %v5815
        %5817 = vmatmul.bf16.gmra.mxu0 %v4509
        %v5818 = vpop.f32.mrf.mxu0
        %v5819 = vadd.f32 %v5725, %v5818
        %v5820 = vpop.f32.mrf.mxu0
        %v5821 = vadd.f32 %v5727, %v5820
        %5822 = vmatmul.bf16.gmra.mxu0 %v4512
        %v5823 = vpop.f32.mrf.mxu0
        %v5824 = vadd.f32 %v5730, %v5823
        %v5825 = vpop.f32.mrf.mxu0
        %v5826 = vadd.f32 %v5732, %v5825
        %5827 = vmatmul.bf16.gmra.mxu0 %v4515
        %v5828 = vpop.f32.mrf.mxu0
        %v5829 = vadd.f32 %v5735, %v5828
        %v5830 = vpop.f32.mrf.mxu0
        %v5831 = vadd.f32 %v5737, %v5830
        %5832 = vmatmul.bf16.gmra.mxu0 %v4518
        %v5833 = vpop.f32.mrf.mxu0
        %v5834 = vadd.f32 %v5740, %v5833
        %v5835 = vpop.f32.mrf.mxu0
        %v5836 = vadd.f32 %v5742, %v5835
        %5837 = vmatmul.bf16.gmra.mxu0 %v4521
        %v5838 = vpop.f32.mrf.mxu0
        %v5839 = vadd.f32 %v5745, %v5838
        %v5840 = vpop.f32.mrf.mxu0
        %v5841 = vadd.f32 %v5747, %v5840
        %5842 = vmatmul.bf16.gmra.mxu0 %v4524
        %v5843 = vpop.f32.mrf.mxu0
        %v5844 = vadd.f32 %v5750, %v5843
        %v5845 = vpop.f32.mrf.mxu0
        %v5846 = vadd.f32 %v5752, %v5845
        %5847 = vmatmul.bf16.gmra.mxu0 %v4527
        %v5848 = vpop.f32.mrf.mxu0
        %v5849 = vadd.f32 %v5755, %v5848
        %v5850 = vpop.f32.mrf.mxu0
        %v5851 = vadd.f32 %v5757, %v5850
        %5852 = vmatmul.bf16.gmra.mxu0 %v4530
        %v5853 = vpop.f32.mrf.mxu0
        %v5854 = vadd.f32 %v5760, %v5853
        %v5855 = vpop.f32.mrf.mxu0
        %v5856 = vadd.f32 %v5762, %v5855
        %5857 = vmatmul.bf16.gmra.mxu0 %v4533
        %v5858 = vpop.f32.mrf.mxu0
        %v5859 = vadd.f32 %v5765, %v5858
        %v5860 = vpop.f32.mrf.mxu0
        %v5861 = vadd.f32 %v5767, %v5860
        %5862 = vmatmul.bf16.gmra.mxu0 %v4536
        %v5863 = vpop.f32.mrf.mxu0
        %v5864 = vadd.f32 %v5770, %v5863
        %v5865 = vpop.f32.mrf.mxu0
        %v5866 = vadd.f32 %v5772, %v5865
        %5867 = vmatmul.bf16.gmra.mxu0 %v4539
        %v5868 = vpop.f32.mrf.mxu0
        %v5869 = vadd.f32 %v5775, %v5868
        %v5870 = vpop.f32.mrf.mxu0
        %v5871 = vadd.f32 %v5777, %v5870
        %5872 = vmatmul.bf16.gmra.mxu0 %v4542
        %v5873 = vpop.f32.mrf.mxu0
        %v5874 = vadd.f32 %v5780, %v5873
        %v5875 = vpop.f32.mrf.mxu0
        %v5876 = vadd.f32 %v5782, %v5875
        %5877 = vdwg.mxu0
        %5878 = vmatpush.bf16.msra.mxu0 %v5259
        %5879 = vmatpush.bf16.msra.mxu0 %v5253
        %5880 = vmatpush.bf16.msra.mxu0 %v5247
        %5881 = vmatpush.bf16.msra.mxu0 %v5241
        %5882 = vmatpush.bf16.msra.mxu0 %v5235
        %5883 = vmatpush.bf16.msra.mxu0 %v5229
        %5884 = vmatpush.bf16.msra.mxu0 %v5223
        %5885 = vmatpush.bf16.msra.mxu0 %v5217
        %5886 = vmatmul.bf16.gmra.mxu0 %v4495
        %v5887 = vpop.f32.mrf.mxu0
        %v5888 = vadd.f32 %v5794, %v5887
        %v5889 = vpop.f32.mrf.mxu0
        %v5890 = vadd.f32 %v5796, %v5889
        %5891 = vmatmul.bf16.gmra.mxu0 %v4498
        %v5892 = vpop.f32.mrf.mxu0
        %v5893 = vadd.f32 %v5799, %v5892
        %v5894 = vpop.f32.mrf.mxu0
        %v5895 = vadd.f32 %v5801, %v5894
        %5896 = vmatmul.bf16.gmra.mxu0 %v4501
        %v5897 = vpop.f32.mrf.mxu0
        %v5898 = vadd.f32 %v5804, %v5897
        %v5899 = vpop.f32.mrf.mxu0
        %v5900 = vadd.f32 %v5806, %v5899
        %5901 = vmatmul.bf16.gmra.mxu0 %v4504
        %v5902 = vpop.f32.mrf.mxu0
        %v5903 = vadd.f32 %v5809, %v5902
        %v5904 = vpop.f32.mrf.mxu0
        %v5905 = vadd.f32 %v5811, %v5904
        %5906 = vmatmul.bf16.gmra.mxu0 %v4507
        %v5907 = vpop.f32.mrf.mxu0
        %v5908 = vadd.f32 %v5814, %v5907
        %v5909 = vpop.f32.mrf.mxu0
        %v5910 = vadd.f32 %v5816, %v5909
        %5911 = vmatmul.bf16.gmra.mxu0 %v4510
        %v5912 = vpop.f32.mrf.mxu0
        %v5913 = vadd.f32 %v5819, %v5912
        %v5914 = vpop.f32.mrf.mxu0
        %v5915 = vadd.f32 %v5821, %v5914
        %5916 = vmatmul.bf16.gmra.mxu0 %v4513
        %v5917 = vpop.f32.mrf.mxu0
        %v5918 = vadd.f32 %v5824, %v5917
        %v5919 = vpop.f32.mrf.mxu0
        %v5920 = vadd.f32 %v5826, %v5919
        %5921 = vmatmul.bf16.gmra.mxu0 %v4516
        %v5922 = vpop.f32.mrf.mxu0
        %v5923 = vadd.f32 %v5829, %v5922
        %v5924 = vpop.f32.mrf.mxu0
        %v5925 = vadd.f32 %v5831, %v5924
        %5926 = vmatmul.bf16.gmra.mxu0 %v4519
        %v5927 = vpop.f32.mrf.mxu0
        %v5928 = vadd.f32 %v5834, %v5927
        %v5929 = vpop.f32.mrf.mxu0
        %v5930 = vadd.f32 %v5836, %v5929
        %5931 = vmatmul.bf16.gmra.mxu0 %v4522
        %v5932 = vpop.f32.mrf.mxu0
        %v5933 = vadd.f32 %v5839, %v5932
        %v5934 = vpop.f32.mrf.mxu0
        %v5935 = vadd.f32 %v5841, %v5934
        %5936 = vmatmul.bf16.gmra.mxu0 %v4525
        %v5937 = vpop.f32.mrf.mxu0
        %v5938 = vadd.f32 %v5844, %v5937
        %v5939 = vpop.f32.mrf.mxu0
        %v5940 = vadd.f32 %v5846, %v5939
        %5941 = vmatmul.bf16.gmra.mxu0 %v4528
        %v5942 = vpop.f32.mrf.mxu0
        %v5943 = vadd.f32 %v5849, %v5942
        %v5944 = vpop.f32.mrf.mxu0
        %v5945 = vadd.f32 %v5851, %v5944
        %5946 = vmatmul.bf16.gmra.mxu0 %v4531
        %v5947 = vpop.f32.mrf.mxu0
        %v5948 = vadd.f32 %v5854, %v5947
        %v5949 = vpop.f32.mrf.mxu0
        %v5950 = vadd.f32 %v5856, %v5949
        %5951 = vmatmul.bf16.gmra.mxu0 %v4534
        %v5952 = vpop.f32.mrf.mxu0
        %v5953 = vadd.f32 %v5859, %v5952
        %v5954 = vpop.f32.mrf.mxu0
        %v5955 = vadd.f32 %v5861, %v5954
        %5956 = vmatmul.bf16.gmra.mxu0 %v4537
        %v5957 = vpop.f32.mrf.mxu0
        %v5958 = vadd.f32 %v5864, %v5957
        %v5959 = vpop.f32.mrf.mxu0
        %v5960 = vadd.f32 %v5866, %v5959
        %5961 = vmatmul.bf16.gmra.mxu0 %v4540
        %v5962 = vpop.f32.mrf.mxu0
        %v5963 = vadd.f32 %v5869, %v5962
        %v5964 = vpop.f32.mrf.mxu0
        %v5965 = vadd.f32 %v5871, %v5964
        %5966 = vmatmul.bf16.gmra.mxu0 %v4543
        %v5967 = vpop.f32.mrf.mxu0
        %v5968 = vadd.f32 %v5874, %v5967
        %v5969 = vpop.f32.mrf.mxu0
        %v5970 = vadd.f32 %v5876, %v5969
        %5971 = vdwg.mxu0
        %5972 = vmatpush.bf16.msra.mxu0 %v5164
        %5973 = vmatpush.bf16.msra.mxu0 %v5158
        %5974 = vmatpush.bf16.msra.mxu0 %v5152
        %5975 = vmatpush.bf16.msra.mxu0 %v5146
        %5976 = vmatpush.bf16.msra.mxu0 %v5140
        %5977 = vmatpush.bf16.msra.mxu0 %v5134
        %5978 = vmatpush.bf16.msra.mxu0 %v5128
        %5979 = vmatpush.bf16.msra.mxu0 %v5122
        %5980 = vmatmul.bf16.gmra.mxu0 %v4493
        %v5981 = vpop.f32.mrf.mxu0
        %v5982 = vadd.f32 0.0, %v5981
        %v5983 = vpop.f32.mrf.mxu0
        %v5984 = vadd.f32 0.0, %v5983
        %5985 = vmatmul.bf16.gmra.mxu0 %v4496
        %v5986 = vpop.f32.mrf.mxu0
        %v5987 = vadd.f32 0.0, %v5986
        %v5988 = vpop.f32.mrf.mxu0
        %v5989 = vadd.f32 0.0, %v5988
        %5990 = vmatmul.bf16.gmra.mxu0 %v4499
        %v5991 = vpop.f32.mrf.mxu0
        %v5992 = vadd.f32 0.0, %v5991
        %v5993 = vpop.f32.mrf.mxu0
        %v5994 = vadd.f32 0.0, %v5993
        %5995 = vmatmul.bf16.gmra.mxu0 %v4502
        %v5996 = vpop.f32.mrf.mxu0
        %v5997 = vadd.f32 0.0, %v5996
        %v5998 = vpop.f32.mrf.mxu0
        %v5999 = vadd.f32 0.0, %v5998
        %6000 = vmatmul.bf16.gmra.mxu0 %v4505
        %v6001 = vpop.f32.mrf.mxu0
        %v6002 = vadd.f32 0.0, %v6001
        %v6003 = vpop.f32.mrf.mxu0
        %v6004 = vadd.f32 0.0, %v6003
        %6005 = vmatmul.bf16.gmra.mxu0 %v4508
        %v6006 = vpop.f32.mrf.mxu0
        %v6007 = vadd.f32 0.0, %v6006
        %v6008 = vpop.f32.mrf.mxu0
        %v6009 = vadd.f32 0.0, %v6008
        %6010 = vmatmul.bf16.gmra.mxu0 %v4511
        %v6011 = vpop.f32.mrf.mxu0
        %v6012 = vadd.f32 0.0, %v6011
        %v6013 = vpop.f32.mrf.mxu0
        %v6014 = vadd.f32 0.0, %v6013
        %6015 = vmatmul.bf16.gmra.mxu0 %v4514
        %v6016 = vpop.f32.mrf.mxu0
        %v6017 = vadd.f32 0.0, %v6016
        %v6018 = vpop.f32.mrf.mxu0
        %v6019 = vadd.f32 0.0, %v6018
        %6020 = vmatmul.bf16.gmra.mxu0 %v4517
        %v6021 = vpop.f32.mrf.mxu0
        %v6022 = vadd.f32 0.0, %v6021
        %v6023 = vpop.f32.mrf.mxu0
        %v6024 = vadd.f32 0.0, %v6023
        %6025 = vmatmul.bf16.gmra.mxu0 %v4520
        %v6026 = vpop.f32.mrf.mxu0
        %v6027 = vadd.f32 0.0, %v6026
        %v6028 = vpop.f32.mrf.mxu0
        %v6029 = vadd.f32 0.0, %v6028
        %6030 = vmatmul.bf16.gmra.mxu0 %v4523
        %v6031 = vpop.f32.mrf.mxu0
        %v6032 = vadd.f32 0.0, %v6031
        %v6033 = vpop.f32.mrf.mxu0
        %v6034 = vadd.f32 0.0, %v6033
        %6035 = vmatmul.bf16.gmra.mxu0 %v4526
        %v6036 = vpop.f32.mrf.mxu0
        %v6037 = vadd.f32 0.0, %v6036
        %v6038 = vpop.f32.mrf.mxu0
        %v6039 = vadd.f32 0.0, %v6038
        %6040 = vmatmul.bf16.gmra.mxu0 %v4529
        %v6041 = vpop.f32.mrf.mxu0
        %v6042 = vadd.f32 0.0, %v6041
        %v6043 = vpop.f32.mrf.mxu0
        %v6044 = vadd.f32 0.0, %v6043
        %6045 = vmatmul.bf16.gmra.mxu0 %v4532
        %v6046 = vpop.f32.mrf.mxu0
        %v6047 = vadd.f32 0.0, %v6046
        %v6048 = vpop.f32.mrf.mxu0
        %v6049 = vadd.f32 0.0, %v6048
        %6050 = vmatmul.bf16.gmra.mxu0 %v4535
        %v6051 = vpop.f32.mrf.mxu0
        %v6052 = vadd.f32 0.0, %v6051
        %v6053 = vpop.f32.mrf.mxu0
        %v6054 = vadd.f32 0.0, %v6053
        %6055 = vmatmul.bf16.gmra.mxu0 %v4538
        %v6056 = vpop.f32.mrf.mxu0
        %v6057 = vadd.f32 0.0, %v6056
        %v6058 = vpop.f32.mrf.mxu0
        %v6059 = vadd.f32 0.0, %v6058
        %6060 = vmatmul.bf16.gmra.mxu0 %v4541
        %v6061 = vpop.f32.mrf.mxu0
        %v6062 = vadd.f32 0.0, %v6061
        %v6063 = vpop.f32.mrf.mxu0
        %v6064 = vadd.f32 0.0, %v6063
        %6065 = vdwg.mxu0
        %6066 = vmatpush.bf16.msra.mxu0 %v5212
        %6067 = vmatpush.bf16.msra.mxu0 %v5206
        %6068 = vmatpush.bf16.msra.mxu0 %v5200
        %6069 = vmatpush.bf16.msra.mxu0 %v5194
        %6070 = vmatpush.bf16.msra.mxu0 %v5188
        %6071 = vmatpush.bf16.msra.mxu0 %v5182
        %6072 = vmatpush.bf16.msra.mxu0 %v5176
        %6073 = vmatpush.bf16.msra.mxu0 %v5170
        %6074 = vmatmul.bf16.gmra.mxu0 %v4494
        %v6075 = vpop.f32.mrf.mxu0
        %v6076 = vadd.f32 %v5982, %v6075
        %v6077 = vpop.f32.mrf.mxu0
        %v6078 = vadd.f32 %v5984, %v6077
        %6079 = vmatmul.bf16.gmra.mxu0 %v4497
        %v6080 = vpop.f32.mrf.mxu0
        %v6081 = vadd.f32 %v5987, %v6080
        %v6082 = vpop.f32.mrf.mxu0
        %v6083 = vadd.f32 %v5989, %v6082
        %6084 = vmatmul.bf16.gmra.mxu0 %v4500
        %v6085 = vpop.f32.mrf.mxu0
        %v6086 = vadd.f32 %v5992, %v6085
        %v6087 = vpop.f32.mrf.mxu0
        %v6088 = vadd.f32 %v5994, %v6087
        %6089 = vmatmul.bf16.gmra.mxu0 %v4503
        %v6090 = vpop.f32.mrf.mxu0
        %v6091 = vadd.f32 %v5997, %v6090
        %v6092 = vpop.f32.mrf.mxu0
        %v6093 = vadd.f32 %v5999, %v6092
        %6094 = vmatmul.bf16.gmra.mxu0 %v4506
        %v6095 = vpop.f32.mrf.mxu0
        %v6096 = vadd.f32 %v6002, %v6095
        %v6097 = vpop.f32.mrf.mxu0
        %v6098 = vadd.f32 %v6004, %v6097
        %6099 = vmatmul.bf16.gmra.mxu0 %v4509
        %v6100 = vpop.f32.mrf.mxu0
        %v6101 = vadd.f32 %v6007, %v6100
        %v6102 = vpop.f32.mrf.mxu0
        %v6103 = vadd.f32 %v6009, %v6102
        %6104 = vmatmul.bf16.gmra.mxu0 %v4512
        %v6105 = vpop.f32.mrf.mxu0
        %v6106 = vadd.f32 %v6012, %v6105
        %v6107 = vpop.f32.mrf.mxu0
        %v6108 = vadd.f32 %v6014, %v6107
        %6109 = vmatmul.bf16.gmra.mxu0 %v4515
        %v6110 = vpop.f32.mrf.mxu0
        %v6111 = vadd.f32 %v6017, %v6110
        %v6112 = vpop.f32.mrf.mxu0
        %v6113 = vadd.f32 %v6019, %v6112
        %6114 = vmatmul.bf16.gmra.mxu0 %v4518
        %v6115 = vpop.f32.mrf.mxu0
        %v6116 = vadd.f32 %v6022, %v6115
        %v6117 = vpop.f32.mrf.mxu0
        %v6118 = vadd.f32 %v6024, %v6117
        %6119 = vmatmul.bf16.gmra.mxu0 %v4521
        %v6120 = vpop.f32.mrf.mxu0
        %v6121 = vadd.f32 %v6027, %v6120
        %v6122 = vpop.f32.mrf.mxu0
        %v6123 = vadd.f32 %v6029, %v6122
        %6124 = vmatmul.bf16.gmra.mxu0 %v4524
        %v6125 = vpop.f32.mrf.mxu0
        %v6126 = vadd.f32 %v6032, %v6125
        %v6127 = vpop.f32.mrf.mxu0
        %v6128 = vadd.f32 %v6034, %v6127
        %6129 = vmatmul.bf16.gmra.mxu0 %v4527
        %v6130 = vpop.f32.mrf.mxu0
        %v6131 = vadd.f32 %v6037, %v6130
        %v6132 = vpop.f32.mrf.mxu0
        %v6133 = vadd.f32 %v6039, %v6132
        %6134 = vmatmul.bf16.gmra.mxu0 %v4530
        %v6135 = vpop.f32.mrf.mxu0
        %v6136 = vadd.f32 %v6042, %v6135
        %v6137 = vpop.f32.mrf.mxu0
        %v6138 = vadd.f32 %v6044, %v6137
        %6139 = vmatmul.bf16.gmra.mxu0 %v4533
        %v6140 = vpop.f32.mrf.mxu0
        %v6141 = vadd.f32 %v6047, %v6140
        %v6142 = vpop.f32.mrf.mxu0
        %v6143 = vadd.f32 %v6049, %v6142
        %6144 = vmatmul.bf16.gmra.mxu0 %v4536
        %v6145 = vpop.f32.mrf.mxu0
        %v6146 = vadd.f32 %v6052, %v6145
        %v6147 = vpop.f32.mrf.mxu0
        %v6148 = vadd.f32 %v6054, %v6147
        %6149 = vmatmul.bf16.gmra.mxu0 %v4539
        %v6150 = vpop.f32.mrf.mxu0
        %v6151 = vadd.f32 %v6057, %v6150
        %v6152 = vpop.f32.mrf.mxu0
        %v6153 = vadd.f32 %v6059, %v6152
        %6154 = vmatmul.bf16.gmra.mxu0 %v4542
        %v6155 = vpop.f32.mrf.mxu0
        %v6156 = vadd.f32 %v6062, %v6155
        %v6157 = vpop.f32.mrf.mxu0
        %v6158 = vadd.f32 %v6064, %v6157
        %6159 = vdwg.mxu0
        %6160 = vmatpush.bf16.msra.mxu0 %v5260
        %6161 = vmatpush.bf16.msra.mxu0 %v5254
        %6162 = vmatpush.bf16.msra.mxu0 %v5248
        %6163 = vmatpush.bf16.msra.mxu0 %v5242
        %6164 = vmatpush.bf16.msra.mxu0 %v5236
        %6165 = vmatpush.bf16.msra.mxu0 %v5230
        %6166 = vmatpush.bf16.msra.mxu0 %v5224
        %6167 = vmatpush.bf16.msra.mxu0 %v5218
        %6168 = vmatmul.bf16.gmra.mxu0 %v4495
        %v6169 = vpop.f32.mrf.mxu0
        %v6170 = vadd.f32 %v6076, %v6169
        %v6171 = vpop.f32.mrf.mxu0
        %v6172 = vadd.f32 %v6078, %v6171
        %6173 = vmatmul.bf16.gmra.mxu0 %v4498
        %v6174 = vpop.f32.mrf.mxu0
        %v6175 = vadd.f32 %v6081, %v6174
        %v6176 = vpop.f32.mrf.mxu0
        %v6177 = vadd.f32 %v6083, %v6176
        %6178 = vmatmul.bf16.gmra.mxu0 %v4501
        %v6179 = vpop.f32.mrf.mxu0
        %v6180 = vadd.f32 %v6086, %v6179
        %v6181 = vpop.f32.mrf.mxu0
        %v6182 = vadd.f32 %v6088, %v6181
        %6183 = vmatmul.bf16.gmra.mxu0 %v4504
        %v6184 = vpop.f32.mrf.mxu0
        %v6185 = vadd.f32 %v6091, %v6184
        %v6186 = vpop.f32.mrf.mxu0
        %v6187 = vadd.f32 %v6093, %v6186
        %6188 = vmatmul.bf16.gmra.mxu0 %v4507
        %v6189 = vpop.f32.mrf.mxu0
        %v6190 = vadd.f32 %v6096, %v6189
        %v6191 = vpop.f32.mrf.mxu0
        %v6192 = vadd.f32 %v6098, %v6191
        %6193 = vmatmul.bf16.gmra.mxu0 %v4510
        %v6194 = vpop.f32.mrf.mxu0
        %v6195 = vadd.f32 %v6101, %v6194
        %v6196 = vpop.f32.mrf.mxu0
        %v6197 = vadd.f32 %v6103, %v6196
        %6198 = vmatmul.bf16.gmra.mxu0 %v4513
        %v6199 = vpop.f32.mrf.mxu0
        %v6200 = vadd.f32 %v6106, %v6199
        %v6201 = vpop.f32.mrf.mxu0
        %v6202 = vadd.f32 %v6108, %v6201
        %6203 = vmatmul.bf16.gmra.mxu0 %v4516
        %v6204 = vpop.f32.mrf.mxu0
        %v6205 = vadd.f32 %v6111, %v6204
        %v6206 = vpop.f32.mrf.mxu0
        %v6207 = vadd.f32 %v6113, %v6206
        %6208 = vmatmul.bf16.gmra.mxu0 %v4519
        %v6209 = vpop.f32.mrf.mxu0
        %v6210 = vadd.f32 %v6116, %v6209
        %v6211 = vpop.f32.mrf.mxu0
        %v6212 = vadd.f32 %v6118, %v6211
        %6213 = vmatmul.bf16.gmra.mxu0 %v4522
        %v6214 = vpop.f32.mrf.mxu0
        %v6215 = vadd.f32 %v6121, %v6214
        %v6216 = vpop.f32.mrf.mxu0
        %v6217 = vadd.f32 %v6123, %v6216
        %6218 = vmatmul.bf16.gmra.mxu0 %v4525
        %v6219 = vpop.f32.mrf.mxu0
        %v6220 = vadd.f32 %v6126, %v6219
        %v6221 = vpop.f32.mrf.mxu0
        %v6222 = vadd.f32 %v6128, %v6221
        %6223 = vmatmul.bf16.gmra.mxu0 %v4528
        %v6224 = vpop.f32.mrf.mxu0
        %v6225 = vadd.f32 %v6131, %v6224
        %v6226 = vpop.f32.mrf.mxu0
        %v6227 = vadd.f32 %v6133, %v6226
        %6228 = vmatmul.bf16.gmra.mxu0 %v4531
        %v6229 = vpop.f32.mrf.mxu0
        %v6230 = vadd.f32 %v6136, %v6229
        %v6231 = vpop.f32.mrf.mxu0
        %v6232 = vadd.f32 %v6138, %v6231
        %6233 = vmatmul.bf16.gmra.mxu0 %v4534
        %v6234 = vpop.f32.mrf.mxu0
        %v6235 = vadd.f32 %v6141, %v6234
        %v6236 = vpop.f32.mrf.mxu0
        %v6237 = vadd.f32 %v6143, %v6236
        %6238 = vmatmul.bf16.gmra.mxu0 %v4537
        %v6239 = vpop.f32.mrf.mxu0
        %v6240 = vadd.f32 %v6146, %v6239
        %v6241 = vpop.f32.mrf.mxu0
        %v6242 = vadd.f32 %v6148, %v6241
        %6243 = vmatmul.bf16.gmra.mxu0 %v4540
        %v6244 = vpop.f32.mrf.mxu0
        %v6245 = vadd.f32 %v6151, %v6244
        %v6246 = vpop.f32.mrf.mxu0
        %v6247 = vadd.f32 %v6153, %v6246
        %6248 = vmatmul.bf16.gmra.mxu0 %v4543
        %v6249 = vpop.f32.mrf.mxu0
        %v6250 = vadd.f32 %v6156, %v6249
        %v6251 = vpop.f32.mrf.mxu0
        %v6252 = vadd.f32 %v6158, %v6251
        %6253 = vdwg.mxu0
        %6254 = vmatpush.bf16.msra.mxu0 %v5165
        %6255 = vmatpush.bf16.msra.mxu0 %v5159
        %6256 = vmatpush.bf16.msra.mxu0 %v5153
        %6257 = vmatpush.bf16.msra.mxu0 %v5147
        %6258 = vmatpush.bf16.msra.mxu0 %v5141
        %6259 = vmatpush.bf16.msra.mxu0 %v5135
        %6260 = vmatpush.bf16.msra.mxu0 %v5129
        %6261 = vmatpush.bf16.msra.mxu0 %v5123
        %6262 = vmatmul.bf16.gmra.mxu0 %v4493
        %v6263 = vpop.f32.mrf.mxu0
        %v6264 = vadd.f32 0.0, %v6263
        %v6265 = vpop.f32.mrf.mxu0
        %v6266 = vadd.f32 0.0, %v6265
        %6267 = vmatmul.bf16.gmra.mxu0 %v4496
        %v6268 = vpop.f32.mrf.mxu0
        %v6269 = vadd.f32 0.0, %v6268
        %v6270 = vpop.f32.mrf.mxu0
        %v6271 = vadd.f32 0.0, %v6270
        %6272 = vmatmul.bf16.gmra.mxu0 %v4499
        %v6273 = vpop.f32.mrf.mxu0
        %v6274 = vadd.f32 0.0, %v6273
        %v6275 = vpop.f32.mrf.mxu0
        %v6276 = vadd.f32 0.0, %v6275
        %6277 = vmatmul.bf16.gmra.mxu0 %v4502
        %v6278 = vpop.f32.mrf.mxu0
        %v6279 = vadd.f32 0.0, %v6278
        %v6280 = vpop.f32.mrf.mxu0
        %v6281 = vadd.f32 0.0, %v6280
        %6282 = vmatmul.bf16.gmra.mxu0 %v4505
        %v6283 = vpop.f32.mrf.mxu0
        %v6284 = vadd.f32 0.0, %v6283
        %v6285 = vpop.f32.mrf.mxu0
        %v6286 = vadd.f32 0.0, %v6285
        %6287 = vmatmul.bf16.gmra.mxu0 %v4508
        %v6288 = vpop.f32.mrf.mxu0
        %v6289 = vadd.f32 0.0, %v6288
        %v6290 = vpop.f32.mrf.mxu0
        %v6291 = vadd.f32 0.0, %v6290
        %6292 = vmatmul.bf16.gmra.mxu0 %v4511
        %v6293 = vpop.f32.mrf.mxu0
        %v6294 = vadd.f32 0.0, %v6293
        %v6295 = vpop.f32.mrf.mxu0
        %v6296 = vadd.f32 0.0, %v6295
        %6297 = vmatmul.bf16.gmra.mxu0 %v4514
        %v6298 = vpop.f32.mrf.mxu0
        %v6299 = vadd.f32 0.0, %v6298
        %v6300 = vpop.f32.mrf.mxu0
        %v6301 = vadd.f32 0.0, %v6300
        %6302 = vmatmul.bf16.gmra.mxu0 %v4517
        %v6303 = vpop.f32.mrf.mxu0
        %v6304 = vadd.f32 0.0, %v6303
        %v6305 = vpop.f32.mrf.mxu0
        %v6306 = vadd.f32 0.0, %v6305
        %6307 = vmatmul.bf16.gmra.mxu0 %v4520
        %v6308 = vpop.f32.mrf.mxu0
        %v6309 = vadd.f32 0.0, %v6308
        %v6310 = vpop.f32.mrf.mxu0
        %v6311 = vadd.f32 0.0, %v6310
        %6312 = vmatmul.bf16.gmra.mxu0 %v4523
        %v6313 = vpop.f32.mrf.mxu0
        %v6314 = vadd.f32 0.0, %v6313
        %v6315 = vpop.f32.mrf.mxu0
        %v6316 = vadd.f32 0.0, %v6315
        %6317 = vmatmul.bf16.gmra.mxu0 %v4526
        %v6318 = vpop.f32.mrf.mxu0
        %v6319 = vadd.f32 0.0, %v6318
        %v6320 = vpop.f32.mrf.mxu0
        %v6321 = vadd.f32 0.0, %v6320
        %6322 = vmatmul.bf16.gmra.mxu0 %v4529
        %v6323 = vpop.f32.mrf.mxu0
        %v6324 = vadd.f32 0.0, %v6323
        %v6325 = vpop.f32.mrf.mxu0
        %v6326 = vadd.f32 0.0, %v6325
        %6327 = vmatmul.bf16.gmra.mxu0 %v4532
        %v6328 = vpop.f32.mrf.mxu0
        %v6329 = vadd.f32 0.0, %v6328
        %v6330 = vpop.f32.mrf.mxu0
        %v6331 = vadd.f32 0.0, %v6330
        %6332 = vmatmul.bf16.gmra.mxu0 %v4535
        %v6333 = vpop.f32.mrf.mxu0
        %v6334 = vadd.f32 0.0, %v6333
        %v6335 = vpop.f32.mrf.mxu0
        %v6336 = vadd.f32 0.0, %v6335
        %6337 = vmatmul.bf16.gmra.mxu0 %v4538
        %v6338 = vpop.f32.mrf.mxu0
        %v6339 = vadd.f32 0.0, %v6338
        %v6340 = vpop.f32.mrf.mxu0
        %v6341 = vadd.f32 0.0, %v6340
        %6342 = vmatmul.bf16.gmra.mxu0 %v4541
        %v6343 = vpop.f32.mrf.mxu0
        %v6344 = vadd.f32 0.0, %v6343
        %v6345 = vpop.f32.mrf.mxu0
        %v6346 = vadd.f32 0.0, %v6345
        %6347 = vdwg.mxu0
        %6348 = vmatpush.bf16.msra.mxu0 %v5213
        %6349 = vmatpush.bf16.msra.mxu0 %v5207
        %6350 = vmatpush.bf16.msra.mxu0 %v5201
        %6351 = vmatpush.bf16.msra.mxu0 %v5195
        %6352 = vmatpush.bf16.msra.mxu0 %v5189
        %6353 = vmatpush.bf16.msra.mxu0 %v5183
        %6354 = vmatpush.bf16.msra.mxu0 %v5177
        %6355 = vmatpush.bf16.msra.mxu0 %v5171
        %6356 = vmatmul.bf16.gmra.mxu0 %v4494
        %v6357 = vpop.f32.mrf.mxu0
        %v6358 = vadd.f32 %v6264, %v6357
        %v6359 = vpop.f32.mrf.mxu0
        %v6360 = vadd.f32 %v6266, %v6359
        %6361 = vmatmul.bf16.gmra.mxu0 %v4497
        %v6362 = vpop.f32.mrf.mxu0
        %v6363 = vadd.f32 %v6269, %v6362
        %v6364 = vpop.f32.mrf.mxu0
        %v6365 = vadd.f32 %v6271, %v6364
        %6366 = vmatmul.bf16.gmra.mxu0 %v4500
        %v6367 = vpop.f32.mrf.mxu0
        %v6368 = vadd.f32 %v6274, %v6367
        %v6369 = vpop.f32.mrf.mxu0
        %v6370 = vadd.f32 %v6276, %v6369
        %6371 = vmatmul.bf16.gmra.mxu0 %v4503
        %v6372 = vpop.f32.mrf.mxu0
        %v6373 = vadd.f32 %v6279, %v6372
        %v6374 = vpop.f32.mrf.mxu0
        %v6375 = vadd.f32 %v6281, %v6374
        %6376 = vmatmul.bf16.gmra.mxu0 %v4506
        %v6377 = vpop.f32.mrf.mxu0
        %v6378 = vadd.f32 %v6284, %v6377
        %v6379 = vpop.f32.mrf.mxu0
        %v6380 = vadd.f32 %v6286, %v6379
        %6381 = vmatmul.bf16.gmra.mxu0 %v4509
        %v6382 = vpop.f32.mrf.mxu0
        %v6383 = vadd.f32 %v6289, %v6382
        %v6384 = vpop.f32.mrf.mxu0
        %v6385 = vadd.f32 %v6291, %v6384
        %6386 = vmatmul.bf16.gmra.mxu0 %v4512
        %v6387 = vpop.f32.mrf.mxu0
        %v6388 = vadd.f32 %v6294, %v6387
        %v6389 = vpop.f32.mrf.mxu0
        %v6390 = vadd.f32 %v6296, %v6389
        %6391 = vmatmul.bf16.gmra.mxu0 %v4515
        %v6392 = vpop.f32.mrf.mxu0
        %v6393 = vadd.f32 %v6299, %v6392
        %v6394 = vpop.f32.mrf.mxu0
        %v6395 = vadd.f32 %v6301, %v6394
        %6396 = vmatmul.bf16.gmra.mxu0 %v4518
        %v6397 = vpop.f32.mrf.mxu0
        %v6398 = vadd.f32 %v6304, %v6397
        %v6399 = vpop.f32.mrf.mxu0
        %v6400 = vadd.f32 %v6306, %v6399
        %6401 = vmatmul.bf16.gmra.mxu0 %v4521
        %v6402 = vpop.f32.mrf.mxu0
        %v6403 = vadd.f32 %v6309, %v6402
        %v6404 = vpop.f32.mrf.mxu0
        %v6405 = vadd.f32 %v6311, %v6404
        %6406 = vmatmul.bf16.gmra.mxu0 %v4524
        %v6407 = vpop.f32.mrf.mxu0
        %v6408 = vadd.f32 %v6314, %v6407
        %v6409 = vpop.f32.mrf.mxu0
        %v6410 = vadd.f32 %v6316, %v6409
        %6411 = vmatmul.bf16.gmra.mxu0 %v4527
        %v6412 = vpop.f32.mrf.mxu0
        %v6413 = vadd.f32 %v6319, %v6412
        %v6414 = vpop.f32.mrf.mxu0
        %v6415 = vadd.f32 %v6321, %v6414
        %6416 = vmatmul.bf16.gmra.mxu0 %v4530
        %v6417 = vpop.f32.mrf.mxu0
        %v6418 = vadd.f32 %v6324, %v6417
        %v6419 = vpop.f32.mrf.mxu0
        %v6420 = vadd.f32 %v6326, %v6419
        %6421 = vmatmul.bf16.gmra.mxu0 %v4533
        %v6422 = vpop.f32.mrf.mxu0
        %v6423 = vadd.f32 %v6329, %v6422
        %v6424 = vpop.f32.mrf.mxu0
        %v6425 = vadd.f32 %v6331, %v6424
        %6426 = vmatmul.bf16.gmra.mxu0 %v4536
        %v6427 = vpop.f32.mrf.mxu0
        %v6428 = vadd.f32 %v6334, %v6427
        %v6429 = vpop.f32.mrf.mxu0
        %v6430 = vadd.f32 %v6336, %v6429
        %6431 = vmatmul.bf16.gmra.mxu0 %v4539
        %v6432 = vpop.f32.mrf.mxu0
        %v6433 = vadd.f32 %v6339, %v6432
        %v6434 = vpop.f32.mrf.mxu0
        %v6435 = vadd.f32 %v6341, %v6434
        %6436 = vmatmul.bf16.gmra.mxu0 %v4542
        %v6437 = vpop.f32.mrf.mxu0
        %v6438 = vadd.f32 %v6344, %v6437
        %v6439 = vpop.f32.mrf.mxu0
        %v6440 = vadd.f32 %v6346, %v6439
        %6441 = vdwg.mxu0
        %6442 = vmatpush.bf16.msra.mxu0 %v5261
        %6443 = vmatpush.bf16.msra.mxu0 %v5255
        %6444 = vmatpush.bf16.msra.mxu0 %v5249
        %6445 = vmatpush.bf16.msra.mxu0 %v5243
        %6446 = vmatpush.bf16.msra.mxu0 %v5237
        %6447 = vmatpush.bf16.msra.mxu0 %v5231
        %6448 = vmatpush.bf16.msra.mxu0 %v5225
        %6449 = vmatpush.bf16.msra.mxu0 %v5219
        %6450 = vmatmul.bf16.gmra.mxu0 %v4495
        %v6451 = vpop.f32.mrf.mxu0
        %v6452 = vadd.f32 %v6358, %v6451
        %v6453 = vpop.f32.mrf.mxu0
        %v6454 = vadd.f32 %v6360, %v6453
        %6455 = vmatmul.bf16.gmra.mxu0 %v4498
        %v6456 = vpop.f32.mrf.mxu0
        %v6457 = vadd.f32 %v6363, %v6456
        %v6458 = vpop.f32.mrf.mxu0
        %v6459 = vadd.f32 %v6365, %v6458
        %6460 = vmatmul.bf16.gmra.mxu0 %v4501
        %v6461 = vpop.f32.mrf.mxu0
        %v6462 = vadd.f32 %v6368, %v6461
        %v6463 = vpop.f32.mrf.mxu0
        %v6464 = vadd.f32 %v6370, %v6463
        %6465 = vmatmul.bf16.gmra.mxu0 %v4504
        %v6466 = vpop.f32.mrf.mxu0
        %v6467 = vadd.f32 %v6373, %v6466
        %v6468 = vpop.f32.mrf.mxu0
        %v6469 = vadd.f32 %v6375, %v6468
        %6470 = vmatmul.bf16.gmra.mxu0 %v4507
        %v6471 = vpop.f32.mrf.mxu0
        %v6472 = vadd.f32 %v6378, %v6471
        %v6473 = vpop.f32.mrf.mxu0
        %v6474 = vadd.f32 %v6380, %v6473
        %6475 = vmatmul.bf16.gmra.mxu0 %v4510
        %v6476 = vpop.f32.mrf.mxu0
        %v6477 = vadd.f32 %v6383, %v6476
        %v6478 = vpop.f32.mrf.mxu0
        %v6479 = vadd.f32 %v6385, %v6478
        %6480 = vmatmul.bf16.gmra.mxu0 %v4513
        %v6481 = vpop.f32.mrf.mxu0
        %v6482 = vadd.f32 %v6388, %v6481
        %v6483 = vpop.f32.mrf.mxu0
        %v6484 = vadd.f32 %v6390, %v6483
        %6485 = vmatmul.bf16.gmra.mxu0 %v4516
        %v6486 = vpop.f32.mrf.mxu0
        %v6487 = vadd.f32 %v6393, %v6486
        %v6488 = vpop.f32.mrf.mxu0
        %v6489 = vadd.f32 %v6395, %v6488
        %6490 = vmatmul.bf16.gmra.mxu0 %v4519
        %v6491 = vpop.f32.mrf.mxu0
        %v6492 = vadd.f32 %v6398, %v6491
        %v6493 = vpop.f32.mrf.mxu0
        %v6494 = vadd.f32 %v6400, %v6493
        %6495 = vmatmul.bf16.gmra.mxu0 %v4522
        %v6496 = vpop.f32.mrf.mxu0
        %v6497 = vadd.f32 %v6403, %v6496
        %v6498 = vpop.f32.mrf.mxu0
        %v6499 = vadd.f32 %v6405, %v6498
        %6500 = vmatmul.bf16.gmra.mxu0 %v4525
        %v6501 = vpop.f32.mrf.mxu0
        %v6502 = vadd.f32 %v6408, %v6501
        %v6503 = vpop.f32.mrf.mxu0
        %v6504 = vadd.f32 %v6410, %v6503
        %6505 = vmatmul.bf16.gmra.mxu0 %v4528
        %v6506 = vpop.f32.mrf.mxu0
        %v6507 = vadd.f32 %v6413, %v6506
        %v6508 = vpop.f32.mrf.mxu0
        %v6509 = vadd.f32 %v6415, %v6508
        %6510 = vmatmul.bf16.gmra.mxu0 %v4531
        %v6511 = vpop.f32.mrf.mxu0
        %v6512 = vadd.f32 %v6418, %v6511
        %v6513 = vpop.f32.mrf.mxu0
        %v6514 = vadd.f32 %v6420, %v6513
        %6515 = vmatmul.bf16.gmra.mxu0 %v4534
        %v6516 = vpop.f32.mrf.mxu0
        %v6517 = vadd.f32 %v6423, %v6516
        %v6518 = vpop.f32.mrf.mxu0
        %v6519 = vadd.f32 %v6425, %v6518
        %6520 = vmatmul.bf16.gmra.mxu0 %v4537
        %v6521 = vpop.f32.mrf.mxu0
        %v6522 = vadd.f32 %v6428, %v6521
        %v6523 = vpop.f32.mrf.mxu0
        %v6524 = vadd.f32 %v6430, %v6523
        %6525 = vmatmul.bf16.gmra.mxu0 %v4540
        %v6526 = vpop.f32.mrf.mxu0
        %v6527 = vadd.f32 %v6433, %v6526
        %v6528 = vpop.f32.mrf.mxu0
        %v6529 = vadd.f32 %v6435, %v6528
        %6530 = vmatmul.bf16.gmra.mxu0 %v4543
        %v6531 = vpop.f32.mrf.mxu0
        %v6532 = vadd.f32 %v6438, %v6531
        %v6533 = vpop.f32.mrf.mxu0
        %v6534 = vadd.f32 %v6440, %v6533
        %6535 = vdwg.mxu0
        %6536 = vmatpush.bf16.msra.mxu0 %v5166
        %6537 = vmatpush.bf16.msra.mxu0 %v5160
        %6538 = vmatpush.bf16.msra.mxu0 %v5154
        %6539 = vmatpush.bf16.msra.mxu0 %v5148
        %6540 = vmatpush.bf16.msra.mxu0 %v5142
        %6541 = vmatpush.bf16.msra.mxu0 %v5136
        %6542 = vmatpush.bf16.msra.mxu0 %v5130
        %6543 = vmatpush.bf16.msra.mxu0 %v5124
        %6544 = vmatmul.bf16.gmra.mxu0 %v4493
        %v6545 = vpop.f32.mrf.mxu0
        %v6546 = vadd.f32 0.0, %v6545
        %v6547 = vpop.f32.mrf.mxu0
        %v6548 = vadd.f32 0.0, %v6547
        %6549 = vmatmul.bf16.gmra.mxu0 %v4496
        %v6550 = vpop.f32.mrf.mxu0
        %v6551 = vadd.f32 0.0, %v6550
        %v6552 = vpop.f32.mrf.mxu0
        %v6553 = vadd.f32 0.0, %v6552
        %6554 = vmatmul.bf16.gmra.mxu0 %v4499
        %v6555 = vpop.f32.mrf.mxu0
        %v6556 = vadd.f32 0.0, %v6555
        %v6557 = vpop.f32.mrf.mxu0
        %v6558 = vadd.f32 0.0, %v6557
        %6559 = vmatmul.bf16.gmra.mxu0 %v4502
        %v6560 = vpop.f32.mrf.mxu0
        %v6561 = vadd.f32 0.0, %v6560
        %v6562 = vpop.f32.mrf.mxu0
        %v6563 = vadd.f32 0.0, %v6562
        %6564 = vmatmul.bf16.gmra.mxu0 %v4505
        %v6565 = vpop.f32.mrf.mxu0
        %v6566 = vadd.f32 0.0, %v6565
        %v6567 = vpop.f32.mrf.mxu0
        %v6568 = vadd.f32 0.0, %v6567
        %6569 = vmatmul.bf16.gmra.mxu0 %v4508
        %v6570 = vpop.f32.mrf.mxu0
        %v6571 = vadd.f32 0.0, %v6570
        %v6572 = vpop.f32.mrf.mxu0
        %v6573 = vadd.f32 0.0, %v6572
        %6574 = vmatmul.bf16.gmra.mxu0 %v4511
        %v6575 = vpop.f32.mrf.mxu0
        %v6576 = vadd.f32 0.0, %v6575
        %v6577 = vpop.f32.mrf.mxu0
        %v6578 = vadd.f32 0.0, %v6577
        %6579 = vmatmul.bf16.gmra.mxu0 %v4514
        %v6580 = vpop.f32.mrf.mxu0
        %v6581 = vadd.f32 0.0, %v6580
        %v6582 = vpop.f32.mrf.mxu0
        %v6583 = vadd.f32 0.0, %v6582
        %6584 = vmatmul.bf16.gmra.mxu0 %v4517
        %v6585 = vpop.f32.mrf.mxu0
        %v6586 = vadd.f32 0.0, %v6585
        %v6587 = vpop.f32.mrf.mxu0
        %v6588 = vadd.f32 0.0, %v6587
        %6589 = vmatmul.bf16.gmra.mxu0 %v4520
        %v6590 = vpop.f32.mrf.mxu0
        %v6591 = vadd.f32 0.0, %v6590
        %v6592 = vpop.f32.mrf.mxu0
        %v6593 = vadd.f32 0.0, %v6592
        %6594 = vmatmul.bf16.gmra.mxu0 %v4523
        %v6595 = vpop.f32.mrf.mxu0
        %v6596 = vadd.f32 0.0, %v6595
        %v6597 = vpop.f32.mrf.mxu0
        %v6598 = vadd.f32 0.0, %v6597
        %6599 = vmatmul.bf16.gmra.mxu0 %v4526
        %v6600 = vpop.f32.mrf.mxu0
        %v6601 = vadd.f32 0.0, %v6600
        %v6602 = vpop.f32.mrf.mxu0
        %v6603 = vadd.f32 0.0, %v6602
        %6604 = vmatmul.bf16.gmra.mxu0 %v4529
        %v6605 = vpop.f32.mrf.mxu0
        %v6606 = vadd.f32 0.0, %v6605
        %v6607 = vpop.f32.mrf.mxu0
        %v6608 = vadd.f32 0.0, %v6607
        %6609 = vmatmul.bf16.gmra.mxu0 %v4532
        %v6610 = vpop.f32.mrf.mxu0
        %v6611 = vadd.f32 0.0, %v6610
        %v6612 = vpop.f32.mrf.mxu0
        %v6613 = vadd.f32 0.0, %v6612
        %6614 = vmatmul.bf16.gmra.mxu0 %v4535
        %v6615 = vpop.f32.mrf.mxu0
        %v6616 = vadd.f32 0.0, %v6615
        %v6617 = vpop.f32.mrf.mxu0
        %v6618 = vadd.f32 0.0, %v6617
        %6619 = vmatmul.bf16.gmra.mxu0 %v4538
        %v6620 = vpop.f32.mrf.mxu0
        %v6621 = vadd.f32 0.0, %v6620
        %v6622 = vpop.f32.mrf.mxu0
        %v6623 = vadd.f32 0.0, %v6622
        %6624 = vmatmul.bf16.gmra.mxu0 %v4541
        %v6625 = vpop.f32.mrf.mxu0
        %v6626 = vadd.f32 0.0, %v6625
        %v6627 = vpop.f32.mrf.mxu0
        %v6628 = vadd.f32 0.0, %v6627
        %6629 = vdwg.mxu0
        %6630 = vmatpush.bf16.msra.mxu0 %v5214
        %6631 = vmatpush.bf16.msra.mxu0 %v5208
        %6632 = vmatpush.bf16.msra.mxu0 %v5202
        %6633 = vmatpush.bf16.msra.mxu0 %v5196
        %6634 = vmatpush.bf16.msra.mxu0 %v5190
        %6635 = vmatpush.bf16.msra.mxu0 %v5184
        %6636 = vmatpush.bf16.msra.mxu0 %v5178
        %6637 = vmatpush.bf16.msra.mxu0 %v5172
        %6638 = vmatmul.bf16.gmra.mxu0 %v4494
        %v6639 = vpop.f32.mrf.mxu0
        %v6640 = vadd.f32 %v6546, %v6639
        %v6641 = vpop.f32.mrf.mxu0
        %v6642 = vadd.f32 %v6548, %v6641
        %6643 = vmatmul.bf16.gmra.mxu0 %v4497
        %v6644 = vpop.f32.mrf.mxu0
        %v6645 = vadd.f32 %v6551, %v6644
        %v6646 = vpop.f32.mrf.mxu0
        %v6647 = vadd.f32 %v6553, %v6646
        %6648 = vmatmul.bf16.gmra.mxu0 %v4500
        %v6649 = vpop.f32.mrf.mxu0
        %v6650 = vadd.f32 %v6556, %v6649
        %v6651 = vpop.f32.mrf.mxu0
        %v6652 = vadd.f32 %v6558, %v6651
        %6653 = vmatmul.bf16.gmra.mxu0 %v4503
        %v6654 = vpop.f32.mrf.mxu0
        %v6655 = vadd.f32 %v6561, %v6654
        %v6656 = vpop.f32.mrf.mxu0
        %v6657 = vadd.f32 %v6563, %v6656
        %6658 = vmatmul.bf16.gmra.mxu0 %v4506
        %v6659 = vpop.f32.mrf.mxu0
        %v6660 = vadd.f32 %v6566, %v6659
        %v6661 = vpop.f32.mrf.mxu0
        %v6662 = vadd.f32 %v6568, %v6661
        %6663 = vmatmul.bf16.gmra.mxu0 %v4509
        %v6664 = vpop.f32.mrf.mxu0
        %v6665 = vadd.f32 %v6571, %v6664
        %v6666 = vpop.f32.mrf.mxu0
        %v6667 = vadd.f32 %v6573, %v6666
        %6668 = vmatmul.bf16.gmra.mxu0 %v4512
        %v6669 = vpop.f32.mrf.mxu0
        %v6670 = vadd.f32 %v6576, %v6669
        %v6671 = vpop.f32.mrf.mxu0
        %v6672 = vadd.f32 %v6578, %v6671
        %6673 = vmatmul.bf16.gmra.mxu0 %v4515
        %v6674 = vpop.f32.mrf.mxu0
        %v6675 = vadd.f32 %v6581, %v6674
        %v6676 = vpop.f32.mrf.mxu0
        %v6677 = vadd.f32 %v6583, %v6676
        %6678 = vmatmul.bf16.gmra.mxu0 %v4518
        %v6679 = vpop.f32.mrf.mxu0
        %v6680 = vadd.f32 %v6586, %v6679
        %v6681 = vpop.f32.mrf.mxu0
        %v6682 = vadd.f32 %v6588, %v6681
        %6683 = vmatmul.bf16.gmra.mxu0 %v4521
        %v6684 = vpop.f32.mrf.mxu0
        %v6685 = vadd.f32 %v6591, %v6684
        %v6686 = vpop.f32.mrf.mxu0
        %v6687 = vadd.f32 %v6593, %v6686
        %6688 = vmatmul.bf16.gmra.mxu0 %v4524
        %v6689 = vpop.f32.mrf.mxu0
        %v6690 = vadd.f32 %v6596, %v6689
        %v6691 = vpop.f32.mrf.mxu0
        %v6692 = vadd.f32 %v6598, %v6691
        %6693 = vmatmul.bf16.gmra.mxu0 %v4527
        %v6694 = vpop.f32.mrf.mxu0
        %v6695 = vadd.f32 %v6601, %v6694
        %v6696 = vpop.f32.mrf.mxu0
        %v6697 = vadd.f32 %v6603, %v6696
        %6698 = vmatmul.bf16.gmra.mxu0 %v4530
        %v6699 = vpop.f32.mrf.mxu0
        %v6700 = vadd.f32 %v6606, %v6699
        %v6701 = vpop.f32.mrf.mxu0
        %v6702 = vadd.f32 %v6608, %v6701
        %6703 = vmatmul.bf16.gmra.mxu0 %v4533
        %v6704 = vpop.f32.mrf.mxu0
        %v6705 = vadd.f32 %v6611, %v6704
        %v6706 = vpop.f32.mrf.mxu0
        %v6707 = vadd.f32 %v6613, %v6706
        %6708 = vmatmul.bf16.gmra.mxu0 %v4536
        %v6709 = vpop.f32.mrf.mxu0
        %v6710 = vadd.f32 %v6616, %v6709
        %v6711 = vpop.f32.mrf.mxu0
        %v6712 = vadd.f32 %v6618, %v6711
        %6713 = vmatmul.bf16.gmra.mxu0 %v4539
        %v6714 = vpop.f32.mrf.mxu0
        %v6715 = vadd.f32 %v6621, %v6714
        %v6716 = vpop.f32.mrf.mxu0
        %v6717 = vadd.f32 %v6623, %v6716
        %6718 = vmatmul.bf16.gmra.mxu0 %v4542
        %v6719 = vpop.f32.mrf.mxu0
        %v6720 = vadd.f32 %v6626, %v6719
        %v6721 = vpop.f32.mrf.mxu0
        %v6722 = vadd.f32 %v6628, %v6721
        %6723 = vdwg.mxu0
        %6724 = vmatpush.bf16.msra.mxu0 %v5262
        %6725 = vmatpush.bf16.msra.mxu0 %v5256
        %6726 = vmatpush.bf16.msra.mxu0 %v5250
        %6727 = vmatpush.bf16.msra.mxu0 %v5244
        %6728 = vmatpush.bf16.msra.mxu0 %v5238
        %6729 = vmatpush.bf16.msra.mxu0 %v5232
        %6730 = vmatpush.bf16.msra.mxu0 %v5226
        %6731 = vmatpush.bf16.msra.mxu0 %v5220
        %6732 = vmatmul.bf16.gmra.mxu0 %v4495
        %v6733 = vpop.f32.mrf.mxu0
        %v6734 = vadd.f32 %v6640, %v6733
        %v6735 = vpop.f32.mrf.mxu0
        %v6736 = vadd.f32 %v6642, %v6735
        %6737 = vmatmul.bf16.gmra.mxu0 %v4498
        %v6738 = vpop.f32.mrf.mxu0
        %v6739 = vadd.f32 %v6645, %v6738
        %v6740 = vpop.f32.mrf.mxu0
        %v6741 = vadd.f32 %v6647, %v6740
        %6742 = vmatmul.bf16.gmra.mxu0 %v4501
        %v6743 = vpop.f32.mrf.mxu0
        %v6744 = vadd.f32 %v6650, %v6743
        %v6745 = vpop.f32.mrf.mxu0
        %v6746 = vadd.f32 %v6652, %v6745
        %6747 = vmatmul.bf16.gmra.mxu0 %v4504
        %v6748 = vpop.f32.mrf.mxu0
        %v6749 = vadd.f32 %v6655, %v6748
        %v6750 = vpop.f32.mrf.mxu0
        %v6751 = vadd.f32 %v6657, %v6750
        %6752 = vmatmul.bf16.gmra.mxu0 %v4507
        %v6753 = vpop.f32.mrf.mxu0
        %v6754 = vadd.f32 %v6660, %v6753
        %v6755 = vpop.f32.mrf.mxu0
        %v6756 = vadd.f32 %v6662, %v6755
        %6757 = vmatmul.bf16.gmra.mxu0 %v4510
        %v6758 = vpop.f32.mrf.mxu0
        %v6759 = vadd.f32 %v6665, %v6758
        %v6760 = vpop.f32.mrf.mxu0
        %v6761 = vadd.f32 %v6667, %v6760
        %6762 = vmatmul.bf16.gmra.mxu0 %v4513
        %v6763 = vpop.f32.mrf.mxu0
        %v6764 = vadd.f32 %v6670, %v6763
        %v6765 = vpop.f32.mrf.mxu0
        %v6766 = vadd.f32 %v6672, %v6765
        %6767 = vmatmul.bf16.gmra.mxu0 %v4516
        %v6768 = vpop.f32.mrf.mxu0
        %v6769 = vadd.f32 %v6675, %v6768
        %v6770 = vpop.f32.mrf.mxu0
        %v6771 = vadd.f32 %v6677, %v6770
        %6772 = vmatmul.bf16.gmra.mxu0 %v4519
        %v6773 = vpop.f32.mrf.mxu0
        %v6774 = vadd.f32 %v6680, %v6773
        %v6775 = vpop.f32.mrf.mxu0
        %v6776 = vadd.f32 %v6682, %v6775
        %6777 = vmatmul.bf16.gmra.mxu0 %v4522
        %v6778 = vpop.f32.mrf.mxu0
        %v6779 = vadd.f32 %v6685, %v6778
        %v6780 = vpop.f32.mrf.mxu0
        %v6781 = vadd.f32 %v6687, %v6780
        %6782 = vmatmul.bf16.gmra.mxu0 %v4525
        %v6783 = vpop.f32.mrf.mxu0
        %v6784 = vadd.f32 %v6690, %v6783
        %v6785 = vpop.f32.mrf.mxu0
        %v6786 = vadd.f32 %v6692, %v6785
        %6787 = vmatmul.bf16.gmra.mxu0 %v4528
        %v6788 = vpop.f32.mrf.mxu0
        %v6789 = vadd.f32 %v6695, %v6788
        %v6790 = vpop.f32.mrf.mxu0
        %v6791 = vadd.f32 %v6697, %v6790
        %6792 = vmatmul.bf16.gmra.mxu0 %v4531
        %v6793 = vpop.f32.mrf.mxu0
        %v6794 = vadd.f32 %v6700, %v6793
        %v6795 = vpop.f32.mrf.mxu0
        %v6796 = vadd.f32 %v6702, %v6795
        %6797 = vmatmul.bf16.gmra.mxu0 %v4534
        %v6798 = vpop.f32.mrf.mxu0
        %v6799 = vadd.f32 %v6705, %v6798
        %v6800 = vpop.f32.mrf.mxu0
        %v6801 = vadd.f32 %v6707, %v6800
        %6802 = vmatmul.bf16.gmra.mxu0 %v4537
        %v6803 = vpop.f32.mrf.mxu0
        %v6804 = vadd.f32 %v6710, %v6803
        %v6805 = vpop.f32.mrf.mxu0
        %v6806 = vadd.f32 %v6712, %v6805
        %6807 = vmatmul.bf16.gmra.mxu0 %v4540
        %v6808 = vpop.f32.mrf.mxu0
        %v6809 = vadd.f32 %v6715, %v6808
        %v6810 = vpop.f32.mrf.mxu0
        %v6811 = vadd.f32 %v6717, %v6810
        %6812 = vmatmul.bf16.gmra.mxu0 %v4543
        %v6813 = vpop.f32.mrf.mxu0
        %v6814 = vadd.f32 %v6720, %v6813
        %v6815 = vpop.f32.mrf.mxu0
        %v6816 = vadd.f32 %v6722, %v6815
        %6817 = vdwg.mxu0
        %6818 = vmatpush.bf16.msra.mxu0 %v5167
        %6819 = vmatpush.bf16.msra.mxu0 %v5161
        %6820 = vmatpush.bf16.msra.mxu0 %v5155
        %6821 = vmatpush.bf16.msra.mxu0 %v5149
        %6822 = vmatpush.bf16.msra.mxu0 %v5143
        %6823 = vmatpush.bf16.msra.mxu0 %v5137
        %6824 = vmatpush.bf16.msra.mxu0 %v5131
        %6825 = vmatpush.bf16.msra.mxu0 %v5125
        %6826 = vmatmul.bf16.gmra.mxu0 %v4493
        %v6827 = vpop.f32.mrf.mxu0
        %v6828 = vadd.f32 0.0, %v6827
        %v6829 = vpop.f32.mrf.mxu0
        %v6830 = vadd.f32 0.0, %v6829
        %6831 = vmatmul.bf16.gmra.mxu0 %v4496
        %v6832 = vpop.f32.mrf.mxu0
        %v6833 = vadd.f32 0.0, %v6832
        %v6834 = vpop.f32.mrf.mxu0
        %v6835 = vadd.f32 0.0, %v6834
        %6836 = vmatmul.bf16.gmra.mxu0 %v4499
        %v6837 = vpop.f32.mrf.mxu0
        %v6838 = vadd.f32 0.0, %v6837
        %v6839 = vpop.f32.mrf.mxu0
        %v6840 = vadd.f32 0.0, %v6839
        %6841 = vmatmul.bf16.gmra.mxu0 %v4502
        %v6842 = vpop.f32.mrf.mxu0
        %v6843 = vadd.f32 0.0, %v6842
        %v6844 = vpop.f32.mrf.mxu0
        %v6845 = vadd.f32 0.0, %v6844
        %6846 = vmatmul.bf16.gmra.mxu0 %v4505
        %v6847 = vpop.f32.mrf.mxu0
        %v6848 = vadd.f32 0.0, %v6847
        %v6849 = vpop.f32.mrf.mxu0
        %v6850 = vadd.f32 0.0, %v6849
        %6851 = vmatmul.bf16.gmra.mxu0 %v4508
        %v6852 = vpop.f32.mrf.mxu0
        %v6853 = vadd.f32 0.0, %v6852
        %v6854 = vpop.f32.mrf.mxu0
        %v6855 = vadd.f32 0.0, %v6854
        %6856 = vmatmul.bf16.gmra.mxu0 %v4511
        %v6857 = vpop.f32.mrf.mxu0
        %v6858 = vadd.f32 0.0, %v6857
        %v6859 = vpop.f32.mrf.mxu0
        %v6860 = vadd.f32 0.0, %v6859
        %6861 = vmatmul.bf16.gmra.mxu0 %v4514
        %v6862 = vpop.f32.mrf.mxu0
        %v6863 = vadd.f32 0.0, %v6862
        %v6864 = vpop.f32.mrf.mxu0
        %v6865 = vadd.f32 0.0, %v6864
        %6866 = vmatmul.bf16.gmra.mxu0 %v4517
        %v6867 = vpop.f32.mrf.mxu0
        %v6868 = vadd.f32 0.0, %v6867
        %v6869 = vpop.f32.mrf.mxu0
        %v6870 = vadd.f32 0.0, %v6869
        %6871 = vmatmul.bf16.gmra.mxu0 %v4520
        %v6872 = vpop.f32.mrf.mxu0
        %v6873 = vadd.f32 0.0, %v6872
        %v6874 = vpop.f32.mrf.mxu0
        %v6875 = vadd.f32 0.0, %v6874
        %6876 = vmatmul.bf16.gmra.mxu0 %v4523
        %v6877 = vpop.f32.mrf.mxu0
        %v6878 = vadd.f32 0.0, %v6877
        %v6879 = vpop.f32.mrf.mxu0
        %v6880 = vadd.f32 0.0, %v6879
        %6881 = vmatmul.bf16.gmra.mxu0 %v4526
        %v6882 = vpop.f32.mrf.mxu0
        %v6883 = vadd.f32 0.0, %v6882
        %v6884 = vpop.f32.mrf.mxu0
        %v6885 = vadd.f32 0.0, %v6884
        %6886 = vmatmul.bf16.gmra.mxu0 %v4529
        %v6887 = vpop.f32.mrf.mxu0
        %v6888 = vadd.f32 0.0, %v6887
        %v6889 = vpop.f32.mrf.mxu0
        %v6890 = vadd.f32 0.0, %v6889
        %6891 = vmatmul.bf16.gmra.mxu0 %v4532
        %v6892 = vpop.f32.mrf.mxu0
        %v6893 = vadd.f32 0.0, %v6892
        %v6894 = vpop.f32.mrf.mxu0
        %v6895 = vadd.f32 0.0, %v6894
        %6896 = vmatmul.bf16.gmra.mxu0 %v4535
        %v6897 = vpop.f32.mrf.mxu0
        %v6898 = vadd.f32 0.0, %v6897
        %v6899 = vpop.f32.mrf.mxu0
        %v6900 = vadd.f32 0.0, %v6899
        %6901 = vmatmul.bf16.gmra.mxu0 %v4538
        %v6902 = vpop.f32.mrf.mxu0
        %v6903 = vadd.f32 0.0, %v6902
        %v6904 = vpop.f32.mrf.mxu0
        %v6905 = vadd.f32 0.0, %v6904
        %6906 = vmatmul.bf16.gmra.mxu0 %v4541
        %v6907 = vpop.f32.mrf.mxu0
        %v6908 = vadd.f32 0.0, %v6907
        %v6909 = vpop.f32.mrf.mxu0
        %v6910 = vadd.f32 0.0, %v6909
        %6911 = vdwg.mxu0
        %6912 = vmatpush.bf16.msra.mxu0 %v5215
        %6913 = vmatpush.bf16.msra.mxu0 %v5209
        %6914 = vmatpush.bf16.msra.mxu0 %v5203
        %6915 = vmatpush.bf16.msra.mxu0 %v5197
        %6916 = vmatpush.bf16.msra.mxu0 %v5191
        %6917 = vmatpush.bf16.msra.mxu0 %v5185
        %6918 = vmatpush.bf16.msra.mxu0 %v5179
        %6919 = vmatpush.bf16.msra.mxu0 %v5173
        %6920 = vmatmul.bf16.gmra.mxu0 %v4494
        %v6921 = vpop.f32.mrf.mxu0
        %v6922 = vadd.f32 %v6828, %v6921
        %v6923 = vpop.f32.mrf.mxu0
        %v6924 = vadd.f32 %v6830, %v6923
        %6925 = vmatmul.bf16.gmra.mxu0 %v4497
        %v6926 = vpop.f32.mrf.mxu0
        %v6927 = vadd.f32 %v6833, %v6926
        %v6928 = vpop.f32.mrf.mxu0
        %v6929 = vadd.f32 %v6835, %v6928
        %6930 = vmatmul.bf16.gmra.mxu0 %v4500
        %v6931 = vpop.f32.mrf.mxu0
        %v6932 = vadd.f32 %v6838, %v6931
        %v6933 = vpop.f32.mrf.mxu0
        %v6934 = vadd.f32 %v6840, %v6933
        %6935 = vmatmul.bf16.gmra.mxu0 %v4503
        %v6936 = vpop.f32.mrf.mxu0
        %v6937 = vadd.f32 %v6843, %v6936
        %v6938 = vpop.f32.mrf.mxu0
        %v6939 = vadd.f32 %v6845, %v6938
        %6940 = vmatmul.bf16.gmra.mxu0 %v4506
        %v6941 = vpop.f32.mrf.mxu0
        %v6942 = vadd.f32 %v6848, %v6941
        %v6943 = vpop.f32.mrf.mxu0
        %v6944 = vadd.f32 %v6850, %v6943
        %6945 = vmatmul.bf16.gmra.mxu0 %v4509
        %v6946 = vpop.f32.mrf.mxu0
        %v6947 = vadd.f32 %v6853, %v6946
        %v6948 = vpop.f32.mrf.mxu0
        %v6949 = vadd.f32 %v6855, %v6948
        %6950 = vmatmul.bf16.gmra.mxu0 %v4512
        %v6951 = vpop.f32.mrf.mxu0
        %v6952 = vadd.f32 %v6858, %v6951
        %v6953 = vpop.f32.mrf.mxu0
        %v6954 = vadd.f32 %v6860, %v6953
        %6955 = vmatmul.bf16.gmra.mxu0 %v4515
        %v6956 = vpop.f32.mrf.mxu0
        %v6957 = vadd.f32 %v6863, %v6956
        %v6958 = vpop.f32.mrf.mxu0
        %v6959 = vadd.f32 %v6865, %v6958
        %6960 = vmatmul.bf16.gmra.mxu0 %v4518
        %v6961 = vpop.f32.mrf.mxu0
        %v6962 = vadd.f32 %v6868, %v6961
        %v6963 = vpop.f32.mrf.mxu0
        %v6964 = vadd.f32 %v6870, %v6963
        %6965 = vmatmul.bf16.gmra.mxu0 %v4521
        %v6966 = vpop.f32.mrf.mxu0
        %v6967 = vadd.f32 %v6873, %v6966
        %v6968 = vpop.f32.mrf.mxu0
        %v6969 = vadd.f32 %v6875, %v6968
        %6970 = vmatmul.bf16.gmra.mxu0 %v4524
        %v6971 = vpop.f32.mrf.mxu0
        %v6972 = vadd.f32 %v6878, %v6971
        %v6973 = vpop.f32.mrf.mxu0
        %v6974 = vadd.f32 %v6880, %v6973
        %6975 = vmatmul.bf16.gmra.mxu0 %v4527
        %v6976 = vpop.f32.mrf.mxu0
        %v6977 = vadd.f32 %v6883, %v6976
        %v6978 = vpop.f32.mrf.mxu0
        %v6979 = vadd.f32 %v6885, %v6978
        %6980 = vmatmul.bf16.gmra.mxu0 %v4530
        %v6981 = vpop.f32.mrf.mxu0
        %v6982 = vadd.f32 %v6888, %v6981
        %v6983 = vpop.f32.mrf.mxu0
        %v6984 = vadd.f32 %v6890, %v6983
        %6985 = vmatmul.bf16.gmra.mxu0 %v4533
        %v6986 = vpop.f32.mrf.mxu0
        %v6987 = vadd.f32 %v6893, %v6986
        %v6988 = vpop.f32.mrf.mxu0
        %v6989 = vadd.f32 %v6895, %v6988
        %6990 = vmatmul.bf16.gmra.mxu0 %v4536
        %v6991 = vpop.f32.mrf.mxu0
        %v6992 = vadd.f32 %v6898, %v6991
        %v6993 = vpop.f32.mrf.mxu0
        %v6994 = vadd.f32 %v6900, %v6993
        %6995 = vmatmul.bf16.gmra.mxu0 %v4539
        %v6996 = vpop.f32.mrf.mxu0
        %v6997 = vadd.f32 %v6903, %v6996
        %v6998 = vpop.f32.mrf.mxu0
        %v6999 = vadd.f32 %v6905, %v6998
        %7000 = vmatmul.bf16.gmra.mxu0 %v4542
        %v7001 = vpop.f32.mrf.mxu0
        %v7002 = vadd.f32 %v6908, %v7001
        %v7003 = vpop.f32.mrf.mxu0
        %v7004 = vadd.f32 %v6910, %v7003
        %7005 = vdwg.mxu0
        %7006 = vmatpush.bf16.msra.mxu0 %v5263
        %7007 = vmatpush.bf16.msra.mxu0 %v5257
        %7008 = vmatpush.bf16.msra.mxu0 %v5251
        %7009 = vmatpush.bf16.msra.mxu0 %v5245
        %7010 = vmatpush.bf16.msra.mxu0 %v5239
        %7011 = vmatpush.bf16.msra.mxu0 %v5233
        %7012 = vmatpush.bf16.msra.mxu0 %v5227
        %7013 = vmatpush.bf16.msra.mxu0 %v5221
        %7014 = vmatmul.bf16.gmra.mxu0 %v4495
        %v7015 = vpop.f32.mrf.mxu0
        %v7016 = vadd.f32 %v6922, %v7015
        %v7017 = vpop.f32.mrf.mxu0
        %v7018 = vadd.f32 %v6924, %v7017
        %7019 = vmatmul.bf16.gmra.mxu0 %v4498
        %v7020 = vpop.f32.mrf.mxu0
        %v7021 = vadd.f32 %v6927, %v7020
        %v7022 = vpop.f32.mrf.mxu0
        %v7023 = vadd.f32 %v6929, %v7022
        %7024 = vmatmul.bf16.gmra.mxu0 %v4501
        %v7025 = vpop.f32.mrf.mxu0
        %v7026 = vadd.f32 %v6932, %v7025
        %v7027 = vpop.f32.mrf.mxu0
        %v7028 = vadd.f32 %v6934, %v7027
        %7029 = vmatmul.bf16.gmra.mxu0 %v4504
        %v7030 = vpop.f32.mrf.mxu0
        %v7031 = vadd.f32 %v6937, %v7030
        %v7032 = vpop.f32.mrf.mxu0
        %v7033 = vadd.f32 %v6939, %v7032
        %7034 = vmatmul.bf16.gmra.mxu0 %v4507
        %v7035 = vpop.f32.mrf.mxu0
        %v7036 = vadd.f32 %v6942, %v7035
        %v7037 = vpop.f32.mrf.mxu0
        %v7038 = vadd.f32 %v6944, %v7037
        %7039 = vmatmul.bf16.gmra.mxu0 %v4510
        %v7040 = vpop.f32.mrf.mxu0
        %v7041 = vadd.f32 %v6947, %v7040
        %v7042 = vpop.f32.mrf.mxu0
        %v7043 = vadd.f32 %v6949, %v7042
        %7044 = vmatmul.bf16.gmra.mxu0 %v4513
        %v7045 = vpop.f32.mrf.mxu0
        %v7046 = vadd.f32 %v6952, %v7045
        %v7047 = vpop.f32.mrf.mxu0
        %v7048 = vadd.f32 %v6954, %v7047
        %7049 = vmatmul.bf16.gmra.mxu0 %v4516
        %v7050 = vpop.f32.mrf.mxu0
        %v7051 = vadd.f32 %v6957, %v7050
        %v7052 = vpop.f32.mrf.mxu0
        %v7053 = vadd.f32 %v6959, %v7052
        %7054 = vmatmul.bf16.gmra.mxu0 %v4519
        %v7055 = vpop.f32.mrf.mxu0
        %v7056 = vadd.f32 %v6962, %v7055
        %v7057 = vpop.f32.mrf.mxu0
        %v7058 = vadd.f32 %v6964, %v7057
        %7059 = vmatmul.bf16.gmra.mxu0 %v4522
        %v7060 = vpop.f32.mrf.mxu0
        %v7061 = vadd.f32 %v6967, %v7060
        %v7062 = vpop.f32.mrf.mxu0
        %v7063 = vadd.f32 %v6969, %v7062
        %7064 = vmatmul.bf16.gmra.mxu0 %v4525
        %v7065 = vpop.f32.mrf.mxu0
        %v7066 = vadd.f32 %v6972, %v7065
        %v7067 = vpop.f32.mrf.mxu0
        %v7068 = vadd.f32 %v6974, %v7067
        %7069 = vmatmul.bf16.gmra.mxu0 %v4528
        %v7070 = vpop.f32.mrf.mxu0
        %v7071 = vadd.f32 %v6977, %v7070
        %v7072 = vpop.f32.mrf.mxu0
        %v7073 = vadd.f32 %v6979, %v7072
        %7074 = vmatmul.bf16.gmra.mxu0 %v4531
        %v7075 = vpop.f32.mrf.mxu0
        %v7076 = vadd.f32 %v6982, %v7075
        %v7077 = vpop.f32.mrf.mxu0
        %v7078 = vadd.f32 %v6984, %v7077
        %7079 = vmatmul.bf16.gmra.mxu0 %v4534
        %v7080 = vpop.f32.mrf.mxu0
        %v7081 = vadd.f32 %v6987, %v7080
        %v7082 = vpop.f32.mrf.mxu0
        %v7083 = vadd.f32 %v6989, %v7082
        %7084 = vmatmul.bf16.gmra.mxu0 %v4537
        %v7085 = vpop.f32.mrf.mxu0
        %v7086 = vadd.f32 %v6992, %v7085
        %v7087 = vpop.f32.mrf.mxu0
        %v7088 = vadd.f32 %v6994, %v7087
        %7089 = vmatmul.bf16.gmra.mxu0 %v4540
        %v7090 = vpop.f32.mrf.mxu0
        %v7091 = vadd.f32 %v6997, %v7090
        %v7092 = vpop.f32.mrf.mxu0
        %v7093 = vadd.f32 %v6999, %v7092
        %7094 = vmatmul.bf16.gmra.mxu0 %v4543
        %v7095 = vpop.f32.mrf.mxu0
        %v7096 = vadd.f32 %v7002, %v7095
        %v7097 = vpop.f32.mrf.mxu0
        %v7098 = vadd.f32 %v7004, %v7097
        %7099 = vdwg.mxu0
        %v7100 = vld [vmem:[#allocation15] sm:$0xff]
        %v7101 = vld [vmem:[#allocation15 + $0x8] sm:$0xff]
        %v7102 = vld [vmem:[#allocation15 + $0x10] sm:$0xff]
        %v7103 = vld [vmem:[#allocation15 + $0x18] sm:$0xf]
        %v7104 = vld [vmem:[#allocation15 + $0x1c] sm:$0xff]
        %v7105 = vld [vmem:[#allocation15 + $0x24] sm:$0xff]
        %v7106 = vld [vmem:[#allocation15 + $0x2c] sm:$0xff]
        %v7107 = vld [vmem:[#allocation15 + $0x34] sm:$0xf]
        %v7108 = vld [vmem:[#allocation15 + $0x38] sm:$0xff]
        %v7109 = vld [vmem:[#allocation15 + $0x40] sm:$0xff]
        %v7110 = vld [vmem:[#allocation15 + $0x48] sm:$0xff]
        %v7111 = vld [vmem:[#allocation15 + $0x50] sm:$0xf]
        %v7112 = vld [vmem:[#allocation15 + $0x54] sm:$0xff]
        %v7113 = vld [vmem:[#allocation15 + $0x5c] sm:$0xff]
        %v7114 = vld [vmem:[#allocation15 + $0x64] sm:$0xff]
        %v7115 = vld [vmem:[#allocation15 + $0x6c] sm:$0xf]
        %v7116 = vld [vmem:[#allocation15 + $0x70] sm:$0xff]
        %v7117 = vld [vmem:[#allocation15 + $0x78] sm:$0xff]
        %v7118 = vld [vmem:[#allocation15 + $0x80] sm:$0xff]
        %v7119 = vld [vmem:[#allocation15 + $0x88] sm:$0xf]
        %v7120 = vld [vmem:[#allocation15 + $0x8c] sm:$0xff]
        %v7121 = vld [vmem:[#allocation15 + $0x94] sm:$0xff]
        %v7122 = vld [vmem:[#allocation15 + $0x9c] sm:$0xff]
        %v7123 = vld [vmem:[#allocation15 + $0xa4] sm:$0xf]
        %v7124 = vld [vmem:[#allocation15 + $0xa8] sm:$0xff]
        %v7125 = vld [vmem:[#allocation15 + $0xb0] sm:$0xff]
        %v7126 = vld [vmem:[#allocation15 + $0xb8] sm:$0xff]
        %v7127 = vld [vmem:[#allocation15 + $0xc0] sm:$0xf]
        %v7128 = vld [vmem:[#allocation15 + $0xc4] sm:$0xff]
        %v7129 = vld [vmem:[#allocation15 + $0xcc] sm:$0xff]
        %v7130 = vld [vmem:[#allocation15 + $0xd4] sm:$0xff]
        %v7131 = vld [vmem:[#allocation15 + $0xdc] sm:$0xf]
        %v7132 = vld [vmem:[#allocation15 + $0xe0] sm:$0xff]
        %v7133 = vld [vmem:[#allocation15 + $0xe8] sm:$0xff]
        %v7134 = vld [vmem:[#allocation15 + $0xf0] sm:$0xff]
        %v7135 = vld [vmem:[#allocation15 + $0xf8] sm:$0xf]
        %v7136 = vld [vmem:[#allocation15 + $0xfc] sm:$0xff]
        %v7137 = vld [vmem:[#allocation15 + $0x104] sm:$0xff]
        %v7138 = vld [vmem:[#allocation15 + $0x10c] sm:$0xff]
        %v7139 = vld [vmem:[#allocation15 + $0x114] sm:$0xf]
        %v7140 = vld [vmem:[#allocation15 + $0x118] sm:$0xff]
        %v7141 = vld [vmem:[#allocation15 + $0x120] sm:$0xff]
        %v7142 = vld [vmem:[#allocation15 + $0x128] sm:$0xff]
        %v7143 = vld [vmem:[#allocation15 + $0x130] sm:$0xf]
        %v7144 = vld [vmem:[#allocation15 + $0x134] sm:$0xff]
        %v7145 = vld [vmem:[#allocation15 + $0x13c] sm:$0xff]
        %v7146 = vld [vmem:[#allocation15 + $0x144] sm:$0xff]
        %v7147 = vld [vmem:[#allocation15 + $0x14c] sm:$0xf]
        %v7148 = vld [vmem:[#allocation15 + $0x150] sm:$0xff]
        %v7149 = vld [vmem:[#allocation15 + $0x158] sm:$0xff]
        %v7150 = vld [vmem:[#allocation15 + $0x160] sm:$0xff]
        %v7151 = vld [vmem:[#allocation15 + $0x168] sm:$0xf]
        %v7152 = vld [vmem:[#allocation15 + $0x16c] sm:$0xff]
        %v7153 = vld [vmem:[#allocation15 + $0x174] sm:$0xff]
        %v7154 = vld [vmem:[#allocation15 + $0x17c] sm:$0xff]
        %v7155 = vld [vmem:[#allocation15 + $0x184] sm:$0xf]
        %v7156 = vld [vmem:[#allocation15 + $0x188] sm:$0xff]
        %v7157 = vld [vmem:[#allocation15 + $0x190] sm:$0xff]
        %v7158 = vld [vmem:[#allocation15 + $0x198] sm:$0xff]
        %v7159 = vld [vmem:[#allocation15 + $0x1a0] sm:$0xf]
        %v7160 = vld [vmem:[#allocation15 + $0x1a4] sm:$0xff]
        %v7161 = vld [vmem:[#allocation15 + $0x1ac] sm:$0xff]
        %v7162 = vld [vmem:[#allocation15 + $0x1b4] sm:$0xff]
        %v7163 = vld [vmem:[#allocation15 + $0x1bc] sm:$0xf]
        %v7164 = vld [vmem:[#allocation15 + $0x1c0] sm:$0xff]
        %v7165 = vld [vmem:[#allocation15 + $0x1c8] sm:$0xff]
        %v7166 = vld [vmem:[#allocation15 + $0x1d0] sm:$0xff]
        %v7167 = vld [vmem:[#allocation15 + $0x1d8] sm:$0xf]
        %v7168 = vld [vmem:[#allocation15 + $0x1dc] sm:$0xff]
        %v7169 = vld [vmem:[#allocation15 + $0x1e4] sm:$0xff]
        %v7170 = vld [vmem:[#allocation15 + $0x1ec] sm:$0xff]
        %v7171 = vld [vmem:[#allocation15 + $0x1f4] sm:$0xf]
        %v7172 = vld [vmem:[#allocation15 + $0x1f8] sm:$0xff]
        %v7173 = vld [vmem:[#allocation15 + $0x200] sm:$0xff]
        %v7174 = vld [vmem:[#allocation15 + $0x208] sm:$0xff]
        %v7175 = vld [vmem:[#allocation15 + $0x210] sm:$0xf]
        %v7176 = vld [vmem:[#allocation15 + $0x214] sm:$0xff]
        %v7177 = vld [vmem:[#allocation15 + $0x21c] sm:$0xff]
        %v7178 = vld [vmem:[#allocation15 + $0x224] sm:$0xff]
        %v7179 = vld [vmem:[#allocation15 + $0x22c] sm:$0xf]
        %v7180 = vld [vmem:[#allocation15 + $0x230] sm:$0xff]
        %v7181 = vld [vmem:[#allocation15 + $0x238] sm:$0xff]
        %v7182 = vld [vmem:[#allocation15 + $0x240] sm:$0xff]
        %v7183 = vld [vmem:[#allocation15 + $0x248] sm:$0xf]
        %v7184 = vld [vmem:[#allocation15 + $0x24c] sm:$0xff]
        %v7185 = vld [vmem:[#allocation15 + $0x254] sm:$0xff]
        %v7186 = vld [vmem:[#allocation15 + $0x25c] sm:$0xff]
        %v7187 = vld [vmem:[#allocation15 + $0x264] sm:$0xf]
        %v7188 = vld [vmem:[#allocation15 + $0x268] sm:$0xff]
        %v7189 = vld [vmem:[#allocation15 + $0x270] sm:$0xff]
        %v7190 = vld [vmem:[#allocation15 + $0x278] sm:$0xff]
        %v7191 = vld [vmem:[#allocation15 + $0x280] sm:$0xf]
        %v7192 = vld [vmem:[#allocation15 + $0x284] sm:$0xff]
        %v7193 = vld [vmem:[#allocation15 + $0x28c] sm:$0xff]
        %v7194 = vld [vmem:[#allocation15 + $0x294] sm:$0xff]
        %v7195 = vld [vmem:[#allocation15 + $0x29c] sm:$0xf]
        %v7196 = vld [vmem:[#allocation15 + $0x2a0] sm:$0xff]
        %v7197 = vld [vmem:[#allocation15 + $0x2a8] sm:$0xff]
        %v7198 = vld [vmem:[#allocation15 + $0x2b0] sm:$0xff]
        %v7199 = vld [vmem:[#allocation15 + $0x2b8] sm:$0xf]
        %v7200 = vld [vmem:[#allocation15 + $0x2bc] sm:$0xff]
        %v7201 = vld [vmem:[#allocation15 + $0x2c4] sm:$0xff]
        %v7202 = vld [vmem:[#allocation15 + $0x2cc] sm:$0xff]
        %v7203 = vld [vmem:[#allocation15 + $0x2d4] sm:$0xf]
        %v7204 = vld [vmem:[#allocation15 + $0x2d8] sm:$0xff]
        %v7205 = vld [vmem:[#allocation15 + $0x2e0] sm:$0xff]
        %v7206 = vld [vmem:[#allocation15 + $0x2e8] sm:$0xff]
        %v7207 = vld [vmem:[#allocation15 + $0x2f0] sm:$0xf]
        %v7208 = vld [vmem:[#allocation15 + $0x2f4] sm:$0xff]
        %v7209 = vld [vmem:[#allocation15 + $0x2fc] sm:$0xff]
        %v7210 = vld [vmem:[#allocation15 + $0x304] sm:$0xff]
        %v7211 = vld [vmem:[#allocation15 + $0x30c] sm:$0xf]
        %v7212 = vld [vmem:[#allocation15 + $0x310] sm:$0xff]
        %v7213 = vld [vmem:[#allocation15 + $0x318] sm:$0xff]
        %v7214 = vld [vmem:[#allocation15 + $0x320] sm:$0xff]
        %v7215 = vld [vmem:[#allocation15 + $0x328] sm:$0xf]
        %v7216 = vld [vmem:[#allocation15 + $0x32c] sm:$0xff]
        %v7217 = vld [vmem:[#allocation15 + $0x334] sm:$0xff]
        %v7218 = vld [vmem:[#allocation15 + $0x33c] sm:$0xff]
        %v7219 = vld [vmem:[#allocation15 + $0x344] sm:$0xf]
        %v7220 = vld [vmem:[#allocation15 + $0x348] sm:$0xff]
        %v7221 = vld [vmem:[#allocation15 + $0x350] sm:$0xff]
        %v7222 = vld [vmem:[#allocation15 + $0x358] sm:$0xff]
        %v7223 = vld [vmem:[#allocation15 + $0x360] sm:$0xf]
        %v7224 = vld [vmem:[#allocation15 + $0x364] sm:$0xff]
        %v7225 = vld [vmem:[#allocation15 + $0x36c] sm:$0xff]
        %v7226 = vld [vmem:[#allocation15 + $0x374] sm:$0xff]
        %v7227 = vld [vmem:[#allocation15 + $0x37c] sm:$0xf]
        %v7228 = vld [vmem:[#allocation15 + $0x380] sm:$0xff]
        %v7229 = vld [vmem:[#allocation15 + $0x388] sm:$0xff]
        %v7230 = vld [vmem:[#allocation15 + $0x390] sm:$0xff]
        %v7231 = vld [vmem:[#allocation15 + $0x398] sm:$0xf]
        %v7232 = vld [vmem:[#allocation15 + $0x39c] sm:$0xff]
        %v7233 = vld [vmem:[#allocation15 + $0x3a4] sm:$0xff]
        %v7234 = vld [vmem:[#allocation15 + $0x3ac] sm:$0xff]
        %v7235 = vld [vmem:[#allocation15 + $0x3b4] sm:$0xf]
        %v7236 = vpack.c.bf16 %v5608, %v5606
        %v7237 = vpack.c.bf16 %v5890, %v5888
        %v7238 = vpack.c.bf16 %v5613, %v5611
        %v7239 = vpack.c.bf16 %v5895, %v5893
        %v7240 = vpack.c.bf16 %v5618, %v5616
        %v7241 = vpack.c.bf16 %v5900, %v5898
        %v7242 = vpack.c.bf16 %v5623, %v5621
        %v7243 = vpack.c.bf16 %v5905, %v5903
        %v7244 = vpack.c.bf16 %v5628, %v5626
        %v7245 = vpack.c.bf16 %v5910, %v5908
        %v7246 = vpack.c.bf16 %v5633, %v5631
        %v7247 = vpack.c.bf16 %v5915, %v5913
        %v7248 = vpack.c.bf16 %v5638, %v5636
        %v7249 = vpack.c.bf16 %v5920, %v5918
        %v7250 = vpack.c.bf16 %v5643, %v5641
        %v7251 = vpack.c.bf16 %v5925, %v5923
        %v7252 = vpack.c.bf16 %v5648, %v5646
        %v7253 = vpack.c.bf16 %v5930, %v5928
        %v7254 = vpack.c.bf16 %v5653, %v5651
        %v7255 = vpack.c.bf16 %v5935, %v5933
        %v7256 = vpack.c.bf16 %v5658, %v5656
        %v7257 = vpack.c.bf16 %v5940, %v5938
        %v7258 = vpack.c.bf16 %v5663, %v5661
        %v7259 = vpack.c.bf16 %v5945, %v5943
        %v7260 = vpack.c.bf16 %v5668, %v5666
        %v7261 = vpack.c.bf16 %v5950, %v5948
        %v7262 = vpack.c.bf16 %v5673, %v5671
        %v7263 = vpack.c.bf16 %v5955, %v5953
        %v7264 = vpack.c.bf16 %v5678, %v5676
        %v7265 = vpack.c.bf16 %v5960, %v5958
        %v7266 = vpack.c.bf16 %v5683, %v5681
        %v7267 = vpack.c.bf16 %v5965, %v5963
        %v7268 = vpack.c.bf16 %v5688, %v5686
        %v7269 = vpack.c.bf16 %v5970, %v5968
        %v7270 = vpack.c.bf16 %v6172, %v6170
        %v7271 = vpack.c.bf16 %v6454, %v6452
        %v7272 = vpack.c.bf16 %v6177, %v6175
        %v7273 = vpack.c.bf16 %v6459, %v6457
        %v7274 = vpack.c.bf16 %v6182, %v6180
        %v7275 = vpack.c.bf16 %v6464, %v6462
        %v7276 = vpack.c.bf16 %v6187, %v6185
        %v7277 = vpack.c.bf16 %v6469, %v6467
        %v7278 = vpack.c.bf16 %v6192, %v6190
        %v7279 = vpack.c.bf16 %v6474, %v6472
        %v7280 = vpack.c.bf16 %v6197, %v6195
        %v7281 = vpack.c.bf16 %v6479, %v6477
        %v7282 = vpack.c.bf16 %v6202, %v6200
        %v7283 = vpack.c.bf16 %v6484, %v6482
        %v7284 = vpack.c.bf16 %v6207, %v6205
        %v7285 = vpack.c.bf16 %v6489, %v6487
        %v7286 = vpack.c.bf16 %v6212, %v6210
        %v7287 = vpack.c.bf16 %v6494, %v6492
        %v7288 = vpack.c.bf16 %v6217, %v6215
        %v7289 = vpack.c.bf16 %v6499, %v6497
        %v7290 = vpack.c.bf16 %v6222, %v6220
        %v7291 = vpack.c.bf16 %v6504, %v6502
        %v7292 = vpack.c.bf16 %v6227, %v6225
        %v7293 = vpack.c.bf16 %v6509, %v6507
        %v7294 = vpack.c.bf16 %v6232, %v6230
        %v7295 = vpack.c.bf16 %v6514, %v6512
        %v7296 = vpack.c.bf16 %v6237, %v6235
        %v7297 = vpack.c.bf16 %v6519, %v6517
        %v7298 = vpack.c.bf16 %v6242, %v6240
        %v7299 = vpack.c.bf16 %v6524, %v6522
        %v7300 = vpack.c.bf16 %v6247, %v6245
        %v7301 = vpack.c.bf16 %v6529, %v6527
        %v7302 = vpack.c.bf16 %v6252, %v6250
        %v7303 = vpack.c.bf16 %v6534, %v6532
        %v7304 = vpack.c.bf16 %v6736, %v6734
        %v7305 = vpack.c.bf16 %v7018, %v7016
        %v7306 = vpack.c.bf16 %v6741, %v6739
        %v7307 = vpack.c.bf16 %v7023, %v7021
        %v7308 = vpack.c.bf16 %v6746, %v6744
        %v7309 = vpack.c.bf16 %v7028, %v7026
        %v7310 = vpack.c.bf16 %v6751, %v6749
        %v7311 = vpack.c.bf16 %v7033, %v7031
        %v7312 = vpack.c.bf16 %v6756, %v6754
        %v7313 = vpack.c.bf16 %v7038, %v7036
        %v7314 = vpack.c.bf16 %v6761, %v6759
        %v7315 = vpack.c.bf16 %v7043, %v7041
        %v7316 = vpack.c.bf16 %v6766, %v6764
        %v7317 = vpack.c.bf16 %v7048, %v7046
        %v7318 = vpack.c.bf16 %v6771, %v6769
        %v7319 = vpack.c.bf16 %v7053, %v7051
        %v7320 = vpack.c.bf16 %v6776, %v6774
        %v7321 = vpack.c.bf16 %v7058, %v7056
        %v7322 = vpack.c.bf16 %v6781, %v6779
        %v7323 = vpack.c.bf16 %v7063, %v7061
        %v7324 = vpack.c.bf16 %v6786, %v6784
        %v7325 = vpack.c.bf16 %v7068, %v7066
        %v7326 = vpack.c.bf16 %v6791, %v6789
        %v7327 = vpack.c.bf16 %v7073, %v7071
        %v7328 = vpack.c.bf16 %v6796, %v6794
        %v7329 = vpack.c.bf16 %v7078, %v7076
        %v7330 = vpack.c.bf16 %v6801, %v6799
        %v7331 = vpack.c.bf16 %v7083, %v7081
        %v7332 = vpack.c.bf16 %v6806, %v6804
        %v7333 = vpack.c.bf16 %v7088, %v7086
        %v7334 = vpack.c.bf16 %v6811, %v6809
        %v7335 = vpack.c.bf16 %v7093, %v7091
        %v7336 = vpack.c.bf16 %v6816, %v6814
        %v7337 = vpack.c.bf16 %v7098, %v7096
        %v7338 = vld [vmem:[%s11] sm:$0x3]
        %v7340 = vperm.slane %v7338, 0
        %v7341 = vperm.slane %v7338, 1
        %v7480 = vunpack.c.l.b16 %v7100
        %v7481 = vunpack.c.h.b16 %v7100
        %v7482 = vunpack.c.l.b16 %v7101
        %v7483 = vunpack.c.h.b16 %v7101
        %v7484 = vunpack.c.l.b16 %v7102
        %v7485 = vunpack.c.h.b16 %v7102
        %v7486 = vunpack.c.l.b16 %v7103
        %v7487 = vunpack.c.l.b16 %v7104
        %v7488 = vunpack.c.h.b16 %v7104
        %v7489 = vunpack.c.l.b16 %v7105
        %v7490 = vunpack.c.h.b16 %v7105
        %v7491 = vunpack.c.l.b16 %v7106
        %v7492 = vunpack.c.h.b16 %v7106
        %v7493 = vunpack.c.l.b16 %v7107
        %v7494 = vunpack.c.l.b16 %v7108
        %v7495 = vunpack.c.h.b16 %v7108
        %v7496 = vunpack.c.l.b16 %v7109
        %v7497 = vunpack.c.h.b16 %v7109
        %v7498 = vunpack.c.l.b16 %v7110
        %v7499 = vunpack.c.h.b16 %v7110
        %v7500 = vunpack.c.l.b16 %v7111
        %v7501 = vunpack.c.l.b16 %v7112
        %v7502 = vunpack.c.h.b16 %v7112
        %v7503 = vunpack.c.l.b16 %v7113
        %v7504 = vunpack.c.h.b16 %v7113
        %v7505 = vunpack.c.l.b16 %v7114
        %v7506 = vunpack.c.h.b16 %v7114
        %v7507 = vunpack.c.l.b16 %v7115
        %v7508 = vunpack.c.l.b16 %v7116
        %v7509 = vunpack.c.h.b16 %v7116
        %v7510 = vunpack.c.l.b16 %v7117
        %v7511 = vunpack.c.h.b16 %v7117
        %v7512 = vunpack.c.l.b16 %v7118
        %v7513 = vunpack.c.h.b16 %v7118
        %v7514 = vunpack.c.l.b16 %v7119
        %v7515 = vunpack.c.l.b16 %v7120
        %v7516 = vunpack.c.h.b16 %v7120
        %v7517 = vunpack.c.l.b16 %v7121
        %v7518 = vunpack.c.h.b16 %v7121
        %v7519 = vunpack.c.l.b16 %v7122
        %v7520 = vunpack.c.h.b16 %v7122
        %v7521 = vunpack.c.l.b16 %v7123
        %v7522 = vunpack.c.l.b16 %v7124
        %v7523 = vunpack.c.h.b16 %v7124
        %v7524 = vunpack.c.l.b16 %v7125
        %v7525 = vunpack.c.h.b16 %v7125
        %v7526 = vunpack.c.l.b16 %v7126
        %v7527 = vunpack.c.h.b16 %v7126
        %v7528 = vunpack.c.l.b16 %v7127
        %v7529 = vunpack.c.l.b16 %v7128
        %v7530 = vunpack.c.h.b16 %v7128
        %v7531 = vunpack.c.l.b16 %v7129
        %v7532 = vunpack.c.h.b16 %v7129
        %v7533 = vunpack.c.l.b16 %v7130
        %v7534 = vunpack.c.h.b16 %v7130
        %v7535 = vunpack.c.l.b16 %v7131
        %v7536 = vunpack.c.l.b16 %v7132
        %v7537 = vunpack.c.h.b16 %v7132
        %v7538 = vunpack.c.l.b16 %v7133
        %v7539 = vunpack.c.h.b16 %v7133
        %v7540 = vunpack.c.l.b16 %v7134
        %v7541 = vunpack.c.h.b16 %v7134
        %v7542 = vunpack.c.l.b16 %v7135
        %v7543 = vunpack.c.l.b16 %v7136
        %v7544 = vunpack.c.h.b16 %v7136
        %v7545 = vunpack.c.l.b16 %v7137
        %v7546 = vunpack.c.h.b16 %v7137
        %v7547 = vunpack.c.l.b16 %v7138
        %v7548 = vunpack.c.h.b16 %v7138
        %v7549 = vunpack.c.l.b16 %v7139
        %v7550 = vunpack.c.l.b16 %v7140
        %v7551 = vunpack.c.h.b16 %v7140
        %v7552 = vunpack.c.l.b16 %v7141
        %v7553 = vunpack.c.h.b16 %v7141
        %v7554 = vunpack.c.l.b16 %v7142
        %v7555 = vunpack.c.h.b16 %v7142
        %v7556 = vunpack.c.l.b16 %v7143
        %v7557 = vunpack.c.l.b16 %v7144
        %v7558 = vunpack.c.h.b16 %v7144
        %v7559 = vunpack.c.l.b16 %v7145
        %v7560 = vunpack.c.h.b16 %v7145
        %v7561 = vunpack.c.l.b16 %v7146
        %v7562 = vunpack.c.h.b16 %v7146
        %v7563 = vunpack.c.l.b16 %v7147
        %v7564 = vunpack.c.l.b16 %v7148
        %v7565 = vunpack.c.h.b16 %v7148
        %v7566 = vunpack.c.l.b16 %v7149
        %v7567 = vunpack.c.h.b16 %v7149
        %v7568 = vunpack.c.l.b16 %v7150
        %v7569 = vunpack.c.h.b16 %v7150
        %v7570 = vunpack.c.l.b16 %v7151
        %v7571 = vunpack.c.l.b16 %v7152
        %v7572 = vunpack.c.h.b16 %v7152
        %v7573 = vunpack.c.l.b16 %v7153
        %v7574 = vunpack.c.h.b16 %v7153
        %v7575 = vunpack.c.l.b16 %v7154
        %v7576 = vunpack.c.h.b16 %v7154
        %v7577 = vunpack.c.l.b16 %v7155
        %v7578 = vunpack.c.l.b16 %v7156
        %v7579 = vunpack.c.h.b16 %v7156
        %v7580 = vunpack.c.l.b16 %v7157
        %v7581 = vunpack.c.h.b16 %v7157
        %v7582 = vunpack.c.l.b16 %v7158
        %v7583 = vunpack.c.h.b16 %v7158
        %v7584 = vunpack.c.l.b16 %v7159
        %v7585 = vunpack.c.l.b16 %v7160
        %v7586 = vunpack.c.h.b16 %v7160
        %v7587 = vunpack.c.l.b16 %v7161
        %v7588 = vunpack.c.h.b16 %v7161
        %v7589 = vunpack.c.l.b16 %v7162
        %v7590 = vunpack.c.h.b16 %v7162
        %v7591 = vunpack.c.l.b16 %v7163
        %v7592 = vunpack.c.l.b16 %v7164
        %v7593 = vunpack.c.h.b16 %v7164
        %v7594 = vunpack.c.l.b16 %v7165
        %v7595 = vunpack.c.h.b16 %v7165
        %v7596 = vunpack.c.l.b16 %v7166
        %v7597 = vunpack.c.h.b16 %v7166
        %v7598 = vunpack.c.l.b16 %v7167
        %v7599 = vunpack.c.l.b16 %v7168
        %v7600 = vunpack.c.h.b16 %v7168
        %v7601 = vunpack.c.l.b16 %v7169
        %v7602 = vunpack.c.h.b16 %v7169
        %v7603 = vunpack.c.l.b16 %v7170
        %v7604 = vunpack.c.h.b16 %v7170
        %v7605 = vunpack.c.l.b16 %v7171
        %v7606 = vunpack.c.l.b16 %v7172
        %v7607 = vunpack.c.h.b16 %v7172
        %v7608 = vunpack.c.l.b16 %v7173
        %v7609 = vunpack.c.h.b16 %v7173
        %v7610 = vunpack.c.l.b16 %v7174
        %v7611 = vunpack.c.h.b16 %v7174
        %v7612 = vunpack.c.l.b16 %v7175
        %v7613 = vunpack.c.l.b16 %v7176
        %v7614 = vunpack.c.h.b16 %v7176
        %v7615 = vunpack.c.l.b16 %v7177
        %v7616 = vunpack.c.h.b16 %v7177
        %v7617 = vunpack.c.l.b16 %v7178
        %v7618 = vunpack.c.h.b16 %v7178
        %v7619 = vunpack.c.l.b16 %v7179
        %v7620 = vunpack.c.l.b16 %v7180
        %v7621 = vunpack.c.h.b16 %v7180
        %v7622 = vunpack.c.l.b16 %v7181
        %v7623 = vunpack.c.h.b16 %v7181
        %v7624 = vunpack.c.l.b16 %v7182
        %v7625 = vunpack.c.h.b16 %v7182
        %v7626 = vunpack.c.l.b16 %v7183
        %v7627 = vunpack.c.l.b16 %v7184
        %v7628 = vunpack.c.h.b16 %v7184
        %v7629 = vunpack.c.l.b16 %v7185
        %v7630 = vunpack.c.h.b16 %v7185
        %v7631 = vunpack.c.l.b16 %v7186
        %v7632 = vunpack.c.h.b16 %v7186
        %v7633 = vunpack.c.l.b16 %v7187
        %v7634 = vunpack.c.l.b16 %v7188
        %v7635 = vunpack.c.h.b16 %v7188
        %v7636 = vunpack.c.l.b16 %v7189
        %v7637 = vunpack.c.h.b16 %v7189
        %v7638 = vunpack.c.l.b16 %v7190
        %v7639 = vunpack.c.h.b16 %v7190
        %v7640 = vunpack.c.l.b16 %v7191
        %v7641 = vunpack.c.l.b16 %v7192
        %v7642 = vunpack.c.h.b16 %v7192
        %v7643 = vunpack.c.l.b16 %v7193
        %v7644 = vunpack.c.h.b16 %v7193
        %v7645 = vunpack.c.l.b16 %v7194
        %v7646 = vunpack.c.h.b16 %v7194
        %v7647 = vunpack.c.l.b16 %v7195
        %v7648 = vunpack.c.l.b16 %v7196
        %v7649 = vunpack.c.h.b16 %v7196
        %v7650 = vunpack.c.l.b16 %v7197
        %v7651 = vunpack.c.h.b16 %v7197
        %v7652 = vunpack.c.l.b16 %v7198
        %v7653 = vunpack.c.h.b16 %v7198
        %v7654 = vunpack.c.l.b16 %v7199
        %v7655 = vunpack.c.l.b16 %v7200
        %v7656 = vunpack.c.h.b16 %v7200
        %v7657 = vunpack.c.l.b16 %v7201
        %v7658 = vunpack.c.h.b16 %v7201
        %v7659 = vunpack.c.l.b16 %v7202
        %v7660 = vunpack.c.h.b16 %v7202
        %v7661 = vunpack.c.l.b16 %v7203
        %v7662 = vunpack.c.l.b16 %v7204
        %v7663 = vunpack.c.h.b16 %v7204
        %v7664 = vunpack.c.l.b16 %v7205
        %v7665 = vunpack.c.h.b16 %v7205
        %v7666 = vunpack.c.l.b16 %v7206
        %v7667 = vunpack.c.h.b16 %v7206
        %v7668 = vunpack.c.l.b16 %v7207
        %v7669 = vunpack.c.l.b16 %v7208
        %v7670 = vunpack.c.h.b16 %v7208
        %v7671 = vunpack.c.l.b16 %v7209
        %v7672 = vunpack.c.h.b16 %v7209
        %v7673 = vunpack.c.l.b16 %v7210
        %v7674 = vunpack.c.h.b16 %v7210
        %v7675 = vunpack.c.l.b16 %v7211
        %v7676 = vunpack.c.l.b16 %v7212
        %v7677 = vunpack.c.h.b16 %v7212
        %v7678 = vunpack.c.l.b16 %v7213
        %v7679 = vunpack.c.h.b16 %v7213
        %v7680 = vunpack.c.l.b16 %v7214
        %v7681 = vunpack.c.h.b16 %v7214
        %v7682 = vunpack.c.l.b16 %v7215
        %v7683 = vunpack.c.l.b16 %v7216
        %v7684 = vunpack.c.h.b16 %v7216
        %v7685 = vunpack.c.l.b16 %v7217
        %v7686 = vunpack.c.h.b16 %v7217
        %v7687 = vunpack.c.l.b16 %v7218
        %v7688 = vunpack.c.h.b16 %v7218
        %v7689 = vunpack.c.l.b16 %v7219
        %v7690 = vunpack.c.l.b16 %v7220
        %v7691 = vunpack.c.h.b16 %v7220
        %v7692 = vunpack.c.l.b16 %v7221
        %v7693 = vunpack.c.h.b16 %v7221
        %v7694 = vunpack.c.l.b16 %v7222
        %v7695 = vunpack.c.h.b16 %v7222
        %v7696 = vunpack.c.l.b16 %v7223
        %v7697 = vunpack.c.l.b16 %v7224
        %v7698 = vunpack.c.h.b16 %v7224
        %v7699 = vunpack.c.l.b16 %v7225
        %v7700 = vunpack.c.h.b16 %v7225
        %v7701 = vunpack.c.l.b16 %v7226
        %v7702 = vunpack.c.h.b16 %v7226
        %v7703 = vunpack.c.l.b16 %v7227
        %v7704 = vunpack.c.l.b16 %v7228
        %v7705 = vunpack.c.h.b16 %v7228
        %v7706 = vunpack.c.l.b16 %v7229
        %v7707 = vunpack.c.h.b16 %v7229
        %v7708 = vunpack.c.l.b16 %v7230
        %v7709 = vunpack.c.h.b16 %v7230
        %v7710 = vunpack.c.l.b16 %v7231
        %v7711 = vunpack.c.l.b16 %v7232
        %v7712 = vunpack.c.h.b16 %v7232
        %v7713 = vunpack.c.l.b16 %v7233
        %v7714 = vunpack.c.h.b16 %v7233
        %v7715 = vunpack.c.l.b16 %v7234
        %v7716 = vunpack.c.h.b16 %v7234
        %v7717 = vunpack.c.l.b16 %v7235
        %v7718 = vpack.c.b16 %v7487, %v7480
        %v7719 = vpack.c.b16 %v7488, %v7481
        %v7720 = vpack.c.b16 %v7489, %v7482
        %v7721 = vpack.c.b16 %v7490, %v7483
        %v7722 = vpack.c.b16 %v7491, %v7484
        %v7723 = vpack.c.b16 %v7492, %v7485
        %v7724 = vpack.c.b16 %v7493, %v7486
        %v7725 = vpack.c.b16 %v7501, %v7494
        %v7726 = vpack.c.b16 %v7502, %v7495
        %v7727 = vpack.c.b16 %v7503, %v7496
        %v7728 = vpack.c.b16 %v7504, %v7497
        %v7729 = vpack.c.b16 %v7505, %v7498
        %v7730 = vpack.c.b16 %v7506, %v7499
        %v7731 = vpack.c.b16 %v7507, %v7500
        %v7732 = vpack.c.b16 %v7515, %v7508
        %v7733 = vpack.c.b16 %v7516, %v7509
        %v7734 = vpack.c.b16 %v7517, %v7510
        %v7735 = vpack.c.b16 %v7518, %v7511
        %v7736 = vpack.c.b16 %v7519, %v7512
        %v7737 = vpack.c.b16 %v7520, %v7513
        %v7738 = vpack.c.b16 %v7521, %v7514
        %v7739 = vpack.c.b16 %v7529, %v7522
        %v7740 = vpack.c.b16 %v7530, %v7523
        %v7741 = vpack.c.b16 %v7531, %v7524
        %v7742 = vpack.c.b16 %v7532, %v7525
        %v7743 = vpack.c.b16 %v7533, %v7526
        %v7744 = vpack.c.b16 %v7534, %v7527
        %v7745 = vpack.c.b16 %v7535, %v7528
        %v7746 = vpack.c.b16 %v7543, %v7536
        %v7747 = vpack.c.b16 %v7544, %v7537
        %v7748 = vpack.c.b16 %v7545, %v7538
        %v7749 = vpack.c.b16 %v7546, %v7539
        %v7750 = vpack.c.b16 %v7547, %v7540
        %v7751 = vpack.c.b16 %v7548, %v7541
        %v7752 = vpack.c.b16 %v7549, %v7542
        %v7753 = vpack.c.b16 %v7557, %v7550
        %v7754 = vpack.c.b16 %v7558, %v7551
        %v7755 = vpack.c.b16 %v7559, %v7552
        %v7756 = vpack.c.b16 %v7560, %v7553
        %v7757 = vpack.c.b16 %v7561, %v7554
        %v7758 = vpack.c.b16 %v7562, %v7555
        %v7759 = vpack.c.b16 %v7563, %v7556
        %v7760 = vpack.c.b16 %v7571, %v7564
        %v7761 = vpack.c.b16 %v7572, %v7565
        %v7762 = vpack.c.b16 %v7573, %v7566
        %v7763 = vpack.c.b16 %v7574, %v7567
        %v7764 = vpack.c.b16 %v7575, %v7568
        %v7765 = vpack.c.b16 %v7576, %v7569
        %v7766 = vpack.c.b16 %v7577, %v7570
        %v7767 = vpack.c.b16 %v7585, %v7578
        %v7768 = vpack.c.b16 %v7586, %v7579
        %v7769 = vpack.c.b16 %v7587, %v7580
        %v7770 = vpack.c.b16 %v7588, %v7581
        %v7771 = vpack.c.b16 %v7589, %v7582
        %v7772 = vpack.c.b16 %v7590, %v7583
        %v7773 = vpack.c.b16 %v7591, %v7584
        %v7774 = vpack.c.b16 %v7599, %v7592
        %v7775 = vpack.c.b16 %v7600, %v7593
        %v7776 = vpack.c.b16 %v7601, %v7594
        %v7777 = vpack.c.b16 %v7602, %v7595
        %v7778 = vpack.c.b16 %v7603, %v7596
        %v7779 = vpack.c.b16 %v7604, %v7597
        %v7780 = vpack.c.b16 %v7605, %v7598
        %v7781 = vpack.c.b16 %v7613, %v7606
        %v7782 = vpack.c.b16 %v7614, %v7607
        %v7783 = vpack.c.b16 %v7615, %v7608
        %v7784 = vpack.c.b16 %v7616, %v7609
        %v7785 = vpack.c.b16 %v7617, %v7610
        %v7786 = vpack.c.b16 %v7618, %v7611
        %v7787 = vpack.c.b16 %v7619, %v7612
        %v7788 = vpack.c.b16 %v7627, %v7620
        %v7789 = vpack.c.b16 %v7628, %v7621
        %v7790 = vpack.c.b16 %v7629, %v7622
        %v7791 = vpack.c.b16 %v7630, %v7623
        %v7792 = vpack.c.b16 %v7631, %v7624
        %v7793 = vpack.c.b16 %v7632, %v7625
        %v7794 = vpack.c.b16 %v7633, %v7626
        %v7795 = vpack.c.b16 %v7641, %v7634
        %v7796 = vpack.c.b16 %v7642, %v7635
        %v7797 = vpack.c.b16 %v7643, %v7636
        %v7798 = vpack.c.b16 %v7644, %v7637
        %v7799 = vpack.c.b16 %v7645, %v7638
        %v7800 = vpack.c.b16 %v7646, %v7639
        %v7801 = vpack.c.b16 %v7647, %v7640
        %v7802 = vpack.c.b16 %v7655, %v7648
        %v7803 = vpack.c.b16 %v7656, %v7649
        %v7804 = vpack.c.b16 %v7657, %v7650
        %v7805 = vpack.c.b16 %v7658, %v7651
        %v7806 = vpack.c.b16 %v7659, %v7652
        %v7807 = vpack.c.b16 %v7660, %v7653
        %v7808 = vpack.c.b16 %v7661, %v7654
        %v7809 = vpack.c.b16 %v7669, %v7662
        %v7810 = vpack.c.b16 %v7670, %v7663
        %v7811 = vpack.c.b16 %v7671, %v7664
        %v7812 = vpack.c.b16 %v7672, %v7665
        %v7813 = vpack.c.b16 %v7673, %v7666
        %v7814 = vpack.c.b16 %v7674, %v7667
        %v7815 = vpack.c.b16 %v7675, %v7668
        %v7816 = vpack.c.b16 %v7683, %v7676
        %v7817 = vpack.c.b16 %v7684, %v7677
        %v7818 = vpack.c.b16 %v7685, %v7678
        %v7819 = vpack.c.b16 %v7686, %v7679
        %v7820 = vpack.c.b16 %v7687, %v7680
        %v7821 = vpack.c.b16 %v7688, %v7681
        %v7822 = vpack.c.b16 %v7689, %v7682
        %v7823 = vpack.c.b16 %v7697, %v7690
        %v7824 = vpack.c.b16 %v7698, %v7691
        %v7825 = vpack.c.b16 %v7699, %v7692
        %v7826 = vpack.c.b16 %v7700, %v7693
        %v7827 = vpack.c.b16 %v7701, %v7694
        %v7828 = vpack.c.b16 %v7702, %v7695
        %v7829 = vpack.c.b16 %v7703, %v7696
        %v7830 = vpack.c.b16 %v7711, %v7704
        %v7831 = vpack.c.b16 %v7712, %v7705
        %v7832 = vpack.c.b16 %v7713, %v7706
        %v7833 = vpack.c.b16 %v7714, %v7707
        %v7834 = vpack.c.b16 %v7715, %v7708
        %v7835 = vpack.c.b16 %v7716, %v7709
        %v7836 = vpack.c.b16 %v7717, %v7710
        %vm7939 = vcmask 392192
        %v7941 = vsel %vm7939, %v7724, 0
        %v7944 = vsel %vm7939, %v7731, 0
        %v7947 = vsel %vm7939, %v7738, 0
        %v7950 = vsel %vm7939, %v7745, 0
        %v7953 = vsel %vm7939, %v7752, 0
        %v7956 = vsel %vm7939, %v7759, 0
        %v7959 = vsel %vm7939, %v7766, 0
        %v7962 = vsel %vm7939, %v7773, 0
        %v7965 = vsel %vm7939, %v7780, 0
        %v7968 = vsel %vm7939, %v7787, 0
        %v7971 = vsel %vm7939, %v7794, 0
        %v7974 = vsel %vm7939, %v7801, 0
        %v7977 = vsel %vm7939, %v7808, 0
        %v7980 = vsel %vm7939, %v7815, 0
        %v7983 = vsel %vm7939, %v7822, 0
        %v7986 = vsel %vm7939, %v7829, 0
        %v7989 = vsel %vm7939, %v7836, 0
        %7991 = vmatpush.bf16.msra.mxu0 %v7250
        %7992 = vmatpush.bf16.msra.mxu0 %v7248
        %7993 = vmatpush.bf16.msra.mxu0 %v7246
        %7994 = vmatpush.bf16.msra.mxu0 %v7244
        %7995 = vmatpush.bf16.msra.mxu0 %v7242
        %7996 = vmatpush.bf16.msra.mxu0 %v7240
        %7997 = vmatpush.bf16.msra.mxu0 %v7238
        %7998 = vmatpush.bf16.msra.mxu0 %v7236
        %7999 = vmatmul.bf16.gmra.mxu0 %v7718
        %v8000 = vpop.f32.mrf.mxu0
        %v8001 = vadd.f32 %v7340, %v8000
        %v8002 = vpop.f32.mrf.mxu0
        %v8003 = vadd.f32 %v7340, %v8002
        %8004 = vmatmul.bf16.gmra.mxu0 %v7725
        %v8005 = vpop.f32.mrf.mxu0
        %v8006 = vadd.f32 %v7340, %v8005
        %v8007 = vpop.f32.mrf.mxu0
        %v8008 = vadd.f32 %v7340, %v8007
        %8009 = vmatmul.bf16.gmra.mxu0 %v7732
        %v8010 = vpop.f32.mrf.mxu0
        %v8011 = vadd.f32 %v7340, %v8010
        %v8012 = vpop.f32.mrf.mxu0
        %v8013 = vadd.f32 %v7340, %v8012
        %8014 = vmatmul.bf16.gmra.mxu0 %v7739
        %v8015 = vpop.f32.mrf.mxu0
        %v8016 = vadd.f32 %v7340, %v8015
        %v8017 = vpop.f32.mrf.mxu0
        %v8018 = vadd.f32 %v7340, %v8017
        %8019 = vmatmul.bf16.gmra.mxu0 %v7746
        %v8020 = vpop.f32.mrf.mxu0
        %v8021 = vadd.f32 %v7340, %v8020
        %v8022 = vpop.f32.mrf.mxu0
        %v8023 = vadd.f32 %v7340, %v8022
        %8024 = vmatmul.bf16.gmra.mxu0 %v7753
        %v8025 = vpop.f32.mrf.mxu0
        %v8026 = vadd.f32 %v7340, %v8025
        %v8027 = vpop.f32.mrf.mxu0
        %v8028 = vadd.f32 %v7340, %v8027
        %8029 = vmatmul.bf16.gmra.mxu0 %v7760
        %v8030 = vpop.f32.mrf.mxu0
        %v8031 = vadd.f32 %v7340, %v8030
        %v8032 = vpop.f32.mrf.mxu0
        %v8033 = vadd.f32 %v7340, %v8032
        %8034 = vmatmul.bf16.gmra.mxu0 %v7767
        %v8035 = vpop.f32.mrf.mxu0
        %v8036 = vadd.f32 %v7340, %v8035
        %v8037 = vpop.f32.mrf.mxu0
        %v8038 = vadd.f32 %v7340, %v8037
        %8039 = vmatmul.bf16.gmra.mxu0 %v7774
        %v8040 = vpop.f32.mrf.mxu0
        %v8041 = vadd.f32 %v7340, %v8040
        %v8042 = vpop.f32.mrf.mxu0
        %v8043 = vadd.f32 %v7340, %v8042
        %8044 = vmatmul.bf16.gmra.mxu0 %v7781
        %v8045 = vpop.f32.mrf.mxu0
        %v8046 = vadd.f32 %v7340, %v8045
        %v8047 = vpop.f32.mrf.mxu0
        %v8048 = vadd.f32 %v7340, %v8047
        %8049 = vmatmul.bf16.gmra.mxu0 %v7788
        %v8050 = vpop.f32.mrf.mxu0
        %v8051 = vadd.f32 %v7340, %v8050
        %v8052 = vpop.f32.mrf.mxu0
        %v8053 = vadd.f32 %v7340, %v8052
        %8054 = vmatmul.bf16.gmra.mxu0 %v7795
        %v8055 = vpop.f32.mrf.mxu0
        %v8056 = vadd.f32 %v7340, %v8055
        %v8057 = vpop.f32.mrf.mxu0
        %v8058 = vadd.f32 %v7340, %v8057
        %8059 = vmatmul.bf16.gmra.mxu0 %v7802
        %v8060 = vpop.f32.mrf.mxu0
        %v8061 = vadd.f32 %v7340, %v8060
        %v8062 = vpop.f32.mrf.mxu0
        %v8063 = vadd.f32 %v7340, %v8062
        %8064 = vmatmul.bf16.gmra.mxu0 %v7809
        %v8065 = vpop.f32.mrf.mxu0
        %v8066 = vadd.f32 %v7340, %v8065
        %v8067 = vpop.f32.mrf.mxu0
        %v8068 = vadd.f32 %v7340, %v8067
        %8069 = vmatmul.bf16.gmra.mxu0 %v7816
        %v8070 = vpop.f32.mrf.mxu0
        %v8071 = vadd.f32 %v7340, %v8070
        %v8072 = vpop.f32.mrf.mxu0
        %v8073 = vadd.f32 %v7340, %v8072
        %8074 = vmatmul.bf16.gmra.mxu0 %v7823
        %v8075 = vpop.f32.mrf.mxu0
        %v8076 = vadd.f32 %v7340, %v8075
        %v8077 = vpop.f32.mrf.mxu0
        %v8078 = vadd.f32 %v7340, %v8077
        %8079 = vmatmul.bf16.gmra.mxu0 %v7830
        %v8080 = vpop.f32.mrf.mxu0
        %v8081 = vadd.f32 %v7340, %v8080
        %v8082 = vpop.f32.mrf.mxu0
        %v8083 = vadd.f32 %v7340, %v8082
        %8084 = vdwg.mxu0
        %8085 = vmatpush.bf16.msra.mxu0 %v7266
        %8086 = vmatpush.bf16.msra.mxu0 %v7264
        %8087 = vmatpush.bf16.msra.mxu0 %v7262
        %8088 = vmatpush.bf16.msra.mxu0 %v7260
        %8089 = vmatpush.bf16.msra.mxu0 %v7258
        %8090 = vmatpush.bf16.msra.mxu0 %v7256
        %8091 = vmatpush.bf16.msra.mxu0 %v7254
        %8092 = vmatpush.bf16.msra.mxu0 %v7252
        %8093 = vmatmul.bf16.gmra.mxu0 %v7719
        %v8094 = vpop.f32.mrf.mxu0
        %v8095 = vadd.f32 %v8001, %v8094
        %v8096 = vpop.f32.mrf.mxu0
        %v8097 = vadd.f32 %v8003, %v8096
        %8098 = vmatmul.bf16.gmra.mxu0 %v7726
        %v8099 = vpop.f32.mrf.mxu0
        %v8100 = vadd.f32 %v8006, %v8099
        %v8101 = vpop.f32.mrf.mxu0
        %v8102 = vadd.f32 %v8008, %v8101
        %8103 = vmatmul.bf16.gmra.mxu0 %v7733
        %v8104 = vpop.f32.mrf.mxu0
        %v8105 = vadd.f32 %v8011, %v8104
        %v8106 = vpop.f32.mrf.mxu0
        %v8107 = vadd.f32 %v8013, %v8106
        %8108 = vmatmul.bf16.gmra.mxu0 %v7740
        %v8109 = vpop.f32.mrf.mxu0
        %v8110 = vadd.f32 %v8016, %v8109
        %v8111 = vpop.f32.mrf.mxu0
        %v8112 = vadd.f32 %v8018, %v8111
        %8113 = vmatmul.bf16.gmra.mxu0 %v7747
        %v8114 = vpop.f32.mrf.mxu0
        %v8115 = vadd.f32 %v8021, %v8114
        %v8116 = vpop.f32.mrf.mxu0
        %v8117 = vadd.f32 %v8023, %v8116
        %8118 = vmatmul.bf16.gmra.mxu0 %v7754
        %v8119 = vpop.f32.mrf.mxu0
        %v8120 = vadd.f32 %v8026, %v8119
        %v8121 = vpop.f32.mrf.mxu0
        %v8122 = vadd.f32 %v8028, %v8121
        %8123 = vmatmul.bf16.gmra.mxu0 %v7761
        %v8124 = vpop.f32.mrf.mxu0
        %v8125 = vadd.f32 %v8031, %v8124
        %v8126 = vpop.f32.mrf.mxu0
        %v8127 = vadd.f32 %v8033, %v8126
        %8128 = vmatmul.bf16.gmra.mxu0 %v7768
        %v8129 = vpop.f32.mrf.mxu0
        %v8130 = vadd.f32 %v8036, %v8129
        %v8131 = vpop.f32.mrf.mxu0
        %v8132 = vadd.f32 %v8038, %v8131
        %8133 = vmatmul.bf16.gmra.mxu0 %v7775
        %v8134 = vpop.f32.mrf.mxu0
        %v8135 = vadd.f32 %v8041, %v8134
        %v8136 = vpop.f32.mrf.mxu0
        %v8137 = vadd.f32 %v8043, %v8136
        %8138 = vmatmul.bf16.gmra.mxu0 %v7782
        %v8139 = vpop.f32.mrf.mxu0
        %v8140 = vadd.f32 %v8046, %v8139
        %v8141 = vpop.f32.mrf.mxu0
        %v8142 = vadd.f32 %v8048, %v8141
        %8143 = vmatmul.bf16.gmra.mxu0 %v7789
        %v8144 = vpop.f32.mrf.mxu0
        %v8145 = vadd.f32 %v8051, %v8144
        %v8146 = vpop.f32.mrf.mxu0
        %v8147 = vadd.f32 %v8053, %v8146
        %8148 = vmatmul.bf16.gmra.mxu0 %v7796
        %v8149 = vpop.f32.mrf.mxu0
        %v8150 = vadd.f32 %v8056, %v8149
        %v8151 = vpop.f32.mrf.mxu0
        %v8152 = vadd.f32 %v8058, %v8151
        %8153 = vmatmul.bf16.gmra.mxu0 %v7803
        %v8154 = vpop.f32.mrf.mxu0
        %v8155 = vadd.f32 %v8061, %v8154
        %v8156 = vpop.f32.mrf.mxu0
        %v8157 = vadd.f32 %v8063, %v8156
        %8158 = vmatmul.bf16.gmra.mxu0 %v7810
        %v8159 = vpop.f32.mrf.mxu0
        %v8160 = vadd.f32 %v8066, %v8159
        %v8161 = vpop.f32.mrf.mxu0
        %v8162 = vadd.f32 %v8068, %v8161
        %8163 = vmatmul.bf16.gmra.mxu0 %v7817
        %v8164 = vpop.f32.mrf.mxu0
        %v8165 = vadd.f32 %v8071, %v8164
        %v8166 = vpop.f32.mrf.mxu0
        %v8167 = vadd.f32 %v8073, %v8166
        %8168 = vmatmul.bf16.gmra.mxu0 %v7824
        %v8169 = vpop.f32.mrf.mxu0
        %v8170 = vadd.f32 %v8076, %v8169
        %v8171 = vpop.f32.mrf.mxu0
        %v8172 = vadd.f32 %v8078, %v8171
        %8173 = vmatmul.bf16.gmra.mxu0 %v7831
        %v8174 = vpop.f32.mrf.mxu0
        %v8175 = vadd.f32 %v8081, %v8174
        %v8176 = vpop.f32.mrf.mxu0
        %v8177 = vadd.f32 %v8083, %v8176
        %8178 = vdwg.mxu0
        %8179 = vmatpush.bf16.msra.mxu0 %v7282
        %8180 = vmatpush.bf16.msra.mxu0 %v7280
        %8181 = vmatpush.bf16.msra.mxu0 %v7278
        %8182 = vmatpush.bf16.msra.mxu0 %v7276
        %8183 = vmatpush.bf16.msra.mxu0 %v7274
        %8184 = vmatpush.bf16.msra.mxu0 %v7272
        %8185 = vmatpush.bf16.msra.mxu0 %v7270
        %8186 = vmatpush.bf16.msra.mxu0 %v7268
        %8187 = vmatmul.bf16.gmra.mxu0 %v7720
        %v8188 = vpop.f32.mrf.mxu0
        %v8189 = vadd.f32 %v8095, %v8188
        %v8190 = vpop.f32.mrf.mxu0
        %v8191 = vadd.f32 %v8097, %v8190
        %8192 = vmatmul.bf16.gmra.mxu0 %v7727
        %v8193 = vpop.f32.mrf.mxu0
        %v8194 = vadd.f32 %v8100, %v8193
        %v8195 = vpop.f32.mrf.mxu0
        %v8196 = vadd.f32 %v8102, %v8195
        %8197 = vmatmul.bf16.gmra.mxu0 %v7734
        %v8198 = vpop.f32.mrf.mxu0
        %v8199 = vadd.f32 %v8105, %v8198
        %v8200 = vpop.f32.mrf.mxu0
        %v8201 = vadd.f32 %v8107, %v8200
        %8202 = vmatmul.bf16.gmra.mxu0 %v7741
        %v8203 = vpop.f32.mrf.mxu0
        %v8204 = vadd.f32 %v8110, %v8203
        %v8205 = vpop.f32.mrf.mxu0
        %v8206 = vadd.f32 %v8112, %v8205
        %8207 = vmatmul.bf16.gmra.mxu0 %v7748
        %v8208 = vpop.f32.mrf.mxu0
        %v8209 = vadd.f32 %v8115, %v8208
        %v8210 = vpop.f32.mrf.mxu0
        %v8211 = vadd.f32 %v8117, %v8210
        %8212 = vmatmul.bf16.gmra.mxu0 %v7755
        %v8213 = vpop.f32.mrf.mxu0
        %v8214 = vadd.f32 %v8120, %v8213
        %v8215 = vpop.f32.mrf.mxu0
        %v8216 = vadd.f32 %v8122, %v8215
        %8217 = vmatmul.bf16.gmra.mxu0 %v7762
        %v8218 = vpop.f32.mrf.mxu0
        %v8219 = vadd.f32 %v8125, %v8218
        %v8220 = vpop.f32.mrf.mxu0
        %v8221 = vadd.f32 %v8127, %v8220
        %8222 = vmatmul.bf16.gmra.mxu0 %v7769
        %v8223 = vpop.f32.mrf.mxu0
        %v8224 = vadd.f32 %v8130, %v8223
        %v8225 = vpop.f32.mrf.mxu0
        %v8226 = vadd.f32 %v8132, %v8225
        %8227 = vmatmul.bf16.gmra.mxu0 %v7776
        %v8228 = vpop.f32.mrf.mxu0
        %v8229 = vadd.f32 %v8135, %v8228
        %v8230 = vpop.f32.mrf.mxu0
        %v8231 = vadd.f32 %v8137, %v8230
        %8232 = vmatmul.bf16.gmra.mxu0 %v7783
        %v8233 = vpop.f32.mrf.mxu0
        %v8234 = vadd.f32 %v8140, %v8233
        %v8235 = vpop.f32.mrf.mxu0
        %v8236 = vadd.f32 %v8142, %v8235
        %8237 = vmatmul.bf16.gmra.mxu0 %v7790
        %v8238 = vpop.f32.mrf.mxu0
        %v8239 = vadd.f32 %v8145, %v8238
        %v8240 = vpop.f32.mrf.mxu0
        %v8241 = vadd.f32 %v8147, %v8240
        %8242 = vmatmul.bf16.gmra.mxu0 %v7797
        %v8243 = vpop.f32.mrf.mxu0
        %v8244 = vadd.f32 %v8150, %v8243
        %v8245 = vpop.f32.mrf.mxu0
        %v8246 = vadd.f32 %v8152, %v8245
        %8247 = vmatmul.bf16.gmra.mxu0 %v7804
        %v8248 = vpop.f32.mrf.mxu0
        %v8249 = vadd.f32 %v8155, %v8248
        %v8250 = vpop.f32.mrf.mxu0
        %v8251 = vadd.f32 %v8157, %v8250
        %8252 = vmatmul.bf16.gmra.mxu0 %v7811
        %v8253 = vpop.f32.mrf.mxu0
        %v8254 = vadd.f32 %v8160, %v8253
        %v8255 = vpop.f32.mrf.mxu0
        %v8256 = vadd.f32 %v8162, %v8255
        %8257 = vmatmul.bf16.gmra.mxu0 %v7818
        %v8258 = vpop.f32.mrf.mxu0
        %v8259 = vadd.f32 %v8165, %v8258
        %v8260 = vpop.f32.mrf.mxu0
        %v8261 = vadd.f32 %v8167, %v8260
        %8262 = vmatmul.bf16.gmra.mxu0 %v7825
        %v8263 = vpop.f32.mrf.mxu0
        %v8264 = vadd.f32 %v8170, %v8263
        %v8265 = vpop.f32.mrf.mxu0
        %v8266 = vadd.f32 %v8172, %v8265
        %8267 = vmatmul.bf16.gmra.mxu0 %v7832
        %v8268 = vpop.f32.mrf.mxu0
        %v8269 = vadd.f32 %v8175, %v8268
        %v8270 = vpop.f32.mrf.mxu0
        %v8271 = vadd.f32 %v8177, %v8270
        %8272 = vdwg.mxu0
        %8273 = vmatpush.bf16.msra.mxu0 %v7298
        %8274 = vmatpush.bf16.msra.mxu0 %v7296
        %8275 = vmatpush.bf16.msra.mxu0 %v7294
        %8276 = vmatpush.bf16.msra.mxu0 %v7292
        %8277 = vmatpush.bf16.msra.mxu0 %v7290
        %8278 = vmatpush.bf16.msra.mxu0 %v7288
        %8279 = vmatpush.bf16.msra.mxu0 %v7286
        %8280 = vmatpush.bf16.msra.mxu0 %v7284
        %8281 = vmatmul.bf16.gmra.mxu0 %v7721
        %v8282 = vpop.f32.mrf.mxu0
        %v8283 = vadd.f32 %v8189, %v8282
        %v8284 = vpop.f32.mrf.mxu0
        %v8285 = vadd.f32 %v8191, %v8284
        %8286 = vmatmul.bf16.gmra.mxu0 %v7728
        %v8287 = vpop.f32.mrf.mxu0
        %v8288 = vadd.f32 %v8194, %v8287
        %v8289 = vpop.f32.mrf.mxu0
        %v8290 = vadd.f32 %v8196, %v8289
        %8291 = vmatmul.bf16.gmra.mxu0 %v7735
        %v8292 = vpop.f32.mrf.mxu0
        %v8293 = vadd.f32 %v8199, %v8292
        %v8294 = vpop.f32.mrf.mxu0
        %v8295 = vadd.f32 %v8201, %v8294
        %8296 = vmatmul.bf16.gmra.mxu0 %v7742
        %v8297 = vpop.f32.mrf.mxu0
        %v8298 = vadd.f32 %v8204, %v8297
        %v8299 = vpop.f32.mrf.mxu0
        %v8300 = vadd.f32 %v8206, %v8299
        %8301 = vmatmul.bf16.gmra.mxu0 %v7749
        %v8302 = vpop.f32.mrf.mxu0
        %v8303 = vadd.f32 %v8209, %v8302
        %v8304 = vpop.f32.mrf.mxu0
        %v8305 = vadd.f32 %v8211, %v8304
        %8306 = vmatmul.bf16.gmra.mxu0 %v7756
        %v8307 = vpop.f32.mrf.mxu0
        %v8308 = vadd.f32 %v8214, %v8307
        %v8309 = vpop.f32.mrf.mxu0
        %v8310 = vadd.f32 %v8216, %v8309
        %8311 = vmatmul.bf16.gmra.mxu0 %v7763
        %v8312 = vpop.f32.mrf.mxu0
        %v8313 = vadd.f32 %v8219, %v8312
        %v8314 = vpop.f32.mrf.mxu0
        %v8315 = vadd.f32 %v8221, %v8314
        %8316 = vmatmul.bf16.gmra.mxu0 %v7770
        %v8317 = vpop.f32.mrf.mxu0
        %v8318 = vadd.f32 %v8224, %v8317
        %v8319 = vpop.f32.mrf.mxu0
        %v8320 = vadd.f32 %v8226, %v8319
        %8321 = vmatmul.bf16.gmra.mxu0 %v7777
        %v8322 = vpop.f32.mrf.mxu0
        %v8323 = vadd.f32 %v8229, %v8322
        %v8324 = vpop.f32.mrf.mxu0
        %v8325 = vadd.f32 %v8231, %v8324
        %8326 = vmatmul.bf16.gmra.mxu0 %v7784
        %v8327 = vpop.f32.mrf.mxu0
        %v8328 = vadd.f32 %v8234, %v8327
        %v8329 = vpop.f32.mrf.mxu0
        %v8330 = vadd.f32 %v8236, %v8329
        %8331 = vmatmul.bf16.gmra.mxu0 %v7791
        %v8332 = vpop.f32.mrf.mxu0
        %v8333 = vadd.f32 %v8239, %v8332
        %v8334 = vpop.f32.mrf.mxu0
        %v8335 = vadd.f32 %v8241, %v8334
        %8336 = vmatmul.bf16.gmra.mxu0 %v7798
        %v8337 = vpop.f32.mrf.mxu0
        %v8338 = vadd.f32 %v8244, %v8337
        %v8339 = vpop.f32.mrf.mxu0
        %v8340 = vadd.f32 %v8246, %v8339
        %8341 = vmatmul.bf16.gmra.mxu0 %v7805
        %v8342 = vpop.f32.mrf.mxu0
        %v8343 = vadd.f32 %v8249, %v8342
        %v8344 = vpop.f32.mrf.mxu0
        %v8345 = vadd.f32 %v8251, %v8344
        %8346 = vmatmul.bf16.gmra.mxu0 %v7812
        %v8347 = vpop.f32.mrf.mxu0
        %v8348 = vadd.f32 %v8254, %v8347
        %v8349 = vpop.f32.mrf.mxu0
        %v8350 = vadd.f32 %v8256, %v8349
        %8351 = vmatmul.bf16.gmra.mxu0 %v7819
        %v8352 = vpop.f32.mrf.mxu0
        %v8353 = vadd.f32 %v8259, %v8352
        %v8354 = vpop.f32.mrf.mxu0
        %v8355 = vadd.f32 %v8261, %v8354
        %8356 = vmatmul.bf16.gmra.mxu0 %v7826
        %v8357 = vpop.f32.mrf.mxu0
        %v8358 = vadd.f32 %v8264, %v8357
        %v8359 = vpop.f32.mrf.mxu0
        %v8360 = vadd.f32 %v8266, %v8359
        %8361 = vmatmul.bf16.gmra.mxu0 %v7833
        %v8362 = vpop.f32.mrf.mxu0
        %v8363 = vadd.f32 %v8269, %v8362
        %v8364 = vpop.f32.mrf.mxu0
        %v8365 = vadd.f32 %v8271, %v8364
        %8366 = vdwg.mxu0
        %8367 = vmatpush.bf16.msra.mxu0 %v7314
        %8368 = vmatpush.bf16.msra.mxu0 %v7312
        %8369 = vmatpush.bf16.msra.mxu0 %v7310
        %8370 = vmatpush.bf16.msra.mxu0 %v7308
        %8371 = vmatpush.bf16.msra.mxu0 %v7306
        %8372 = vmatpush.bf16.msra.mxu0 %v7304
        %8373 = vmatpush.bf16.msra.mxu0 %v7302
        %8374 = vmatpush.bf16.msra.mxu0 %v7300
        %8375 = vmatmul.bf16.gmra.mxu0 %v7722
        %v8376 = vpop.f32.mrf.mxu0
        %v8377 = vadd.f32 %v8283, %v8376
        %v8378 = vpop.f32.mrf.mxu0
        %v8379 = vadd.f32 %v8285, %v8378
        %8380 = vmatmul.bf16.gmra.mxu0 %v7729
        %v8381 = vpop.f32.mrf.mxu0
        %v8382 = vadd.f32 %v8288, %v8381
        %v8383 = vpop.f32.mrf.mxu0
        %v8384 = vadd.f32 %v8290, %v8383
        %8385 = vmatmul.bf16.gmra.mxu0 %v7736
        %v8386 = vpop.f32.mrf.mxu0
        %v8387 = vadd.f32 %v8293, %v8386
        %v8388 = vpop.f32.mrf.mxu0
        %v8389 = vadd.f32 %v8295, %v8388
        %8390 = vmatmul.bf16.gmra.mxu0 %v7743
        %v8391 = vpop.f32.mrf.mxu0
        %v8392 = vadd.f32 %v8298, %v8391
        %v8393 = vpop.f32.mrf.mxu0
        %v8394 = vadd.f32 %v8300, %v8393
        %8395 = vmatmul.bf16.gmra.mxu0 %v7750
        %v8396 = vpop.f32.mrf.mxu0
        %v8397 = vadd.f32 %v8303, %v8396
        %v8398 = vpop.f32.mrf.mxu0
        %v8399 = vadd.f32 %v8305, %v8398
        %8400 = vmatmul.bf16.gmra.mxu0 %v7757
        %v8401 = vpop.f32.mrf.mxu0
        %v8402 = vadd.f32 %v8308, %v8401
        %v8403 = vpop.f32.mrf.mxu0
        %v8404 = vadd.f32 %v8310, %v8403
        %8405 = vmatmul.bf16.gmra.mxu0 %v7764
        %v8406 = vpop.f32.mrf.mxu0
        %v8407 = vadd.f32 %v8313, %v8406
        %v8408 = vpop.f32.mrf.mxu0
        %v8409 = vadd.f32 %v8315, %v8408
        %8410 = vmatmul.bf16.gmra.mxu0 %v7771
        %v8411 = vpop.f32.mrf.mxu0
        %v8412 = vadd.f32 %v8318, %v8411
        %v8413 = vpop.f32.mrf.mxu0
        %v8414 = vadd.f32 %v8320, %v8413
        %8415 = vmatmul.bf16.gmra.mxu0 %v7778
        %v8416 = vpop.f32.mrf.mxu0
        %v8417 = vadd.f32 %v8323, %v8416
        %v8418 = vpop.f32.mrf.mxu0
        %v8419 = vadd.f32 %v8325, %v8418
        %8420 = vmatmul.bf16.gmra.mxu0 %v7785
        %v8421 = vpop.f32.mrf.mxu0
        %v8422 = vadd.f32 %v8328, %v8421
        %v8423 = vpop.f32.mrf.mxu0
        %v8424 = vadd.f32 %v8330, %v8423
        %8425 = vmatmul.bf16.gmra.mxu0 %v7792
        %v8426 = vpop.f32.mrf.mxu0
        %v8427 = vadd.f32 %v8333, %v8426
        %v8428 = vpop.f32.mrf.mxu0
        %v8429 = vadd.f32 %v8335, %v8428
        %8430 = vmatmul.bf16.gmra.mxu0 %v7799
        %v8431 = vpop.f32.mrf.mxu0
        %v8432 = vadd.f32 %v8338, %v8431
        %v8433 = vpop.f32.mrf.mxu0
        %v8434 = vadd.f32 %v8340, %v8433
        %8435 = vmatmul.bf16.gmra.mxu0 %v7806
        %v8436 = vpop.f32.mrf.mxu0
        %v8437 = vadd.f32 %v8343, %v8436
        %v8438 = vpop.f32.mrf.mxu0
        %v8439 = vadd.f32 %v8345, %v8438
        %8440 = vmatmul.bf16.gmra.mxu0 %v7813
        %v8441 = vpop.f32.mrf.mxu0
        %v8442 = vadd.f32 %v8348, %v8441
        %v8443 = vpop.f32.mrf.mxu0
        %v8444 = vadd.f32 %v8350, %v8443
        %8445 = vmatmul.bf16.gmra.mxu0 %v7820
        %v8446 = vpop.f32.mrf.mxu0
        %v8447 = vadd.f32 %v8353, %v8446
        %v8448 = vpop.f32.mrf.mxu0
        %v8449 = vadd.f32 %v8355, %v8448
        %8450 = vmatmul.bf16.gmra.mxu0 %v7827
        %v8451 = vpop.f32.mrf.mxu0
        %v8452 = vadd.f32 %v8358, %v8451
        %v8453 = vpop.f32.mrf.mxu0
        %v8454 = vadd.f32 %v8360, %v8453
        %8455 = vmatmul.bf16.gmra.mxu0 %v7834
        %v8456 = vpop.f32.mrf.mxu0
        %v8457 = vadd.f32 %v8363, %v8456
        %v8458 = vpop.f32.mrf.mxu0
        %v8459 = vadd.f32 %v8365, %v8458
        %8460 = vdwg.mxu0
        %8461 = vmatpush.bf16.msra.mxu0 %v7330
        %8462 = vmatpush.bf16.msra.mxu0 %v7328
        %8463 = vmatpush.bf16.msra.mxu0 %v7326
        %8464 = vmatpush.bf16.msra.mxu0 %v7324
        %8465 = vmatpush.bf16.msra.mxu0 %v7322
        %8466 = vmatpush.bf16.msra.mxu0 %v7320
        %8467 = vmatpush.bf16.msra.mxu0 %v7318
        %8468 = vmatpush.bf16.msra.mxu0 %v7316
        %8469 = vmatmul.bf16.gmra.mxu0 %v7723
        %v8470 = vpop.f32.mrf.mxu0
        %v8471 = vadd.f32 %v8377, %v8470
        %v8472 = vpop.f32.mrf.mxu0
        %v8473 = vadd.f32 %v8379, %v8472
        %8474 = vmatmul.bf16.gmra.mxu0 %v7730
        %v8475 = vpop.f32.mrf.mxu0
        %v8476 = vadd.f32 %v8382, %v8475
        %v8477 = vpop.f32.mrf.mxu0
        %v8478 = vadd.f32 %v8384, %v8477
        %8479 = vmatmul.bf16.gmra.mxu0 %v7737
        %v8480 = vpop.f32.mrf.mxu0
        %v8481 = vadd.f32 %v8387, %v8480
        %v8482 = vpop.f32.mrf.mxu0
        %v8483 = vadd.f32 %v8389, %v8482
        %8484 = vmatmul.bf16.gmra.mxu0 %v7744
        %v8485 = vpop.f32.mrf.mxu0
        %v8486 = vadd.f32 %v8392, %v8485
        %v8487 = vpop.f32.mrf.mxu0
        %v8488 = vadd.f32 %v8394, %v8487
        %8489 = vmatmul.bf16.gmra.mxu0 %v7751
        %v8490 = vpop.f32.mrf.mxu0
        %v8491 = vadd.f32 %v8397, %v8490
        %v8492 = vpop.f32.mrf.mxu0
        %v8493 = vadd.f32 %v8399, %v8492
        %8494 = vmatmul.bf16.gmra.mxu0 %v7758
        %v8495 = vpop.f32.mrf.mxu0
        %v8496 = vadd.f32 %v8402, %v8495
        %v8497 = vpop.f32.mrf.mxu0
        %v8498 = vadd.f32 %v8404, %v8497
        %8499 = vmatmul.bf16.gmra.mxu0 %v7765
        %v8500 = vpop.f32.mrf.mxu0
        %v8501 = vadd.f32 %v8407, %v8500
        %v8502 = vpop.f32.mrf.mxu0
        %v8503 = vadd.f32 %v8409, %v8502
        %8504 = vmatmul.bf16.gmra.mxu0 %v7772
        %v8505 = vpop.f32.mrf.mxu0
        %v8506 = vadd.f32 %v8412, %v8505
        %v8507 = vpop.f32.mrf.mxu0
        %v8508 = vadd.f32 %v8414, %v8507
        %8509 = vmatmul.bf16.gmra.mxu0 %v7779
        %v8510 = vpop.f32.mrf.mxu0
        %v8511 = vadd.f32 %v8417, %v8510
        %v8512 = vpop.f32.mrf.mxu0
        %v8513 = vadd.f32 %v8419, %v8512
        %8514 = vmatmul.bf16.gmra.mxu0 %v7786
        %v8515 = vpop.f32.mrf.mxu0
        %v8516 = vadd.f32 %v8422, %v8515
        %v8517 = vpop.f32.mrf.mxu0
        %v8518 = vadd.f32 %v8424, %v8517
        %8519 = vmatmul.bf16.gmra.mxu0 %v7793
        %v8520 = vpop.f32.mrf.mxu0
        %v8521 = vadd.f32 %v8427, %v8520
        %v8522 = vpop.f32.mrf.mxu0
        %v8523 = vadd.f32 %v8429, %v8522
        %8524 = vmatmul.bf16.gmra.mxu0 %v7800
        %v8525 = vpop.f32.mrf.mxu0
        %v8526 = vadd.f32 %v8432, %v8525
        %v8527 = vpop.f32.mrf.mxu0
        %v8528 = vadd.f32 %v8434, %v8527
        %8529 = vmatmul.bf16.gmra.mxu0 %v7807
        %v8530 = vpop.f32.mrf.mxu0
        %v8531 = vadd.f32 %v8437, %v8530
        %v8532 = vpop.f32.mrf.mxu0
        %v8533 = vadd.f32 %v8439, %v8532
        %8534 = vmatmul.bf16.gmra.mxu0 %v7814
        %v8535 = vpop.f32.mrf.mxu0
        %v8536 = vadd.f32 %v8442, %v8535
        %v8537 = vpop.f32.mrf.mxu0
        %v8538 = vadd.f32 %v8444, %v8537
        %8539 = vmatmul.bf16.gmra.mxu0 %v7821
        %v8540 = vpop.f32.mrf.mxu0
        %v8541 = vadd.f32 %v8447, %v8540
        %v8542 = vpop.f32.mrf.mxu0
        %v8543 = vadd.f32 %v8449, %v8542
        %8544 = vmatmul.bf16.gmra.mxu0 %v7828
        %v8545 = vpop.f32.mrf.mxu0
        %v8546 = vadd.f32 %v8452, %v8545
        %v8547 = vpop.f32.mrf.mxu0
        %v8548 = vadd.f32 %v8454, %v8547
        %8549 = vmatmul.bf16.gmra.mxu0 %v7835
        %v8550 = vpop.f32.mrf.mxu0
        %v8551 = vadd.f32 %v8457, %v8550
        %v8552 = vpop.f32.mrf.mxu0
        %v8553 = vadd.f32 %v8459, %v8552
        %8554 = vdwg.mxu0
        %8555 = vmatpush.bf16.msra.mxu0 0
        %8556 = vmatpush.bf16.msra.mxu0 0
        %8557 = vmatpush.bf16.msra.mxu0 0
        %8558 = vmatpush.bf16.msra.mxu0 0
        %8559 = vmatpush.bf16.msra.mxu0 0
        %8560 = vmatpush.bf16.msra.mxu0 %v7336
        %8561 = vmatpush.bf16.msra.mxu0 %v7334
        %8562 = vmatpush.bf16.msra.mxu0 %v7332
        %8563 = vmatmul.bf16.gmra.mxu0 %v7941
        %v8564 = vpop.f32.mrf.mxu0
        %v8565 = vadd.f32 %v8471, %v8564
        %v8566 = vpop.f32.mrf.mxu0
        %v8567 = vadd.f32 %v8473, %v8566
        %8568 = vmatmul.bf16.gmra.mxu0 %v7944
        %v8569 = vpop.f32.mrf.mxu0
        %v8570 = vadd.f32 %v8476, %v8569
        %v8571 = vpop.f32.mrf.mxu0
        %v8572 = vadd.f32 %v8478, %v8571
        %8573 = vmatmul.bf16.gmra.mxu0 %v7947
        %v8574 = vpop.f32.mrf.mxu0
        %v8575 = vadd.f32 %v8481, %v8574
        %v8576 = vpop.f32.mrf.mxu0
        %v8577 = vadd.f32 %v8483, %v8576
        %8578 = vmatmul.bf16.gmra.mxu0 %v7950
        %v8579 = vpop.f32.mrf.mxu0
        %v8580 = vadd.f32 %v8486, %v8579
        %v8581 = vpop.f32.mrf.mxu0
        %v8582 = vadd.f32 %v8488, %v8581
        %8583 = vmatmul.bf16.gmra.mxu0 %v7953
        %v8584 = vpop.f32.mrf.mxu0
        %v8585 = vadd.f32 %v8491, %v8584
        %v8586 = vpop.f32.mrf.mxu0
        %v8587 = vadd.f32 %v8493, %v8586
        %8588 = vmatmul.bf16.gmra.mxu0 %v7956
        %v8589 = vpop.f32.mrf.mxu0
        %v8590 = vadd.f32 %v8496, %v8589
        %v8591 = vpop.f32.mrf.mxu0
        %v8592 = vadd.f32 %v8498, %v8591
        %8593 = vmatmul.bf16.gmra.mxu0 %v7959
        %v8594 = vpop.f32.mrf.mxu0
        %v8595 = vadd.f32 %v8501, %v8594
        %v8596 = vpop.f32.mrf.mxu0
        %v8597 = vadd.f32 %v8503, %v8596
        %8598 = vmatmul.bf16.gmra.mxu0 %v7962
        %v8599 = vpop.f32.mrf.mxu0
        %v8600 = vadd.f32 %v8506, %v8599
        %v8601 = vpop.f32.mrf.mxu0
        %v8602 = vadd.f32 %v8508, %v8601
        %8603 = vmatmul.bf16.gmra.mxu0 %v7965
        %v8604 = vpop.f32.mrf.mxu0
        %v8605 = vadd.f32 %v8511, %v8604
        %v8606 = vpop.f32.mrf.mxu0
        %v8607 = vadd.f32 %v8513, %v8606
        %8608 = vmatmul.bf16.gmra.mxu0 %v7968
        %v8609 = vpop.f32.mrf.mxu0
        %v8610 = vadd.f32 %v8516, %v8609
        %v8611 = vpop.f32.mrf.mxu0
        %v8612 = vadd.f32 %v8518, %v8611
        %8613 = vmatmul.bf16.gmra.mxu0 %v7971
        %v8614 = vpop.f32.mrf.mxu0
        %v8615 = vadd.f32 %v8521, %v8614
        %v8616 = vpop.f32.mrf.mxu0
        %v8617 = vadd.f32 %v8523, %v8616
        %8618 = vmatmul.bf16.gmra.mxu0 %v7974
        %v8619 = vpop.f32.mrf.mxu0
        %v8620 = vadd.f32 %v8526, %v8619
        %v8621 = vpop.f32.mrf.mxu0
        %v8622 = vadd.f32 %v8528, %v8621
        %8623 = vmatmul.bf16.gmra.mxu0 %v7977
        %v8624 = vpop.f32.mrf.mxu0
        %v8625 = vadd.f32 %v8531, %v8624
        %v8626 = vpop.f32.mrf.mxu0
        %v8627 = vadd.f32 %v8533, %v8626
        %8628 = vmatmul.bf16.gmra.mxu0 %v7980
        %v8629 = vpop.f32.mrf.mxu0
        %v8630 = vadd.f32 %v8536, %v8629
        %v8631 = vpop.f32.mrf.mxu0
        %v8632 = vadd.f32 %v8538, %v8631
        %8633 = vmatmul.bf16.gmra.mxu0 %v7983
        %v8634 = vpop.f32.mrf.mxu0
        %v8635 = vadd.f32 %v8541, %v8634
        %v8636 = vpop.f32.mrf.mxu0
        %v8637 = vadd.f32 %v8543, %v8636
        %8638 = vmatmul.bf16.gmra.mxu0 %v7986
        %v8639 = vpop.f32.mrf.mxu0
        %v8640 = vadd.f32 %v8546, %v8639
        %v8641 = vpop.f32.mrf.mxu0
        %v8642 = vadd.f32 %v8548, %v8641
        %8643 = vmatmul.bf16.gmra.mxu0 %v7989
        %v8644 = vpop.f32.mrf.mxu0
        %v8645 = vadd.f32 %v8551, %v8644
        %v8646 = vpop.f32.mrf.mxu0
        %v8647 = vadd.f32 %v8553, %v8646
        %8648 = vdwg.mxu0
        %8649 = vmatpush.bf16.msra.mxu0 %v7251
        %8650 = vmatpush.bf16.msra.mxu0 %v7249
        %8651 = vmatpush.bf16.msra.mxu0 %v7247
        %8652 = vmatpush.bf16.msra.mxu0 %v7245
        %8653 = vmatpush.bf16.msra.mxu0 %v7243
        %8654 = vmatpush.bf16.msra.mxu0 %v7241
        %8655 = vmatpush.bf16.msra.mxu0 %v7239
        %8656 = vmatpush.bf16.msra.mxu0 %v7237
        %8657 = vmatmul.bf16.gmra.mxu0 %v7718
        %v8658 = vpop.f32.mrf.mxu0
        %v8659 = vadd.f32 %v7341, %v8658
        %v8660 = vpop.f32.mrf.mxu0
        %v8661 = vadd.f32 %v7341, %v8660
        %8662 = vmatmul.bf16.gmra.mxu0 %v7725
        %v8663 = vpop.f32.mrf.mxu0
        %v8664 = vadd.f32 %v7341, %v8663
        %v8665 = vpop.f32.mrf.mxu0
        %v8666 = vadd.f32 %v7341, %v8665
        %8667 = vmatmul.bf16.gmra.mxu0 %v7732
        %v8668 = vpop.f32.mrf.mxu0
        %v8669 = vadd.f32 %v7341, %v8668
        %v8670 = vpop.f32.mrf.mxu0
        %v8671 = vadd.f32 %v7341, %v8670
        %8672 = vmatmul.bf16.gmra.mxu0 %v7739
        %v8673 = vpop.f32.mrf.mxu0
        %v8674 = vadd.f32 %v7341, %v8673
        %v8675 = vpop.f32.mrf.mxu0
        %v8676 = vadd.f32 %v7341, %v8675
        %8677 = vmatmul.bf16.gmra.mxu0 %v7746
        %v8678 = vpop.f32.mrf.mxu0
        %v8679 = vadd.f32 %v7341, %v8678
        %v8680 = vpop.f32.mrf.mxu0
        %v8681 = vadd.f32 %v7341, %v8680
        %8682 = vmatmul.bf16.gmra.mxu0 %v7753
        %v8683 = vpop.f32.mrf.mxu0
        %v8684 = vadd.f32 %v7341, %v8683
        %v8685 = vpop.f32.mrf.mxu0
        %v8686 = vadd.f32 %v7341, %v8685
        %8687 = vmatmul.bf16.gmra.mxu0 %v7760
        %v8688 = vpop.f32.mrf.mxu0
        %v8689 = vadd.f32 %v7341, %v8688
        %v8690 = vpop.f32.mrf.mxu0
        %v8691 = vadd.f32 %v7341, %v8690
        %8692 = vmatmul.bf16.gmra.mxu0 %v7767
        %v8693 = vpop.f32.mrf.mxu0
        %v8694 = vadd.f32 %v7341, %v8693
        %v8695 = vpop.f32.mrf.mxu0
        %v8696 = vadd.f32 %v7341, %v8695
        %8697 = vmatmul.bf16.gmra.mxu0 %v7774
        %v8698 = vpop.f32.mrf.mxu0
        %v8699 = vadd.f32 %v7341, %v8698
        %v8700 = vpop.f32.mrf.mxu0
        %v8701 = vadd.f32 %v7341, %v8700
        %8702 = vmatmul.bf16.gmra.mxu0 %v7781
        %v8703 = vpop.f32.mrf.mxu0
        %v8704 = vadd.f32 %v7341, %v8703
        %v8705 = vpop.f32.mrf.mxu0
        %v8706 = vadd.f32 %v7341, %v8705
        %8707 = vmatmul.bf16.gmra.mxu0 %v7788
        %v8708 = vpop.f32.mrf.mxu0
        %v8709 = vadd.f32 %v7341, %v8708
        %v8710 = vpop.f32.mrf.mxu0
        %v8711 = vadd.f32 %v7341, %v8710
        %8712 = vmatmul.bf16.gmra.mxu0 %v7795
        %v8713 = vpop.f32.mrf.mxu0
        %v8714 = vadd.f32 %v7341, %v8713
        %v8715 = vpop.f32.mrf.mxu0
        %v8716 = vadd.f32 %v7341, %v8715
        %8717 = vmatmul.bf16.gmra.mxu0 %v7802
        %v8718 = vpop.f32.mrf.mxu0
        %v8719 = vadd.f32 %v7341, %v8718
        %v8720 = vpop.f32.mrf.mxu0
        %v8721 = vadd.f32 %v7341, %v8720
        %8722 = vmatmul.bf16.gmra.mxu0 %v7809
        %v8723 = vpop.f32.mrf.mxu0
        %v8724 = vadd.f32 %v7341, %v8723
        %v8725 = vpop.f32.mrf.mxu0
        %v8726 = vadd.f32 %v7341, %v8725
        %8727 = vmatmul.bf16.gmra.mxu0 %v7816
        %v8728 = vpop.f32.mrf.mxu0
        %v8729 = vadd.f32 %v7341, %v8728
        %v8730 = vpop.f32.mrf.mxu0
        %v8731 = vadd.f32 %v7341, %v8730
        %8732 = vmatmul.bf16.gmra.mxu0 %v7823
        %v8733 = vpop.f32.mrf.mxu0
        %v8734 = vadd.f32 %v7341, %v8733
        %v8735 = vpop.f32.mrf.mxu0
        %v8736 = vadd.f32 %v7341, %v8735
        %8737 = vmatmul.bf16.gmra.mxu0 %v7830
        %v8738 = vpop.f32.mrf.mxu0
        %v8739 = vadd.f32 %v7341, %v8738
        %v8740 = vpop.f32.mrf.mxu0
        %v8741 = vadd.f32 %v7341, %v8740
        %8742 = vdwg.mxu0
        %8743 = vmatpush.bf16.msra.mxu0 %v7267
        %8744 = vmatpush.bf16.msra.mxu0 %v7265
        %8745 = vmatpush.bf16.msra.mxu0 %v7263
        %8746 = vmatpush.bf16.msra.mxu0 %v7261
        %8747 = vmatpush.bf16.msra.mxu0 %v7259
        %8748 = vmatpush.bf16.msra.mxu0 %v7257
        %8749 = vmatpush.bf16.msra.mxu0 %v7255
        %8750 = vmatpush.bf16.msra.mxu0 %v7253
        %8751 = vmatmul.bf16.gmra.mxu0 %v7719
        %v8752 = vpop.f32.mrf.mxu0
        %v8753 = vadd.f32 %v8659, %v8752
        %v8754 = vpop.f32.mrf.mxu0
        %v8755 = vadd.f32 %v8661, %v8754
        %8756 = vmatmul.bf16.gmra.mxu0 %v7726
        %v8757 = vpop.f32.mrf.mxu0
        %v8758 = vadd.f32 %v8664, %v8757
        %v8759 = vpop.f32.mrf.mxu0
        %v8760 = vadd.f32 %v8666, %v8759
        %8761 = vmatmul.bf16.gmra.mxu0 %v7733
        %v8762 = vpop.f32.mrf.mxu0
        %v8763 = vadd.f32 %v8669, %v8762
        %v8764 = vpop.f32.mrf.mxu0
        %v8765 = vadd.f32 %v8671, %v8764
        %8766 = vmatmul.bf16.gmra.mxu0 %v7740
        %v8767 = vpop.f32.mrf.mxu0
        %v8768 = vadd.f32 %v8674, %v8767
        %v8769 = vpop.f32.mrf.mxu0
        %v8770 = vadd.f32 %v8676, %v8769
        %8771 = vmatmul.bf16.gmra.mxu0 %v7747
        %v8772 = vpop.f32.mrf.mxu0
        %v8773 = vadd.f32 %v8679, %v8772
        %v8774 = vpop.f32.mrf.mxu0
        %v8775 = vadd.f32 %v8681, %v8774
        %8776 = vmatmul.bf16.gmra.mxu0 %v7754
        %v8777 = vpop.f32.mrf.mxu0
        %v8778 = vadd.f32 %v8684, %v8777
        %v8779 = vpop.f32.mrf.mxu0
        %v8780 = vadd.f32 %v8686, %v8779
        %8781 = vmatmul.bf16.gmra.mxu0 %v7761
        %v8782 = vpop.f32.mrf.mxu0
        %v8783 = vadd.f32 %v8689, %v8782
        %v8784 = vpop.f32.mrf.mxu0
        %v8785 = vadd.f32 %v8691, %v8784
        %8786 = vmatmul.bf16.gmra.mxu0 %v7768
        %v8787 = vpop.f32.mrf.mxu0
        %v8788 = vadd.f32 %v8694, %v8787
        %v8789 = vpop.f32.mrf.mxu0
        %v8790 = vadd.f32 %v8696, %v8789
        %8791 = vmatmul.bf16.gmra.mxu0 %v7775
        %v8792 = vpop.f32.mrf.mxu0
        %v8793 = vadd.f32 %v8699, %v8792
        %v8794 = vpop.f32.mrf.mxu0
        %v8795 = vadd.f32 %v8701, %v8794
        %8796 = vmatmul.bf16.gmra.mxu0 %v7782
        %v8797 = vpop.f32.mrf.mxu0
        %v8798 = vadd.f32 %v8704, %v8797
        %v8799 = vpop.f32.mrf.mxu0
        %v8800 = vadd.f32 %v8706, %v8799
        %8801 = vmatmul.bf16.gmra.mxu0 %v7789
        %v8802 = vpop.f32.mrf.mxu0
        %v8803 = vadd.f32 %v8709, %v8802
        %v8804 = vpop.f32.mrf.mxu0
        %v8805 = vadd.f32 %v8711, %v8804
        %8806 = vmatmul.bf16.gmra.mxu0 %v7796
        %v8807 = vpop.f32.mrf.mxu0
        %v8808 = vadd.f32 %v8714, %v8807
        %v8809 = vpop.f32.mrf.mxu0
        %v8810 = vadd.f32 %v8716, %v8809
        %8811 = vmatmul.bf16.gmra.mxu0 %v7803
        %v8812 = vpop.f32.mrf.mxu0
        %v8813 = vadd.f32 %v8719, %v8812
        %v8814 = vpop.f32.mrf.mxu0
        %v8815 = vadd.f32 %v8721, %v8814
        %8816 = vmatmul.bf16.gmra.mxu0 %v7810
        %v8817 = vpop.f32.mrf.mxu0
        %v8818 = vadd.f32 %v8724, %v8817
        %v8819 = vpop.f32.mrf.mxu0
        %v8820 = vadd.f32 %v8726, %v8819
        %8821 = vmatmul.bf16.gmra.mxu0 %v7817
        %v8822 = vpop.f32.mrf.mxu0
        %v8823 = vadd.f32 %v8729, %v8822
        %v8824 = vpop.f32.mrf.mxu0
        %v8825 = vadd.f32 %v8731, %v8824
        %8826 = vmatmul.bf16.gmra.mxu0 %v7824
        %v8827 = vpop.f32.mrf.mxu0
        %v8828 = vadd.f32 %v8734, %v8827
        %v8829 = vpop.f32.mrf.mxu0
        %v8830 = vadd.f32 %v8736, %v8829
        %8831 = vmatmul.bf16.gmra.mxu0 %v7831
        %v8832 = vpop.f32.mrf.mxu0
        %v8833 = vadd.f32 %v8739, %v8832
        %v8834 = vpop.f32.mrf.mxu0
        %v8835 = vadd.f32 %v8741, %v8834
        %8836 = vdwg.mxu0
        %8837 = vmatpush.bf16.msra.mxu0 %v7283
        %8838 = vmatpush.bf16.msra.mxu0 %v7281
        %8839 = vmatpush.bf16.msra.mxu0 %v7279
        %8840 = vmatpush.bf16.msra.mxu0 %v7277
        %8841 = vmatpush.bf16.msra.mxu0 %v7275
        %8842 = vmatpush.bf16.msra.mxu0 %v7273
        %8843 = vmatpush.bf16.msra.mxu0 %v7271
        %8844 = vmatpush.bf16.msra.mxu0 %v7269
        %8845 = vmatmul.bf16.gmra.mxu0 %v7720
        %v8846 = vpop.f32.mrf.mxu0
        %v8847 = vadd.f32 %v8753, %v8846
        %v8848 = vpop.f32.mrf.mxu0
        %v8849 = vadd.f32 %v8755, %v8848
        %8850 = vmatmul.bf16.gmra.mxu0 %v7727
        %v8851 = vpop.f32.mrf.mxu0
        %v8852 = vadd.f32 %v8758, %v8851
        %v8853 = vpop.f32.mrf.mxu0
        %v8854 = vadd.f32 %v8760, %v8853
        %8855 = vmatmul.bf16.gmra.mxu0 %v7734
        %v8856 = vpop.f32.mrf.mxu0
        %v8857 = vadd.f32 %v8763, %v8856
        %v8858 = vpop.f32.mrf.mxu0
        %v8859 = vadd.f32 %v8765, %v8858
        %8860 = vmatmul.bf16.gmra.mxu0 %v7741
        %v8861 = vpop.f32.mrf.mxu0
        %v8862 = vadd.f32 %v8768, %v8861
        %v8863 = vpop.f32.mrf.mxu0
        %v8864 = vadd.f32 %v8770, %v8863
        %8865 = vmatmul.bf16.gmra.mxu0 %v7748
        %v8866 = vpop.f32.mrf.mxu0
        %v8867 = vadd.f32 %v8773, %v8866
        %v8868 = vpop.f32.mrf.mxu0
        %v8869 = vadd.f32 %v8775, %v8868
        %8870 = vmatmul.bf16.gmra.mxu0 %v7755
        %v8871 = vpop.f32.mrf.mxu0
        %v8872 = vadd.f32 %v8778, %v8871
        %v8873 = vpop.f32.mrf.mxu0
        %v8874 = vadd.f32 %v8780, %v8873
        %8875 = vmatmul.bf16.gmra.mxu0 %v7762
        %v8876 = vpop.f32.mrf.mxu0
        %v8877 = vadd.f32 %v8783, %v8876
        %v8878 = vpop.f32.mrf.mxu0
        %v8879 = vadd.f32 %v8785, %v8878
        %8880 = vmatmul.bf16.gmra.mxu0 %v7769
        %v8881 = vpop.f32.mrf.mxu0
        %v8882 = vadd.f32 %v8788, %v8881
        %v8883 = vpop.f32.mrf.mxu0
        %v8884 = vadd.f32 %v8790, %v8883
        %8885 = vmatmul.bf16.gmra.mxu0 %v7776
        %v8886 = vpop.f32.mrf.mxu0
        %v8887 = vadd.f32 %v8793, %v8886
        %v8888 = vpop.f32.mrf.mxu0
        %v8889 = vadd.f32 %v8795, %v8888
        %8890 = vmatmul.bf16.gmra.mxu0 %v7783
        %v8891 = vpop.f32.mrf.mxu0
        %v8892 = vadd.f32 %v8798, %v8891
        %v8893 = vpop.f32.mrf.mxu0
        %v8894 = vadd.f32 %v8800, %v8893
        %8895 = vmatmul.bf16.gmra.mxu0 %v7790
        %v8896 = vpop.f32.mrf.mxu0
        %v8897 = vadd.f32 %v8803, %v8896
        %v8898 = vpop.f32.mrf.mxu0
        %v8899 = vadd.f32 %v8805, %v8898
        %8900 = vmatmul.bf16.gmra.mxu0 %v7797
        %v8901 = vpop.f32.mrf.mxu0
        %v8902 = vadd.f32 %v8808, %v8901
        %v8903 = vpop.f32.mrf.mxu0
        %v8904 = vadd.f32 %v8810, %v8903
        %8905 = vmatmul.bf16.gmra.mxu0 %v7804
        %v8906 = vpop.f32.mrf.mxu0
        %v8907 = vadd.f32 %v8813, %v8906
        %v8908 = vpop.f32.mrf.mxu0
        %v8909 = vadd.f32 %v8815, %v8908
        %8910 = vmatmul.bf16.gmra.mxu0 %v7811
        %v8911 = vpop.f32.mrf.mxu0
        %v8912 = vadd.f32 %v8818, %v8911
        %v8913 = vpop.f32.mrf.mxu0
        %v8914 = vadd.f32 %v8820, %v8913
        %8915 = vmatmul.bf16.gmra.mxu0 %v7818
        %v8916 = vpop.f32.mrf.mxu0
        %v8917 = vadd.f32 %v8823, %v8916
        %v8918 = vpop.f32.mrf.mxu0
        %v8919 = vadd.f32 %v8825, %v8918
        %8920 = vmatmul.bf16.gmra.mxu0 %v7825
        %v8921 = vpop.f32.mrf.mxu0
        %v8922 = vadd.f32 %v8828, %v8921
        %v8923 = vpop.f32.mrf.mxu0
        %v8924 = vadd.f32 %v8830, %v8923
        %8925 = vmatmul.bf16.gmra.mxu0 %v7832
        %v8926 = vpop.f32.mrf.mxu0
        %v8927 = vadd.f32 %v8833, %v8926
        %v8928 = vpop.f32.mrf.mxu0
        %v8929 = vadd.f32 %v8835, %v8928
        %8930 = vdwg.mxu0
        %8931 = vmatpush.bf16.msra.mxu0 %v7299
        %8932 = vmatpush.bf16.msra.mxu0 %v7297
        %8933 = vmatpush.bf16.msra.mxu0 %v7295
        %8934 = vmatpush.bf16.msra.mxu0 %v7293
        %8935 = vmatpush.bf16.msra.mxu0 %v7291
        %8936 = vmatpush.bf16.msra.mxu0 %v7289
        %8937 = vmatpush.bf16.msra.mxu0 %v7287
        %8938 = vmatpush.bf16.msra.mxu0 %v7285
        %8939 = vmatmul.bf16.gmra.mxu0 %v7721
        %v8940 = vpop.f32.mrf.mxu0
        %v8941 = vadd.f32 %v8847, %v8940
        %v8942 = vpop.f32.mrf.mxu0
        %v8943 = vadd.f32 %v8849, %v8942
        %8944 = vmatmul.bf16.gmra.mxu0 %v7728
        %v8945 = vpop.f32.mrf.mxu0
        %v8946 = vadd.f32 %v8852, %v8945
        %v8947 = vpop.f32.mrf.mxu0
        %v8948 = vadd.f32 %v8854, %v8947
        %8949 = vmatmul.bf16.gmra.mxu0 %v7735
        %v8950 = vpop.f32.mrf.mxu0
        %v8951 = vadd.f32 %v8857, %v8950
        %v8952 = vpop.f32.mrf.mxu0
        %v8953 = vadd.f32 %v8859, %v8952
        %8954 = vmatmul.bf16.gmra.mxu0 %v7742
        %v8955 = vpop.f32.mrf.mxu0
        %v8956 = vadd.f32 %v8862, %v8955
        %v8957 = vpop.f32.mrf.mxu0
        %v8958 = vadd.f32 %v8864, %v8957
        %8959 = vmatmul.bf16.gmra.mxu0 %v7749
        %v8960 = vpop.f32.mrf.mxu0
        %v8961 = vadd.f32 %v8867, %v8960
        %v8962 = vpop.f32.mrf.mxu0
        %v8963 = vadd.f32 %v8869, %v8962
        %8964 = vmatmul.bf16.gmra.mxu0 %v7756
        %v8965 = vpop.f32.mrf.mxu0
        %v8966 = vadd.f32 %v8872, %v8965
        %v8967 = vpop.f32.mrf.mxu0
        %v8968 = vadd.f32 %v8874, %v8967
        %8969 = vmatmul.bf16.gmra.mxu0 %v7763
        %v8970 = vpop.f32.mrf.mxu0
        %v8971 = vadd.f32 %v8877, %v8970
        %v8972 = vpop.f32.mrf.mxu0
        %v8973 = vadd.f32 %v8879, %v8972
        %8974 = vmatmul.bf16.gmra.mxu0 %v7770
        %v8975 = vpop.f32.mrf.mxu0
        %v8976 = vadd.f32 %v8882, %v8975
        %v8977 = vpop.f32.mrf.mxu0
        %v8978 = vadd.f32 %v8884, %v8977
        %8979 = vmatmul.bf16.gmra.mxu0 %v7777
        %v8980 = vpop.f32.mrf.mxu0
        %v8981 = vadd.f32 %v8887, %v8980
        %v8982 = vpop.f32.mrf.mxu0
        %v8983 = vadd.f32 %v8889, %v8982
        %8984 = vmatmul.bf16.gmra.mxu0 %v7784
        %v8985 = vpop.f32.mrf.mxu0
        %v8986 = vadd.f32 %v8892, %v8985
        %v8987 = vpop.f32.mrf.mxu0
        %v8988 = vadd.f32 %v8894, %v8987
        %8989 = vmatmul.bf16.gmra.mxu0 %v7791
        %v8990 = vpop.f32.mrf.mxu0
        %v8991 = vadd.f32 %v8897, %v8990
        %v8992 = vpop.f32.mrf.mxu0
        %v8993 = vadd.f32 %v8899, %v8992
        %8994 = vmatmul.bf16.gmra.mxu0 %v7798
        %v8995 = vpop.f32.mrf.mxu0
        %v8996 = vadd.f32 %v8902, %v8995
        %v8997 = vpop.f32.mrf.mxu0
        %v8998 = vadd.f32 %v8904, %v8997
        %8999 = vmatmul.bf16.gmra.mxu0 %v7805
        %v9000 = vpop.f32.mrf.mxu0
        %v9001 = vadd.f32 %v8907, %v9000
        %v9002 = vpop.f32.mrf.mxu0
        %v9003 = vadd.f32 %v8909, %v9002
        %9004 = vmatmul.bf16.gmra.mxu0 %v7812
        %v9005 = vpop.f32.mrf.mxu0
        %v9006 = vadd.f32 %v8912, %v9005
        %v9007 = vpop.f32.mrf.mxu0
        %v9008 = vadd.f32 %v8914, %v9007
        %9009 = vmatmul.bf16.gmra.mxu0 %v7819
        %v9010 = vpop.f32.mrf.mxu0
        %v9011 = vadd.f32 %v8917, %v9010
        %v9012 = vpop.f32.mrf.mxu0
        %v9013 = vadd.f32 %v8919, %v9012
        %9014 = vmatmul.bf16.gmra.mxu0 %v7826
        %v9015 = vpop.f32.mrf.mxu0
        %v9016 = vadd.f32 %v8922, %v9015
        %v9017 = vpop.f32.mrf.mxu0
        %v9018 = vadd.f32 %v8924, %v9017
        %9019 = vmatmul.bf16.gmra.mxu0 %v7833
        %v9020 = vpop.f32.mrf.mxu0
        %v9021 = vadd.f32 %v8927, %v9020
        %v9022 = vpop.f32.mrf.mxu0
        %v9023 = vadd.f32 %v8929, %v9022
        %9024 = vdwg.mxu0
        %9025 = vmatpush.bf16.msra.mxu0 %v7315
        %9026 = vmatpush.bf16.msra.mxu0 %v7313
        %9027 = vmatpush.bf16.msra.mxu0 %v7311
        %9028 = vmatpush.bf16.msra.mxu0 %v7309
        %9029 = vmatpush.bf16.msra.mxu0 %v7307
        %9030 = vmatpush.bf16.msra.mxu0 %v7305
        %9031 = vmatpush.bf16.msra.mxu0 %v7303
        %9032 = vmatpush.bf16.msra.mxu0 %v7301
        %9033 = vmatmul.bf16.gmra.mxu0 %v7722
        %v9034 = vpop.f32.mrf.mxu0
        %v9035 = vadd.f32 %v8941, %v9034
        %v9036 = vpop.f32.mrf.mxu0
        %v9037 = vadd.f32 %v8943, %v9036
        %9038 = vmatmul.bf16.gmra.mxu0 %v7729
        %v9039 = vpop.f32.mrf.mxu0
        %v9040 = vadd.f32 %v8946, %v9039
        %v9041 = vpop.f32.mrf.mxu0
        %v9042 = vadd.f32 %v8948, %v9041
        %9043 = vmatmul.bf16.gmra.mxu0 %v7736
        %v9044 = vpop.f32.mrf.mxu0
        %v9045 = vadd.f32 %v8951, %v9044
        %v9046 = vpop.f32.mrf.mxu0
        %v9047 = vadd.f32 %v8953, %v9046
        %9048 = vmatmul.bf16.gmra.mxu0 %v7743
        %v9049 = vpop.f32.mrf.mxu0
        %v9050 = vadd.f32 %v8956, %v9049
        %v9051 = vpop.f32.mrf.mxu0
        %v9052 = vadd.f32 %v8958, %v9051
        %9053 = vmatmul.bf16.gmra.mxu0 %v7750
        %v9054 = vpop.f32.mrf.mxu0
        %v9055 = vadd.f32 %v8961, %v9054
        %v9056 = vpop.f32.mrf.mxu0
        %v9057 = vadd.f32 %v8963, %v9056
        %9058 = vmatmul.bf16.gmra.mxu0 %v7757
        %v9059 = vpop.f32.mrf.mxu0
        %v9060 = vadd.f32 %v8966, %v9059
        %v9061 = vpop.f32.mrf.mxu0
        %v9062 = vadd.f32 %v8968, %v9061
        %9063 = vmatmul.bf16.gmra.mxu0 %v7764
        %v9064 = vpop.f32.mrf.mxu0
        %v9065 = vadd.f32 %v8971, %v9064
        %v9066 = vpop.f32.mrf.mxu0
        %v9067 = vadd.f32 %v8973, %v9066
        %9068 = vmatmul.bf16.gmra.mxu0 %v7771
        %v9069 = vpop.f32.mrf.mxu0
        %v9070 = vadd.f32 %v8976, %v9069
        %v9071 = vpop.f32.mrf.mxu0
        %v9072 = vadd.f32 %v8978, %v9071
        %9073 = vmatmul.bf16.gmra.mxu0 %v7778
        %v9074 = vpop.f32.mrf.mxu0
        %v9075 = vadd.f32 %v8981, %v9074
        %v9076 = vpop.f32.mrf.mxu0
        %v9077 = vadd.f32 %v8983, %v9076
        %9078 = vmatmul.bf16.gmra.mxu0 %v7785
        %v9079 = vpop.f32.mrf.mxu0
        %v9080 = vadd.f32 %v8986, %v9079
        %v9081 = vpop.f32.mrf.mxu0
        %v9082 = vadd.f32 %v8988, %v9081
        %9083 = vmatmul.bf16.gmra.mxu0 %v7792
        %v9084 = vpop.f32.mrf.mxu0
        %v9085 = vadd.f32 %v8991, %v9084
        %v9086 = vpop.f32.mrf.mxu0
        %v9087 = vadd.f32 %v8993, %v9086
        %9088 = vmatmul.bf16.gmra.mxu0 %v7799
        %v9089 = vpop.f32.mrf.mxu0
        %v9090 = vadd.f32 %v8996, %v9089
        %v9091 = vpop.f32.mrf.mxu0
        %v9092 = vadd.f32 %v8998, %v9091
        %9093 = vmatmul.bf16.gmra.mxu0 %v7806
        %v9094 = vpop.f32.mrf.mxu0
        %v9095 = vadd.f32 %v9001, %v9094
        %v9096 = vpop.f32.mrf.mxu0
        %v9097 = vadd.f32 %v9003, %v9096
        %9098 = vmatmul.bf16.gmra.mxu0 %v7813
        %v9099 = vpop.f32.mrf.mxu0
        %v9100 = vadd.f32 %v9006, %v9099
        %v9101 = vpop.f32.mrf.mxu0
        %v9102 = vadd.f32 %v9008, %v9101
        %9103 = vmatmul.bf16.gmra.mxu0 %v7820
        %v9104 = vpop.f32.mrf.mxu0
        %v9105 = vadd.f32 %v9011, %v9104
        %v9106 = vpop.f32.mrf.mxu0
        %v9107 = vadd.f32 %v9013, %v9106
        %9108 = vmatmul.bf16.gmra.mxu0 %v7827
        %v9109 = vpop.f32.mrf.mxu0
        %v9110 = vadd.f32 %v9016, %v9109
        %v9111 = vpop.f32.mrf.mxu0
        %v9112 = vadd.f32 %v9018, %v9111
        %9113 = vmatmul.bf16.gmra.mxu0 %v7834
        %v9114 = vpop.f32.mrf.mxu0
        %v9115 = vadd.f32 %v9021, %v9114
        %v9116 = vpop.f32.mrf.mxu0
        %v9117 = vadd.f32 %v9023, %v9116
        %9118 = vdwg.mxu0
        %9119 = vmatpush.bf16.msra.mxu0 %v7331
        %9120 = vmatpush.bf16.msra.mxu0 %v7329
        %9121 = vmatpush.bf16.msra.mxu0 %v7327
        %9122 = vmatpush.bf16.msra.mxu0 %v7325
        %9123 = vmatpush.bf16.msra.mxu0 %v7323
        %9124 = vmatpush.bf16.msra.mxu0 %v7321
        %9125 = vmatpush.bf16.msra.mxu0 %v7319
        %9126 = vmatpush.bf16.msra.mxu0 %v7317
        %9127 = vmatmul.bf16.gmra.mxu0 %v7723
        %v9128 = vpop.f32.mrf.mxu0
        %v9129 = vadd.f32 %v9035, %v9128
        %v9130 = vpop.f32.mrf.mxu0
        %v9131 = vadd.f32 %v9037, %v9130
        %9132 = vmatmul.bf16.gmra.mxu0 %v7730
        %v9133 = vpop.f32.mrf.mxu0
        %v9134 = vadd.f32 %v9040, %v9133
        %v9135 = vpop.f32.mrf.mxu0
        %v9136 = vadd.f32 %v9042, %v9135
        %9137 = vmatmul.bf16.gmra.mxu0 %v7737
        %v9138 = vpop.f32.mrf.mxu0
        %v9139 = vadd.f32 %v9045, %v9138
        %v9140 = vpop.f32.mrf.mxu0
        %v9141 = vadd.f32 %v9047, %v9140
        %9142 = vmatmul.bf16.gmra.mxu0 %v7744
        %v9143 = vpop.f32.mrf.mxu0
        %v9144 = vadd.f32 %v9050, %v9143
        %v9145 = vpop.f32.mrf.mxu0
        %v9146 = vadd.f32 %v9052, %v9145
        %9147 = vmatmul.bf16.gmra.mxu0 %v7751
        %v9148 = vpop.f32.mrf.mxu0
        %v9149 = vadd.f32 %v9055, %v9148
        %v9150 = vpop.f32.mrf.mxu0
        %v9151 = vadd.f32 %v9057, %v9150
        %9152 = vmatmul.bf16.gmra.mxu0 %v7758
        %v9153 = vpop.f32.mrf.mxu0
        %v9154 = vadd.f32 %v9060, %v9153
        %v9155 = vpop.f32.mrf.mxu0
        %v9156 = vadd.f32 %v9062, %v9155
        %9157 = vmatmul.bf16.gmra.mxu0 %v7765
        %v9158 = vpop.f32.mrf.mxu0
        %v9159 = vadd.f32 %v9065, %v9158
        %v9160 = vpop.f32.mrf.mxu0
        %v9161 = vadd.f32 %v9067, %v9160
        %9162 = vmatmul.bf16.gmra.mxu0 %v7772
        %v9163 = vpop.f32.mrf.mxu0
        %v9164 = vadd.f32 %v9070, %v9163
        %v9165 = vpop.f32.mrf.mxu0
        %v9166 = vadd.f32 %v9072, %v9165
        %9167 = vmatmul.bf16.gmra.mxu0 %v7779
        %v9168 = vpop.f32.mrf.mxu0
        %v9169 = vadd.f32 %v9075, %v9168
        %v9170 = vpop.f32.mrf.mxu0
        %v9171 = vadd.f32 %v9077, %v9170
        %9172 = vmatmul.bf16.gmra.mxu0 %v7786
        %v9173 = vpop.f32.mrf.mxu0
        %v9174 = vadd.f32 %v9080, %v9173
        %v9175 = vpop.f32.mrf.mxu0
        %v9176 = vadd.f32 %v9082, %v9175
        %9177 = vmatmul.bf16.gmra.mxu0 %v7793
        %v9178 = vpop.f32.mrf.mxu0
        %v9179 = vadd.f32 %v9085, %v9178
        %v9180 = vpop.f32.mrf.mxu0
        %v9181 = vadd.f32 %v9087, %v9180
        %9182 = vmatmul.bf16.gmra.mxu0 %v7800
        %v9183 = vpop.f32.mrf.mxu0
        %v9184 = vadd.f32 %v9090, %v9183
        %v9185 = vpop.f32.mrf.mxu0
        %v9186 = vadd.f32 %v9092, %v9185
        %9187 = vmatmul.bf16.gmra.mxu0 %v7807
        %v9188 = vpop.f32.mrf.mxu0
        %v9189 = vadd.f32 %v9095, %v9188
        %v9190 = vpop.f32.mrf.mxu0
        %v9191 = vadd.f32 %v9097, %v9190
        %9192 = vmatmul.bf16.gmra.mxu0 %v7814
        %v9193 = vpop.f32.mrf.mxu0
        %v9194 = vadd.f32 %v9100, %v9193
        %v9195 = vpop.f32.mrf.mxu0
        %v9196 = vadd.f32 %v9102, %v9195
        %9197 = vmatmul.bf16.gmra.mxu0 %v7821
        %v9198 = vpop.f32.mrf.mxu0
        %v9199 = vadd.f32 %v9105, %v9198
        %v9200 = vpop.f32.mrf.mxu0
        %v9201 = vadd.f32 %v9107, %v9200
        %9202 = vmatmul.bf16.gmra.mxu0 %v7828
        %v9203 = vpop.f32.mrf.mxu0
        %v9204 = vadd.f32 %v9110, %v9203
        %v9205 = vpop.f32.mrf.mxu0
        %v9206 = vadd.f32 %v9112, %v9205
        %9207 = vmatmul.bf16.gmra.mxu0 %v7835
        %v9208 = vpop.f32.mrf.mxu0
        %v9209 = vadd.f32 %v9115, %v9208
        %v9210 = vpop.f32.mrf.mxu0
        %v9211 = vadd.f32 %v9117, %v9210
        %9212 = vdwg.mxu0
        %9213 = vmatpush.bf16.msra.mxu0 0
        %9214 = vmatpush.bf16.msra.mxu0 0
        %9215 = vmatpush.bf16.msra.mxu0 0
        %9216 = vmatpush.bf16.msra.mxu0 0
        %9217 = vmatpush.bf16.msra.mxu0 0
        %9218 = vmatpush.bf16.msra.mxu0 %v7337
        %9219 = vmatpush.bf16.msra.mxu0 %v7335
        %9220 = vmatpush.bf16.msra.mxu0 %v7333
        %9221 = vmatmul.bf16.gmra.mxu0 %v7941
        %v9222 = vpop.f32.mrf.mxu0
        %v9223 = vadd.f32 %v9129, %v9222
        %v9224 = vpop.f32.mrf.mxu0
        %v9225 = vadd.f32 %v9131, %v9224
        %9226 = vmatmul.bf16.gmra.mxu0 %v7944
        %v9227 = vpop.f32.mrf.mxu0
        %v9228 = vadd.f32 %v9134, %v9227
        %v9229 = vpop.f32.mrf.mxu0
        %v9230 = vadd.f32 %v9136, %v9229
        %9231 = vmatmul.bf16.gmra.mxu0 %v7947
        %v9232 = vpop.f32.mrf.mxu0
        %v9233 = vadd.f32 %v9139, %v9232
        %v9234 = vpop.f32.mrf.mxu0
        %v9235 = vadd.f32 %v9141, %v9234
        %9236 = vmatmul.bf16.gmra.mxu0 %v7950
        %v9237 = vpop.f32.mrf.mxu0
        %v9238 = vadd.f32 %v9144, %v9237
        %v9239 = vpop.f32.mrf.mxu0
        %v9240 = vadd.f32 %v9146, %v9239
        %9241 = vmatmul.bf16.gmra.mxu0 %v7953
        %v9242 = vpop.f32.mrf.mxu0
        %v9243 = vadd.f32 %v9149, %v9242
        %v9244 = vpop.f32.mrf.mxu0
        %v9245 = vadd.f32 %v9151, %v9244
        %9246 = vmatmul.bf16.gmra.mxu0 %v7956
        %v9247 = vpop.f32.mrf.mxu0
        %v9248 = vadd.f32 %v9154, %v9247
        %v9249 = vpop.f32.mrf.mxu0
        %v9250 = vadd.f32 %v9156, %v9249
        %9251 = vmatmul.bf16.gmra.mxu0 %v7959
        %v9252 = vpop.f32.mrf.mxu0
        %v9253 = vadd.f32 %v9159, %v9252
        %v9254 = vpop.f32.mrf.mxu0
        %v9255 = vadd.f32 %v9161, %v9254
        %9256 = vmatmul.bf16.gmra.mxu0 %v7962
        %v9257 = vpop.f32.mrf.mxu0
        %v9258 = vadd.f32 %v9164, %v9257
        %v9259 = vpop.f32.mrf.mxu0
        %v9260 = vadd.f32 %v9166, %v9259
        %9261 = vmatmul.bf16.gmra.mxu0 %v7965
        %v9262 = vpop.f32.mrf.mxu0
        %v9263 = vadd.f32 %v9169, %v9262
        %v9264 = vpop.f32.mrf.mxu0
        %v9265 = vadd.f32 %v9171, %v9264
        %9266 = vmatmul.bf16.gmra.mxu0 %v7968
        %v9267 = vpop.f32.mrf.mxu0
        %v9268 = vadd.f32 %v9174, %v9267
        %v9269 = vpop.f32.mrf.mxu0
        %v9270 = vadd.f32 %v9176, %v9269
        %9271 = vmatmul.bf16.gmra.mxu0 %v7971
        %v9272 = vpop.f32.mrf.mxu0
        %v9273 = vadd.f32 %v9179, %v9272
        %v9274 = vpop.f32.mrf.mxu0
        %v9275 = vadd.f32 %v9181, %v9274
        %9276 = vmatmul.bf16.gmra.mxu0 %v7974
        %v9277 = vpop.f32.mrf.mxu0
        %v9278 = vadd.f32 %v9184, %v9277
        %v9279 = vpop.f32.mrf.mxu0
        %v9280 = vadd.f32 %v9186, %v9279
        %9281 = vmatmul.bf16.gmra.mxu0 %v7977
        %v9282 = vpop.f32.mrf.mxu0
        %v9283 = vadd.f32 %v9189, %v9282
        %v9284 = vpop.f32.mrf.mxu0
        %v9285 = vadd.f32 %v9191, %v9284
        %9286 = vmatmul.bf16.gmra.mxu0 %v7980
        %v9287 = vpop.f32.mrf.mxu0
        %v9288 = vadd.f32 %v9194, %v9287
        %v9289 = vpop.f32.mrf.mxu0
        %v9290 = vadd.f32 %v9196, %v9289
        %9291 = vmatmul.bf16.gmra.mxu0 %v7983
        %v9292 = vpop.f32.mrf.mxu0
        %v9293 = vadd.f32 %v9199, %v9292
        %v9294 = vpop.f32.mrf.mxu0
        %v9295 = vadd.f32 %v9201, %v9294
        %9296 = vmatmul.bf16.gmra.mxu0 %v7986
        %v9297 = vpop.f32.mrf.mxu0
        %v9298 = vadd.f32 %v9204, %v9297
        %v9299 = vpop.f32.mrf.mxu0
        %v9300 = vadd.f32 %v9206, %v9299
        %9301 = vmatmul.bf16.gmra.mxu0 %v7989
        %v9302 = vpop.f32.mrf.mxu0
        %v9303 = vadd.f32 %v9209, %v9302
        %v9304 = vpop.f32.mrf.mxu0
        %v9305 = vadd.f32 %v9211, %v9304
        %9306 = vdwg.mxu0
        %9307 = vst [vmem:[%s560] sm:$0xff] %v8565
        %9308 = vst [vmem:[%s560 + $0x8] sm:$0xff] %v9223
        %9309 = vst [vmem:[%s560 + $0x10] sm:$0xff] %v8567
        %9310 = vst [vmem:[%s560 + $0x18] sm:$0xff] %v9225
        %9311 = vst [vmem:[%s560 + $0x20] sm:$0xff] %v8570
        %9312 = vst [vmem:[%s560 + $0x28] sm:$0xff] %v9228
        %9313 = vst [vmem:[%s560 + $0x30] sm:$0xff] %v8572
        %9314 = vst [vmem:[%s560 + $0x38] sm:$0xff] %v9230
        %9315 = vst [vmem:[%s560 + $0x40] sm:$0xff] %v8575
        %9316 = vst [vmem:[%s560 + $0x48] sm:$0xff] %v9233
        %9317 = vst [vmem:[%s560 + $0x50] sm:$0xff] %v8577
        %9318 = vst [vmem:[%s560 + $0x58] sm:$0xff] %v9235
        %9319 = vst [vmem:[%s560 + $0x60] sm:$0xff] %v8580
        %9320 = vst [vmem:[%s560 + $0x68] sm:$0xff] %v9238
        %9321 = vst [vmem:[%s560 + $0x70] sm:$0xff] %v8582
        %9322 = vst [vmem:[%s560 + $0x78] sm:$0xff] %v9240
        %9323 = vst [vmem:[%s560 + $0x80] sm:$0xff] %v8585
        %9324 = vst [vmem:[%s560 + $0x88] sm:$0xff] %v9243
        %9325 = vst [vmem:[%s560 + $0x90] sm:$0xff] %v8587
        %9326 = vst [vmem:[%s560 + $0x98] sm:$0xff] %v9245
        %9327 = vst [vmem:[%s560 + $0xa0] sm:$0xff] %v8590
        %9328 = vst [vmem:[%s560 + $0xa8] sm:$0xff] %v9248
        %9329 = vst [vmem:[%s560 + $0xb0] sm:$0xff] %v8592
        %9330 = vst [vmem:[%s560 + $0xb8] sm:$0xff] %v9250
        %9331 = vst [vmem:[%s560 + $0xc0] sm:$0xff] %v8595
        %9332 = vst [vmem:[%s560 + $0xc8] sm:$0xff] %v9253
        %9333 = vst [vmem:[%s560 + $0xd0] sm:$0xff] %v8597
        %9334 = vst [vmem:[%s560 + $0xd8] sm:$0xff] %v9255
        %9335 = vst [vmem:[%s560 + $0xe0] sm:$0xff] %v8600
        %9336 = vst [vmem:[%s560 + $0xe8] sm:$0xff] %v9258
        %9337 = vst [vmem:[%s560 + $0xf0] sm:$0xff] %v8602
        %9338 = vst [vmem:[%s560 + $0xf8] sm:$0xff] %v9260
        %9339 = vst [vmem:[%s560 + $0x100] sm:$0xff] %v8605
        %9340 = vst [vmem:[%s560 + $0x108] sm:$0xff] %v9263
        %9341 = vst [vmem:[%s560 + $0x110] sm:$0xff] %v8607
        %9342 = vst [vmem:[%s560 + $0x118] sm:$0xff] %v9265
        %9343 = vst [vmem:[%s560 + $0x120] sm:$0xff] %v8610
        %9344 = vst [vmem:[%s560 + $0x128] sm:$0xff] %v9268
        %9345 = vst [vmem:[%s560 + $0x130] sm:$0xff] %v8612
        %9346 = vst [vmem:[%s560 + $0x138] sm:$0xff] %v9270
        %9347 = vst [vmem:[%s560 + $0x140] sm:$0xff] %v8615
        %9348 = vst [vmem:[%s560 + $0x148] sm:$0xff] %v9273
        %9349 = vst [vmem:[%s560 + $0x150] sm:$0xff] %v8617
        %9350 = vst [vmem:[%s560 + $0x158] sm:$0xff] %v9275
        %9351 = vst [vmem:[%s560 + $0x160] sm:$0xff] %v8620
        %9352 = vst [vmem:[%s560 + $0x168] sm:$0xff] %v9278
        %9353 = vst [vmem:[%s560 + $0x170] sm:$0xff] %v8622
        %9354 = vst [vmem:[%s560 + $0x178] sm:$0xff] %v9280
        %9355 = vst [vmem:[%s560 + $0x180] sm:$0xff] %v8625
        %9356 = vst [vmem:[%s560 + $0x188] sm:$0xff] %v9283
        %9357 = vst [vmem:[%s560 + $0x190] sm:$0xff] %v8627
        %9358 = vst [vmem:[%s560 + $0x198] sm:$0xff] %v9285
        %9359 = vst [vmem:[%s560 + $0x1a0] sm:$0xff] %v8630
        %9360 = vst [vmem:[%s560 + $0x1a8] sm:$0xff] %v9288
        %9361 = vst [vmem:[%s560 + $0x1b0] sm:$0xff] %v8632
        %9362 = vst [vmem:[%s560 + $0x1b8] sm:$0xff] %v9290
        %9363 = vst [vmem:[%s560 + $0x1c0] sm:$0xff] %v8635
        %9364 = vst [vmem:[%s560 + $0x1c8] sm:$0xff] %v9293
        %9365 = vst [vmem:[%s560 + $0x1d0] sm:$0xff] %v8637
        %9366 = vst [vmem:[%s560 + $0x1d8] sm:$0xff] %v9295
        %9367 = vst [vmem:[%s560 + $0x1e0] sm:$0xff] %v8640
        %9368 = vst [vmem:[%s560 + $0x1e8] sm:$0xff] %v9298
        %9369 = vst [vmem:[%s560 + $0x1f0] sm:$0xff] %v8642
        %9370 = vst [vmem:[%s560 + $0x1f8] sm:$0xff] %v9300
        %9371 = vst [vmem:[%s560 + $0x200] sm:$0xff] %v8645
        %9372 = vst [vmem:[%s560 + $0x208] sm:$0xff] %v9303
        %9373 = vst [vmem:[%s560 + $0x210] sm:$0xff] %v8647
        %9374 = vst [vmem:[%s560 + $0x218] sm:$0xff] %v9305
        %p9375 = scmp.lt.s32.totalorder %s30, 1
        %s9376 = scalar_select %p9375, %s30, 1
        %s9377 = smul.addr %s9376, 68
        %s9378 = smul.addr %s9377, 8
        %s9379 = scalar_lea.vmem %s12, %s9378
        // Predicated region
        $region105: #{_decoder_forward_impl.1} parent=67 // pred_check
          %p9380 = pneg %p305
        $region106: #{_decoder_forward_impl.1} parent=67 // pred_check_branch
          %9382 = sbr.rel (%p9380) target = $region108
        $region107: #{_decoder_forward_impl.1} parent=67 // pred_region
          _
        $region108: #{_decoder_forward_impl.1} parent=67 // pred_fallthru
          _
      $region68: #{_decoder_forward_impl.1} parent=5 // pred_fallthru
        _
      %p9383 = scmp.le.s32.totalorder 2, %s25
      // Predicated region
      $region109: #{_decoder_forward_impl.1} parent=5 // pred_check
        %p9384 = pneg %p9383
      $region110: #{_decoder_forward_impl.1} parent=5 // pred_check_branch
        %9386 = sbr.rel (%p9384) target = $region112
      $region111: #{_decoder_forward_impl.1} parent=5 // pred_region
        %s9387 = ssub.s32 %s25, 2
        // Predicated region
        $region113: #{_decoder_forward_impl.1} parent=111 // pred_check
          %p9388 = pneg %p311
        $region114: #{_decoder_forward_impl.1} parent=111 // pred_check_branch
          %9390 = sbr.rel (%p9388) target = $region116
        $region115: #{_decoder_forward_impl.1} parent=111 // pred_region
          %p9391 = scmp.lt.s32.totalorder %s31, 1
          %s9392 = scalar_select %p9391, %s31, 1
          %s9393 = smul.addr %s9392, 68
          %s9394 = smul.addr %s9393, 8
          %s9395 = scalar_lea.vmem %s12, %s9394
        $region116: #{_decoder_forward_impl.1} parent=111 // pred_fallthru
          _
      $region112: #{_decoder_forward_impl.1} parent=5 // pred_fallthru
        _
    $region6: #{_decoder_forward_impl.1} parent=1 // loop_footer
      %s29 = sadd.s32 1, %s25
    $region7: #{_decoder_forward_impl.1} parent=1 // loop_footer_branch
      %24 = sbr.rel target = $region3
    $region8: #{_decoder_forward_impl.1} parent=1 // loop_exit
      _
    %9396 = vsyncpa [#allocation3], 1
    %s9397 = scalar_lea.sflag [#allocation3], 1
    %9398 = vsyncpa %s9397, 1
    %9399 = vsyncpa [#allocation5], 1
    %9400 = vsyncpa [#allocation8], 1
    %9401 = vsyncpa [#allocation11], 1
    %9402 = vsyncpa [#allocation14], 1

</llo_original>
